<compile_context>
chip_gen: v7x
topology: tpu7x:2x2x1
jax: 0.10.0
libtpu: 0.0.40
codegen_flags: <defaults>
</compile_context>

<pallas_src>
import math
import functools

import jax
import jax.numpy as jnp
from jax import lax
from jax.experimental import pallas as pl
from jax.experimental.pallas import tpu as pltpu


# ----------------------------------------------------------------------------
# small helpers
# ----------------------------------------------------------------------------
def _round_up(x, m):
    return -(-x // m) * m


def _erf_f32(x):
    # float32 rational approximation of erf (same form as XLA's ErfImpl32).
    alpha = (0.00022905065861350646, 0.0034082910107109506,
             0.050955695062380861, 0.18520832239976145, 1.128379143519084)
    beta = (-1.1791602954361697e-7, 0.000023547966471313185,
            0.0010179625278914885, 0.014070470171167667,
            0.11098505178285362, 0.49746925110067538, 1.0)
    x = jnp.maximum(jnp.minimum(x, 4.0), -4.0)
    x2 = x * x
    p = alpha[0]
    for c in alpha[1:]:
        p = p * x2 + c
    q = beta[0]
    for c in beta[1:]:
        q = q * x2 + c
    return x * p / q


def _silu(x):
    return x / (1.0 + jnp.exp(-x))


def _softplus(x):
    # matches torch.nn.functional.softplus (threshold = 20)
    return jnp.where(x > 20.0, x, jnp.log(1.0 + jnp.exp(jnp.minimum(x, 20.0))))


# ----------------------------------------------------------------------------
# Pallas kernels
# ----------------------------------------------------------------------------
def _layer_kernel(x_ref, win_ref, convw_ref, wxf_ref, dtb_ref, at_ref,
                  dskip_ref, wout_ref, lng_ref, lnb_ref,
                  w1_ref, b1_ref, w2_ref, b2_ref,
                  o_ref,
                  dA_ref, du_ref, b_sc, c_sc, y_sc,
                  *, add_residual):
    """One MambaLayer (Mamba block + LN(+res) + FFN) for a (L, bt, D) block.

    Activations are time-major: row index = t * bt + b.
    """
    L, bt, D = x_ref.shape
    K, d_inner = convw_ref.shape
    n_state = at_ref.shape[0]
    M = L * bt
    pz = win_ref.shape[1] - d_inner          # lane-aligned start of the z segment
    p0 = _round_up(d_inner, 128)             # start of B segment in fused x_proj
    p1 = _round_up(n_state, 128)             # padded width of the B segment

    x_in = x_ref[...].astype(jnp.float32).reshape(M, D)

    # ---- in_proj over all L*bt rows (bf16 MXU matmul, f32 accumulation) -----
    xz = jnp.dot(x_in.astype(jnp.bfloat16), win_ref[...],
                 preferred_element_type=jnp.float32)          # (M, pz + d_inner)
    xc = xz[:, :d_inner]                                      # x branch
    z = xz[:, pz:pz + d_inner]                                # gate branch

    # ---- causal depthwise conv along time (leading-axis, tile-aligned) ------
    cw = convw_ref[...].astype(jnp.float32)                   # (K, d_inner)
    xc3 = xc.reshape(L, bt, d_inner)
    xpad = jnp.concatenate(
        [jnp.zeros((K - 1, bt, d_inner), jnp.float32), xc3], axis=0)
    acc = cw[K - 1:K, :].reshape(1, 1, d_inner) * xc3         # shift 0 tap
    for s in range(1, K):
        tap = cw[K - 1 - s:K - s, :].reshape(1, 1, d_inner)
        acc = acc + tap * xpad[K - 1 - s:K - 1 - s + L]       # shift s timesteps
    u = _silu(acc).reshape(M, d_inner)

    # ---- fused x_proj (+ folded dt_proj): [delta | pad | B | pad | C] -------
    x_dbl = jnp.dot(u.astype(jnp.bfloat16), wxf_ref[...],
                    preferred_element_type=jnp.float32)       # (M, p0+p1+N)
    delta = _softplus(x_dbl[:, :d_inner] + dtb_ref[...])      # (M, d_inner)
    b_mat = x_dbl[:, p0:p0 + n_state]                         # (M, N)
    c_mat = x_dbl[:, p0 + p1:p0 + p1 + n_state]               # (M, N)

    # ---- hoist time-parallel terms; stash time-major operands for the scan --
    a_t = at_ref[...]                                         # (N, d_inner) == A^T
    dA_ref[...] = jnp.exp(delta[:, None, :] * a_t[None, :, :]
                          ).reshape(L, bt, n_state, d_inner)
    du_ref[...] = (delta * u).reshape(L, bt, d_inner)
    b_sc[...] = b_mat.reshape(L, bt, n_state)
    c_sc[...] = c_mat.reshape(L, bt, n_state)

    # ---- serial scan: carry in vregs, dBu recomputed, C contraction fused ---
    def step(t, state):
        dbu = du_ref[t][:, None, :] * b_sc[t][:, :, None]     # (bt, N, d_inner)
        state = dA_ref[t] * state + dbu
        y_sc[t] = jnp.sum(state * c_sc[t][:, :, None], axis=1)  # (bt, d_inner)
        return state

    unroll = True if L <= 32 else 4
    _ = lax.fori_loop(0, L, step,
                      jnp.zeros((bt, n_state, d_inner), jnp.float32),
                      unroll=unroll)

    y = y_sc[...].reshape(M, d_inner)
    y = y + u * dskip_ref[...]                                # D skip connection
    y = y * _silu(z)                                          # SiLU(z) gate

    hidden = jnp.dot(y.astype(jnp.bfloat16), wout_ref[...],
                     preferred_element_type=jnp.float32)      # (M, D)

    # ---- post-Mamba LayerNorm (+ optional residual) --------------------------
    h = hidden + x_in if add_residual else hidden
    mean = jnp.mean(h, axis=-1, keepdims=True)
    hc = h - mean
    var = jnp.mean(hc * hc, axis=-1, keepdims=True)
    h2 = hc * lax.rsqrt(var + 1e-12) * lng_ref[...] + lnb_ref[...]

    # ---- FeedForward: fc2(gelu(fc1(h2))) + h2 --------------------------------
    f = jnp.dot(h2.astype(jnp.bfloat16), w1_ref[...],
                preferred_element_type=jnp.float32) + b1_ref[...]
    f = f * 0.5 * (1.0 + _erf_f32(f * (1.0 / math.sqrt(2.0))))
    out = jnp.dot(f.astype(jnp.bfloat16), w2_ref[...],
                  preferred_element_type=jnp.float32) + b2_ref[...] + h2

    o_ref[...] = out.reshape(L, bt, D).astype(o_ref.dtype)


def _ln_kernel(x_ref, g_ref, b_ref, o_ref):
    x = x_ref[...].astype(jnp.float32)                        # (TM, D)
    mean = jnp.mean(x, axis=-1, keepdims=True)
    xc = x - mean
    var = jnp.mean(xc * xc, axis=-1, keepdims=True)
    inv = lax.rsqrt(var + 1e-12)                              # eps = 1e-12
    o_ref[...] = (xc * inv * g_ref[...] + b_ref[...]).astype(o_ref.dtype)


# ----------------------------------------------------------------------------
# tiling helpers
# ----------------------------------------------------------------------------
def _pick_batch_tile(b_pad, L, n_state, d_inner):
    """Sequences per grid step (multiple of 8 dividing b_pad).

    Caps: the scan carry bt*N*d_inner stays within ~32 vregs, and the dA
    scratch bt*L*N*d_inner*4B stays <= ~6 MiB (fits every generation's scoped
    VMEM).  Prefers >= 2 grid steps when there is enough batch.
    """
    cap_carry = (32 * 1024) // max(n_state * d_inner, 1)
    cap_vmem = (6 * 1024 * 1024) // max(4 * L * n_state * d_inner, 1)
    cap = max(8, (min(cap_carry, cap_vmem) // 8) * 8)
    cands = [c for c in range(8, b_pad + 1, 8) if b_pad % c == 0 and c <= cap]
    if not cands:
        return 8
    bt = max(cands)
    if bt == b_pad and b_pad >= 16:
        smaller = [c for c in cands if c <= b_pad // 2]
        if smaller:
            bt = max(smaller)
    return bt


def _ln_row_tile(m_rows):
    if m_rows <= 1024:
        return m_rows
    for cand in (1024, 512, 256, 128, 64, 32, 16, 8):
        if m_rows % cand == 0:
            return cand
    return m_rows


# ----------------------------------------------------------------------------
# wrappers (glue)
# ----------------------------------------------------------------------------
def layernorm(x, gamma, beta):
    """Row-wise LayerNorm; output bf16.  x: (..., D)."""
    shape = x.shape
    D = shape[-1]
    x2 = x.reshape(-1, D)
    M = x2.shape[0]
    TM = _ln_row_tile(M)
    out = pl.pallas_call(
        _ln_kernel,
        out_shape=jax.ShapeDtypeStruct((M, D), jnp.bfloat16),
        grid=(M // TM,),
        in_specs=[pl.BlockSpec((TM, D), lambda i: (i, 0)),
                  pl.BlockSpec((1, D), lambda i: (0, 0)),
                  pl.BlockSpec((1, D), lambda i: (0, 0))],
        out_specs=pl.BlockSpec((TM, D), lambda i: (i, 0)),
        compiler_params=pltpu.CompilerParams(dimension_semantics=("parallel",)),
    )(x2, gamma, beta)
    return out.reshape(shape)


def mamba_layer(h, p, add_residual):
    """One fused MambaLayer.  h: (L, B_pad, D) bf16 (time-major)."""
    L, b_pad, D = h.shape
    n_state, d_inner = p['A_t'].shape
    bt = _pick_batch_tile(b_pad, L, n_state, d_inner)

    weights = (p['w_in'], p['conv_w'], p['w_xf'], p['dt_bias'], p['A_t'],
               p['D'], p['w_out'], p['ln_g'], p['ln_b'],
               p['w1'], p['b1'], p['w2'], p['b2'])

    def full(arr):
        nd = arr.ndim
        return pl.BlockSpec(arr.shape, lambda i, _nd=nd: (0,) * _nd)

    scratch = [
        pltpu.VMEM((L, bt, n_state, d_inner), jnp.float32),   # dA = exp(delta*A)
        pltpu.VMEM((L, bt, d_inner), jnp.float32),            # delta * u
        pltpu.VMEM((L, bt, n_state), jnp.float32),            # B
        pltpu.VMEM((L, bt, n_state), jnp.float32),            # C
        pltpu.VMEM((L, bt, d_inner), jnp.float32),            # y
    ]

    # explicit scoped-VMEM budget (v5e default is only 16 MiB)
    scratch_bytes = 4 * L * bt * (n_state * d_inner + 2 * d_inner + 2 * n_state)
    weight_bytes = sum(int(w.size) * w.dtype.itemsize for w in weights)
    block_bytes = 2 * 2 * (L * bt * D * 2)                    # bf16 in/out, dbl-buffered
    need = scratch_bytes + 2 * weight_bytes + block_bytes
    vmem_limit = int(min(max(2 * need, 32 * 1024 * 1024), 56 * 1024 * 1024))

    kern = functools.partial(_layer_kernel, add_residual=add_residual)
    out = pl.pallas_call(
        kern,
        out_shape=jax.ShapeDtypeStruct((L, b_pad, D), jnp.bfloat16),
        grid=(b_pad // bt,),
        in_specs=[pl.BlockSpec((L, bt, D), lambda i: (0, i, 0))]
                 + [full(w) for w in weights],
        out_specs=pl.BlockSpec((L, bt, D), lambda i: (0, i, 0)),
        scratch_shapes=scratch,
        compiler_params=pltpu.CompilerParams(
            dimension_semantics=("parallel",),
            vmem_limit_bytes=vmem_limit),
    )(h, *weights)
    return out


# ----------------------------------------------------------------------------
# parameters (deterministic synthetic init, mirroring Mamba4Rec.__init__ shapes;
# stored in the kernel-consumed layout: pre-transposed matmul weights in bf16,
# dt_proj folded into x_proj, segments padded to 128-lane boundaries)
# ----------------------------------------------------------------------------
def init_params(key, items_num, hidden_size, d_state, d_conv, expand, num_layers):
    d_model = hidden_size
    d_inner = int(expand * d_model)
    dt_rank = math.ceil(d_model / 16)
    inner_size = d_conv * 4
    pz = _round_up(d_inner, 128)     # start of z segment in fused in_proj
    p0 = _round_up(d_inner, 128)     # start of B segment in fused x_proj
    p1 = _round_up(d_state, 128)     # padded width of B segment

    def normal(k, shape):
        return 0.02 * jax.random.normal(k, shape, jnp.float32)

    keys = jax.random.split(key, 1 + num_layers)
    emb = normal(keys[0], (items_num + 1, d_model)).at[0].set(0.0)  # padding_idx=0

    params = {'emb': emb,
              'ln_g': jnp.ones((1, d_model), jnp.float32),
              'ln_b': jnp.zeros((1, d_model), jnp.float32),
              'layers': []}

    # A = -exp(A_log), A_log = log(arange(1..d_state)); stored transposed (N, d_inner)
    a_t = -jnp.tile(jnp.arange(1, d_state + 1, dtype=jnp.float32)[:, None],
                    (1, d_inner))

    for i in range(num_layers):
        lk = jax.random.split(keys[1 + i], 8)

        # in_proj (no bias): lane-aligned segments [W_x | 0 | W_z]
        w_in_x = normal(lk[0], (d_model, d_inner))
        w_in_z = normal(lk[1], (d_model, d_inner))
        w_in = jnp.zeros((d_model, pz + d_inner), jnp.float32)
        w_in = w_in.at[:, :d_inner].set(w_in_x).at[:, pz:pz + d_inner].set(w_in_z)

        # x_proj with dt_proj folded in: [W_x_dt @ W_dt | 0 | W_B | 0 | W_C]
        w_x = normal(lk[2], (d_inner, dt_rank + 2 * d_state))
        dt_std = dt_rank ** -0.5
        w_dt = jax.random.uniform(lk[3], (dt_rank, d_inner), jnp.float32,
                                  -dt_std, dt_std)
        w_delta = w_x[:, :dt_rank] @ w_dt                       # (d_inner, d_inner)
        w_xf = jnp.zeros((d_inner, p0 + p1 + d_state), jnp.float32)
        w_xf = (w_xf.at[:, :d_inner].set(w_delta)
                     .at[:, p0:p0 + d_state].set(w_x[:, dt_rank:dt_rank + d_state])
                     .at[:, p0 + p1:p0 + p1 + d_state]
                     .set(w_x[:, dt_rank + d_state:]))

        layer = {
            'w_in': w_in.astype(jnp.bfloat16),
            'conv_w': normal(lk[4], (d_conv, d_inner)),          # taps major, no bias
            'w_xf': w_xf.astype(jnp.bfloat16),
            'dt_bias': jnp.zeros((1, d_inner), jnp.float32),     # zeroed by _init_weights
            'A_t': a_t,
            'D': jnp.ones((1, d_inner), jnp.float32),
            'w_out': normal(lk[5], (d_inner, d_model)).astype(jnp.bfloat16),
            'ln_g': jnp.ones((1, d_model), jnp.float32),
            'ln_b': jnp.zeros((1, d_model), jnp.float32),
            'w1': normal(lk[6], (d_model, inner_size)).astype(jnp.bfloat16),
            'b1': jnp.zeros((1, inner_size), jnp.float32),
            'w2': normal(lk[7], (inner_size, d_model)).astype(jnp.bfloat16),
            'b2': jnp.zeros((1, d_model), jnp.float32),
        }
        params['layers'].append(layer)
    return params


# ----------------------------------------------------------------------------
# full forward pass
# ----------------------------------------------------------------------------
def mamba4rec_forward(params, item_seq, item_seq_len, num_layers):
    B, L = item_seq.shape
    l_pad = _round_up(L, 8)
    b_pad = _round_up(B, 8)

    # time-major, padded ids (pad id 0 == padding_idx -> zero embedding)
    seq_t = jnp.zeros((l_pad, b_pad), item_seq.dtype).at[:L, :B].set(item_seq.T)

    # embedding lookup (glue) + dropout(identity) + LayerNorm (Pallas, bf16 out)
    item_emb = jnp.take(params['emb'], seq_t, axis=0)            # (l_pad, b_pad, D)
    h = layernorm(item_emb, params['ln_g'], params['ln_b'])

    add_residual = (num_layers != 1)
    for layer in params['layers']:
        h = mamba_layer(h, layer, add_residual)                  # fused MambaLayer

    # gather_indexes (glue): h is time-major (l_pad, b_pad, D)
    seq_output = h[item_seq_len - 1, jnp.arange(B), :]           # (B, D)
    return seq_output.astype(jnp.float32)


# ----------------------------------------------------------------------------
if __name__ == "__main__":
    items_num = 50
    hidden_size = 32
    d_state = 16
    d_conv = 4
    expand = 2
    num_layers = 2
    B, L = 2, 8

    key = jax.random.PRNGKey(0)
    pkey, skey = jax.random.split(key)
    params = init_params(pkey, items_num, hidden_size, d_state, d_conv,
                         expand, num_layers)
    item_seq = jax.random.randint(skey, (B, L), 1, items_num + 1, dtype=jnp.int32)
    item_seq_len = jnp.array([L, L - 3], dtype=jnp.int32)

    fwd = jax.jit(functools.partial(mamba4rec_forward, num_layers=num_layers))
    out = fwd(params, item_seq, item_seq_len)
    jax.block_until_ready(out)
    assert out.shape == (B, hidden_size)
    assert bool(jnp.all(jnp.isfinite(out)))
    print("KERNEL_OK")
</pallas_src>

<mosaic_0001>
module attributes {stable_mosaic.version = 11 : i64} {
  func.func @_layer_kernel(%arg0: i32, %arg1: memref<8x8x32xbf16, #tpu.memory_space<vmem>>, %arg2: memref<32x192xbf16, #tpu.memory_space<vmem>>, %arg3: memref<4x64xf32, #tpu.memory_space<vmem>>, %arg4: memref<64x272xbf16, #tpu.memory_space<vmem>>, %arg5: memref<1x64xf32, #tpu.memory_space<vmem>>, %arg6: memref<16x64xf32, #tpu.memory_space<vmem>>, %arg7: memref<1x64xf32, #tpu.memory_space<vmem>>, %arg8: memref<64x32xbf16, #tpu.memory_space<vmem>>, %arg9: memref<1x32xf32, #tpu.memory_space<vmem>>, %arg10: memref<1x32xf32, #tpu.memory_space<vmem>>, %arg11: memref<32x16xbf16, #tpu.memory_space<vmem>>, %arg12: memref<1x16xf32, #tpu.memory_space<vmem>>, %arg13: memref<16x32xbf16, #tpu.memory_space<vmem>>, %arg14: memref<1x32xf32, #tpu.memory_space<vmem>>, %arg15: memref<8x8x32xbf16, #tpu.memory_space<vmem>>, %arg16: memref<8x8x16x64xf32, #tpu.memory_space<vmem>>, %arg17: memref<8x8x64xf32, #tpu.memory_space<vmem>>, %arg18: memref<8x8x16xf32, #tpu.memory_space<vmem>>, %arg19: memref<8x8x16xf32, #tpu.memory_space<vmem>>, %arg20: memref<8x8x64xf32, #tpu.memory_space<vmem>>) attributes {dimension_semantics = [#tpu.dimension_semantics<parallel>], iteration_bounds = array<i64: 1>, scalar_prefetch = 0 : i64, scratch_operands = 5 : i64, tpu.core_type = #tpu.core_type<tc>, window_params = [{transform_indices = @transform_0, window_bounds = array<i64: 8, 8, 32>}, {pipeline_mode = #tpu.pipeline_mode<synchronous>, transform_indices = @transform_1, window_bounds = array<i64: 32, 192>}, {pipeline_mode = #tpu.pipeline_mode<synchronous>, transform_indices = @transform_2, window_bounds = array<i64: 4, 64>}, {pipeline_mode = #tpu.pipeline_mode<synchronous>, transform_indices = @transform_3, window_bounds = array<i64: 64, 272>}, {pipeline_mode = #tpu.pipeline_mode<synchronous>, transform_indices = @transform_4, window_bounds = array<i64: 1, 64>}, {pipeline_mode = #tpu.pipeline_mode<synchronous>, transform_indices = @transform_5, window_bounds = array<i64: 16, 64>}, {pipeline_mode = #tpu.pipeline_mode<synchronous>, transform_indices = @transform_6, window_bounds = array<i64: 1, 64>}, {pipeline_mode = #tpu.pipeline_mode<synchronous>, transform_indices = @transform_7, window_bounds = array<i64: 64, 32>}, {pipeline_mode = #tpu.pipeline_mode<synchronous>, transform_indices = @transform_8, window_bounds = array<i64: 1, 32>}, {pipeline_mode = #tpu.pipeline_mode<synchronous>, transform_indices = @transform_9, window_bounds = array<i64: 1, 32>}, {pipeline_mode = #tpu.pipeline_mode<synchronous>, transform_indices = @transform_10, window_bounds = array<i64: 32, 16>}, {pipeline_mode = #tpu.pipeline_mode<synchronous>, transform_indices = @transform_11, window_bounds = array<i64: 1, 16>}, {pipeline_mode = #tpu.pipeline_mode<synchronous>, transform_indices = @transform_12, window_bounds = array<i64: 16, 32>}, {pipeline_mode = #tpu.pipeline_mode<synchronous>, transform_indices = @transform_13, window_bounds = array<i64: 1, 32>}, {transform_indices = @transform_14, window_bounds = array<i64: 8, 8, 32>}]} {
    %c0 = arith.constant 0 : index
    %c0_0 = arith.constant 0 : index
    %c0_1 = arith.constant 0 : index
    %0 = vector.load %arg1[%c0, %c0_0, %c0_1] : memref<8x8x32xbf16, #tpu.memory_space<vmem>>, vector<8x8x32xbf16>
    %1 = arith.extf %0 : vector<8x8x32xbf16> to vector<8x8x32xf32>
    %2 = vector.shape_cast %1 : vector<8x8x32xf32> to vector<64x32xf32>
    %3 = arith.truncf %2 : vector<64x32xf32> to vector<64x32xbf16>
    %c0_2 = arith.constant 0 : index
    %c0_3 = arith.constant 0 : index
    %4 = vector.load %arg2[%c0_2, %c0_3] : memref<32x192xbf16, #tpu.memory_space<vmem>>, vector<32x192xbf16>
    %cst = arith.constant dense<0.000000e+00> : vector<64x192xf32>
    %5 = tpu.matmul %3, %4, %cst {dimension_numbers = #tpu.dot_dimension_numbers<[1], [0], [0], [1], [0, 0, 1, 1], [], []>} : vector<64x32xbf16>, vector<32x192xbf16>, vector<64x192xf32> -> vector<64x192xf32>
    %6 = vector.extract_strided_slice %5 {offsets = [0, 0], sizes = [64, 64], strides = [1, 1]} : vector<64x192xf32> to vector<64x64xf32>
    %7 = vector.extract_strided_slice %5 {offsets = [0, 128], sizes = [64, 64], strides = [1, 1]} : vector<64x192xf32> to vector<64x64xf32>
    %c0_4 = arith.constant 0 : index
    %c0_5 = arith.constant 0 : index
    %8 = vector.load %arg3[%c0_4, %c0_5] : memref<4x64xf32, #tpu.memory_space<vmem>>, vector<4x64xf32>
    %9 = vector.shape_cast %6 : vector<64x64xf32> to vector<8x8x64xf32>
    %cst_6 = arith.constant 0.000000e+00 : f32
    %10 = vector.broadcast %cst_6 : f32 to vector<3x8x64xf32>
    %11 = tpu.concatenate %10, %9 in 0 : vector<3x8x64xf32>, vector<8x8x64xf32> -> vector<11x8x64xf32>
    %12 = vector.extract_strided_slice %8 {offsets = [3, 0], sizes = [1, 64], strides = [1, 1]} : vector<4x64xf32> to vector<1x64xf32>
    %13 = vector.shape_cast %12 : vector<1x64xf32> to vector<1x1x64xf32>
    %14 = vector.broadcast %13 : vector<1x1x64xf32> to vector<8x8x64xf32>
    %15 = arith.mulf %14, %9 : vector<8x8x64xf32>
    %16 = vector.extract_strided_slice %8 {offsets = [2, 0], sizes = [1, 64], strides = [1, 1]} : vector<4x64xf32> to vector<1x64xf32>
    %17 = vector.shape_cast %16 : vector<1x64xf32> to vector<1x1x64xf32>
    %18 = vector.extract_strided_slice %11 {offsets = [2, 0, 0], sizes = [8, 8, 64], strides = [1, 1, 1]} : vector<11x8x64xf32> to vector<8x8x64xf32>
    %19 = vector.broadcast %17 : vector<1x1x64xf32> to vector<8x8x64xf32>
    %20 = arith.mulf %19, %18 : vector<8x8x64xf32>
    %21 = arith.addf %15, %20 : vector<8x8x64xf32>
    %22 = vector.extract_strided_slice %8 {offsets = [1, 0], sizes = [1, 64], strides = [1, 1]} : vector<4x64xf32> to vector<1x64xf32>
    %23 = vector.shape_cast %22 : vector<1x64xf32> to vector<1x1x64xf32>
    %24 = vector.extract_strided_slice %11 {offsets = [1, 0, 0], sizes = [8, 8, 64], strides = [1, 1, 1]} : vector<11x8x64xf32> to vector<8x8x64xf32>
    %25 = vector.broadcast %23 : vector<1x1x64xf32> to vector<8x8x64xf32>
    %26 = arith.mulf %25, %24 : vector<8x8x64xf32>
    %27 = arith.addf %21, %26 : vector<8x8x64xf32>
    %28 = vector.extract_strided_slice %8 {offsets = [0, 0], sizes = [1, 64], strides = [1, 1]} : vector<4x64xf32> to vector<1x64xf32>
    %29 = vector.shape_cast %28 : vector<1x64xf32> to vector<1x1x64xf32>
    %30 = vector.extract_strided_slice %11 {offsets = [0, 0, 0], sizes = [8, 8, 64], strides = [1, 1, 1]} : vector<11x8x64xf32> to vector<8x8x64xf32>
    %31 = vector.broadcast %29 : vector<1x1x64xf32> to vector<8x8x64xf32>
    %32 = arith.mulf %31, %30 : vector<8x8x64xf32>
    %33 = arith.addf %27, %32 : vector<8x8x64xf32>
    %cst_7 = arith.constant 0.000000e+00 : f32
    %34 = vector.broadcast %cst_7 : f32 to vector<8x8x64xf32>
    %35 = arith.subf %34, %33 : vector<8x8x64xf32>
    %36 = math.exp %35 : vector<8x8x64xf32>
    %cst_8 = arith.constant 1.000000e+00 : f32
    %37 = vector.broadcast %cst_8 : f32 to vector<8x8x64xf32>
    %38 = arith.addf %37, %36 : vector<8x8x64xf32>
    %39 = arith.divf %33, %38 : vector<8x8x64xf32>
    %40 = vector.shape_cast %39 : vector<8x8x64xf32> to vector<64x64xf32>
    %41 = arith.truncf %40 : vector<64x64xf32> to vector<64x64xbf16>
    %c0_9 = arith.constant 0 : index
    %c0_10 = arith.constant 0 : index
    %42 = vector.load %arg4[%c0_9, %c0_10] : memref<64x272xbf16, #tpu.memory_space<vmem>>, vector<64x272xbf16>
    %cst_11 = arith.constant dense<0.000000e+00> : vector<64x272xf32>
    %43 = tpu.matmul %41, %42, %cst_11 {dimension_numbers = #tpu.dot_dimension_numbers<[1], [0], [0], [1], [0, 0, 1, 1], [], []>} : vector<64x64xbf16>, vector<64x272xbf16>, vector<64x272xf32> -> vector<64x272xf32>
    %44 = vector.extract_strided_slice %43 {offsets = [0, 0], sizes = [64, 64], strides = [1, 1]} : vector<64x272xf32> to vector<64x64xf32>
    %c0_12 = arith.constant 0 : index
    %c0_13 = arith.constant 0 : index
    %45 = vector.load %arg5[%c0_12, %c0_13] : memref<1x64xf32, #tpu.memory_space<vmem>>, vector<1x64xf32>
    %46 = vector.broadcast %45 : vector<1x64xf32> to vector<64x64xf32>
    %47 = arith.addf %44, %46 : vector<64x64xf32>
    %cst_14 = arith.constant 2.000000e+01 : f32
    %48 = vector.broadcast %cst_14 : f32 to vector<64x64xf32>
    %49 = arith.cmpf ogt, %47, %48 : vector<64x64xf32>
    %cst_15 = arith.constant 2.000000e+01 : f32
    %50 = vector.broadcast %cst_15 : f32 to vector<64x64xf32>
    %51 = arith.minimumf %47, %50 : vector<64x64xf32>
    %52 = math.exp %51 : vector<64x64xf32>
    %cst_16 = arith.constant 1.000000e+00 : f32
    %53 = vector.broadcast %cst_16 : f32 to vector<64x64xf32>
    %54 = arith.addf %53, %52 : vector<64x64xf32>
    %55 = math.log %54 : vector<64x64xf32>
    %56 = arith.select %49, %47, %55 : vector<64x64xi1>, vector<64x64xf32>
    %57 = vector.extract_strided_slice %43 {offsets = [0, 128], sizes = [64, 16], strides = [1, 1]} : vector<64x272xf32> to vector<64x16xf32>
    %58 = vector.extract_strided_slice %43 {offsets = [0, 256], sizes = [64, 16], strides = [1, 1]} : vector<64x272xf32> to vector<64x16xf32>
    %c0_17 = arith.constant 0 : index
    %c0_18 = arith.constant 0 : index
    %59 = vector.load %arg6[%c0_17, %c0_18] : memref<16x64xf32, #tpu.memory_space<vmem>>, vector<16x64xf32>
    %60 = vector.shape_cast %56 : vector<64x64xf32> to vector<64x1x64xf32>
    %61 = vector.shape_cast %59 : vector<16x64xf32> to vector<1x16x64xf32>
    %62 = vector.broadcast %60 : vector<64x1x64xf32> to vector<64x16x64xf32>
    %63 = vector.broadcast %61 : vector<1x16x64xf32> to vector<64x16x64xf32>
    %64 = arith.mulf %62, %63 : vector<64x16x64xf32>
    %65 = math.exp %64 : vector<64x16x64xf32>
    %66 = vector.shape_cast %65 : vector<64x16x64xf32> to vector<8x8x16x64xf32>
    %c0_19 = arith.constant 0 : index
    %c0_20 = arith.constant 0 : index
    %c0_21 = arith.constant 0 : index
    %c0_22 = arith.constant 0 : index
    %67 = vector.load %arg16[%c0_19, %c0_20, %c0_21, %c0_22] : memref<8x8x16x64xf32, #tpu.memory_space<vmem>>, vector<8x8x16x64xf32>
    tpu.vector_store %arg16[%c0_19, %c0_20, %c0_21, %c0_22], %66 {strides = array<i32>} : memref<8x8x16x64xf32, #tpu.memory_space<vmem>>, vector<8x8x16x64xf32>,
    %68 = arith.mulf %56, %40 : vector<64x64xf32>
    %69 = vector.shape_cast %68 : vector<64x64xf32> to vector<8x8x64xf32>
    %c0_23 = arith.constant 0 : index
    %c0_24 = arith.constant 0 : index
    %c0_25 = arith.constant 0 : index
    %70 = vector.load %arg17[%c0_23, %c0_24, %c0_25] : memref<8x8x64xf32, #tpu.memory_space<vmem>>, vector<8x8x64xf32>
    tpu.vector_store %arg17[%c0_23, %c0_24, %c0_25], %69 {strides = array<i32>} : memref<8x8x64xf32, #tpu.memory_space<vmem>>, vector<8x8x64xf32>,
    %71 = vector.shape_cast %57 : vector<64x16xf32> to vector<8x8x16xf32>
    %c0_26 = arith.constant 0 : index
    %c0_27 = arith.constant 0 : index
    %c0_28 = arith.constant 0 : index
    %72 = vector.load %arg18[%c0_26, %c0_27, %c0_28] : memref<8x8x16xf32, #tpu.memory_space<vmem>>, vector<8x8x16xf32>
    tpu.vector_store %arg18[%c0_26, %c0_27, %c0_28], %71 {strides = array<i32>} : memref<8x8x16xf32, #tpu.memory_space<vmem>>, vector<8x8x16xf32>,
    %73 = vector.shape_cast %58 : vector<64x16xf32> to vector<8x8x16xf32>
    %c0_29 = arith.constant 0 : index
    %c0_30 = arith.constant 0 : index
    %c0_31 = arith.constant 0 : index
    %74 = vector.load %arg19[%c0_29, %c0_30, %c0_31] : memref<8x8x16xf32, #tpu.memory_space<vmem>>, vector<8x8x16xf32>
    tpu.vector_store %arg19[%c0_29, %c0_30, %c0_31], %73 {strides = array<i32>} : memref<8x8x16xf32, #tpu.memory_space<vmem>>, vector<8x8x16xf32>,
    %cst_32 = arith.constant 0.000000e+00 : f32
    %75 = vector.broadcast %cst_32 : f32 to vector<8x16x64xf32>
    %c0_i32 = arith.constant 0 : i32
    %76 = arith.index_cast %c0_i32 : i32 to index
    %c0_33 = arith.constant 0 : index
    %c0_34 = arith.constant 0 : index
    %77 = vector.load %arg17[%76, %c0_33, %c0_34] : memref<8x8x64xf32, #tpu.memory_space<vmem>>, vector<1x8x64xf32>
    %78 = vector.shape_cast %77 : vector<1x8x64xf32> to vector<8x64xf32>
    %79 = vector.shape_cast %78 : vector<8x64xf32> to vector<8x1x64xf32>
    %80 = arith.index_cast %c0_i32 : i32 to index
    %c0_35 = arith.constant 0 : index
    %c0_36 = arith.constant 0 : index
    %81 = vector.load %arg18[%80, %c0_35, %c0_36] : memref<8x8x16xf32, #tpu.memory_space<vmem>>, vector<1x8x16xf32>
    %82 = vector.shape_cast %81 : vector<1x8x16xf32> to vector<8x16xf32>
    %83 = vector.shape_cast %82 : vector<8x16xf32> to vector<8x16x1xf32>
    %84 = vector.broadcast %79 : vector<8x1x64xf32> to vector<8x16x64xf32>
    %85 = vector.broadcast %83 : vector<8x16x1xf32> to vector<8x16x64xf32>
    %86 = arith.mulf %84, %85 : vector<8x16x64xf32>
    %87 = arith.index_cast %c0_i32 : i32 to index
    %c0_37 = arith.constant 0 : index
    %c0_38 = arith.constant 0 : index
    %c0_39 = arith.constant 0 : index
    %88 = vector.load %arg16[%87, %c0_37, %c0_38, %c0_39] : memref<8x8x16x64xf32, #tpu.memory_space<vmem>>, vector<1x8x16x64xf32>
    %89 = vector.shape_cast %88 : vector<1x8x16x64xf32> to vector<8x16x64xf32>
    %90 = arith.mulf %89, %75 : vector<8x16x64xf32>
    %91 = arith.addf %90, %86 : vector<8x16x64xf32>
    %92 = arith.index_cast %c0_i32 : i32 to index
    %c0_40 = arith.constant 0 : index
    %c0_41 = arith.constant 0 : index
    %93 = vector.load %arg19[%92, %c0_40, %c0_41] : memref<8x8x16xf32, #tpu.memory_space<vmem>>, vector<1x8x16xf32>
    %94 = vector.shape_cast %93 : vector<1x8x16xf32> to vector<8x16xf32>
    %95 = vector.shape_cast %94 : vector<8x16xf32> to vector<8x16x1xf32>
    %96 = vector.broadcast %95 : vector<8x16x1xf32> to vector<8x16x64xf32>
    %97 = arith.mulf %91, %96 : vector<8x16x64xf32>
    %cst_42 = arith.constant dense<0.000000e+00> : vector<8x64xf32>
    %98 = vector.multi_reduction <add>, %97, %cst_42 [1] : vector<8x16x64xf32> to vector<8x64xf32>
    %99 = arith.index_cast %c0_i32 : i32 to index
    %c0_43 = arith.constant 0 : index
    %c0_44 = arith.constant 0 : index
    %100 = vector.load %arg20[%99, %c0_43, %c0_44] : memref<8x8x64xf32, #tpu.memory_space<vmem>>, vector<1x8x64xf32>
    %101 = vector.shape_cast %100 : vector<1x8x64xf32> to vector<8x64xf32>
    %102 = vector.shape_cast %98 : vector<8x64xf32> to vector<1x8x64xf32>
    tpu.vector_store %arg20[%99, %c0_43, %c0_44], %102 {strides = array<i32>} : memref<8x8x64xf32, #tpu.memory_space<vmem>>, vector<1x8x64xf32>,
    %c1_i32 = arith.constant 1 : i32
    %103 = arith.index_cast %c1_i32 : i32 to index
    %c0_45 = arith.constant 0 : index
    %c0_46 = arith.constant 0 : index
    %104 = vector.load %arg17[%103, %c0_45, %c0_46] : memref<8x8x64xf32, #tpu.memory_space<vmem>>, vector<1x8x64xf32>
    %105 = vector.shape_cast %104 : vector<1x8x64xf32> to vector<8x64xf32>
    %106 = vector.shape_cast %105 : vector<8x64xf32> to vector<8x1x64xf32>
    %107 = arith.index_cast %c1_i32 : i32 to index
    %c0_47 = arith.constant 0 : index
    %c0_48 = arith.constant 0 : index
    %108 = vector.load %arg18[%107, %c0_47, %c0_48] : memref<8x8x16xf32, #tpu.memory_space<vmem>>, vector<1x8x16xf32>
    %109 = vector.shape_cast %108 : vector<1x8x16xf32> to vector<8x16xf32>
    %110 = vector.shape_cast %109 : vector<8x16xf32> to vector<8x16x1xf32>
    %111 = vector.broadcast %106 : vector<8x1x64xf32> to vector<8x16x64xf32>
    %112 = vector.broadcast %110 : vector<8x16x1xf32> to vector<8x16x64xf32>
    %113 = arith.mulf %111, %112 : vector<8x16x64xf32>
    %114 = arith.index_cast %c1_i32 : i32 to index
    %c0_49 = arith.constant 0 : index
    %c0_50 = arith.constant 0 : index
    %c0_51 = arith.constant 0 : index
    %115 = vector.load %arg16[%114, %c0_49, %c0_50, %c0_51] : memref<8x8x16x64xf32, #tpu.memory_space<vmem>>, vector<1x8x16x64xf32>
    %116 = vector.shape_cast %115 : vector<1x8x16x64xf32> to vector<8x16x64xf32>
    %117 = arith.mulf %116, %91 : vector<8x16x64xf32>
    %118 = arith.addf %117, %113 : vector<8x16x64xf32>
    %119 = arith.index_cast %c1_i32 : i32 to index
    %c0_52 = arith.constant 0 : index
    %c0_53 = arith.constant 0 : index
    %120 = vector.load %arg19[%119, %c0_52, %c0_53] : memref<8x8x16xf32, #tpu.memory_space<vmem>>, vector<1x8x16xf32>
    %121 = vector.shape_cast %120 : vector<1x8x16xf32> to vector<8x16xf32>
    %122 = vector.shape_cast %121 : vector<8x16xf32> to vector<8x16x1xf32>
    %123 = vector.broadcast %122 : vector<8x16x1xf32> to vector<8x16x64xf32>
    %124 = arith.mulf %118, %123 : vector<8x16x64xf32>
    %cst_54 = arith.constant dense<0.000000e+00> : vector<8x64xf32>
    %125 = vector.multi_reduction <add>, %124, %cst_54 [1] : vector<8x16x64xf32> to vector<8x64xf32>
    %126 = arith.index_cast %c1_i32 : i32 to index
    %c0_55 = arith.constant 0 : index
    %c0_56 = arith.constant 0 : index
    %127 = vector.load %arg20[%126, %c0_55, %c0_56] : memref<8x8x64xf32, #tpu.memory_space<vmem>>, vector<1x8x64xf32>
    %128 = vector.shape_cast %127 : vector<1x8x64xf32> to vector<8x64xf32>
    %129 = vector.shape_cast %125 : vector<8x64xf32> to vector<1x8x64xf32>
    tpu.vector_store %arg20[%126, %c0_55, %c0_56], %129 {strides = array<i32>} : memref<8x8x64xf32, #tpu.memory_space<vmem>>, vector<1x8x64xf32>,
    %c2_i32 = arith.constant 2 : i32
    %130 = arith.index_cast %c2_i32 : i32 to index
    %c0_57 = arith.constant 0 : index
    %c0_58 = arith.constant 0 : index
    %131 = vector.load %arg17[%130, %c0_57, %c0_58] : memref<8x8x64xf32, #tpu.memory_space<vmem>>, vector<1x8x64xf32>
    %132 = vector.shape_cast %131 : vector<1x8x64xf32> to vector<8x64xf32>
    %133 = vector.shape_cast %132 : vector<8x64xf32> to vector<8x1x64xf32>
    %134 = arith.index_cast %c2_i32 : i32 to index
    %c0_59 = arith.constant 0 : index
    %c0_60 = arith.constant 0 : index
    %135 = vector.load %arg18[%134, %c0_59, %c0_60] : memref<8x8x16xf32, #tpu.memory_space<vmem>>, vector<1x8x16xf32>
    %136 = vector.shape_cast %135 : vector<1x8x16xf32> to vector<8x16xf32>
    %137 = vector.shape_cast %136 : vector<8x16xf32> to vector<8x16x1xf32>
    %138 = vector.broadcast %133 : vector<8x1x64xf32> to vector<8x16x64xf32>
    %139 = vector.broadcast %137 : vector<8x16x1xf32> to vector<8x16x64xf32>
    %140 = arith.mulf %138, %139 : vector<8x16x64xf32>
    %141 = arith.index_cast %c2_i32 : i32 to index
    %c0_61 = arith.constant 0 : index
    %c0_62 = arith.constant 0 : index
    %c0_63 = arith.constant 0 : index
    %142 = vector.load %arg16[%141, %c0_61, %c0_62, %c0_63] : memref<8x8x16x64xf32, #tpu.memory_space<vmem>>, vector<1x8x16x64xf32>
    %143 = vector.shape_cast %142 : vector<1x8x16x64xf32> to vector<8x16x64xf32>
    %144 = arith.mulf %143, %118 : vector<8x16x64xf32>
    %145 = arith.addf %144, %140 : vector<8x16x64xf32>
    %146 = arith.index_cast %c2_i32 : i32 to index
    %c0_64 = arith.constant 0 : index
    %c0_65 = arith.constant 0 : index
    %147 = vector.load %arg19[%146, %c0_64, %c0_65] : memref<8x8x16xf32, #tpu.memory_space<vmem>>, vector<1x8x16xf32>
    %148 = vector.shape_cast %147 : vector<1x8x16xf32> to vector<8x16xf32>
    %149 = vector.shape_cast %148 : vector<8x16xf32> to vector<8x16x1xf32>
    %150 = vector.broadcast %149 : vector<8x16x1xf32> to vector<8x16x64xf32>
    %151 = arith.mulf %145, %150 : vector<8x16x64xf32>
    %cst_66 = arith.constant dense<0.000000e+00> : vector<8x64xf32>
    %152 = vector.multi_reduction <add>, %151, %cst_66 [1] : vector<8x16x64xf32> to vector<8x64xf32>
    %153 = arith.index_cast %c2_i32 : i32 to index
    %c0_67 = arith.constant 0 : index
    %c0_68 = arith.constant 0 : index
    %154 = vector.load %arg20[%153, %c0_67, %c0_68] : memref<8x8x64xf32, #tpu.memory_space<vmem>>, vector<1x8x64xf32>
    %155 = vector.shape_cast %154 : vector<1x8x64xf32> to vector<8x64xf32>
    %156 = vector.shape_cast %152 : vector<8x64xf32> to vector<1x8x64xf32>
    tpu.vector_store %arg20[%153, %c0_67, %c0_68], %156 {strides = array<i32>} : memref<8x8x64xf32, #tpu.memory_space<vmem>>, vector<1x8x64xf32>,
    %c3_i32 = arith.constant 3 : i32
    %157 = arith.index_cast %c3_i32 : i32 to index
    %c0_69 = arith.constant 0 : index
    %c0_70 = arith.constant 0 : index
    %158 = vector.load %arg17[%157, %c0_69, %c0_70] : memref<8x8x64xf32, #tpu.memory_space<vmem>>, vector<1x8x64xf32>
    %159 = vector.shape_cast %158 : vector<1x8x64xf32> to vector<8x64xf32>
    %160 = vector.shape_cast %159 : vector<8x64xf32> to vector<8x1x64xf32>
    %161 = arith.index_cast %c3_i32 : i32 to index
    %c0_71 = arith.constant 0 : index
    %c0_72 = arith.constant 0 : index
    %162 = vector.load %arg18[%161, %c0_71, %c0_72] : memref<8x8x16xf32, #tpu.memory_space<vmem>>, vector<1x8x16xf32>
    %163 = vector.shape_cast %162 : vector<1x8x16xf32> to vector<8x16xf32>
    %164 = vector.shape_cast %163 : vector<8x16xf32> to vector<8x16x1xf32>
    %165 = vector.broadcast %160 : vector<8x1x64xf32> to vector<8x16x64xf32>
    %166 = vector.broadcast %164 : vector<8x16x1xf32> to vector<8x16x64xf32>
    %167 = arith.mulf %165, %166 : vector<8x16x64xf32>
    %168 = arith.index_cast %c3_i32 : i32 to index
    %c0_73 = arith.constant 0 : index
    %c0_74 = arith.constant 0 : index
    %c0_75 = arith.constant 0 : index
    %169 = vector.load %arg16[%168, %c0_73, %c0_74, %c0_75] : memref<8x8x16x64xf32, #tpu.memory_space<vmem>>, vector<1x8x16x64xf32>
    %170 = vector.shape_cast %169 : vector<1x8x16x64xf32> to vector<8x16x64xf32>
    %171 = arith.mulf %170, %145 : vector<8x16x64xf32>
    %172 = arith.addf %171, %167 : vector<8x16x64xf32>
    %173 = arith.index_cast %c3_i32 : i32 to index
    %c0_76 = arith.constant 0 : index
    %c0_77 = arith.constant 0 : index
    %174 = vector.load %arg19[%173, %c0_76, %c0_77] : memref<8x8x16xf32, #tpu.memory_space<vmem>>, vector<1x8x16xf32>
    %175 = vector.shape_cast %174 : vector<1x8x16xf32> to vector<8x16xf32>
    %176 = vector.shape_cast %175 : vector<8x16xf32> to vector<8x16x1xf32>
    %177 = vector.broadcast %176 : vector<8x16x1xf32> to vector<8x16x64xf32>
    %178 = arith.mulf %172, %177 : vector<8x16x64xf32>
    %cst_78 = arith.constant dense<0.000000e+00> : vector<8x64xf32>
    %179 = vector.multi_reduction <add>, %178, %cst_78 [1] : vector<8x16x64xf32> to vector<8x64xf32>
    %180 = arith.index_cast %c3_i32 : i32 to index
    %c0_79 = arith.constant 0 : index
    %c0_80 = arith.constant 0 : index
    %181 = vector.load %arg20[%180, %c0_79, %c0_80] : memref<8x8x64xf32, #tpu.memory_space<vmem>>, vector<1x8x64xf32>
    %182 = vector.shape_cast %181 : vector<1x8x64xf32> to vector<8x64xf32>
    %183 = vector.shape_cast %179 : vector<8x64xf32> to vector<1x8x64xf32>
    tpu.vector_store %arg20[%180, %c0_79, %c0_80], %183 {strides = array<i32>} : memref<8x8x64xf32, #tpu.memory_space<vmem>>, vector<1x8x64xf32>,
    %c4_i32 = arith.constant 4 : i32
    %184 = arith.index_cast %c4_i32 : i32 to index
    %c0_81 = arith.constant 0 : index
    %c0_82 = arith.constant 0 : index
    %185 = vector.load %arg17[%184, %c0_81, %c0_82] : memref<8x8x64xf32, #tpu.memory_space<vmem>>, vector<1x8x64xf32>
    %186 = vector.shape_cast %185 : vector<1x8x64xf32> to vector<8x64xf32>
    %187 = vector.shape_cast %186 : vector<8x64xf32> to vector<8x1x64xf32>
    %188 = arith.index_cast %c4_i32 : i32 to index
    %c0_83 = arith.constant 0 : index
    %c0_84 = arith.constant 0 : index
    %189 = vector.load %arg18[%188, %c0_83, %c0_84] : memref<8x8x16xf32, #tpu.memory_space<vmem>>, vector<1x8x16xf32>
    %190 = vector.shape_cast %189 : vector<1x8x16xf32> to vector<8x16xf32>
    %191 = vector.shape_cast %190 : vector<8x16xf32> to vector<8x16x1xf32>
    %192 = vector.broadcast %187 : vector<8x1x64xf32> to vector<8x16x64xf32>
    %193 = vector.broadcast %191 : vector<8x16x1xf32> to vector<8x16x64xf32>
    %194 = arith.mulf %192, %193 : vector<8x16x64xf32>
    %195 = arith.index_cast %c4_i32 : i32 to index
    %c0_85 = arith.constant 0 : index
    %c0_86 = arith.constant 0 : index
    %c0_87 = arith.constant 0 : index
    %196 = vector.load %arg16[%195, %c0_85, %c0_86, %c0_87] : memref<8x8x16x64xf32, #tpu.memory_space<vmem>>, vector<1x8x16x64xf32>
    %197 = vector.shape_cast %196 : vector<1x8x16x64xf32> to vector<8x16x64xf32>
    %198 = arith.mulf %197, %172 : vector<8x16x64xf32>
    %199 = arith.addf %198, %194 : vector<8x16x64xf32>
    %200 = arith.index_cast %c4_i32 : i32 to index
    %c0_88 = arith.constant 0 : index
    %c0_89 = arith.constant 0 : index
    %201 = vector.load %arg19[%200, %c0_88, %c0_89] : memref<8x8x16xf32, #tpu.memory_space<vmem>>, vector<1x8x16xf32>
    %202 = vector.shape_cast %201 : vector<1x8x16xf32> to vector<8x16xf32>
    %203 = vector.shape_cast %202 : vector<8x16xf32> to vector<8x16x1xf32>
    %204 = vector.broadcast %203 : vector<8x16x1xf32> to vector<8x16x64xf32>
    %205 = arith.mulf %199, %204 : vector<8x16x64xf32>
    %cst_90 = arith.constant dense<0.000000e+00> : vector<8x64xf32>
    %206 = vector.multi_reduction <add>, %205, %cst_90 [1] : vector<8x16x64xf32> to vector<8x64xf32>
    %207 = arith.index_cast %c4_i32 : i32 to index
    %c0_91 = arith.constant 0 : index
    %c0_92 = arith.constant 0 : index
    %208 = vector.load %arg20[%207, %c0_91, %c0_92] : memref<8x8x64xf32, #tpu.memory_space<vmem>>, vector<1x8x64xf32>
    %209 = vector.shape_cast %208 : vector<1x8x64xf32> to vector<8x64xf32>
    %210 = vector.shape_cast %206 : vector<8x64xf32> to vector<1x8x64xf32>
    tpu.vector_store %arg20[%207, %c0_91, %c0_92], %210 {strides = array<i32>} : memref<8x8x64xf32, #tpu.memory_space<vmem>>, vector<1x8x64xf32>,
    %c5_i32 = arith.constant 5 : i32
    %211 = arith.index_cast %c5_i32 : i32 to index
    %c0_93 = arith.constant 0 : index
    %c0_94 = arith.constant 0 : index
    %212 = vector.load %arg17[%211, %c0_93, %c0_94] : memref<8x8x64xf32, #tpu.memory_space<vmem>>, vector<1x8x64xf32>
    %213 = vector.shape_cast %212 : vector<1x8x64xf32> to vector<8x64xf32>
    %214 = vector.shape_cast %213 : vector<8x64xf32> to vector<8x1x64xf32>
    %215 = arith.index_cast %c5_i32 : i32 to index
    %c0_95 = arith.constant 0 : index
    %c0_96 = arith.constant 0 : index
    %216 = vector.load %arg18[%215, %c0_95, %c0_96] : memref<8x8x16xf32, #tpu.memory_space<vmem>>, vector<1x8x16xf32>
    %217 = vector.shape_cast %216 : vector<1x8x16xf32> to vector<8x16xf32>
    %218 = vector.shape_cast %217 : vector<8x16xf32> to vector<8x16x1xf32>
    %219 = vector.broadcast %214 : vector<8x1x64xf32> to vector<8x16x64xf32>
    %220 = vector.broadcast %218 : vector<8x16x1xf32> to vector<8x16x64xf32>
    %221 = arith.mulf %219, %220 : vector<8x16x64xf32>
    %222 = arith.index_cast %c5_i32 : i32 to index
    %c0_97 = arith.constant 0 : index
    %c0_98 = arith.constant 0 : index
    %c0_99 = arith.constant 0 : index
    %223 = vector.load %arg16[%222, %c0_97, %c0_98, %c0_99] : memref<8x8x16x64xf32, #tpu.memory_space<vmem>>, vector<1x8x16x64xf32>
    %224 = vector.shape_cast %223 : vector<1x8x16x64xf32> to vector<8x16x64xf32>
    %225 = arith.mulf %224, %199 : vector<8x16x64xf32>
    %226 = arith.addf %225, %221 : vector<8x16x64xf32>
    %227 = arith.index_cast %c5_i32 : i32 to index
    %c0_100 = arith.constant 0 : index
    %c0_101 = arith.constant 0 : index
    %228 = vector.load %arg19[%227, %c0_100, %c0_101] : memref<8x8x16xf32, #tpu.memory_space<vmem>>, vector<1x8x16xf32>
    %229 = vector.shape_cast %228 : vector<1x8x16xf32> to vector<8x16xf32>
    %230 = vector.shape_cast %229 : vector<8x16xf32> to vector<8x16x1xf32>
    %231 = vector.broadcast %230 : vector<8x16x1xf32> to vector<8x16x64xf32>
    %232 = arith.mulf %226, %231 : vector<8x16x64xf32>
    %cst_102 = arith.constant dense<0.000000e+00> : vector<8x64xf32>
    %233 = vector.multi_reduction <add>, %232, %cst_102 [1] : vector<8x16x64xf32> to vector<8x64xf32>
    %234 = arith.index_cast %c5_i32 : i32 to index
    %c0_103 = arith.constant 0 : index
    %c0_104 = arith.constant 0 : index
    %235 = vector.load %arg20[%234, %c0_103, %c0_104] : memref<8x8x64xf32, #tpu.memory_space<vmem>>, vector<1x8x64xf32>
    %236 = vector.shape_cast %235 : vector<1x8x64xf32> to vector<8x64xf32>
    %237 = vector.shape_cast %233 : vector<8x64xf32> to vector<1x8x64xf32>
    tpu.vector_store %arg20[%234, %c0_103, %c0_104], %237 {strides = array<i32>} : memref<8x8x64xf32, #tpu.memory_space<vmem>>, vector<1x8x64xf32>,
    %c6_i32 = arith.constant 6 : i32
    %238 = arith.index_cast %c6_i32 : i32 to index
    %c0_105 = arith.constant 0 : index
    %c0_106 = arith.constant 0 : index
    %239 = vector.load %arg17[%238, %c0_105, %c0_106] : memref<8x8x64xf32, #tpu.memory_space<vmem>>, vector<1x8x64xf32>
    %240 = vector.shape_cast %239 : vector<1x8x64xf32> to vector<8x64xf32>
    %241 = vector.shape_cast %240 : vector<8x64xf32> to vector<8x1x64xf32>
    %242 = arith.index_cast %c6_i32 : i32 to index
    %c0_107 = arith.constant 0 : index
    %c0_108 = arith.constant 0 : index
    %243 = vector.load %arg18[%242, %c0_107, %c0_108] : memref<8x8x16xf32, #tpu.memory_space<vmem>>, vector<1x8x16xf32>
    %244 = vector.shape_cast %243 : vector<1x8x16xf32> to vector<8x16xf32>
    %245 = vector.shape_cast %244 : vector<8x16xf32> to vector<8x16x1xf32>
    %246 = vector.broadcast %241 : vector<8x1x64xf32> to vector<8x16x64xf32>
    %247 = vector.broadcast %245 : vector<8x16x1xf32> to vector<8x16x64xf32>
    %248 = arith.mulf %246, %247 : vector<8x16x64xf32>
    %249 = arith.index_cast %c6_i32 : i32 to index
    %c0_109 = arith.constant 0 : index
    %c0_110 = arith.constant 0 : index
    %c0_111 = arith.constant 0 : index
    %250 = vector.load %arg16[%249, %c0_109, %c0_110, %c0_111] : memref<8x8x16x64xf32, #tpu.memory_space<vmem>>, vector<1x8x16x64xf32>
    %251 = vector.shape_cast %250 : vector<1x8x16x64xf32> to vector<8x16x64xf32>
    %252 = arith.mulf %251, %226 : vector<8x16x64xf32>
    %253 = arith.addf %252, %248 : vector<8x16x64xf32>
    %254 = arith.index_cast %c6_i32 : i32 to index
    %c0_112 = arith.constant 0 : index
    %c0_113 = arith.constant 0 : index
    %255 = vector.load %arg19[%254, %c0_112, %c0_113] : memref<8x8x16xf32, #tpu.memory_space<vmem>>, vector<1x8x16xf32>
    %256 = vector.shape_cast %255 : vector<1x8x16xf32> to vector<8x16xf32>
    %257 = vector.shape_cast %256 : vector<8x16xf32> to vector<8x16x1xf32>
    %258 = vector.broadcast %257 : vector<8x16x1xf32> to vector<8x16x64xf32>
    %259 = arith.mulf %253, %258 : vector<8x16x64xf32>
    %cst_114 = arith.constant dense<0.000000e+00> : vector<8x64xf32>
    %260 = vector.multi_reduction <add>, %259, %cst_114 [1] : vector<8x16x64xf32> to vector<8x64xf32>
    %261 = arith.index_cast %c6_i32 : i32 to index
    %c0_115 = arith.constant 0 : index
    %c0_116 = arith.constant 0 : index
    %262 = vector.load %arg20[%261, %c0_115, %c0_116] : memref<8x8x64xf32, #tpu.memory_space<vmem>>, vector<1x8x64xf32>
    %263 = vector.shape_cast %262 : vector<1x8x64xf32> to vector<8x64xf32>
    %264 = vector.shape_cast %260 : vector<8x64xf32> to vector<1x8x64xf32>
    tpu.vector_store %arg20[%261, %c0_115, %c0_116], %264 {strides = array<i32>} : memref<8x8x64xf32, #tpu.memory_space<vmem>>, vector<1x8x64xf32>,
    %c7_i32 = arith.constant 7 : i32
    %265 = arith.index_cast %c7_i32 : i32 to index
    %c0_117 = arith.constant 0 : index
    %c0_118 = arith.constant 0 : index
    %266 = vector.load %arg17[%265, %c0_117, %c0_118] : memref<8x8x64xf32, #tpu.memory_space<vmem>>, vector<1x8x64xf32>
    %267 = vector.shape_cast %266 : vector<1x8x64xf32> to vector<8x64xf32>
    %268 = vector.shape_cast %267 : vector<8x64xf32> to vector<8x1x64xf32>
    %269 = arith.index_cast %c7_i32 : i32 to index
    %c0_119 = arith.constant 0 : index
    %c0_120 = arith.constant 0 : index
    %270 = vector.load %arg18[%269, %c0_119, %c0_120] : memref<8x8x16xf32, #tpu.memory_space<vmem>>, vector<1x8x16xf32>
    %271 = vector.shape_cast %270 : vector<1x8x16xf32> to vector<8x16xf32>
    %272 = vector.shape_cast %271 : vector<8x16xf32> to vector<8x16x1xf32>
    %273 = vector.broadcast %268 : vector<8x1x64xf32> to vector<8x16x64xf32>
    %274 = vector.broadcast %272 : vector<8x16x1xf32> to vector<8x16x64xf32>
    %275 = arith.mulf %273, %274 : vector<8x16x64xf32>
    %276 = arith.index_cast %c7_i32 : i32 to index
    %c0_121 = arith.constant 0 : index
    %c0_122 = arith.constant 0 : index
    %c0_123 = arith.constant 0 : index
    %277 = vector.load %arg16[%276, %c0_121, %c0_122, %c0_123] : memref<8x8x16x64xf32, #tpu.memory_space<vmem>>, vector<1x8x16x64xf32>
    %278 = vector.shape_cast %277 : vector<1x8x16x64xf32> to vector<8x16x64xf32>
    %279 = arith.mulf %278, %253 : vector<8x16x64xf32>
    %280 = arith.addf %279, %275 : vector<8x16x64xf32>
    %281 = arith.index_cast %c7_i32 : i32 to index
    %c0_124 = arith.constant 0 : index
    %c0_125 = arith.constant 0 : index
    %282 = vector.load %arg19[%281, %c0_124, %c0_125] : memref<8x8x16xf32, #tpu.memory_space<vmem>>, vector<1x8x16xf32>
    %283 = vector.shape_cast %282 : vector<1x8x16xf32> to vector<8x16xf32>
    %284 = vector.shape_cast %283 : vector<8x16xf32> to vector<8x16x1xf32>
    %285 = vector.broadcast %284 : vector<8x16x1xf32> to vector<8x16x64xf32>
    %286 = arith.mulf %280, %285 : vector<8x16x64xf32>
    %cst_126 = arith.constant dense<0.000000e+00> : vector<8x64xf32>
    %287 = vector.multi_reduction <add>, %286, %cst_126 [1] : vector<8x16x64xf32> to vector<8x64xf32>
    %288 = arith.index_cast %c7_i32 : i32 to index
    %c0_127 = arith.constant 0 : index
    %c0_128 = arith.constant 0 : index
    %289 = vector.load %arg20[%288, %c0_127, %c0_128] : memref<8x8x64xf32, #tpu.memory_space<vmem>>, vector<1x8x64xf32>
    %290 = vector.shape_cast %289 : vector<1x8x64xf32> to vector<8x64xf32>
    %291 = vector.shape_cast %287 : vector<8x64xf32> to vector<1x8x64xf32>
    tpu.vector_store %arg20[%288, %c0_127, %c0_128], %291 {strides = array<i32>} : memref<8x8x64xf32, #tpu.memory_space<vmem>>, vector<1x8x64xf32>,
    %c8_i32 = arith.constant 8 : i32
    %c0_129 = arith.constant 0 : index
    %c0_130 = arith.constant 0 : index
    %c0_131 = arith.constant 0 : index
    %292 = vector.load %arg20[%c0_129, %c0_130, %c0_131] : memref<8x8x64xf32, #tpu.memory_space<vmem>>, vector<8x8x64xf32>
    %293 = vector.shape_cast %292 : vector<8x8x64xf32> to vector<64x64xf32>
    %c0_132 = arith.constant 0 : index
    %c0_133 = arith.constant 0 : index
    %294 = vector.load %arg7[%c0_132, %c0_133] : memref<1x64xf32, #tpu.memory_space<vmem>>, vector<1x64xf32>
    %295 = vector.broadcast %294 : vector<1x64xf32> to vector<64x64xf32>
    %296 = arith.mulf %40, %295 : vector<64x64xf32>
    %297 = arith.addf %293, %296 : vector<64x64xf32>
    %cst_134 = arith.constant 0.000000e+00 : f32
    %298 = vector.broadcast %cst_134 : f32 to vector<64x64xf32>
    %299 = arith.subf %298, %7 : vector<64x64xf32>
    %300 = math.exp %299 : vector<64x64xf32>
    %cst_135 = arith.constant 1.000000e+00 : f32
    %301 = vector.broadcast %cst_135 : f32 to vector<64x64xf32>
    %302 = arith.addf %301, %300 : vector<64x64xf32>
    %303 = arith.divf %7, %302 : vector<64x64xf32>
    %304 = arith.mulf %297, %303 : vector<64x64xf32>
    %305 = arith.truncf %304 : vector<64x64xf32> to vector<64x64xbf16>
    %c0_136 = arith.constant 0 : index
    %c0_137 = arith.constant 0 : index
    %306 = vector.load %arg8[%c0_136, %c0_137] : memref<64x32xbf16, #tpu.memory_space<vmem>>, vector<64x32xbf16>
    %cst_138 = arith.constant dense<0.000000e+00> : vector<64x32xf32>
    %307 = tpu.matmul %305, %306, %cst_138 {dimension_numbers = #tpu.dot_dimension_numbers<[1], [0], [0], [1], [0, 0, 1, 1], [], []>} : vector<64x64xbf16>, vector<64x32xbf16>, vector<64x32xf32> -> vector<64x32xf32>
    %308 = arith.addf %307, %2 : vector<64x32xf32>
    %cst_139 = arith.constant dense<0.000000e+00> : vector<64xf32>
    %309 = vector.multi_reduction <add>, %308, %cst_139 [1] : vector<64x32xf32> to vector<64xf32>
    %310 = vector.shape_cast %309 : vector<64xf32> to vector<64x1xf32>
    %cst_140 = arith.constant 3.200000e+01 : f32
    %311 = vector.broadcast %cst_140 : f32 to vector<64x1xf32>
    %312 = arith.divf %310, %311 : vector<64x1xf32>
    %313 = vector.broadcast %312 : vector<64x1xf32> to vector<64x32xf32>
    %314 = arith.subf %308, %313 : vector<64x32xf32>
    %315 = arith.mulf %314, %314 : vector<64x32xf32>
    %cst_141 = arith.constant dense<0.000000e+00> : vector<64xf32>
    %316 = vector.multi_reduction <add>, %315, %cst_141 [1] : vector<64x32xf32> to vector<64xf32>
    %317 = vector.shape_cast %316 : vector<64xf32> to vector<64x1xf32>
    %cst_142 = arith.constant 3.200000e+01 : f32
    %318 = vector.broadcast %cst_142 : f32 to vector<64x1xf32>
    %319 = arith.divf %317, %318 : vector<64x1xf32>
    %cst_143 = arith.constant 9.99999996E-13 : f32
    %320 = vector.broadcast %cst_143 : f32 to vector<64x1xf32>
    %321 = arith.addf %319, %320 : vector<64x1xf32>
    %322 = math.rsqrt %321 : vector<64x1xf32>
    %323 = vector.broadcast %322 : vector<64x1xf32> to vector<64x32xf32>
    %324 = arith.mulf %314, %323 : vector<64x32xf32>
    %c0_144 = arith.constant 0 : index
    %c0_145 = arith.constant 0 : index
    %325 = vector.load %arg9[%c0_144, %c0_145] : memref<1x32xf32, #tpu.memory_space<vmem>>, vector<1x32xf32>
    %326 = vector.broadcast %325 : vector<1x32xf32> to vector<64x32xf32>
    %327 = arith.mulf %324, %326 : vector<64x32xf32>
    %c0_146 = arith.constant 0 : index
    %c0_147 = arith.constant 0 : index
    %328 = vector.load %arg10[%c0_146, %c0_147] : memref<1x32xf32, #tpu.memory_space<vmem>>, vector<1x32xf32>
    %329 = vector.broadcast %328 : vector<1x32xf32> to vector<64x32xf32>
    %330 = arith.addf %327, %329 : vector<64x32xf32>
    %331 = arith.truncf %330 : vector<64x32xf32> to vector<64x32xbf16>
    %c0_148 = arith.constant 0 : index
    %c0_149 = arith.constant 0 : index
    %332 = vector.load %arg11[%c0_148, %c0_149] : memref<32x16xbf16, #tpu.memory_space<vmem>>, vector<32x16xbf16>
    %cst_150 = arith.constant dense<0.000000e+00> : vector<64x16xf32>
    %333 = tpu.matmul %331, %332, %cst_150 {dimension_numbers = #tpu.dot_dimension_numbers<[1], [0], [0], [1], [0, 0, 1, 1], [], []>} : vector<64x32xbf16>, vector<32x16xbf16>, vector<64x16xf32> -> vector<64x16xf32>
    %c0_151 = arith.constant 0 : index
    %c0_152 = arith.constant 0 : index
    %334 = vector.load %arg12[%c0_151, %c0_152] : memref<1x16xf32, #tpu.memory_space<vmem>>, vector<1x16xf32>
    %335 = vector.broadcast %334 : vector<1x16xf32> to vector<64x16xf32>
    %336 = arith.addf %333, %335 : vector<64x16xf32>
    %cst_153 = arith.constant 5.000000e-01 : f32
    %337 = vector.broadcast %cst_153 : f32 to vector<64x16xf32>
    %338 = arith.mulf %336, %337 : vector<64x16xf32>
    %cst_154 = arith.constant 0.707106769 : f32
    %339 = vector.broadcast %cst_154 : f32 to vector<64x16xf32>
    %340 = arith.mulf %336, %339 : vector<64x16xf32>
    %cst_155 = arith.constant 4.000000e+00 : f32
    %341 = vector.broadcast %cst_155 : f32 to vector<64x16xf32>
    %342 = arith.minimumf %340, %341 : vector<64x16xf32>
    %cst_156 = arith.constant -4.000000e+00 : f32
    %343 = vector.broadcast %cst_156 : f32 to vector<64x16xf32>
    %344 = arith.maximumf %342, %343 : vector<64x16xf32>
    %345 = arith.mulf %344, %344 : vector<64x16xf32>
    %cst_157 = arith.constant 2.29050653E-4 : f32
    %346 = vector.broadcast %cst_157 : f32 to vector<64x16xf32>
    %347 = arith.mulf %346, %345 : vector<64x16xf32>
    %cst_158 = arith.constant 0.00340829091 : f32
    %348 = vector.broadcast %cst_158 : f32 to vector<64x16xf32>
    %349 = arith.addf %347, %348 : vector<64x16xf32>
    %350 = arith.mulf %349, %345 : vector<64x16xf32>
    %cst_159 = arith.constant 0.0509556942 : f32
    %351 = vector.broadcast %cst_159 : f32 to vector<64x16xf32>
    %352 = arith.addf %350, %351 : vector<64x16xf32>
    %353 = arith.mulf %352, %345 : vector<64x16xf32>
    %cst_160 = arith.constant 0.185208321 : f32
    %354 = vector.broadcast %cst_160 : f32 to vector<64x16xf32>
    %355 = arith.addf %353, %354 : vector<64x16xf32>
    %356 = arith.mulf %355, %345 : vector<64x16xf32>
    %cst_161 = arith.constant 1.12837911 : f32
    %357 = vector.broadcast %cst_161 : f32 to vector<64x16xf32>
    %358 = arith.addf %356, %357 : vector<64x16xf32>
    %cst_162 = arith.constant -1.17916031E-7 : f32
    %359 = vector.broadcast %cst_162 : f32 to vector<64x16xf32>
    %360 = arith.mulf %359, %345 : vector<64x16xf32>
    %cst_163 = arith.constant 2.35479656E-5 : f32
    %361 = vector.broadcast %cst_163 : f32 to vector<64x16xf32>
    %362 = arith.addf %360, %361 : vector<64x16xf32>
    %363 = arith.mulf %362, %345 : vector<64x16xf32>
    %cst_164 = arith.constant 0.00101796258 : f32
    %364 = vector.broadcast %cst_164 : f32 to vector<64x16xf32>
    %365 = arith.addf %363, %364 : vector<64x16xf32>
    %366 = arith.mulf %365, %345 : vector<64x16xf32>
    %cst_165 = arith.constant 0.0140704699 : f32
    %367 = vector.broadcast %cst_165 : f32 to vector<64x16xf32>
    %368 = arith.addf %366, %367 : vector<64x16xf32>
    %369 = arith.mulf %368, %345 : vector<64x16xf32>
    %cst_166 = arith.constant 0.110985048 : f32
    %370 = vector.broadcast %cst_166 : f32 to vector<64x16xf32>
    %371 = arith.addf %369, %370 : vector<64x16xf32>
    %372 = arith.mulf %371, %345 : vector<64x16xf32>
    %cst_167 = arith.constant 0.497469246 : f32
    %373 = vector.broadcast %cst_167 : f32 to vector<64x16xf32>
    %374 = arith.addf %372, %373 : vector<64x16xf32>
    %375 = arith.mulf %374, %345 : vector<64x16xf32>
    %cst_168 = arith.constant 1.000000e+00 : f32
    %376 = vector.broadcast %cst_168 : f32 to vector<64x16xf32>
    %377 = arith.addf %375, %376 : vector<64x16xf32>
    %378 = arith.mulf %344, %358 : vector<64x16xf32>
    %379 = arith.divf %378, %377 : vector<64x16xf32>
    %cst_169 = arith.constant 1.000000e+00 : f32
    %380 = vector.broadcast %cst_169 : f32 to vector<64x16xf32>
    %381 = arith.addf %380, %379 : vector<64x16xf32>
    %382 = arith.mulf %338, %381 : vector<64x16xf32>
    %383 = arith.truncf %382 : vector<64x16xf32> to vector<64x16xbf16>
    %c0_170 = arith.constant 0 : index
    %c0_171 = arith.constant 0 : index
    %384 = vector.load %arg13[%c0_170, %c0_171] : memref<16x32xbf16, #tpu.memory_space<vmem>>, vector<16x32xbf16>
    %cst_172 = arith.constant dense<0.000000e+00> : vector<64x32xf32>
    %385 = tpu.matmul %383, %384, %cst_172 {dimension_numbers = #tpu.dot_dimension_numbers<[1], [0], [0], [1], [0, 0, 1, 1], [], []>} : vector<64x16xbf16>, vector<16x32xbf16>, vector<64x32xf32> -> vector<64x32xf32>
    %c0_173 = arith.constant 0 : index
    %c0_174 = arith.constant 0 : index
    %386 = vector.load %arg14[%c0_173, %c0_174] : memref<1x32xf32, #tpu.memory_space<vmem>>, vector<1x32xf32>
    %387 = vector.broadcast %386 : vector<1x32xf32> to vector<64x32xf32>
    %388 = arith.addf %385, %387 : vector<64x32xf32>
    %389 = arith.addf %388, %330 : vector<64x32xf32>
    %390 = vector.shape_cast %389 : vector<64x32xf32> to vector<8x8x32xf32>
    %391 = arith.truncf %390 : vector<8x8x32xf32> to vector<8x8x32xbf16>
    %c0_175 = arith.constant 0 : index
    %c0_176 = arith.constant 0 : index
    %c0_177 = arith.constant 0 : index
    %392 = vector.load %arg15[%c0_175, %c0_176, %c0_177] : memref<8x8x32xbf16, #tpu.memory_space<vmem>>, vector<8x8x32xbf16>
    tpu.vector_store %arg15[%c0_175, %c0_176, %c0_177], %391 {strides = array<i32>} : memref<8x8x32xbf16, #tpu.memory_space<vmem>>, vector<8x8x32xbf16>,
    return
  }
  func.func @transform_0(%arg0: i32) -> (i32, i32, i32) {
    %c0_i32 = arith.constant 0 : i32
    %c0_i32_0 = arith.constant 0 : i32
    %c0_i32_1 = arith.constant 0 : i32
    return %c0_i32, %arg0, %c0_i32_0 : i32, i32, i32
  }
  func.func @transform_1(%arg0: i32) -> (i32, i32) {
    %c0_i32 = arith.constant 0 : i32
    %c0_i32_0 = arith.constant 0 : i32
    %c0_i32_1 = arith.constant 0 : i32
    return %c0_i32, %c0_i32_0 : i32, i32
  }
  func.func @transform_2(%arg0: i32) -> (i32, i32) {
    %c0_i32 = arith.constant 0 : i32
    %c0_i32_0 = arith.constant 0 : i32
    %c0_i32_1 = arith.constant 0 : i32
    return %c0_i32, %c0_i32_0 : i32, i32
  }
  func.func @transform_3(%arg0: i32) -> (i32, i32) {
    %c0_i32 = arith.constant 0 : i32
    %c0_i32_0 = arith.constant 0 : i32
    %c0_i32_1 = arith.constant 0 : i32
    return %c0_i32, %c0_i32_0 : i32, i32
  }
  func.func @transform_4(%arg0: i32) -> (i32, i32) {
    %c0_i32 = arith.constant 0 : i32
    %c0_i32_0 = arith.constant 0 : i32
    %c0_i32_1 = arith.constant 0 : i32
    return %c0_i32, %c0_i32_0 : i32, i32
  }
  func.func @transform_5(%arg0: i32) -> (i32, i32) {
    %c0_i32 = arith.constant 0 : i32
    %c0_i32_0 = arith.constant 0 : i32
    %c0_i32_1 = arith.constant 0 : i32
    return %c0_i32, %c0_i32_0 : i32, i32
  }
  func.func @transform_6(%arg0: i32) -> (i32, i32) {
    %c0_i32 = arith.constant 0 : i32
    %c0_i32_0 = arith.constant 0 : i32
    %c0_i32_1 = arith.constant 0 : i32
    return %c0_i32, %c0_i32_0 : i32, i32
  }
  func.func @transform_7(%arg0: i32) -> (i32, i32) {
    %c0_i32 = arith.constant 0 : i32
    %c0_i32_0 = arith.constant 0 : i32
    %c0_i32_1 = arith.constant 0 : i32
    return %c0_i32, %c0_i32_0 : i32, i32
  }
  func.func @transform_8(%arg0: i32) -> (i32, i32) {
    %c0_i32 = arith.constant 0 : i32
    %c0_i32_0 = arith.constant 0 : i32
    %c0_i32_1 = arith.constant 0 : i32
    return %c0_i32, %c0_i32_0 : i32, i32
  }
  func.func @transform_9(%arg0: i32) -> (i32, i32) {
    %c0_i32 = arith.constant 0 : i32
    %c0_i32_0 = arith.constant 0 : i32
    %c0_i32_1 = arith.constant 0 : i32
    return %c0_i32, %c0_i32_0 : i32, i32
  }
  func.func @transform_10(%arg0: i32) -> (i32, i32) {
    %c0_i32 = arith.constant 0 : i32
    %c0_i32_0 = arith.constant 0 : i32
    %c0_i32_1 = arith.constant 0 : i32
    return %c0_i32, %c0_i32_0 : i32, i32
  }
  func.func @transform_11(%arg0: i32) -> (i32, i32) {
    %c0_i32 = arith.constant 0 : i32
    %c0_i32_0 = arith.constant 0 : i32
    %c0_i32_1 = arith.constant 0 : i32
    return %c0_i32, %c0_i32_0 : i32, i32
  }
  func.func @transform_12(%arg0: i32) -> (i32, i32) {
    %c0_i32 = arith.constant 0 : i32
    %c0_i32_0 = arith.constant 0 : i32
    %c0_i32_1 = arith.constant 0 : i32
    return %c0_i32, %c0_i32_0 : i32, i32
  }
  func.func @transform_13(%arg0: i32) -> (i32, i32) {
    %c0_i32 = arith.constant 0 : i32
    %c0_i32_0 = arith.constant 0 : i32
    %c0_i32_1 = arith.constant 0 : i32
    return %c0_i32, %c0_i32_0 : i32, i32
  }
  func.func @transform_14(%arg0: i32) -> (i32, i32, i32) {
    %c0_i32 = arith.constant 0 : i32
    %c0_i32_0 = arith.constant 0 : i32
    %c0_i32_1 = arith.constant 0 : i32
    return %c0_i32, %arg0, %c0_i32_0 : i32, i32, i32
  }
}

module attributes {stable_mosaic.version = 11 : i64} {
  func.func @_ln_kernel(%arg0: i32, %arg1: memref<64x32xf32, #tpu.memory_space<vmem>>, %arg2: memref<1x32xf32, #tpu.memory_space<vmem>>, %arg3: memref<1x32xf32, #tpu.memory_space<vmem>>, %arg4: memref<64x32xbf16, #tpu.memory_space<vmem>>) attributes {dimension_semantics = [#tpu.dimension_semantics<parallel>], iteration_bounds = array<i64: 1>, scalar_prefetch = 0 : i64, scratch_operands = 0 : i64, tpu.core_type = #tpu.core_type<tc>, window_params = [{transform_indices = @transform_0, window_bounds = array<i64: 64, 32>}, {pipeline_mode = #tpu.pipeline_mode<synchronous>, transform_indices = @transform_1, window_bounds = array<i64: 1, 32>}, {pipeline_mode = #tpu.pipeline_mode<synchronous>, transform_indices = @transform_2, window_bounds = array<i64: 1, 32>}, {transform_indices = @transform_3, window_bounds = array<i64: 64, 32>}]} {
    %c0 = arith.constant 0 : index
    %c0_0 = arith.constant 0 : index
    %0 = vector.load %arg1[%c0, %c0_0] : memref<64x32xf32, #tpu.memory_space<vmem>>, vector<64x32xf32>
    %cst = arith.constant dense<0.000000e+00> : vector<64xf32>
    %1 = vector.multi_reduction <add>, %0, %cst [1] : vector<64x32xf32> to vector<64xf32>
    %2 = vector.shape_cast %1 : vector<64xf32> to vector<64x1xf32>
    %cst_1 = arith.constant 3.200000e+01 : f32
    %3 = vector.broadcast %cst_1 : f32 to vector<64x1xf32>
    %4 = arith.divf %2, %3 : vector<64x1xf32>
    %5 = vector.broadcast %4 : vector<64x1xf32> to vector<64x32xf32>
    %6 = arith.subf %0, %5 : vector<64x32xf32>
    %7 = arith.mulf %6, %6 : vector<64x32xf32>
    %cst_2 = arith.constant dense<0.000000e+00> : vector<64xf32>
    %8 = vector.multi_reduction <add>, %7, %cst_2 [1] : vector<64x32xf32> to vector<64xf32>
    %9 = vector.shape_cast %8 : vector<64xf32> to vector<64x1xf32>
    %cst_3 = arith.constant 3.200000e+01 : f32
    %10 = vector.broadcast %cst_3 : f32 to vector<64x1xf32>
    %11 = arith.divf %9, %10 : vector<64x1xf32>
    %cst_4 = arith.constant 9.99999996E-13 : f32
    %12 = vector.broadcast %cst_4 : f32 to vector<64x1xf32>
    %13 = arith.addf %11, %12 : vector<64x1xf32>
    %14 = math.rsqrt %13 : vector<64x1xf32>
    %15 = vector.broadcast %14 : vector<64x1xf32> to vector<64x32xf32>
    %16 = arith.mulf %6, %15 : vector<64x32xf32>
    %c0_5 = arith.constant 0 : index
    %c0_6 = arith.constant 0 : index
    %17 = vector.load %arg2[%c0_5, %c0_6] : memref<1x32xf32, #tpu.memory_space<vmem>>, vector<1x32xf32>
    %18 = vector.broadcast %17 : vector<1x32xf32> to vector<64x32xf32>
    %19 = arith.mulf %16, %18 : vector<64x32xf32>
    %c0_7 = arith.constant 0 : index
    %c0_8 = arith.constant 0 : index
    %20 = vector.load %arg3[%c0_7, %c0_8] : memref<1x32xf32, #tpu.memory_space<vmem>>, vector<1x32xf32>
    %21 = vector.broadcast %20 : vector<1x32xf32> to vector<64x32xf32>
    %22 = arith.addf %19, %21 : vector<64x32xf32>
    %23 = arith.truncf %22 : vector<64x32xf32> to vector<64x32xbf16>
    %c0_9 = arith.constant 0 : index
    %c0_10 = arith.constant 0 : index
    %24 = vector.load %arg4[%c0_9, %c0_10] : memref<64x32xbf16, #tpu.memory_space<vmem>>, vector<64x32xbf16>
    tpu.vector_store %arg4[%c0_9, %c0_10], %23 {strides = array<i32>} : memref<64x32xbf16, #tpu.memory_space<vmem>>, vector<64x32xbf16>,
    return
  }
  func.func @transform_0(%arg0: i32) -> (i32, i32) {
    %c0_i32 = arith.constant 0 : i32
    %c0_i32_0 = arith.constant 0 : i32
    return %arg0, %c0_i32 : i32, i32
  }
  func.func @transform_1(%arg0: i32) -> (i32, i32) {
    %c0_i32 = arith.constant 0 : i32
    %c0_i32_0 = arith.constant 0 : i32
    %c0_i32_1 = arith.constant 0 : i32
    return %c0_i32, %c0_i32_0 : i32, i32
  }
  func.func @transform_2(%arg0: i32) -> (i32, i32) {
    %c0_i32 = arith.constant 0 : i32
    %c0_i32_0 = arith.constant 0 : i32
    %c0_i32_1 = arith.constant 0 : i32
    return %c0_i32, %c0_i32_0 : i32, i32
  }
  func.func @transform_3(%arg0: i32) -> (i32, i32) {
    %c0_i32 = arith.constant 0 : i32
    %c0_i32_0 = arith.constant 0 : i32
    return %arg0, %c0_i32 : i32, i32
  }
}

</mosaic_0001>

<llo_original>
// kernel: mamba4rec_forward.3
$region0: #{mamba4rec_forward.3}
  #allocation0 [shape = 'u32[]', space=smem, size = 0x4, offset = 0x4, fixed_abs, tag = 'smem constant byte address 0x4 - core index']
  #allocation1 [shape = 'u32[144,128]{1,0:T(1,128)}', space=vmem, size = 0x12000, scoped, tag = 'internal scratch']
  %s0 = inlined_call_operand.vmem [shape: f32[64,32], index: 0, kind: input, shape index: {}]
  %s1 = inlined_call_operand.vmem [shape: f32[1,32], index: 1, kind: input, shape index: {}]
  %s2 = inlined_call_operand.vmem [shape: f32[1,32], index: 2, kind: input, shape index: {}]
  %s3 = inlined_call_operand.vmem [shape: bf16[64,32], index: 3, kind: output, shape index: {}]
  %s4 = sld [smem:[#allocation0]]
  $region22: #{mamba4rec_forward.3} parent=0
    _
  %s6 = ssub.s32 1, %s4
  %s7 = scalar_select 0, %s6, %s4
  // Predicated region
  $region2: #{mamba4rec_forward.3} parent=0 // pred_check
    _
  $region3: #{mamba4rec_forward.3} parent=0 // pred_check_branch
    %9 = sbr.rel (0) target = $region5
  $region4: #{mamba4rec_forward.3} parent=0 // pred_region
    _
  $region5: #{mamba4rec_forward.3} parent=0 // pred_fallthru
    _
  // Predicated region
  $region6: #{mamba4rec_forward.3} parent=0 // pred_check
    _
  $region7: #{mamba4rec_forward.3} parent=0 // pred_check_branch
    %11 = sbr.rel (0) target = $region9
  $region8: #{mamba4rec_forward.3} parent=0 // pred_region
    _
  $region9: #{mamba4rec_forward.3} parent=0 // pred_fallthru
    _
  // Predicated region
  $region10: #{mamba4rec_forward.3} parent=0 // pred_check
    _
  $region11: #{mamba4rec_forward.3} parent=0 // pred_check_branch
    %13 = sbr.rel (0) target = $region13
  $region12: #{mamba4rec_forward.3} parent=0 // pred_region
    _
  $region13: #{mamba4rec_forward.3} parent=0 // pred_fallthru
    _
  %v14 = vld [vmem:[%s0] sm:$0xff]
  %v15 = vld [vmem:[%s0 + $0x8] sm:$0xff]
  %v16 = vld [vmem:[%s0 + $0x10] sm:$0xff]
  %v17 = vld [vmem:[%s0 + $0x18] sm:$0xff]
  %v18 = vld [vmem:[%s0 + $0x20] sm:$0xff]
  %v19 = vld [vmem:[%s0 + $0x28] sm:$0xff]
  %v20 = vld [vmem:[%s0 + $0x30] sm:$0xff]
  %v21 = vld [vmem:[%s0 + $0x38] sm:$0xff]
  %vm22 = vcmask 261120
  %v23 = vsel %vm22, %v14, 0.0
  %24 = vadd.xlane.f32.xlu0 %v23
  %v25 = vpop.xlane.xlu0 %24
  %v26 = vsel %vm22, %v15, 0.0
  %27 = vadd.xlane.f32.xlu0 %v26
  %v28 = vpop.xlane.xlu0 %27
  %v29 = vsel %vm22, %v16, 0.0
  %30 = vadd.xlane.f32.xlu0 %v29
  %v31 = vpop.xlane.xlu0 %30
  %v32 = vsel %vm22, %v17, 0.0
  %33 = vadd.xlane.f32.xlu0 %v32
  %v34 = vpop.xlane.xlu0 %33
  %v35 = vsel %vm22, %v18, 0.0
  %36 = vadd.xlane.f32.xlu0 %v35
  %v37 = vpop.xlane.xlu0 %36
  %v38 = vsel %vm22, %v19, 0.0
  %39 = vadd.xlane.f32.xlu0 %v38
  %v40 = vpop.xlane.xlu0 %39
  %v41 = vsel %vm22, %v20, 0.0
  %42 = vadd.xlane.f32.xlu0 %v41
  %v43 = vpop.xlane.xlu0 %42
  %v44 = vsel %vm22, %v21, 0.0
  %45 = vadd.xlane.f32.xlu0 %v44
  %v46 = vpop.xlane.xlu0 %45
  %v47 = vrcp.pop 32.0
  %v48 = vmul.f32 %v25, %v47
  %v49 = vmul.f32 %v28, %v47
  %v50 = vmul.f32 %v31, %v47
  %v51 = vmul.f32 %v34, %v47
  %v52 = vmul.f32 %v37, %v47
  %v53 = vmul.f32 %v40, %v47
  %v54 = vmul.f32 %v43, %v47
  %v55 = vmul.f32 %v46, %v47
  %v56 = vsub.f32 %v14, %v48
  %v57 = vsub.f32 %v15, %v49
  %v58 = vsub.f32 %v16, %v50
  %v59 = vsub.f32 %v17, %v51
  %v60 = vsub.f32 %v18, %v52
  %v61 = vsub.f32 %v19, %v53
  %v62 = vsub.f32 %v20, %v54
  %v63 = vsub.f32 %v21, %v55
  %v64 = vmul.f32 %v56, %v56
  %v65 = vmul.f32 %v57, %v57
  %v66 = vmul.f32 %v58, %v58
  %v67 = vmul.f32 %v59, %v59
  %v68 = vmul.f32 %v60, %v60
  %v69 = vmul.f32 %v61, %v61
  %v70 = vmul.f32 %v62, %v62
  %v71 = vmul.f32 %v63, %v63
  %v72 = vsel %vm22, %v64, 0.0
  %73 = vadd.xlane.f32.xlu0 %v72
  %v74 = vpop.xlane.xlu0 %73
  %v75 = vsel %vm22, %v65, 0.0
  %76 = vadd.xlane.f32.xlu0 %v75
  %v77 = vpop.xlane.xlu0 %76
  %v78 = vsel %vm22, %v66, 0.0
  %79 = vadd.xlane.f32.xlu0 %v78
  %v80 = vpop.xlane.xlu0 %79
  %v81 = vsel %vm22, %v67, 0.0
  %82 = vadd.xlane.f32.xlu0 %v81
  %v83 = vpop.xlane.xlu0 %82
  %v84 = vsel %vm22, %v68, 0.0
  %85 = vadd.xlane.f32.xlu0 %v84
  %v86 = vpop.xlane.xlu0 %85
  %v87 = vsel %vm22, %v69, 0.0
  %88 = vadd.xlane.f32.xlu0 %v87
  %v89 = vpop.xlane.xlu0 %88
  %v90 = vsel %vm22, %v70, 0.0
  %91 = vadd.xlane.f32.xlu0 %v90
  %v92 = vpop.xlane.xlu0 %91
  %v93 = vsel %vm22, %v71, 0.0
  %94 = vadd.xlane.f32.xlu0 %v93
  %v95 = vpop.xlane.xlu0 %94
  %v96 = vmul.f32 %v74, %v47
  %v97 = vmul.f32 %v77, %v47
  %v98 = vmul.f32 %v80, %v47
  %v99 = vmul.f32 %v83, %v47
  %v100 = vmul.f32 %v86, %v47
  %v101 = vmul.f32 %v89, %v47
  %v102 = vmul.f32 %v92, %v47
  %v103 = vmul.f32 %v95, %v47
  %v104 = vadd.f32 %v96, 1e-12
  %v105 = vadd.f32 %v97, 1e-12
  %v106 = vadd.f32 %v98, 1e-12
  %v107 = vadd.f32 %v99, 1e-12
  %v108 = vadd.f32 %v100, 1e-12
  %v109 = vadd.f32 %v101, 1e-12
  %v110 = vadd.f32 %v102, 1e-12
  %v111 = vadd.f32 %v103, 1e-12
  %v112 = vrsqrt.pop %v104
  %v113 = vrsqrt.pop %v105
  %v114 = vrsqrt.pop %v106
  %v115 = vrsqrt.pop %v107
  %v116 = vrsqrt.pop %v108
  %v117 = vrsqrt.pop %v109
  %v118 = vrsqrt.pop %v110
  %v119 = vrsqrt.pop %v111
  %v120 = vmul.f32 %v56, %v112
  %v121 = vmul.f32 %v57, %v113
  %v122 = vmul.f32 %v58, %v114
  %v123 = vmul.f32 %v59, %v115
  %v124 = vmul.f32 %v60, %v116
  %v125 = vmul.f32 %v61, %v117
  %v126 = vmul.f32 %v62, %v118
  %v127 = vmul.f32 %v63, %v119
  %v128 = vld [vmem:[%s1] sm:$0x1]
  %v130 = vlaneseq
  %v131 = vshrl.u32 %v130, 7
  %v132 = vsub.s32 0, %v131
  %v133 = vrot.slane %v128, %v132
  %v135 = vmul.f32 %v120, %v133
  %v136 = vmul.f32 %v121, %v133
  %v137 = vmul.f32 %v122, %v133
  %v138 = vmul.f32 %v123, %v133
  %v139 = vmul.f32 %v124, %v133
  %v140 = vmul.f32 %v125, %v133
  %v141 = vmul.f32 %v126, %v133
  %v142 = vmul.f32 %v127, %v133
  %v143 = vld [vmem:[%s2] sm:$0x1]
  %v145 = vlaneseq
  %v146 = vshrl.u32 %v145, 7
  %v147 = vsub.s32 0, %v146
  %v148 = vrot.slane %v143, %v147
  %v150 = vadd.f32 %v135, %v148
  %v151 = vadd.f32 %v136, %v148
  %v152 = vadd.f32 %v137, %v148
  %v153 = vadd.f32 %v138, %v148
  %v154 = vadd.f32 %v139, %v148
  %v155 = vadd.f32 %v140, %v148
  %v156 = vadd.f32 %v141, %v148
  %v157 = vadd.f32 %v142, %v148
  %v158 = vpack.c.bf16 %v151, %v150
  %v159 = vpack.c.bf16 %v153, %v152
  %v160 = vpack.c.bf16 %v155, %v154
  %v161 = vpack.c.bf16 %v157, %v156
  %v166 = vunpack.c.l.b16 %v158
  %v167 = vunpack.c.h.b16 %v158
  %v168 = vunpack.c.l.b16 %v159
  %v169 = vunpack.c.h.b16 %v159
  %v170 = vunpack.c.l.b16 %v160
  %v171 = vunpack.c.h.b16 %v160
  %v172 = vunpack.c.l.b16 %v161
  %v173 = vunpack.c.h.b16 %v161
  %v174 = vpack.c.b16 %v166, %v166
  %v175 = vpack.c.b16 %v167, %v167
  %v176 = vpack.c.b16 %v168, %v168
  %v177 = vpack.c.b16 %v169, %v169
  %v178 = vpack.c.b16 %v170, %v170
  %v179 = vpack.c.b16 %v171, %v171
  %v180 = vpack.c.b16 %v172, %v172
  %v181 = vpack.c.b16 %v173, %v173
  %vm190 = vcmask 257024
  %191 = vst.msk [vmem:[%s3] sm:$0xf] %vm190, %v174
  %192 = vst.msk [vmem:[%s3 + $0x4] sm:$0xf] %vm190, %v175
  %193 = vst.msk [vmem:[%s3 + $0x8] sm:$0xf] %vm190, %v176
  %194 = vst.msk [vmem:[%s3 + $0xc] sm:$0xf] %vm190, %v177
  %195 = vst.msk [vmem:[%s3 + $0x10] sm:$0xf] %vm190, %v178
  %196 = vst.msk [vmem:[%s3 + $0x14] sm:$0xf] %vm190, %v179
  %197 = vst.msk [vmem:[%s3 + $0x18] sm:$0xf] %vm190, %v180
  %198 = vst.msk [vmem:[%s3 + $0x1c] sm:$0xf] %vm190, %v181
  // Predicated region
  $region14: #{mamba4rec_forward.3} parent=0 // pred_check
    _
  $region15: #{mamba4rec_forward.3} parent=0 // pred_check_branch
    %200 = sbr.rel (0) target = $region17
  $region16: #{mamba4rec_forward.3} parent=0 // pred_region
    _
  $region17: #{mamba4rec_forward.3} parent=0 // pred_fallthru
    _
  // Predicated region
  $region18: #{mamba4rec_forward.3} parent=0 // pred_check
    _
  $region19: #{mamba4rec_forward.3} parent=0 // pred_check_branch
    %202 = sbr.rel (0) target = $region21
  $region20: #{mamba4rec_forward.3} parent=0 // pred_region
    _
  $region21: #{mamba4rec_forward.3} parent=0 // pred_fallthru
    _

// kernel: mamba4rec_forward.4
$region0: #{mamba4rec_forward.4}
  #allocation0 [shape = 'u32[]', space=smem, size = 0x4, offset = 0x4, fixed_abs, tag = 'smem constant byte address 0x4 - core index']
  #allocation1 [shape = 'u32[144,128]{1,0:T(1,128)}', space=vmem, size = 0x12000, scoped, tag = 'internal scratch']
  #allocation2 [shape = 'f32[8,8,16,64]{3,2,1,0:T(8,128)}', space=vmem, size = 0x80000, scoped, tag = 'scratch operand']
  #allocation3 [shape = 'f32[8,8,64]{2,1,0:T(8,128)}', space=vmem, size = 0x8000, scoped, tag = 'scratch operand']
  #allocation4 [shape = 'f32[8,8,16]{2,1,0:T(8,128)}', space=vmem, size = 0x8000, scoped, tag = 'scratch operand']
  #allocation5 [shape = 'f32[8,8,16]{2,1,0:T(8,128)}', space=vmem, size = 0x8000, scoped, tag = 'scratch operand']
  #allocation6 [shape = 'f32[8,8,64]{2,1,0:T(8,128)}', space=vmem, size = 0x8000, scoped, tag = 'scratch operand']
  %s0 = inlined_call_operand.vmem [shape: bf16[8,8,32], index: 0, kind: input, shape index: {}]
  %s1 = inlined_call_operand.vmem [shape: bf16[32,192], index: 1, kind: input, shape index: {}]
  %s2 = inlined_call_operand.vmem [shape: f32[4,64], index: 2, kind: input, shape index: {}]
  %s3 = inlined_call_operand.vmem [shape: bf16[64,272], index: 3, kind: input, shape index: {}]
  %s4 = inlined_call_operand.vmem [shape: f32[1,64], index: 4, kind: input, shape index: {}]
  %s5 = inlined_call_operand.vmem [shape: f32[16,64], index: 5, kind: input, shape index: {}]
  %s6 = inlined_call_operand.vmem [shape: f32[1,64], index: 6, kind: input, shape index: {}]
  %s7 = inlined_call_operand.vmem [shape: bf16[64,32], index: 7, kind: input, shape index: {}]
  %s8 = inlined_call_operand.vmem [shape: f32[1,32], index: 8, kind: input, shape index: {}]
  %s9 = inlined_call_operand.vmem [shape: f32[1,32], index: 9, kind: input, shape index: {}]
  %s10 = inlined_call_operand.vmem [shape: bf16[32,16], index: 10, kind: input, shape index: {}]
  %s11 = inlined_call_operand.vmem [shape: f32[1,16], index: 11, kind: input, shape index: {}]
  %s12 = inlined_call_operand.vmem [shape: bf16[16,32], index: 12, kind: input, shape index: {}]
  %s13 = inlined_call_operand.vmem [shape: f32[1,32], index: 13, kind: input, shape index: {}]
  %s14 = inlined_call_operand.vmem [shape: bf16[8,8,32], index: 14, kind: output, shape index: {}]
  %s15 = sld [smem:[#allocation0]]
  $region66: #{mamba4rec_forward.4} parent=0
    _
  %s17 = ssub.s32 1, %s15
  %s18 = scalar_select 0, %s17, %s15
  // Predicated region
  $region2: #{mamba4rec_forward.4} parent=0 // pred_check
    _
  $region3: #{mamba4rec_forward.4} parent=0 // pred_check_branch
    %20 = sbr.rel (0) target = $region5
  $region4: #{mamba4rec_forward.4} parent=0 // pred_region
    _
  $region5: #{mamba4rec_forward.4} parent=0 // pred_fallthru
    _
  // Predicated region
  $region6: #{mamba4rec_forward.4} parent=0 // pred_check
    _
  $region7: #{mamba4rec_forward.4} parent=0 // pred_check_branch
    %22 = sbr.rel (0) target = $region9
  $region8: #{mamba4rec_forward.4} parent=0 // pred_region
    _
  $region9: #{mamba4rec_forward.4} parent=0 // pred_fallthru
    _
  // Predicated region
  $region10: #{mamba4rec_forward.4} parent=0 // pred_check
    _
  $region11: #{mamba4rec_forward.4} parent=0 // pred_check_branch
    %24 = sbr.rel (0) target = $region13
  $region12: #{mamba4rec_forward.4} parent=0 // pred_region
    _
  $region13: #{mamba4rec_forward.4} parent=0 // pred_fallthru
    _
  // Predicated region
  $region14: #{mamba4rec_forward.4} parent=0 // pred_check
    _
  $region15: #{mamba4rec_forward.4} parent=0 // pred_check_branch
    %26 = sbr.rel (0) target = $region17
  $region16: #{mamba4rec_forward.4} parent=0 // pred_region
    _
  $region17: #{mamba4rec_forward.4} parent=0 // pred_fallthru
    _
  // Predicated region
  $region18: #{mamba4rec_forward.4} parent=0 // pred_check
    _
  $region19: #{mamba4rec_forward.4} parent=0 // pred_check_branch
    %28 = sbr.rel (0) target = $region21
  $region20: #{mamba4rec_forward.4} parent=0 // pred_region
    _
  $region21: #{mamba4rec_forward.4} parent=0 // pred_fallthru
    _
  // Predicated region
  $region22: #{mamba4rec_forward.4} parent=0 // pred_check
    _
  $region23: #{mamba4rec_forward.4} parent=0 // pred_check_branch
    %30 = sbr.rel (0) target = $region25
  $region24: #{mamba4rec_forward.4} parent=0 // pred_region
    _
  $region25: #{mamba4rec_forward.4} parent=0 // pred_fallthru
    _
  // Predicated region
  $region26: #{mamba4rec_forward.4} parent=0 // pred_check
    _
  $region27: #{mamba4rec_forward.4} parent=0 // pred_check_branch
    %32 = sbr.rel (0) target = $region29
  $region28: #{mamba4rec_forward.4} parent=0 // pred_region
    _
  $region29: #{mamba4rec_forward.4} parent=0 // pred_fallthru
    _
  // Predicated region
  $region30: #{mamba4rec_forward.4} parent=0 // pred_check
    _
  $region31: #{mamba4rec_forward.4} parent=0 // pred_check_branch
    %34 = sbr.rel (0) target = $region33
  $region32: #{mamba4rec_forward.4} parent=0 // pred_region
    _
  $region33: #{mamba4rec_forward.4} parent=0 // pred_fallthru
    _
  // Predicated region
  $region34: #{mamba4rec_forward.4} parent=0 // pred_check
    _
  $region35: #{mamba4rec_forward.4} parent=0 // pred_check_branch
    %36 = sbr.rel (0) target = $region37
  $region36: #{mamba4rec_forward.4} parent=0 // pred_region
    _
  $region37: #{mamba4rec_forward.4} parent=0 // pred_fallthru
    _
  // Predicated region
  $region38: #{mamba4rec_forward.4} parent=0 // pred_check
    _
  $region39: #{mamba4rec_forward.4} parent=0 // pred_check_branch
    %38 = sbr.rel (0) target = $region41
  $region40: #{mamba4rec_forward.4} parent=0 // pred_region
    _
  $region41: #{mamba4rec_forward.4} parent=0 // pred_fallthru
    _
  // Predicated region
  $region42: #{mamba4rec_forward.4} parent=0 // pred_check
    _
  $region43: #{mamba4rec_forward.4} parent=0 // pred_check_branch
    %40 = sbr.rel (0) target = $region45
  $region44: #{mamba4rec_forward.4} parent=0 // pred_region
    _
  $region45: #{mamba4rec_forward.4} parent=0 // pred_fallthru
    _
  // Predicated region
  $region46: #{mamba4rec_forward.4} parent=0 // pred_check
    _
  $region47: #{mamba4rec_forward.4} parent=0 // pred_check_branch
    %42 = sbr.rel (0) target = $region49
  $region48: #{mamba4rec_forward.4} parent=0 // pred_region
    _
  $region49: #{mamba4rec_forward.4} parent=0 // pred_fallthru
    _
  // Predicated region
  $region50: #{mamba4rec_forward.4} parent=0 // pred_check
    _
  $region51: #{mamba4rec_forward.4} parent=0 // pred_check_branch
    %44 = sbr.rel (0) target = $region53
  $region52: #{mamba4rec_forward.4} parent=0 // pred_region
    _
  $region53: #{mamba4rec_forward.4} parent=0 // pred_fallthru
    _
  // Predicated region
  $region54: #{mamba4rec_forward.4} parent=0 // pred_check
    _
  $region55: #{mamba4rec_forward.4} parent=0 // pred_check_branch
    %46 = sbr.rel (0) target = $region57
  $region56: #{mamba4rec_forward.4} parent=0 // pred_region
    _
  $region57: #{mamba4rec_forward.4} parent=0 // pred_fallthru
    _
  %v48 = vld [vmem:[%s0] sm:$0xf]
  %v49 = vld [vmem:[%s0 + $0x4] sm:$0xf]
  %v50 = vld [vmem:[%s0 + $0x8] sm:$0xf]
  %v51 = vld [vmem:[%s0 + $0xc] sm:$0xf]
  %v52 = vld [vmem:[%s0 + $0x10] sm:$0xf]
  %v53 = vld [vmem:[%s0 + $0x14] sm:$0xf]
  %v54 = vld [vmem:[%s0 + $0x18] sm:$0xf]
  %v55 = vld [vmem:[%s0 + $0x1c] sm:$0xf]
  %v56 = vunpack.c.l.bf16 %v48
  %v57 = vunpack.c.l.bf16 %v49
  %v58 = vunpack.c.l.bf16 %v50
  %v59 = vunpack.c.l.bf16 %v51
  %v60 = vunpack.c.l.bf16 %v52
  %v61 = vunpack.c.l.bf16 %v53
  %v62 = vunpack.c.l.bf16 %v54
  %v63 = vunpack.c.l.bf16 %v55
  %v64 = vpack.c.bf16 %v57, %v56
  %v65 = vpack.c.bf16 %v59, %v58
  %v66 = vpack.c.bf16 %v61, %v60
  %v67 = vpack.c.bf16 %v63, %v62
  %v68 = vld [vmem:[%s1] sm:$0xff]
  %v69 = vld [vmem:[%s1 + $0x8] sm:$0xff]
  %v70 = vld [vmem:[%s1 + $0x10] sm:$0xff]
  %v71 = vld [vmem:[%s1 + $0x18] sm:$0xff]
  %v76 = vunpack.c.l.b16 %v68
  %v77 = vunpack.c.h.b16 %v68
  %v78 = vunpack.c.l.b16 %v69
  %v79 = vunpack.c.h.b16 %v69
  %v80 = vunpack.c.l.b16 %v70
  %v81 = vunpack.c.h.b16 %v70
  %v82 = vunpack.c.l.b16 %v71
  %v83 = vunpack.c.h.b16 %v71
  %v84 = vpack.c.b16 %v78, %v76
  %v85 = vpack.c.b16 %v79, %v77
  %v86 = vpack.c.b16 %v82, %v80
  %v87 = vpack.c.b16 %v83, %v81
  %vm92 = vcmask 261120
  %v94 = vsel %vm92, %v64, 0
  %v97 = vsel %vm92, %v65, 0
  %v100 = vsel %vm92, %v66, 0
  %v103 = vsel %vm92, %v67, 0
  %105 = vmatprep.subr.bf16.mxu0 %v85
  %106 = vmatpush1.bf16.msra.mxu0 %v84
  %107 = vmatprep.subr.bf16.mxu0 %v87
  %108 = vmatpush1.bf16.msra.mxu0 %v86
  %109 = vmatprep.subr.bf16.mxu0 0
  %110 = vmatpush1.bf16.msra.mxu0 0
  %111 = vmatprep.subr.bf16.mxu0 0
  %112 = vmatpush1.bf16.msra.mxu0 0
  %113 = vmatprep.subr.bf16.mxu0 0
  %114 = vmatpush1.bf16.msra.mxu0 0
  %115 = vmatprep.subr.bf16.mxu0 0
  %116 = vmatpush1.bf16.msra.mxu0 0
  %117 = vmatprep.subr.bf16.mxu0 0
  %118 = vmatpush1.bf16.msra.mxu0 0
  %119 = vmatprep.subr.bf16.mxu0 0
  %120 = vmatpush1.bf16.msra.mxu0 0
  %121 = vmatprep.subr.bf16.mxu0 0
  %122 = vmatpush1.bf16.msra.mxu0 0
  %123 = vmatprep.subr.bf16.mxu0 0
  %124 = vmatpush1.bf16.msra.mxu0 0
  %125 = vmatprep.subr.bf16.mxu0 0
  %126 = vmatpush1.bf16.msra.mxu0 0
  %127 = vmatprep.subr.bf16.mxu0 0
  %128 = vmatpush1.bf16.msra.mxu0 0
  %129 = vmatprep.subr.bf16.mxu0 0
  %130 = vmatpush1.bf16.msra.mxu0 0
  %131 = vmatprep.subr.bf16.mxu0 0
  %132 = vmatpush1.bf16.msra.mxu0 0
  %133 = vmatprep.subr.bf16.mxu0 0
  %134 = vmatpush1.bf16.msra.mxu0 0
  %135 = vmatprep.subr.bf16.mxu0 0
  %136 = vmatpush1.bf16.msra.mxu0 0
  %137 = vmatprep.mubr.bf16.mxu0 0
  %138 = vmatmul.mubr.bf16.gmra.mrb[0].mxu0 %v94
  %v139 = vpop.f32.mrb[0].mxu0
  %v140 = vadd.f32 0.0, %v139
  %v141 = vpop.f32.mrb[0].mxu0
  %v142 = vadd.f32 0.0, %v141
  %v143 = vpop.f32.mrb[0].mxu0
  %v144 = vadd.f32 0.0, %v143
  %v145 = vpop.f32.mrb[0].mxu0
  %v146 = vadd.f32 0.0, %v145
  %147 = vmatprep.mubr.bf16.mxu0 0
  %148 = vmatmul.mubr.bf16.gmra.mrb[0].mxu0 %v97
  %v149 = vpop.f32.mrb[0].mxu0
  %v150 = vadd.f32 0.0, %v149
  %v151 = vpop.f32.mrb[0].mxu0
  %v152 = vadd.f32 0.0, %v151
  %v153 = vpop.f32.mrb[0].mxu0
  %v154 = vadd.f32 0.0, %v153
  %v155 = vpop.f32.mrb[0].mxu0
  %v156 = vadd.f32 0.0, %v155
  %157 = vmatprep.mubr.bf16.mxu0 0
  %158 = vmatmul.mubr.bf16.gmra.mrb[0].mxu0 %v100
  %v159 = vpop.f32.mrb[0].mxu0
  %v160 = vadd.f32 0.0, %v159
  %v161 = vpop.f32.mrb[0].mxu0
  %v162 = vadd.f32 0.0, %v161
  %v163 = vpop.f32.mrb[0].mxu0
  %v164 = vadd.f32 0.0, %v163
  %v165 = vpop.f32.mrb[0].mxu0
  %v166 = vadd.f32 0.0, %v165
  %167 = vmatprep.mubr.bf16.mxu0 0
  %168 = vmatmul.mubr.bf16.gmra.mrb[0].mxu0 %v103
  %v169 = vpop.f32.mrb[0].mxu0
  %v170 = vadd.f32 0.0, %v169
  %v171 = vpop.f32.mrb[0].mxu0
  %v172 = vadd.f32 0.0, %v171
  %v173 = vpop.f32.mrb[0].mxu0
  %v174 = vadd.f32 0.0, %v173
  %v175 = vpop.f32.mrb[0].mxu0
  %v176 = vadd.f32 0.0, %v175
  %177 = vdwg.mxu0
  %v178 = vld [vmem:[%s2] sm:$0xf]
  %v179 = vlaneseq
  %v180 = vshrl.u32 %v179, 7
  %v181 = vsub.s32 3, %v180
  %v182 = vrot.slane %v178, %v181
  %v183 = vmul.f32 %v182, %v140
  %v184 = vmul.f32 %v182, %v144
  %v185 = vmul.f32 %v182, %v150
  %v186 = vmul.f32 %v182, %v154
  %v187 = vmul.f32 %v182, %v160
  %v188 = vmul.f32 %v182, %v164
  %v189 = vmul.f32 %v182, %v170
  %v190 = vmul.f32 %v182, %v174
  %v191 = vlaneseq
  %v192 = vshrl.u32 %v191, 7
  %v193 = vsub.s32 2, %v192
  %v194 = vrot.slane %v178, %v193
  %v195 = vmul.f32 %v194, 0.0
  %v196 = vmul.f32 %v194, %v140
  %v197 = vmul.f32 %v194, %v144
  %v198 = vmul.f32 %v194, %v150
  %v199 = vmul.f32 %v194, %v154
  %v200 = vmul.f32 %v194, %v160
  %v201 = vmul.f32 %v194, %v164
  %v202 = vmul.f32 %v194, %v170
  %v203 = vadd.f32 %v183, %v195
  %v204 = vadd.f32 %v184, %v196
  %v205 = vadd.f32 %v185, %v197
  %v206 = vadd.f32 %v186, %v198
  %v207 = vadd.f32 %v187, %v199
  %v208 = vadd.f32 %v188, %v200
  %v209 = vadd.f32 %v189, %v201
  %v210 = vadd.f32 %v190, %v202
  %v211 = vlaneseq
  %v212 = vshrl.u32 %v211, 7
  %v213 = vsub.s32 1, %v212
  %v214 = vrot.slane %v178, %v213
  %v215 = vmul.f32 %v214, 0.0
  %v216 = vmul.f32 %v214, %v140
  %v217 = vmul.f32 %v214, %v144
  %v218 = vmul.f32 %v214, %v150
  %v219 = vmul.f32 %v214, %v154
  %v220 = vmul.f32 %v214, %v160
  %v221 = vmul.f32 %v214, %v164
  %v222 = vadd.f32 %v203, %v215
  %v223 = vadd.f32 %v204, %v215
  %v224 = vadd.f32 %v205, %v216
  %v225 = vadd.f32 %v206, %v217
  %v226 = vadd.f32 %v207, %v218
  %v227 = vadd.f32 %v208, %v219
  %v228 = vadd.f32 %v209, %v220
  %v229 = vadd.f32 %v210, %v221
  %v230 = vlaneseq
  %v231 = vshrl.u32 %v230, 7
  %v232 = vsub.s32 0, %v231
  %v233 = vrot.slane %v178, %v232
  %v234 = vmul.f32 %v233, 0.0
  %v235 = vmul.f32 %v233, %v140
  %v236 = vmul.f32 %v233, %v144
  %v237 = vmul.f32 %v233, %v150
  %v238 = vmul.f32 %v233, %v154
  %v239 = vmul.f32 %v233, %v160
  %v240 = vadd.f32 %v222, %v234
  %v241 = vadd.f32 %v223, %v234
  %v242 = vadd.f32 %v224, %v234
  %v243 = vadd.f32 %v225, %v235
  %v244 = vadd.f32 %v226, %v236
  %v245 = vadd.f32 %v227, %v237
  %v246 = vadd.f32 %v228, %v238
  %v247 = vadd.f32 %v229, %v239
  %v248 = vsub.f32 0.0, %v240
  %v249 = vsub.f32 0.0, %v241
  %v250 = vsub.f32 0.0, %v242
  %v251 = vsub.f32 0.0, %v243
  %v252 = vsub.f32 0.0, %v244
  %v253 = vsub.f32 0.0, %v245
  %v254 = vsub.f32 0.0, %v246
  %v255 = vsub.f32 0.0, %v247
  %v256 = vmul.f32 %v248, 1.442695
  %v257 = vpow.pop %v256
  %v258 = vmul.f32 %v249, 1.442695
  %v259 = vpow.pop %v258
  %v260 = vmul.f32 %v250, 1.442695
  %v261 = vpow.pop %v260
  %v262 = vmul.f32 %v251, 1.442695
  %v263 = vpow.pop %v262
  %v264 = vmul.f32 %v252, 1.442695
  %v265 = vpow.pop %v264
  %v266 = vmul.f32 %v253, 1.442695
  %v267 = vpow.pop %v266
  %v268 = vmul.f32 %v254, 1.442695
  %v269 = vpow.pop %v268
  %v270 = vmul.f32 %v255, 1.442695
  %v271 = vpow.pop %v270
  %v272 = vadd.f32 %v257, 1.0
  %v273 = vadd.f32 %v259, 1.0
  %v274 = vadd.f32 %v261, 1.0
  %v275 = vadd.f32 %v263, 1.0
  %v276 = vadd.f32 %v265, 1.0
  %v277 = vadd.f32 %v267, 1.0
  %v278 = vadd.f32 %v269, 1.0
  %v279 = vadd.f32 %v271, 1.0
  %v280 = vrcp.pop %v272
  %v281 = vmul.f32 %v240, %v280
  %v282 = vrcp.pop %v273
  %v283 = vmul.f32 %v241, %v282
  %v284 = vrcp.pop %v274
  %v285 = vmul.f32 %v242, %v284
  %v286 = vrcp.pop %v275
  %v287 = vmul.f32 %v243, %v286
  %v288 = vrcp.pop %v276
  %v289 = vmul.f32 %v244, %v288
  %v290 = vrcp.pop %v277
  %v291 = vmul.f32 %v245, %v290
  %v292 = vrcp.pop %v278
  %v293 = vmul.f32 %v246, %v292
  %v294 = vrcp.pop %v279
  %v295 = vmul.f32 %v247, %v294
  %v296 = vpack.c.bf16 %v283, %v281
  %v297 = vpack.c.bf16 %v287, %v285
  %v298 = vpack.c.bf16 %v291, %v289
  %v299 = vpack.c.bf16 %v295, %v293
  %v300 = vld [vmem:[%s3] sm:$0xff]
  %v301 = vld [vmem:[%s3 + $0x8] sm:$0xf]
  %v302 = vld [vmem:[%s3 + $0xc] sm:$0xff]
  %v303 = vld [vmem:[%s3 + $0x14] sm:$0xf]
  %v304 = vld [vmem:[%s3 + $0x18] sm:$0xff]
  %v305 = vld [vmem:[%s3 + $0x20] sm:$0xf]
  %v306 = vld [vmem:[%s3 + $0x24] sm:$0xff]
  %v307 = vld [vmem:[%s3 + $0x2c] sm:$0xf]
  %v308 = vld [vmem:[%s3 + $0x30] sm:$0xff]
  %v309 = vld [vmem:[%s3 + $0x38] sm:$0xf]
  %v310 = vld [vmem:[%s3 + $0x3c] sm:$0xff]
  %v311 = vld [vmem:[%s3 + $0x44] sm:$0xf]
  %v312 = vld [vmem:[%s3 + $0x48] sm:$0xff]
  %v313 = vld [vmem:[%s3 + $0x50] sm:$0xf]
  %v314 = vld [vmem:[%s3 + $0x54] sm:$0xff]
  %v315 = vld [vmem:[%s3 + $0x5c] sm:$0xf]
  %v332 = vunpack.c.l.b16 %v300
  %v333 = vunpack.c.h.b16 %v300
  %v334 = vunpack.c.l.b16 %v301
  %v335 = vunpack.c.l.b16 %v302
  %v336 = vunpack.c.h.b16 %v302
  %v337 = vunpack.c.l.b16 %v303
  %v338 = vunpack.c.l.b16 %v304
  %v339 = vunpack.c.h.b16 %v304
  %v340 = vunpack.c.l.b16 %v305
  %v341 = vunpack.c.l.b16 %v306
  %v342 = vunpack.c.h.b16 %v306
  %v343 = vunpack.c.l.b16 %v307
  %v344 = vunpack.c.l.b16 %v308
  %v345 = vunpack.c.h.b16 %v308
  %v346 = vunpack.c.l.b16 %v309
  %v347 = vunpack.c.l.b16 %v310
  %v348 = vunpack.c.h.b16 %v310
  %v349 = vunpack.c.l.b16 %v311
  %v350 = vunpack.c.l.b16 %v312
  %v351 = vunpack.c.h.b16 %v312
  %v352 = vunpack.c.l.b16 %v313
  %v353 = vunpack.c.l.b16 %v314
  %v354 = vunpack.c.h.b16 %v314
  %v355 = vunpack.c.l.b16 %v315
  %v356 = vpack.c.b16 %v335, %v332
  %v357 = vpack.c.b16 %v336, %v333
  %v358 = vpack.c.b16 %v337, %v334
  %v359 = vpack.c.b16 %v341, %v338
  %v360 = vpack.c.b16 %v342, %v339
  %v361 = vpack.c.b16 %v343, %v340
  %v362 = vpack.c.b16 %v347, %v344
  %v363 = vpack.c.b16 %v348, %v345
  %v364 = vpack.c.b16 %v349, %v346
  %v365 = vpack.c.b16 %v353, %v350
  %v366 = vpack.c.b16 %v354, %v351
  %v367 = vpack.c.b16 %v355, %v352
  %vm380 = vcmask 523264
  %v382 = vsel %vm380, %v296, 0
  %v385 = vsel %vm380, %v297, 0
  %v388 = vsel %vm380, %v298, 0
  %v391 = vsel %vm380, %v299, 0
  %393 = vmatprep.subr.bf16.mxu0 %v357
  %394 = vmatpush1.bf16.msra.mxu0 %v356
  %395 = vmatprep.subr.bf16.mxu0 %v360
  %396 = vmatpush1.bf16.msra.mxu0 %v359
  %397 = vmatprep.subr.bf16.mxu0 %v363
  %398 = vmatpush1.bf16.msra.mxu0 %v362
  %399 = vmatprep.subr.bf16.mxu0 %v366
  %400 = vmatpush1.bf16.msra.mxu0 %v365
  %401 = vmatprep.subr.bf16.mxu0 0
  %402 = vmatpush1.bf16.msra.mxu0 0
  %403 = vmatprep.subr.bf16.mxu0 0
  %404 = vmatpush1.bf16.msra.mxu0 0
  %405 = vmatprep.subr.bf16.mxu0 0
  %406 = vmatpush1.bf16.msra.mxu0 0
  %407 = vmatprep.subr.bf16.mxu0 0
  %408 = vmatpush1.bf16.msra.mxu0 0
  %409 = vmatprep.subr.bf16.mxu0 0
  %410 = vmatpush1.bf16.msra.mxu0 0
  %411 = vmatprep.subr.bf16.mxu0 0
  %412 = vmatpush1.bf16.msra.mxu0 0
  %413 = vmatprep.subr.bf16.mxu0 0
  %414 = vmatpush1.bf16.msra.mxu0 0
  %415 = vmatprep.subr.bf16.mxu0 0
  %416 = vmatpush1.bf16.msra.mxu0 0
  %417 = vmatprep.subr.bf16.mxu0 0
  %418 = vmatpush1.bf16.msra.mxu0 0
  %419 = vmatprep.subr.bf16.mxu0 0
  %420 = vmatpush1.bf16.msra.mxu0 0
  %421 = vmatprep.subr.bf16.mxu0 0
  %422 = vmatpush1.bf16.msra.mxu0 0
  %423 = vmatprep.subr.bf16.mxu0 0
  %424 = vmatpush1.bf16.msra.mxu0 0
  %425 = vmatprep.mubr.bf16.mxu0 0
  %426 = vmatmul.mubr.bf16.gmra.mrb[0].mxu0 %v382
  %v427 = vpop.f32.mrb[0].mxu0
  %v428 = vadd.f32 0.0, %v427
  %v429 = vpop.f32.mrb[0].mxu0
  %v430 = vadd.f32 0.0, %v429
  %v431 = vpop.f32.mrb[0].mxu0
  %v432 = vadd.f32 0.0, %v431
  %v433 = vpop.f32.mrb[0].mxu0
  %v434 = vadd.f32 0.0, %v433
  %435 = vmatprep.mubr.bf16.mxu0 0
  %436 = vmatmul.mubr.bf16.gmra.mrb[0].mxu0 %v385
  %v437 = vpop.f32.mrb[0].mxu0
  %v438 = vadd.f32 0.0, %v437
  %v439 = vpop.f32.mrb[0].mxu0
  %v440 = vadd.f32 0.0, %v439
  %v441 = vpop.f32.mrb[0].mxu0
  %v442 = vadd.f32 0.0, %v441
  %v443 = vpop.f32.mrb[0].mxu0
  %v444 = vadd.f32 0.0, %v443
  %445 = vmatprep.mubr.bf16.mxu0 0
  %446 = vmatmul.mubr.bf16.gmra.mrb[0].mxu0 %v388
  %v447 = vpop.f32.mrb[0].mxu0
  %v448 = vadd.f32 0.0, %v447
  %v449 = vpop.f32.mrb[0].mxu0
  %v450 = vadd.f32 0.0, %v449
  %v451 = vpop.f32.mrb[0].mxu0
  %v452 = vadd.f32 0.0, %v451
  %v453 = vpop.f32.mrb[0].mxu0
  %v454 = vadd.f32 0.0, %v453
  %455 = vmatprep.mubr.bf16.mxu0 0
  %456 = vmatmul.mubr.bf16.gmra.mrb[0].mxu0 %v391
  %v457 = vpop.f32.mrb[0].mxu0
  %v458 = vadd.f32 0.0, %v457
  %v459 = vpop.f32.mrb[0].mxu0
  %v460 = vadd.f32 0.0, %v459
  %v461 = vpop.f32.mrb[0].mxu0
  %v462 = vadd.f32 0.0, %v461
  %v463 = vpop.f32.mrb[0].mxu0
  %v464 = vadd.f32 0.0, %v463
  %465 = vdwg.mxu0
  %466 = vmatprep.subr.bf16.mxu0 0
  %467 = vmatpush1.bf16.msra.mxu0 %v358
  %468 = vmatprep.subr.bf16.mxu0 0
  %469 = vmatpush1.bf16.msra.mxu0 %v361
  %470 = vmatprep.subr.bf16.mxu0 0
  %471 = vmatpush1.bf16.msra.mxu0 %v364
  %472 = vmatprep.subr.bf16.mxu0 0
  %473 = vmatpush1.bf16.msra.mxu0 %v367
  %474 = vmatprep.subr.bf16.mxu0 0
  %475 = vmatpush1.bf16.msra.mxu0 0
  %476 = vmatprep.subr.bf16.mxu0 0
  %477 = vmatpush1.bf16.msra.mxu0 0
  %478 = vmatprep.subr.bf16.mxu0 0
  %479 = vmatpush1.bf16.msra.mxu0 0
  %480 = vmatprep.subr.bf16.mxu0 0
  %481 = vmatpush1.bf16.msra.mxu0 0
  %482 = vmatprep.subr.bf16.mxu0 0
  %483 = vmatpush1.bf16.msra.mxu0 0
  %484 = vmatprep.subr.bf16.mxu0 0
  %485 = vmatpush1.bf16.msra.mxu0 0
  %486 = vmatprep.subr.bf16.mxu0 0
  %487 = vmatpush1.bf16.msra.mxu0 0
  %488 = vmatprep.subr.bf16.mxu0 0
  %489 = vmatpush1.bf16.msra.mxu0 0
  %490 = vmatprep.subr.bf16.mxu0 0
  %491 = vmatpush1.bf16.msra.mxu0 0
  %492 = vmatprep.subr.bf16.mxu0 0
  %493 = vmatpush1.bf16.msra.mxu0 0
  %494 = vmatprep.subr.bf16.mxu0 0
  %495 = vmatpush1.bf16.msra.mxu0 0
  %496 = vmatprep.subr.bf16.mxu0 0
  %497 = vmatpush1.bf16.msra.mxu0 0
  %498 = vmatprep.mubr.bf16.mxu0 0
  %499 = vmatmul.mubr.bf16.gmra.mrb[0].mxu0 %v382
  %v500 = vpop.f32.mrb[0].mxu0
  %v501 = vadd.f32 0.0, %v500
  %v502 = vpop.f32.mrb[0].mxu0
  %v503 = vpop.f32.mrb[0].mxu0
  %v504 = vadd.f32 0.0, %v503
  %v505 = vpop.f32.mrb[0].mxu0
  %506 = vmatprep.mubr.bf16.mxu0 0
  %507 = vmatmul.mubr.bf16.gmra.mrb[0].mxu0 %v385
  %v508 = vpop.f32.mrb[0].mxu0
  %v509 = vadd.f32 0.0, %v508
  %v510 = vpop.f32.mrb[0].mxu0
  %v511 = vpop.f32.mrb[0].mxu0
  %v512 = vadd.f32 0.0, %v511
  %v513 = vpop.f32.mrb[0].mxu0
  %514 = vmatprep.mubr.bf16.mxu0 0
  %515 = vmatmul.mubr.bf16.gmra.mrb[0].mxu0 %v388
  %v516 = vpop.f32.mrb[0].mxu0
  %v517 = vadd.f32 0.0, %v516
  %v518 = vpop.f32.mrb[0].mxu0
  %v519 = vpop.f32.mrb[0].mxu0
  %v520 = vadd.f32 0.0, %v519
  %v521 = vpop.f32.mrb[0].mxu0
  %522 = vmatprep.mubr.bf16.mxu0 0
  %523 = vmatmul.mubr.bf16.gmra.mrb[0].mxu0 %v391
  %v524 = vpop.f32.mrb[0].mxu0
  %v525 = vadd.f32 0.0, %v524
  %v526 = vpop.f32.mrb[0].mxu0
  %v527 = vpop.f32.mrb[0].mxu0
  %v528 = vadd.f32 0.0, %v527
  %v529 = vpop.f32.mrb[0].mxu0
  %530 = vdwg.mxu0
  %v531 = vld [vmem:[%s4] sm:$0x1]
  %v533 = vlaneseq
  %v534 = vshrl.u32 %v533, 7
  %v535 = vsub.s32 0, %v534
  %v536 = vrot.slane %v531, %v535
  %v538 = vadd.f32 %v428, %v536
  %v539 = vadd.f32 %v432, %v536
  %v540 = vadd.f32 %v438, %v536
  %v541 = vadd.f32 %v442, %v536
  %v542 = vadd.f32 %v448, %v536
  %v543 = vadd.f32 %v452, %v536
  %v544 = vadd.f32 %v458, %v536
  %v545 = vadd.f32 %v462, %v536
  %vm546 = vcmp.gt.f32.partialorder %v538, 20.0
  %vm547 = vcmp.gt.f32.partialorder %v539, 20.0
  %vm548 = vcmp.gt.f32.partialorder %v540, 20.0
  %vm549 = vcmp.gt.f32.partialorder %v541, 20.0
  %vm550 = vcmp.gt.f32.partialorder %v542, 20.0
  %vm551 = vcmp.gt.f32.partialorder %v543, 20.0
  %vm552 = vcmp.gt.f32.partialorder %v544, 20.0
  %vm553 = vcmp.gt.f32.partialorder %v545, 20.0
  %v554 = vmin.f32 %v538, 20.0
  %v555 = vmin.f32 %v539, 20.0
  %v556 = vmin.f32 %v540, 20.0
  %v557 = vmin.f32 %v541, 20.0
  %v558 = vmin.f32 %v542, 20.0
  %v559 = vmin.f32 %v543, 20.0
  %v560 = vmin.f32 %v544, 20.0
  %v561 = vmin.f32 %v545, 20.0
  %v562 = vmul.f32 %v554, 1.442695
  %v563 = vpow.pop %v562
  %v564 = vmul.f32 %v555, 1.442695
  %v565 = vpow.pop %v564
  %v566 = vmul.f32 %v556, 1.442695
  %v567 = vpow.pop %v566
  %v568 = vmul.f32 %v557, 1.442695
  %v569 = vpow.pop %v568
  %v570 = vmul.f32 %v558, 1.442695
  %v571 = vpow.pop %v570
  %v572 = vmul.f32 %v559, 1.442695
  %v573 = vpow.pop %v572
  %v574 = vmul.f32 %v560, 1.442695
  %v575 = vpow.pop %v574
  %v576 = vmul.f32 %v561, 1.442695
  %v577 = vpow.pop %v576
  %v578 = vadd.f32 %v563, 1.0
  %v579 = vadd.f32 %v565, 1.0
  %v580 = vadd.f32 %v567, 1.0
  %v581 = vadd.f32 %v569, 1.0
  %v582 = vadd.f32 %v571, 1.0
  %v583 = vadd.f32 %v573, 1.0
  %v584 = vadd.f32 %v575, 1.0
  %v585 = vadd.f32 %v577, 1.0
  %v586 = vlog2.pop %v578
  %v587 = vmul.f32 %v586, 0.6931472
  %v588 = vlog2.pop %v579
  %v589 = vmul.f32 %v588, 0.6931472
  %v590 = vlog2.pop %v580
  %v591 = vmul.f32 %v590, 0.6931472
  %v592 = vlog2.pop %v581
  %v593 = vmul.f32 %v592, 0.6931472
  %v594 = vlog2.pop %v582
  %v595 = vmul.f32 %v594, 0.6931472
  %v596 = vlog2.pop %v583
  %v597 = vmul.f32 %v596, 0.6931472
  %v598 = vlog2.pop %v584
  %v599 = vmul.f32 %v598, 0.6931472
  %v600 = vlog2.pop %v585
  %v601 = vmul.f32 %v600, 0.6931472
  %v602 = vsel %vm546, %v538, %v587
  %v603 = vsel %vm547, %v539, %v589
  %v604 = vsel %vm548, %v540, %v591
  %v605 = vsel %vm549, %v541, %v593
  %v606 = vsel %vm550, %v542, %v595
  %v607 = vsel %vm551, %v543, %v597
  %v608 = vsel %vm552, %v544, %v599
  %v609 = vsel %vm553, %v545, %v601
  %v610 = vld [vmem:[%s5] sm:$0xff]
  %v611 = vld [vmem:[%s5 + $0x8] sm:$0xff]
  %v620 = vcombine.high %v602, %v602
  %v622 = vunpack.c.l.s4 1966171168
  %v623 = vunpack.c.0.s8 %v622
  %v624 = vlaneseq
  %v625 = vshrl.u32 %v624, 7
  %v626 = vsub.s32 %v623, %v625
  %v627 = vrot.slane %v602, %v626
  %v629 = vunpack.c.l.s4 1966171168
  %v630 = vunpack.c.0.s8 %v629
  %v631 = vlaneseq
  %v632 = vshrl.u32 %v631, 7
  %v633 = vsub.s32 %v630, %v632
  %v634 = vrot.slane %v620, %v633
  %v635 = vcombine.high %v627, %v627
  %v636 = vcombine.high %v634, %v634
  %v638 = vunpack.c.l.s4 1966171168
  %v639 = vunpack.c.0.s8 %v638
  %v640 = vlaneseq
  %v641 = vshrl.u32 %v640, 7
  %v642 = vsub.s32 %v639, %v641
  %v643 = vrot.slane %v627, %v642
  %v645 = vunpack.c.l.s4 1966171168
  %v646 = vunpack.c.0.s8 %v645
  %v647 = vlaneseq
  %v648 = vshrl.u32 %v647, 7
  %v649 = vsub.s32 %v646, %v648
  %v650 = vrot.slane %v634, %v649
  %v652 = vunpack.c.l.s4 1966171168
  %v653 = vunpack.c.0.s8 %v652
  %v654 = vlaneseq
  %v655 = vshrl.u32 %v654, 7
  %v656 = vsub.s32 %v653, %v655
  %v657 = vrot.slane %v635, %v656
  %v659 = vunpack.c.l.s4 1966171168
  %v660 = vunpack.c.0.s8 %v659
  %v661 = vlaneseq
  %v662 = vshrl.u32 %v661, 7
  %v663 = vsub.s32 %v660, %v662
  %v664 = vrot.slane %v636, %v663
  %v665 = vcombine.high %v643, %v643
  %v666 = vcombine.high %v650, %v650
  %v667 = vcombine.high %v657, %v657
  %v668 = vcombine.high %v664, %v664
  %v669 = vcombine.high %v603, %v603
  %v671 = vunpack.c.l.s4 1966171168
  %v672 = vunpack.c.0.s8 %v671
  %v673 = vlaneseq
  %v674 = vshrl.u32 %v673, 7
  %v675 = vsub.s32 %v672, %v674
  %v676 = vrot.slane %v603, %v675
  %v678 = vunpack.c.l.s4 1966171168
  %v679 = vunpack.c.0.s8 %v678
  %v680 = vlaneseq
  %v681 = vshrl.u32 %v680, 7
  %v682 = vsub.s32 %v679, %v681
  %v683 = vrot.slane %v669, %v682
  %v684 = vcombine.high %v676, %v676
  %v685 = vcombine.high %v683, %v683
  %v687 = vunpack.c.l.s4 1966171168
  %v688 = vunpack.c.0.s8 %v687
  %v689 = vlaneseq
  %v690 = vshrl.u32 %v689, 7
  %v691 = vsub.s32 %v688, %v690
  %v692 = vrot.slane %v676, %v691
  %v694 = vunpack.c.l.s4 1966171168
  %v695 = vunpack.c.0.s8 %v694
  %v696 = vlaneseq
  %v697 = vshrl.u32 %v696, 7
  %v698 = vsub.s32 %v695, %v697
  %v699 = vrot.slane %v683, %v698
  %v701 = vunpack.c.l.s4 1966171168
  %v702 = vunpack.c.0.s8 %v701
  %v703 = vlaneseq
  %v704 = vshrl.u32 %v703, 7
  %v705 = vsub.s32 %v702, %v704
  %v706 = vrot.slane %v684, %v705
  %v708 = vunpack.c.l.s4 1966171168
  %v709 = vunpack.c.0.s8 %v708
  %v710 = vlaneseq
  %v711 = vshrl.u32 %v710, 7
  %v712 = vsub.s32 %v709, %v711
  %v713 = vrot.slane %v685, %v712
  %v714 = vcombine.high %v692, %v692
  %v715 = vcombine.high %v699, %v699
  %v716 = vcombine.high %v706, %v706
  %v717 = vcombine.high %v713, %v713
  %v718 = vcombine.high %v604, %v604
  %v720 = vunpack.c.l.s4 1966171168
  %v721 = vunpack.c.0.s8 %v720
  %v722 = vlaneseq
  %v723 = vshrl.u32 %v722, 7
  %v724 = vsub.s32 %v721, %v723
  %v725 = vrot.slane %v604, %v724
  %v727 = vunpack.c.l.s4 1966171168
  %v728 = vunpack.c.0.s8 %v727
  %v729 = vlaneseq
  %v730 = vshrl.u32 %v729, 7
  %v731 = vsub.s32 %v728, %v730
  %v732 = vrot.slane %v718, %v731
  %v733 = vcombine.high %v725, %v725
  %v734 = vcombine.high %v732, %v732
  %v736 = vunpack.c.l.s4 1966171168
  %v737 = vunpack.c.0.s8 %v736
  %v738 = vlaneseq
  %v739 = vshrl.u32 %v738, 7
  %v740 = vsub.s32 %v737, %v739
  %v741 = vrot.slane %v725, %v740
  %v743 = vunpack.c.l.s4 1966171168
  %v744 = vunpack.c.0.s8 %v743
  %v745 = vlaneseq
  %v746 = vshrl.u32 %v745, 7
  %v747 = vsub.s32 %v744, %v746
  %v748 = vrot.slane %v732, %v747
  %v750 = vunpack.c.l.s4 1966171168
  %v751 = vunpack.c.0.s8 %v750
  %v752 = vlaneseq
  %v753 = vshrl.u32 %v752, 7
  %v754 = vsub.s32 %v751, %v753
  %v755 = vrot.slane %v733, %v754
  %v757 = vunpack.c.l.s4 1966171168
  %v758 = vunpack.c.0.s8 %v757
  %v759 = vlaneseq
  %v760 = vshrl.u32 %v759, 7
  %v761 = vsub.s32 %v758, %v760
  %v762 = vrot.slane %v734, %v761
  %v763 = vcombine.high %v741, %v741
  %v764 = vcombine.high %v748, %v748
  %v765 = vcombine.high %v755, %v755
  %v766 = vcombine.high %v762, %v762
  %v767 = vcombine.high %v605, %v605
  %v769 = vunpack.c.l.s4 1966171168
  %v770 = vunpack.c.0.s8 %v769
  %v771 = vlaneseq
  %v772 = vshrl.u32 %v771, 7
  %v773 = vsub.s32 %v770, %v772
  %v774 = vrot.slane %v605, %v773
  %v776 = vunpack.c.l.s4 1966171168
  %v777 = vunpack.c.0.s8 %v776
  %v778 = vlaneseq
  %v779 = vshrl.u32 %v778, 7
  %v780 = vsub.s32 %v777, %v779
  %v781 = vrot.slane %v767, %v780
  %v782 = vcombine.high %v774, %v774
  %v783 = vcombine.high %v781, %v781
  %v785 = vunpack.c.l.s4 1966171168
  %v786 = vunpack.c.0.s8 %v785
  %v787 = vlaneseq
  %v788 = vshrl.u32 %v787, 7
  %v789 = vsub.s32 %v786, %v788
  %v790 = vrot.slane %v774, %v789
  %v792 = vunpack.c.l.s4 1966171168
  %v793 = vunpack.c.0.s8 %v792
  %v794 = vlaneseq
  %v795 = vshrl.u32 %v794, 7
  %v796 = vsub.s32 %v793, %v795
  %v797 = vrot.slane %v781, %v796
  %v799 = vunpack.c.l.s4 1966171168
  %v800 = vunpack.c.0.s8 %v799
  %v801 = vlaneseq
  %v802 = vshrl.u32 %v801, 7
  %v803 = vsub.s32 %v800, %v802
  %v804 = vrot.slane %v782, %v803
  %v806 = vunpack.c.l.s4 1966171168
  %v807 = vunpack.c.0.s8 %v806
  %v808 = vlaneseq
  %v809 = vshrl.u32 %v808, 7
  %v810 = vsub.s32 %v807, %v809
  %v811 = vrot.slane %v783, %v810
  %v812 = vcombine.high %v790, %v790
  %v813 = vcombine.high %v797, %v797
  %v814 = vcombine.high %v804, %v804
  %v815 = vcombine.high %v811, %v811
  %v816 = vcombine.high %v606, %v606
  %v818 = vunpack.c.l.s4 1966171168
  %v819 = vunpack.c.0.s8 %v818
  %v820 = vlaneseq
  %v821 = vshrl.u32 %v820, 7
  %v822 = vsub.s32 %v819, %v821
  %v823 = vrot.slane %v606, %v822
  %v825 = vunpack.c.l.s4 1966171168
  %v826 = vunpack.c.0.s8 %v825
  %v827 = vlaneseq
  %v828 = vshrl.u32 %v827, 7
  %v829 = vsub.s32 %v826, %v828
  %v830 = vrot.slane %v816, %v829
  %v831 = vcombine.high %v823, %v823
  %v832 = vcombine.high %v830, %v830
  %v834 = vunpack.c.l.s4 1966171168
  %v835 = vunpack.c.0.s8 %v834
  %v836 = vlaneseq
  %v837 = vshrl.u32 %v836, 7
  %v838 = vsub.s32 %v835, %v837
  %v839 = vrot.slane %v823, %v838
  %v841 = vunpack.c.l.s4 1966171168
  %v842 = vunpack.c.0.s8 %v841
  %v843 = vlaneseq
  %v844 = vshrl.u32 %v843, 7
  %v845 = vsub.s32 %v842, %v844
  %v846 = vrot.slane %v830, %v845
  %v848 = vunpack.c.l.s4 1966171168
  %v849 = vunpack.c.0.s8 %v848
  %v850 = vlaneseq
  %v851 = vshrl.u32 %v850, 7
  %v852 = vsub.s32 %v849, %v851
  %v853 = vrot.slane %v831, %v852
  %v855 = vunpack.c.l.s4 1966171168
  %v856 = vunpack.c.0.s8 %v855
  %v857 = vlaneseq
  %v858 = vshrl.u32 %v857, 7
  %v859 = vsub.s32 %v856, %v858
  %v860 = vrot.slane %v832, %v859
  %v861 = vcombine.high %v839, %v839
  %v862 = vcombine.high %v846, %v846
  %v863 = vcombine.high %v853, %v853
  %v864 = vcombine.high %v860, %v860
  %v865 = vcombine.high %v607, %v607
  %v867 = vunpack.c.l.s4 1966171168
  %v868 = vunpack.c.0.s8 %v867
  %v869 = vlaneseq
  %v870 = vshrl.u32 %v869, 7
  %v871 = vsub.s32 %v868, %v870
  %v872 = vrot.slane %v607, %v871
  %v874 = vunpack.c.l.s4 1966171168
  %v875 = vunpack.c.0.s8 %v874
  %v876 = vlaneseq
  %v877 = vshrl.u32 %v876, 7
  %v878 = vsub.s32 %v875, %v877
  %v879 = vrot.slane %v865, %v878
  %v880 = vcombine.high %v872, %v872
  %v881 = vcombine.high %v879, %v879
  %v883 = vunpack.c.l.s4 1966171168
  %v884 = vunpack.c.0.s8 %v883
  %v885 = vlaneseq
  %v886 = vshrl.u32 %v885, 7
  %v887 = vsub.s32 %v884, %v886
  %v888 = vrot.slane %v872, %v887
  %v890 = vunpack.c.l.s4 1966171168
  %v891 = vunpack.c.0.s8 %v890
  %v892 = vlaneseq
  %v893 = vshrl.u32 %v892, 7
  %v894 = vsub.s32 %v891, %v893
  %v895 = vrot.slane %v879, %v894
  %v897 = vunpack.c.l.s4 1966171168
  %v898 = vunpack.c.0.s8 %v897
  %v899 = vlaneseq
  %v900 = vshrl.u32 %v899, 7
  %v901 = vsub.s32 %v898, %v900
  %v902 = vrot.slane %v880, %v901
  %v904 = vunpack.c.l.s4 1966171168
  %v905 = vunpack.c.0.s8 %v904
  %v906 = vlaneseq
  %v907 = vshrl.u32 %v906, 7
  %v908 = vsub.s32 %v905, %v907
  %v909 = vrot.slane %v881, %v908
  %v910 = vcombine.high %v888, %v888
  %v911 = vcombine.high %v895, %v895
  %v912 = vcombine.high %v902, %v902
  %v913 = vcombine.high %v909, %v909
  %v914 = vcombine.high %v608, %v608
  %v916 = vunpack.c.l.s4 1966171168
  %v917 = vunpack.c.0.s8 %v916
  %v918 = vlaneseq
  %v919 = vshrl.u32 %v918, 7
  %v920 = vsub.s32 %v917, %v919
  %v921 = vrot.slane %v608, %v920
  %v923 = vunpack.c.l.s4 1966171168
  %v924 = vunpack.c.0.s8 %v923
  %v925 = vlaneseq
  %v926 = vshrl.u32 %v925, 7
  %v927 = vsub.s32 %v924, %v926
  %v928 = vrot.slane %v914, %v927
  %v929 = vcombine.high %v921, %v921
  %v930 = vcombine.high %v928, %v928
  %v932 = vunpack.c.l.s4 1966171168
  %v933 = vunpack.c.0.s8 %v932
  %v934 = vlaneseq
  %v935 = vshrl.u32 %v934, 7
  %v936 = vsub.s32 %v933, %v935
  %v937 = vrot.slane %v921, %v936
  %v939 = vunpack.c.l.s4 1966171168
  %v940 = vunpack.c.0.s8 %v939
  %v941 = vlaneseq
  %v942 = vshrl.u32 %v941, 7
  %v943 = vsub.s32 %v940, %v942
  %v944 = vrot.slane %v928, %v943
  %v946 = vunpack.c.l.s4 1966171168
  %v947 = vunpack.c.0.s8 %v946
  %v948 = vlaneseq
  %v949 = vshrl.u32 %v948, 7
  %v950 = vsub.s32 %v947, %v949
  %v951 = vrot.slane %v929, %v950
  %v953 = vunpack.c.l.s4 1966171168
  %v954 = vunpack.c.0.s8 %v953
  %v955 = vlaneseq
  %v956 = vshrl.u32 %v955, 7
  %v957 = vsub.s32 %v954, %v956
  %v958 = vrot.slane %v930, %v957
  %v959 = vcombine.high %v937, %v937
  %v960 = vcombine.high %v944, %v944
  %v961 = vcombine.high %v951, %v951
  %v962 = vcombine.high %v958, %v958
  %v963 = vcombine.high %v609, %v609
  %v965 = vunpack.c.l.s4 1966171168
  %v966 = vunpack.c.0.s8 %v965
  %v967 = vlaneseq
  %v968 = vshrl.u32 %v967, 7
  %v969 = vsub.s32 %v966, %v968
  %v970 = vrot.slane %v609, %v969
  %v972 = vunpack.c.l.s4 1966171168
  %v973 = vunpack.c.0.s8 %v972
  %v974 = vlaneseq
  %v975 = vshrl.u32 %v974, 7
  %v976 = vsub.s32 %v973, %v975
  %v977 = vrot.slane %v963, %v976
  %v978 = vcombine.high %v970, %v970
  %v979 = vcombine.high %v977, %v977
  %v981 = vunpack.c.l.s4 1966171168
  %v982 = vunpack.c.0.s8 %v981
  %v983 = vlaneseq
  %v984 = vshrl.u32 %v983, 7
  %v985 = vsub.s32 %v982, %v984
  %v986 = vrot.slane %v970, %v985
  %v988 = vunpack.c.l.s4 1966171168
  %v989 = vunpack.c.0.s8 %v988
  %v990 = vlaneseq
  %v991 = vshrl.u32 %v990, 7
  %v992 = vsub.s32 %v989, %v991
  %v993 = vrot.slane %v977, %v992
  %v995 = vunpack.c.l.s4 1966171168
  %v996 = vunpack.c.0.s8 %v995
  %v997 = vlaneseq
  %v998 = vshrl.u32 %v997, 7
  %v999 = vsub.s32 %v996, %v998
  %v1000 = vrot.slane %v978, %v999
  %v1002 = vunpack.c.l.s4 1966171168
  %v1003 = vunpack.c.0.s8 %v1002
  %v1004 = vlaneseq
  %v1005 = vshrl.u32 %v1004, 7
  %v1006 = vsub.s32 %v1003, %v1005
  %v1007 = vrot.slane %v979, %v1006
  %v1008 = vcombine.high %v986, %v986
  %v1009 = vcombine.high %v993, %v993
  %v1010 = vcombine.high %v1000, %v1000
  %v1011 = vcombine.high %v1007, %v1007
  %v1012 = vlaneseq
  %v1013 = vshrl.u32 %v1012, 7
  %v1014 = vsub.s32 0, %v1013
  %v1015 = vrot.slane %v643, %v1014
  %v1016 = vlaneseq
  %v1017 = vshrl.u32 %v1016, 7
  %v1018 = vsub.s32 0, %v1017
  %v1019 = vrot.slane %v657, %v1018
  %v1020 = vlaneseq
  %v1021 = vshrl.u32 %v1020, 7
  %v1022 = vsub.s32 0, %v1021
  %v1023 = vrot.slane %v665, %v1022
  %v1024 = vlaneseq
  %v1025 = vshrl.u32 %v1024, 7
  %v1026 = vsub.s32 0, %v1025
  %v1027 = vrot.slane %v667, %v1026
  %v1028 = vlaneseq
  %v1029 = vshrl.u32 %v1028, 7
  %v1030 = vsub.s32 0, %v1029
  %v1031 = vrot.slane %v650, %v1030
  %v1032 = vlaneseq
  %v1033 = vshrl.u32 %v1032, 7
  %v1034 = vsub.s32 0, %v1033
  %v1035 = vrot.slane %v664, %v1034
  %v1036 = vlaneseq
  %v1037 = vshrl.u32 %v1036, 7
  %v1038 = vsub.s32 0, %v1037
  %v1039 = vrot.slane %v666, %v1038
  %v1040 = vlaneseq
  %v1041 = vshrl.u32 %v1040, 7
  %v1042 = vsub.s32 0, %v1041
  %v1043 = vrot.slane %v668, %v1042
  %v1044 = vlaneseq
  %v1045 = vshrl.u32 %v1044, 7
  %v1046 = vsub.s32 0, %v1045
  %v1047 = vrot.slane %v692, %v1046
  %v1048 = vlaneseq
  %v1049 = vshrl.u32 %v1048, 7
  %v1050 = vsub.s32 0, %v1049
  %v1051 = vrot.slane %v706, %v1050
  %v1052 = vlaneseq
  %v1053 = vshrl.u32 %v1052, 7
  %v1054 = vsub.s32 0, %v1053
  %v1055 = vrot.slane %v714, %v1054
  %v1056 = vlaneseq
  %v1057 = vshrl.u32 %v1056, 7
  %v1058 = vsub.s32 0, %v1057
  %v1059 = vrot.slane %v716, %v1058
  %v1060 = vlaneseq
  %v1061 = vshrl.u32 %v1060, 7
  %v1062 = vsub.s32 0, %v1061
  %v1063 = vrot.slane %v699, %v1062
  %v1064 = vlaneseq
  %v1065 = vshrl.u32 %v1064, 7
  %v1066 = vsub.s32 0, %v1065
  %v1067 = vrot.slane %v713, %v1066
  %v1068 = vlaneseq
  %v1069 = vshrl.u32 %v1068, 7
  %v1070 = vsub.s32 0, %v1069
  %v1071 = vrot.slane %v715, %v1070
  %v1072 = vlaneseq
  %v1073 = vshrl.u32 %v1072, 7
  %v1074 = vsub.s32 0, %v1073
  %v1075 = vrot.slane %v717, %v1074
  %v1076 = vlaneseq
  %v1077 = vshrl.u32 %v1076, 7
  %v1078 = vsub.s32 0, %v1077
  %v1079 = vrot.slane %v741, %v1078
  %v1080 = vlaneseq
  %v1081 = vshrl.u32 %v1080, 7
  %v1082 = vsub.s32 0, %v1081
  %v1083 = vrot.slane %v755, %v1082
  %v1084 = vlaneseq
  %v1085 = vshrl.u32 %v1084, 7
  %v1086 = vsub.s32 0, %v1085
  %v1087 = vrot.slane %v763, %v1086
  %v1088 = vlaneseq
  %v1089 = vshrl.u32 %v1088, 7
  %v1090 = vsub.s32 0, %v1089
  %v1091 = vrot.slane %v765, %v1090
  %v1092 = vlaneseq
  %v1093 = vshrl.u32 %v1092, 7
  %v1094 = vsub.s32 0, %v1093
  %v1095 = vrot.slane %v748, %v1094
  %v1096 = vlaneseq
  %v1097 = vshrl.u32 %v1096, 7
  %v1098 = vsub.s32 0, %v1097
  %v1099 = vrot.slane %v762, %v1098
  %v1100 = vlaneseq
  %v1101 = vshrl.u32 %v1100, 7
  %v1102 = vsub.s32 0, %v1101
  %v1103 = vrot.slane %v764, %v1102
  %v1104 = vlaneseq
  %v1105 = vshrl.u32 %v1104, 7
  %v1106 = vsub.s32 0, %v1105
  %v1107 = vrot.slane %v766, %v1106
  %v1108 = vlaneseq
  %v1109 = vshrl.u32 %v1108, 7
  %v1110 = vsub.s32 0, %v1109
  %v1111 = vrot.slane %v790, %v1110
  %v1112 = vlaneseq
  %v1113 = vshrl.u32 %v1112, 7
  %v1114 = vsub.s32 0, %v1113
  %v1115 = vrot.slane %v804, %v1114
  %v1116 = vlaneseq
  %v1117 = vshrl.u32 %v1116, 7
  %v1118 = vsub.s32 0, %v1117
  %v1119 = vrot.slane %v812, %v1118
  %v1120 = vlaneseq
  %v1121 = vshrl.u32 %v1120, 7
  %v1122 = vsub.s32 0, %v1121
  %v1123 = vrot.slane %v814, %v1122
  %v1124 = vlaneseq
  %v1125 = vshrl.u32 %v1124, 7
  %v1126 = vsub.s32 0, %v1125
  %v1127 = vrot.slane %v797, %v1126
  %v1128 = vlaneseq
  %v1129 = vshrl.u32 %v1128, 7
  %v1130 = vsub.s32 0, %v1129
  %v1131 = vrot.slane %v811, %v1130
  %v1132 = vlaneseq
  %v1133 = vshrl.u32 %v1132, 7
  %v1134 = vsub.s32 0, %v1133
  %v1135 = vrot.slane %v813, %v1134
  %v1136 = vlaneseq
  %v1137 = vshrl.u32 %v1136, 7
  %v1138 = vsub.s32 0, %v1137
  %v1139 = vrot.slane %v815, %v1138
  %v1140 = vlaneseq
  %v1141 = vshrl.u32 %v1140, 7
  %v1142 = vsub.s32 0, %v1141
  %v1143 = vrot.slane %v839, %v1142
  %v1144 = vlaneseq
  %v1145 = vshrl.u32 %v1144, 7
  %v1146 = vsub.s32 0, %v1145
  %v1147 = vrot.slane %v853, %v1146
  %v1148 = vlaneseq
  %v1149 = vshrl.u32 %v1148, 7
  %v1150 = vsub.s32 0, %v1149
  %v1151 = vrot.slane %v861, %v1150
  %v1152 = vlaneseq
  %v1153 = vshrl.u32 %v1152, 7
  %v1154 = vsub.s32 0, %v1153
  %v1155 = vrot.slane %v863, %v1154
  %v1156 = vlaneseq
  %v1157 = vshrl.u32 %v1156, 7
  %v1158 = vsub.s32 0, %v1157
  %v1159 = vrot.slane %v846, %v1158
  %v1160 = vlaneseq
  %v1161 = vshrl.u32 %v1160, 7
  %v1162 = vsub.s32 0, %v1161
  %v1163 = vrot.slane %v860, %v1162
  %v1164 = vlaneseq
  %v1165 = vshrl.u32 %v1164, 7
  %v1166 = vsub.s32 0, %v1165
  %v1167 = vrot.slane %v862, %v1166
  %v1168 = vlaneseq
  %v1169 = vshrl.u32 %v1168, 7
  %v1170 = vsub.s32 0, %v1169
  %v1171 = vrot.slane %v864, %v1170
  %v1172 = vlaneseq
  %v1173 = vshrl.u32 %v1172, 7
  %v1174 = vsub.s32 0, %v1173
  %v1175 = vrot.slane %v888, %v1174
  %v1176 = vlaneseq
  %v1177 = vshrl.u32 %v1176, 7
  %v1178 = vsub.s32 0, %v1177
  %v1179 = vrot.slane %v902, %v1178
  %v1180 = vlaneseq
  %v1181 = vshrl.u32 %v1180, 7
  %v1182 = vsub.s32 0, %v1181
  %v1183 = vrot.slane %v910, %v1182
  %v1184 = vlaneseq
  %v1185 = vshrl.u32 %v1184, 7
  %v1186 = vsub.s32 0, %v1185
  %v1187 = vrot.slane %v912, %v1186
  %v1188 = vlaneseq
  %v1189 = vshrl.u32 %v1188, 7
  %v1190 = vsub.s32 0, %v1189
  %v1191 = vrot.slane %v895, %v1190
  %v1192 = vlaneseq
  %v1193 = vshrl.u32 %v1192, 7
  %v1194 = vsub.s32 0, %v1193
  %v1195 = vrot.slane %v909, %v1194
  %v1196 = vlaneseq
  %v1197 = vshrl.u32 %v1196, 7
  %v1198 = vsub.s32 0, %v1197
  %v1199 = vrot.slane %v911, %v1198
  %v1200 = vlaneseq
  %v1201 = vshrl.u32 %v1200, 7
  %v1202 = vsub.s32 0, %v1201
  %v1203 = vrot.slane %v913, %v1202
  %v1204 = vlaneseq
  %v1205 = vshrl.u32 %v1204, 7
  %v1206 = vsub.s32 0, %v1205
  %v1207 = vrot.slane %v937, %v1206
  %v1208 = vlaneseq
  %v1209 = vshrl.u32 %v1208, 7
  %v1210 = vsub.s32 0, %v1209
  %v1211 = vrot.slane %v951, %v1210
  %v1212 = vlaneseq
  %v1213 = vshrl.u32 %v1212, 7
  %v1214 = vsub.s32 0, %v1213
  %v1215 = vrot.slane %v959, %v1214
  %v1216 = vlaneseq
  %v1217 = vshrl.u32 %v1216, 7
  %v1218 = vsub.s32 0, %v1217
  %v1219 = vrot.slane %v961, %v1218
  %v1220 = vlaneseq
  %v1221 = vshrl.u32 %v1220, 7
  %v1222 = vsub.s32 0, %v1221
  %v1223 = vrot.slane %v944, %v1222
  %v1224 = vlaneseq
  %v1225 = vshrl.u32 %v1224, 7
  %v1226 = vsub.s32 0, %v1225
  %v1227 = vrot.slane %v958, %v1226
  %v1228 = vlaneseq
  %v1229 = vshrl.u32 %v1228, 7
  %v1230 = vsub.s32 0, %v1229
  %v1231 = vrot.slane %v960, %v1230
  %v1232 = vlaneseq
  %v1233 = vshrl.u32 %v1232, 7
  %v1234 = vsub.s32 0, %v1233
  %v1235 = vrot.slane %v962, %v1234
  %v1236 = vlaneseq
  %v1237 = vshrl.u32 %v1236, 7
  %v1238 = vsub.s32 0, %v1237
  %v1239 = vrot.slane %v986, %v1238
  %v1240 = vlaneseq
  %v1241 = vshrl.u32 %v1240, 7
  %v1242 = vsub.s32 0, %v1241
  %v1243 = vrot.slane %v1000, %v1242
  %v1244 = vlaneseq
  %v1245 = vshrl.u32 %v1244, 7
  %v1246 = vsub.s32 0, %v1245
  %v1247 = vrot.slane %v1008, %v1246
  %v1248 = vlaneseq
  %v1249 = vshrl.u32 %v1248, 7
  %v1250 = vsub.s32 0, %v1249
  %v1251 = vrot.slane %v1010, %v1250
  %v1252 = vlaneseq
  %v1253 = vshrl.u32 %v1252, 7
  %v1254 = vsub.s32 0, %v1253
  %v1255 = vrot.slane %v993, %v1254
  %v1256 = vlaneseq
  %v1257 = vshrl.u32 %v1256, 7
  %v1258 = vsub.s32 0, %v1257
  %v1259 = vrot.slane %v1007, %v1258
  %v1260 = vlaneseq
  %v1261 = vshrl.u32 %v1260, 7
  %v1262 = vsub.s32 0, %v1261
  %v1263 = vrot.slane %v1009, %v1262
  %v1264 = vlaneseq
  %v1265 = vshrl.u32 %v1264, 7
  %v1266 = vsub.s32 0, %v1265
  %v1267 = vrot.slane %v1011, %v1266
  %v1332 = vmul.f32 %v1015, %v610
  %v1333 = vmul.f32 %v1015, %v611
  %v1334 = vmul.f32 %v1019, %v610
  %v1335 = vmul.f32 %v1019, %v611
  %v1336 = vmul.f32 %v1023, %v610
  %v1337 = vmul.f32 %v1023, %v611
  %v1338 = vmul.f32 %v1027, %v610
  %v1339 = vmul.f32 %v1027, %v611
  %v1340 = vmul.f32 %v1031, %v610
  %v1341 = vmul.f32 %v1031, %v611
  %v1342 = vmul.f32 %v1035, %v610
  %v1343 = vmul.f32 %v1035, %v611
  %v1344 = vmul.f32 %v1039, %v610
  %v1345 = vmul.f32 %v1039, %v611
  %v1346 = vmul.f32 %v1043, %v610
  %v1347 = vmul.f32 %v1043, %v611
  %v1348 = vmul.f32 %v1047, %v610
  %v1349 = vmul.f32 %v1047, %v611
  %v1350 = vmul.f32 %v1051, %v610
  %v1351 = vmul.f32 %v1051, %v611
  %v1352 = vmul.f32 %v1055, %v610
  %v1353 = vmul.f32 %v1055, %v611
  %v1354 = vmul.f32 %v1059, %v610
  %v1355 = vmul.f32 %v1059, %v611
  %v1356 = vmul.f32 %v1063, %v610
  %v1357 = vmul.f32 %v1063, %v611
  %v1358 = vmul.f32 %v1067, %v610
  %v1359 = vmul.f32 %v1067, %v611
  %v1360 = vmul.f32 %v1071, %v610
  %v1361 = vmul.f32 %v1071, %v611
  %v1362 = vmul.f32 %v1075, %v610
  %v1363 = vmul.f32 %v1075, %v611
  %v1364 = vmul.f32 %v1079, %v610
  %v1365 = vmul.f32 %v1079, %v611
  %v1366 = vmul.f32 %v1083, %v610
  %v1367 = vmul.f32 %v1083, %v611
  %v1368 = vmul.f32 %v1087, %v610
  %v1369 = vmul.f32 %v1087, %v611
  %v1370 = vmul.f32 %v1091, %v610
  %v1371 = vmul.f32 %v1091, %v611
  %v1372 = vmul.f32 %v1095, %v610
  %v1373 = vmul.f32 %v1095, %v611
  %v1374 = vmul.f32 %v1099, %v610
  %v1375 = vmul.f32 %v1099, %v611
  %v1376 = vmul.f32 %v1103, %v610
  %v1377 = vmul.f32 %v1103, %v611
  %v1378 = vmul.f32 %v1107, %v610
  %v1379 = vmul.f32 %v1107, %v611
  %v1380 = vmul.f32 %v1111, %v610
  %v1381 = vmul.f32 %v1111, %v611
  %v1382 = vmul.f32 %v1115, %v610
  %v1383 = vmul.f32 %v1115, %v611
  %v1384 = vmul.f32 %v1119, %v610
  %v1385 = vmul.f32 %v1119, %v611
  %v1386 = vmul.f32 %v1123, %v610
  %v1387 = vmul.f32 %v1123, %v611
  %v1388 = vmul.f32 %v1127, %v610
  %v1389 = vmul.f32 %v1127, %v611
  %v1390 = vmul.f32 %v1131, %v610
  %v1391 = vmul.f32 %v1131, %v611
  %v1392 = vmul.f32 %v1135, %v610
  %v1393 = vmul.f32 %v1135, %v611
  %v1394 = vmul.f32 %v1139, %v610
  %v1395 = vmul.f32 %v1139, %v611
  %v1396 = vmul.f32 %v1143, %v610
  %v1397 = vmul.f32 %v1143, %v611
  %v1398 = vmul.f32 %v1147, %v610
  %v1399 = vmul.f32 %v1147, %v611
  %v1400 = vmul.f32 %v1151, %v610
  %v1401 = vmul.f32 %v1151, %v611
  %v1402 = vmul.f32 %v1155, %v610
  %v1403 = vmul.f32 %v1155, %v611
  %v1404 = vmul.f32 %v1159, %v610
  %v1405 = vmul.f32 %v1159, %v611
  %v1406 = vmul.f32 %v1163, %v610
  %v1407 = vmul.f32 %v1163, %v611
  %v1408 = vmul.f32 %v1167, %v610
  %v1409 = vmul.f32 %v1167, %v611
  %v1410 = vmul.f32 %v1171, %v610
  %v1411 = vmul.f32 %v1171, %v611
  %v1412 = vmul.f32 %v1175, %v610
  %v1413 = vmul.f32 %v1175, %v611
  %v1414 = vmul.f32 %v1179, %v610
  %v1415 = vmul.f32 %v1179, %v611
  %v1416 = vmul.f32 %v1183, %v610
  %v1417 = vmul.f32 %v1183, %v611
  %v1418 = vmul.f32 %v1187, %v610
  %v1419 = vmul.f32 %v1187, %v611
  %v1420 = vmul.f32 %v1191, %v610
  %v1421 = vmul.f32 %v1191, %v611
  %v1422 = vmul.f32 %v1195, %v610
  %v1423 = vmul.f32 %v1195, %v611
  %v1424 = vmul.f32 %v1199, %v610
  %v1425 = vmul.f32 %v1199, %v611
  %v1426 = vmul.f32 %v1203, %v610
  %v1427 = vmul.f32 %v1203, %v611
  %v1428 = vmul.f32 %v1207, %v610
  %v1429 = vmul.f32 %v1207, %v611
  %v1430 = vmul.f32 %v1211, %v610
  %v1431 = vmul.f32 %v1211, %v611
  %v1432 = vmul.f32 %v1215, %v610
  %v1433 = vmul.f32 %v1215, %v611
  %v1434 = vmul.f32 %v1219, %v610
  %v1435 = vmul.f32 %v1219, %v611
  %v1436 = vmul.f32 %v1223, %v610
  %v1437 = vmul.f32 %v1223, %v611
  %v1438 = vmul.f32 %v1227, %v610
  %v1439 = vmul.f32 %v1227, %v611
  %v1440 = vmul.f32 %v1231, %v610
  %v1441 = vmul.f32 %v1231, %v611
  %v1442 = vmul.f32 %v1235, %v610
  %v1443 = vmul.f32 %v1235, %v611
  %v1444 = vmul.f32 %v1239, %v610
  %v1445 = vmul.f32 %v1239, %v611
  %v1446 = vmul.f32 %v1243, %v610
  %v1447 = vmul.f32 %v1243, %v611
  %v1448 = vmul.f32 %v1247, %v610
  %v1449 = vmul.f32 %v1247, %v611
  %v1450 = vmul.f32 %v1251, %v610
  %v1451 = vmul.f32 %v1251, %v611
  %v1452 = vmul.f32 %v1255, %v610
  %v1453 = vmul.f32 %v1255, %v611
  %v1454 = vmul.f32 %v1259, %v610
  %v1455 = vmul.f32 %v1259, %v611
  %v1456 = vmul.f32 %v1263, %v610
  %v1457 = vmul.f32 %v1263, %v611
  %v1458 = vmul.f32 %v1267, %v610
  %v1459 = vmul.f32 %v1267, %v611
  %v1460 = vmul.f32 %v1332, 1.442695
  %v1461 = vpow.pop %v1460
  %v1462 = vmul.f32 %v1333, 1.442695
  %v1463 = vpow.pop %v1462
  %v1464 = vmul.f32 %v1334, 1.442695
  %v1465 = vpow.pop %v1464
  %v1466 = vmul.f32 %v1335, 1.442695
  %v1467 = vpow.pop %v1466
  %v1468 = vmul.f32 %v1336, 1.442695
  %v1469 = vpow.pop %v1468
  %v1470 = vmul.f32 %v1337, 1.442695
  %v1471 = vpow.pop %v1470
  %v1472 = vmul.f32 %v1338, 1.442695
  %v1473 = vpow.pop %v1472
  %v1474 = vmul.f32 %v1339, 1.442695
  %v1475 = vpow.pop %v1474
  %v1476 = vmul.f32 %v1340, 1.442695
  %v1477 = vpow.pop %v1476
  %v1478 = vmul.f32 %v1341, 1.442695
  %v1479 = vpow.pop %v1478
  %v1480 = vmul.f32 %v1342, 1.442695
  %v1481 = vpow.pop %v1480
  %v1482 = vmul.f32 %v1343, 1.442695
  %v1483 = vpow.pop %v1482
  %v1484 = vmul.f32 %v1344, 1.442695
  %v1485 = vpow.pop %v1484
  %v1486 = vmul.f32 %v1345, 1.442695
  %v1487 = vpow.pop %v1486
  %v1488 = vmul.f32 %v1346, 1.442695
  %v1489 = vpow.pop %v1488
  %v1490 = vmul.f32 %v1347, 1.442695
  %v1491 = vpow.pop %v1490
  %v1492 = vmul.f32 %v1348, 1.442695
  %v1493 = vpow.pop %v1492
  %v1494 = vmul.f32 %v1349, 1.442695
  %v1495 = vpow.pop %v1494
  %v1496 = vmul.f32 %v1350, 1.442695
  %v1497 = vpow.pop %v1496
  %v1498 = vmul.f32 %v1351, 1.442695
  %v1499 = vpow.pop %v1498
  %v1500 = vmul.f32 %v1352, 1.442695
  %v1501 = vpow.pop %v1500
  %v1502 = vmul.f32 %v1353, 1.442695
  %v1503 = vpow.pop %v1502
  %v1504 = vmul.f32 %v1354, 1.442695
  %v1505 = vpow.pop %v1504
  %v1506 = vmul.f32 %v1355, 1.442695
  %v1507 = vpow.pop %v1506
  %v1508 = vmul.f32 %v1356, 1.442695
  %v1509 = vpow.pop %v1508
  %v1510 = vmul.f32 %v1357, 1.442695
  %v1511 = vpow.pop %v1510
  %v1512 = vmul.f32 %v1358, 1.442695
  %v1513 = vpow.pop %v1512
  %v1514 = vmul.f32 %v1359, 1.442695
  %v1515 = vpow.pop %v1514
  %v1516 = vmul.f32 %v1360, 1.442695
  %v1517 = vpow.pop %v1516
  %v1518 = vmul.f32 %v1361, 1.442695
  %v1519 = vpow.pop %v1518
  %v1520 = vmul.f32 %v1362, 1.442695
  %v1521 = vpow.pop %v1520
  %v1522 = vmul.f32 %v1363, 1.442695
  %v1523 = vpow.pop %v1522
  %v1524 = vmul.f32 %v1364, 1.442695
  %v1525 = vpow.pop %v1524
  %v1526 = vmul.f32 %v1365, 1.442695
  %v1527 = vpow.pop %v1526
  %v1528 = vmul.f32 %v1366, 1.442695
  %v1529 = vpow.pop %v1528
  %v1530 = vmul.f32 %v1367, 1.442695
  %v1531 = vpow.pop %v1530
  %v1532 = vmul.f32 %v1368, 1.442695
  %v1533 = vpow.pop %v1532
  %v1534 = vmul.f32 %v1369, 1.442695
  %v1535 = vpow.pop %v1534
  %v1536 = vmul.f32 %v1370, 1.442695
  %v1537 = vpow.pop %v1536
  %v1538 = vmul.f32 %v1371, 1.442695
  %v1539 = vpow.pop %v1538
  %v1540 = vmul.f32 %v1372, 1.442695
  %v1541 = vpow.pop %v1540
  %v1542 = vmul.f32 %v1373, 1.442695
  %v1543 = vpow.pop %v1542
  %v1544 = vmul.f32 %v1374, 1.442695
  %v1545 = vpow.pop %v1544
  %v1546 = vmul.f32 %v1375, 1.442695
  %v1547 = vpow.pop %v1546
  %v1548 = vmul.f32 %v1376, 1.442695
  %v1549 = vpow.pop %v1548
  %v1550 = vmul.f32 %v1377, 1.442695
  %v1551 = vpow.pop %v1550
  %v1552 = vmul.f32 %v1378, 1.442695
  %v1553 = vpow.pop %v1552
  %v1554 = vmul.f32 %v1379, 1.442695
  %v1555 = vpow.pop %v1554
  %v1556 = vmul.f32 %v1380, 1.442695
  %v1557 = vpow.pop %v1556
  %v1558 = vmul.f32 %v1381, 1.442695
  %v1559 = vpow.pop %v1558
  %v1560 = vmul.f32 %v1382, 1.442695
  %v1561 = vpow.pop %v1560
  %v1562 = vmul.f32 %v1383, 1.442695
  %v1563 = vpow.pop %v1562
  %v1564 = vmul.f32 %v1384, 1.442695
  %v1565 = vpow.pop %v1564
  %v1566 = vmul.f32 %v1385, 1.442695
  %v1567 = vpow.pop %v1566
  %v1568 = vmul.f32 %v1386, 1.442695
  %v1569 = vpow.pop %v1568
  %v1570 = vmul.f32 %v1387, 1.442695
  %v1571 = vpow.pop %v1570
  %v1572 = vmul.f32 %v1388, 1.442695
  %v1573 = vpow.pop %v1572
  %v1574 = vmul.f32 %v1389, 1.442695
  %v1575 = vpow.pop %v1574
  %v1576 = vmul.f32 %v1390, 1.442695
  %v1577 = vpow.pop %v1576
  %v1578 = vmul.f32 %v1391, 1.442695
  %v1579 = vpow.pop %v1578
  %v1580 = vmul.f32 %v1392, 1.442695
  %v1581 = vpow.pop %v1580
  %v1582 = vmul.f32 %v1393, 1.442695
  %v1583 = vpow.pop %v1582
  %v1584 = vmul.f32 %v1394, 1.442695
  %v1585 = vpow.pop %v1584
  %v1586 = vmul.f32 %v1395, 1.442695
  %v1587 = vpow.pop %v1586
  %v1588 = vmul.f32 %v1396, 1.442695
  %v1589 = vpow.pop %v1588
  %v1590 = vmul.f32 %v1397, 1.442695
  %v1591 = vpow.pop %v1590
  %v1592 = vmul.f32 %v1398, 1.442695
  %v1593 = vpow.pop %v1592
  %v1594 = vmul.f32 %v1399, 1.442695
  %v1595 = vpow.pop %v1594
  %v1596 = vmul.f32 %v1400, 1.442695
  %v1597 = vpow.pop %v1596
  %v1598 = vmul.f32 %v1401, 1.442695
  %v1599 = vpow.pop %v1598
  %v1600 = vmul.f32 %v1402, 1.442695
  %v1601 = vpow.pop %v1600
  %v1602 = vmul.f32 %v1403, 1.442695
  %v1603 = vpow.pop %v1602
  %v1604 = vmul.f32 %v1404, 1.442695
  %v1605 = vpow.pop %v1604
  %v1606 = vmul.f32 %v1405, 1.442695
  %v1607 = vpow.pop %v1606
  %v1608 = vmul.f32 %v1406, 1.442695
  %v1609 = vpow.pop %v1608
  %v1610 = vmul.f32 %v1407, 1.442695
  %v1611 = vpow.pop %v1610
  %v1612 = vmul.f32 %v1408, 1.442695
  %v1613 = vpow.pop %v1612
  %v1614 = vmul.f32 %v1409, 1.442695
  %v1615 = vpow.pop %v1614
  %v1616 = vmul.f32 %v1410, 1.442695
  %v1617 = vpow.pop %v1616
  %v1618 = vmul.f32 %v1411, 1.442695
  %v1619 = vpow.pop %v1618
  %v1620 = vmul.f32 %v1412, 1.442695
  %v1621 = vpow.pop %v1620
  %v1622 = vmul.f32 %v1413, 1.442695
  %v1623 = vpow.pop %v1622
  %v1624 = vmul.f32 %v1414, 1.442695
  %v1625 = vpow.pop %v1624
  %v1626 = vmul.f32 %v1415, 1.442695
  %v1627 = vpow.pop %v1626
  %v1628 = vmul.f32 %v1416, 1.442695
  %v1629 = vpow.pop %v1628
  %v1630 = vmul.f32 %v1417, 1.442695
  %v1631 = vpow.pop %v1630
  %v1632 = vmul.f32 %v1418, 1.442695
  %v1633 = vpow.pop %v1632
  %v1634 = vmul.f32 %v1419, 1.442695
  %v1635 = vpow.pop %v1634
  %v1636 = vmul.f32 %v1420, 1.442695
  %v1637 = vpow.pop %v1636
  %v1638 = vmul.f32 %v1421, 1.442695
  %v1639 = vpow.pop %v1638
  %v1640 = vmul.f32 %v1422, 1.442695
  %v1641 = vpow.pop %v1640
  %v1642 = vmul.f32 %v1423, 1.442695
  %v1643 = vpow.pop %v1642
  %v1644 = vmul.f32 %v1424, 1.442695
  %v1645 = vpow.pop %v1644
  %v1646 = vmul.f32 %v1425, 1.442695
  %v1647 = vpow.pop %v1646
  %v1648 = vmul.f32 %v1426, 1.442695
  %v1649 = vpow.pop %v1648
  %v1650 = vmul.f32 %v1427, 1.442695
  %v1651 = vpow.pop %v1650
  %v1652 = vmul.f32 %v1428, 1.442695
  %v1653 = vpow.pop %v1652
  %v1654 = vmul.f32 %v1429, 1.442695
  %v1655 = vpow.pop %v1654
  %v1656 = vmul.f32 %v1430, 1.442695
  %v1657 = vpow.pop %v1656
  %v1658 = vmul.f32 %v1431, 1.442695
  %v1659 = vpow.pop %v1658
  %v1660 = vmul.f32 %v1432, 1.442695
  %v1661 = vpow.pop %v1660
  %v1662 = vmul.f32 %v1433, 1.442695
  %v1663 = vpow.pop %v1662
  %v1664 = vmul.f32 %v1434, 1.442695
  %v1665 = vpow.pop %v1664
  %v1666 = vmul.f32 %v1435, 1.442695
  %v1667 = vpow.pop %v1666
  %v1668 = vmul.f32 %v1436, 1.442695
  %v1669 = vpow.pop %v1668
  %v1670 = vmul.f32 %v1437, 1.442695
  %v1671 = vpow.pop %v1670
  %v1672 = vmul.f32 %v1438, 1.442695
  %v1673 = vpow.pop %v1672
  %v1674 = vmul.f32 %v1439, 1.442695
  %v1675 = vpow.pop %v1674
  %v1676 = vmul.f32 %v1440, 1.442695
  %v1677 = vpow.pop %v1676
  %v1678 = vmul.f32 %v1441, 1.442695
  %v1679 = vpow.pop %v1678
  %v1680 = vmul.f32 %v1442, 1.442695
  %v1681 = vpow.pop %v1680
  %v1682 = vmul.f32 %v1443, 1.442695
  %v1683 = vpow.pop %v1682
  %v1684 = vmul.f32 %v1444, 1.442695
  %v1685 = vpow.pop %v1684
  %v1686 = vmul.f32 %v1445, 1.442695
  %v1687 = vpow.pop %v1686
  %v1688 = vmul.f32 %v1446, 1.442695
  %v1689 = vpow.pop %v1688
  %v1690 = vmul.f32 %v1447, 1.442695
  %v1691 = vpow.pop %v1690
  %v1692 = vmul.f32 %v1448, 1.442695
  %v1693 = vpow.pop %v1692
  %v1694 = vmul.f32 %v1449, 1.442695
  %v1695 = vpow.pop %v1694
  %v1696 = vmul.f32 %v1450, 1.442695
  %v1697 = vpow.pop %v1696
  %v1698 = vmul.f32 %v1451, 1.442695
  %v1699 = vpow.pop %v1698
  %v1700 = vmul.f32 %v1452, 1.442695
  %v1701 = vpow.pop %v1700
  %v1702 = vmul.f32 %v1453, 1.442695
  %v1703 = vpow.pop %v1702
  %v1704 = vmul.f32 %v1454, 1.442695
  %v1705 = vpow.pop %v1704
  %v1706 = vmul.f32 %v1455, 1.442695
  %v1707 = vpow.pop %v1706
  %v1708 = vmul.f32 %v1456, 1.442695
  %v1709 = vpow.pop %v1708
  %v1710 = vmul.f32 %v1457, 1.442695
  %v1711 = vpow.pop %v1710
  %v1712 = vmul.f32 %v1458, 1.442695
  %v1713 = vpow.pop %v1712
  %v1714 = vmul.f32 %v1459, 1.442695
  %v1715 = vpow.pop %v1714
  %1716 = vst.msk [vmem:[#allocation2] sm:$0xff] %vm380, %v1461
  %1717 = vst.msk [vmem:[#allocation2 + $0x8] sm:$0xff] %vm380, %v1463
  %1718 = vst.msk [vmem:[#allocation2 + $0x10] sm:$0xff] %vm380, %v1465
  %1719 = vst.msk [vmem:[#allocation2 + $0x18] sm:$0xff] %vm380, %v1467
  %1720 = vst.msk [vmem:[#allocation2 + $0x20] sm:$0xff] %vm380, %v1469
  %1721 = vst.msk [vmem:[#allocation2 + $0x28] sm:$0xff] %vm380, %v1471
  %1722 = vst.msk [vmem:[#allocation2 + $0x30] sm:$0xff] %vm380, %v1473
  %1723 = vst.msk [vmem:[#allocation2 + $0x38] sm:$0xff] %vm380, %v1475
  %1724 = vst.msk [vmem:[#allocation2 + $0x40] sm:$0xff] %vm380, %v1477
  %1725 = vst.msk [vmem:[#allocation2 + $0x48] sm:$0xff] %vm380, %v1479
  %1726 = vst.msk [vmem:[#allocation2 + $0x50] sm:$0xff] %vm380, %v1481
  %1727 = vst.msk [vmem:[#allocation2 + $0x58] sm:$0xff] %vm380, %v1483
  %1728 = vst.msk [vmem:[#allocation2 + $0x60] sm:$0xff] %vm380, %v1485
  %1729 = vst.msk [vmem:[#allocation2 + $0x68] sm:$0xff] %vm380, %v1487
  %1730 = vst.msk [vmem:[#allocation2 + $0x70] sm:$0xff] %vm380, %v1489
  %1731 = vst.msk [vmem:[#allocation2 + $0x78] sm:$0xff] %vm380, %v1491
  %1732 = vst.msk [vmem:[#allocation2 + $0x80] sm:$0xff] %vm380, %v1493
  %1733 = vst.msk [vmem:[#allocation2 + $0x88] sm:$0xff] %vm380, %v1495
  %1734 = vst.msk [vmem:[#allocation2 + $0x90] sm:$0xff] %vm380, %v1497
  %1735 = vst.msk [vmem:[#allocation2 + $0x98] sm:$0xff] %vm380, %v1499
  %1736 = vst.msk [vmem:[#allocation2 + $0xa0] sm:$0xff] %vm380, %v1501
  %1737 = vst.msk [vmem:[#allocation2 + $0xa8] sm:$0xff] %vm380, %v1503
  %1738 = vst.msk [vmem:[#allocation2 + $0xb0] sm:$0xff] %vm380, %v1505
  %1739 = vst.msk [vmem:[#allocation2 + $0xb8] sm:$0xff] %vm380, %v1507
  %1740 = vst.msk [vmem:[#allocation2 + $0xc0] sm:$0xff] %vm380, %v1509
  %1741 = vst.msk [vmem:[#allocation2 + $0xc8] sm:$0xff] %vm380, %v1511
  %1742 = vst.msk [vmem:[#allocation2 + $0xd0] sm:$0xff] %vm380, %v1513
  %1743 = vst.msk [vmem:[#allocation2 + $0xd8] sm:$0xff] %vm380, %v1515
  %1744 = vst.msk [vmem:[#allocation2 + $0xe0] sm:$0xff] %vm380, %v1517
  %1745 = vst.msk [vmem:[#allocation2 + $0xe8] sm:$0xff] %vm380, %v1519
  %1746 = vst.msk [vmem:[#allocation2 + $0xf0] sm:$0xff] %vm380, %v1521
  %1747 = vst.msk [vmem:[#allocation2 + $0xf8] sm:$0xff] %vm380, %v1523
  %1748 = vst.msk [vmem:[#allocation2 + $0x100] sm:$0xff] %vm380, %v1525
  %1749 = vst.msk [vmem:[#allocation2 + $0x108] sm:$0xff] %vm380, %v1527
  %1750 = vst.msk [vmem:[#allocation2 + $0x110] sm:$0xff] %vm380, %v1529
  %1751 = vst.msk [vmem:[#allocation2 + $0x118] sm:$0xff] %vm380, %v1531
  %1752 = vst.msk [vmem:[#allocation2 + $0x120] sm:$0xff] %vm380, %v1533
  %1753 = vst.msk [vmem:[#allocation2 + $0x128] sm:$0xff] %vm380, %v1535
  %1754 = vst.msk [vmem:[#allocation2 + $0x130] sm:$0xff] %vm380, %v1537
  %1755 = vst.msk [vmem:[#allocation2 + $0x138] sm:$0xff] %vm380, %v1539
  %1756 = vst.msk [vmem:[#allocation2 + $0x140] sm:$0xff] %vm380, %v1541
  %1757 = vst.msk [vmem:[#allocation2 + $0x148] sm:$0xff] %vm380, %v1543
  %1758 = vst.msk [vmem:[#allocation2 + $0x150] sm:$0xff] %vm380, %v1545
  %1759 = vst.msk [vmem:[#allocation2 + $0x158] sm:$0xff] %vm380, %v1547
  %1760 = vst.msk [vmem:[#allocation2 + $0x160] sm:$0xff] %vm380, %v1549
  %1761 = vst.msk [vmem:[#allocation2 + $0x168] sm:$0xff] %vm380, %v1551
  %1762 = vst.msk [vmem:[#allocation2 + $0x170] sm:$0xff] %vm380, %v1553
  %1763 = vst.msk [vmem:[#allocation2 + $0x178] sm:$0xff] %vm380, %v1555
  %1764 = vst.msk [vmem:[#allocation2 + $0x180] sm:$0xff] %vm380, %v1557
  %1765 = vst.msk [vmem:[#allocation2 + $0x188] sm:$0xff] %vm380, %v1559
  %1766 = vst.msk [vmem:[#allocation2 + $0x190] sm:$0xff] %vm380, %v1561
  %1767 = vst.msk [vmem:[#allocation2 + $0x198] sm:$0xff] %vm380, %v1563
  %1768 = vst.msk [vmem:[#allocation2 + $0x1a0] sm:$0xff] %vm380, %v1565
  %1769 = vst.msk [vmem:[#allocation2 + $0x1a8] sm:$0xff] %vm380, %v1567
  %1770 = vst.msk [vmem:[#allocation2 + $0x1b0] sm:$0xff] %vm380, %v1569
  %1771 = vst.msk [vmem:[#allocation2 + $0x1b8] sm:$0xff] %vm380, %v1571
  %1772 = vst.msk [vmem:[#allocation2 + $0x1c0] sm:$0xff] %vm380, %v1573
  %1773 = vst.msk [vmem:[#allocation2 + $0x1c8] sm:$0xff] %vm380, %v1575
  %1774 = vst.msk [vmem:[#allocation2 + $0x1d0] sm:$0xff] %vm380, %v1577
  %1775 = vst.msk [vmem:[#allocation2 + $0x1d8] sm:$0xff] %vm380, %v1579
  %1776 = vst.msk [vmem:[#allocation2 + $0x1e0] sm:$0xff] %vm380, %v1581
  %1777 = vst.msk [vmem:[#allocation2 + $0x1e8] sm:$0xff] %vm380, %v1583
  %1778 = vst.msk [vmem:[#allocation2 + $0x1f0] sm:$0xff] %vm380, %v1585
  %1779 = vst.msk [vmem:[#allocation2 + $0x1f8] sm:$0xff] %vm380, %v1587
  %1780 = vst.msk [vmem:[#allocation2 + $0x200] sm:$0xff] %vm380, %v1589
  %1781 = vst.msk [vmem:[#allocation2 + $0x208] sm:$0xff] %vm380, %v1591
  %1782 = vst.msk [vmem:[#allocation2 + $0x210] sm:$0xff] %vm380, %v1593
  %1783 = vst.msk [vmem:[#allocation2 + $0x218] sm:$0xff] %vm380, %v1595
  %1784 = vst.msk [vmem:[#allocation2 + $0x220] sm:$0xff] %vm380, %v1597
  %1785 = vst.msk [vmem:[#allocation2 + $0x228] sm:$0xff] %vm380, %v1599
  %1786 = vst.msk [vmem:[#allocation2 + $0x230] sm:$0xff] %vm380, %v1601
  %1787 = vst.msk [vmem:[#allocation2 + $0x238] sm:$0xff] %vm380, %v1603
  %1788 = vst.msk [vmem:[#allocation2 + $0x240] sm:$0xff] %vm380, %v1605
  %1789 = vst.msk [vmem:[#allocation2 + $0x248] sm:$0xff] %vm380, %v1607
  %1790 = vst.msk [vmem:[#allocation2 + $0x250] sm:$0xff] %vm380, %v1609
  %1791 = vst.msk [vmem:[#allocation2 + $0x258] sm:$0xff] %vm380, %v1611
  %1792 = vst.msk [vmem:[#allocation2 + $0x260] sm:$0xff] %vm380, %v1613
  %1793 = vst.msk [vmem:[#allocation2 + $0x268] sm:$0xff] %vm380, %v1615
  %1794 = vst.msk [vmem:[#allocation2 + $0x270] sm:$0xff] %vm380, %v1617
  %1795 = vst.msk [vmem:[#allocation2 + $0x278] sm:$0xff] %vm380, %v1619
  %1796 = vst.msk [vmem:[#allocation2 + $0x280] sm:$0xff] %vm380, %v1621
  %1797 = vst.msk [vmem:[#allocation2 + $0x288] sm:$0xff] %vm380, %v1623
  %1798 = vst.msk [vmem:[#allocation2 + $0x290] sm:$0xff] %vm380, %v1625
  %1799 = vst.msk [vmem:[#allocation2 + $0x298] sm:$0xff] %vm380, %v1627
  %1800 = vst.msk [vmem:[#allocation2 + $0x2a0] sm:$0xff] %vm380, %v1629
  %1801 = vst.msk [vmem:[#allocation2 + $0x2a8] sm:$0xff] %vm380, %v1631
  %1802 = vst.msk [vmem:[#allocation2 + $0x2b0] sm:$0xff] %vm380, %v1633
  %1803 = vst.msk [vmem:[#allocation2 + $0x2b8] sm:$0xff] %vm380, %v1635
  %1804 = vst.msk [vmem:[#allocation2 + $0x2c0] sm:$0xff] %vm380, %v1637
  %1805 = vst.msk [vmem:[#allocation2 + $0x2c8] sm:$0xff] %vm380, %v1639
  %1806 = vst.msk [vmem:[#allocation2 + $0x2d0] sm:$0xff] %vm380, %v1641
  %1807 = vst.msk [vmem:[#allocation2 + $0x2d8] sm:$0xff] %vm380, %v1643
  %1808 = vst.msk [vmem:[#allocation2 + $0x2e0] sm:$0xff] %vm380, %v1645
  %1809 = vst.msk [vmem:[#allocation2 + $0x2e8] sm:$0xff] %vm380, %v1647
  %1810 = vst.msk [vmem:[#allocation2 + $0x2f0] sm:$0xff] %vm380, %v1649
  %1811 = vst.msk [vmem:[#allocation2 + $0x2f8] sm:$0xff] %vm380, %v1651
  %1812 = vst.msk [vmem:[#allocation2 + $0x300] sm:$0xff] %vm380, %v1653
  %1813 = vst.msk [vmem:[#allocation2 + $0x308] sm:$0xff] %vm380, %v1655
  %1814 = vst.msk [vmem:[#allocation2 + $0x310] sm:$0xff] %vm380, %v1657
  %1815 = vst.msk [vmem:[#allocation2 + $0x318] sm:$0xff] %vm380, %v1659
  %1816 = vst.msk [vmem:[#allocation2 + $0x320] sm:$0xff] %vm380, %v1661
  %1817 = vst.msk [vmem:[#allocation2 + $0x328] sm:$0xff] %vm380, %v1663
  %1818 = vst.msk [vmem:[#allocation2 + $0x330] sm:$0xff] %vm380, %v1665
  %1819 = vst.msk [vmem:[#allocation2 + $0x338] sm:$0xff] %vm380, %v1667
  %1820 = vst.msk [vmem:[#allocation2 + $0x340] sm:$0xff] %vm380, %v1669
  %1821 = vst.msk [vmem:[#allocation2 + $0x348] sm:$0xff] %vm380, %v1671
  %1822 = vst.msk [vmem:[#allocation2 + $0x350] sm:$0xff] %vm380, %v1673
  %1823 = vst.msk [vmem:[#allocation2 + $0x358] sm:$0xff] %vm380, %v1675
  %1824 = vst.msk [vmem:[#allocation2 + $0x360] sm:$0xff] %vm380, %v1677
  %1825 = vst.msk [vmem:[#allocation2 + $0x368] sm:$0xff] %vm380, %v1679
  %1826 = vst.msk [vmem:[#allocation2 + $0x370] sm:$0xff] %vm380, %v1681
  %1827 = vst.msk [vmem:[#allocation2 + $0x378] sm:$0xff] %vm380, %v1683
  %1828 = vst.msk [vmem:[#allocation2 + $0x380] sm:$0xff] %vm380, %v1685
  %1829 = vst.msk [vmem:[#allocation2 + $0x388] sm:$0xff] %vm380, %v1687
  %1830 = vst.msk [vmem:[#allocation2 + $0x390] sm:$0xff] %vm380, %v1689
  %1831 = vst.msk [vmem:[#allocation2 + $0x398] sm:$0xff] %vm380, %v1691
  %1832 = vst.msk [vmem:[#allocation2 + $0x3a0] sm:$0xff] %vm380, %v1693
  %1833 = vst.msk [vmem:[#allocation2 + $0x3a8] sm:$0xff] %vm380, %v1695
  %1834 = vst.msk [vmem:[#allocation2 + $0x3b0] sm:$0xff] %vm380, %v1697
  %1835 = vst.msk [vmem:[#allocation2 + $0x3b8] sm:$0xff] %vm380, %v1699
  %1836 = vst.msk [vmem:[#allocation2 + $0x3c0] sm:$0xff] %vm380, %v1701
  %1837 = vst.msk [vmem:[#allocation2 + $0x3c8] sm:$0xff] %vm380, %v1703
  %1838 = vst.msk [vmem:[#allocation2 + $0x3d0] sm:$0xff] %vm380, %v1705
  %1839 = vst.msk [vmem:[#allocation2 + $0x3d8] sm:$0xff] %vm380, %v1707
  %1840 = vst.msk [vmem:[#allocation2 + $0x3e0] sm:$0xff] %vm380, %v1709
  %1841 = vst.msk [vmem:[#allocation2 + $0x3e8] sm:$0xff] %vm380, %v1711
  %1842 = vst.msk [vmem:[#allocation2 + $0x3f0] sm:$0xff] %vm380, %v1713
  %1843 = vst.msk [vmem:[#allocation2 + $0x3f8] sm:$0xff] %vm380, %v1715
  %v1844 = vmul.f32 %v602, %v281
  %v1845 = vmul.f32 %v603, %v283
  %v1846 = vmul.f32 %v604, %v285
  %v1847 = vmul.f32 %v605, %v287
  %v1848 = vmul.f32 %v606, %v289
  %v1849 = vmul.f32 %v607, %v291
  %v1850 = vmul.f32 %v608, %v293
  %v1851 = vmul.f32 %v609, %v295
  %1852 = vst.msk [vmem:[#allocation3] sm:$0xff] %vm380, %v1844
  %1853 = vst.msk [vmem:[#allocation3 + $0x8] sm:$0xff] %vm380, %v1845
  %1854 = vst.msk [vmem:[#allocation3 + $0x10] sm:$0xff] %vm380, %v1846
  %1855 = vst.msk [vmem:[#allocation3 + $0x18] sm:$0xff] %vm380, %v1847
  %1856 = vst.msk [vmem:[#allocation3 + $0x20] sm:$0xff] %vm380, %v1848
  %1857 = vst.msk [vmem:[#allocation3 + $0x28] sm:$0xff] %vm380, %v1849
  %1858 = vst.msk [vmem:[#allocation3 + $0x30] sm:$0xff] %vm380, %v1850
  %1859 = vst.msk [vmem:[#allocation3 + $0x38] sm:$0xff] %vm380, %v1851
  %vm1860 = vcmask 130048
  %1861 = vst.msk [vmem:[#allocation4] sm:$0xff] %vm1860, %v430
  %1862 = vst.msk [vmem:[#allocation4 + $0x8] sm:$0xff] %vm1860, %v434
  %1863 = vst.msk [vmem:[#allocation4 + $0x10] sm:$0xff] %vm1860, %v440
  %1864 = vst.msk [vmem:[#allocation4 + $0x18] sm:$0xff] %vm1860, %v444
  %1865 = vst.msk [vmem:[#allocation4 + $0x20] sm:$0xff] %vm1860, %v450
  %1866 = vst.msk [vmem:[#allocation4 + $0x28] sm:$0xff] %vm1860, %v454
  %1867 = vst.msk [vmem:[#allocation4 + $0x30] sm:$0xff] %vm1860, %v460
  %1868 = vst.msk [vmem:[#allocation4 + $0x38] sm:$0xff] %vm1860, %v464
  %1869 = vst.msk [vmem:[#allocation5] sm:$0xff] %vm1860, %v501
  %1870 = vst.msk [vmem:[#allocation5 + $0x8] sm:$0xff] %vm1860, %v504
  %1871 = vst.msk [vmem:[#allocation5 + $0x10] sm:$0xff] %vm1860, %v509
  %1872 = vst.msk [vmem:[#allocation5 + $0x18] sm:$0xff] %vm1860, %v512
  %1873 = vst.msk [vmem:[#allocation5 + $0x20] sm:$0xff] %vm1860, %v517
  %1874 = vst.msk [vmem:[#allocation5 + $0x28] sm:$0xff] %vm1860, %v520
  %1875 = vst.msk [vmem:[#allocation5 + $0x30] sm:$0xff] %vm1860, %v525
  %1876 = vst.msk [vmem:[#allocation5 + $0x38] sm:$0xff] %vm1860, %v528
  %v1877 = vld [vmem:[#allocation3] sm:$0xff]
  %v1879 = vcombine.high %v1877, %v1877
  %v1881 = vunpack.c.l.s4 1966171168
  %v1882 = vunpack.c.0.s8 %v1881
  %v1883 = vlaneseq
  %v1884 = vshrl.u32 %v1883, 7
  %v1885 = vsub.s32 %v1882, %v1884
  %v1886 = vrot.slane %v1877, %v1885
  %v1888 = vunpack.c.l.s4 1966171168
  %v1889 = vunpack.c.0.s8 %v1888
  %v1890 = vlaneseq
  %v1891 = vshrl.u32 %v1890, 7
  %v1892 = vsub.s32 %v1889, %v1891
  %v1893 = vrot.slane %v1879, %v1892
  %v1894 = vcombine.high %v1886, %v1886
  %v1895 = vcombine.high %v1893, %v1893
  %v1897 = vunpack.c.l.s4 1966171168
  %v1898 = vunpack.c.0.s8 %v1897
  %v1899 = vlaneseq
  %v1900 = vshrl.u32 %v1899, 7
  %v1901 = vsub.s32 %v1898, %v1900
  %v1902 = vrot.slane %v1886, %v1901
  %v1904 = vunpack.c.l.s4 1966171168
  %v1905 = vunpack.c.0.s8 %v1904
  %v1906 = vlaneseq
  %v1907 = vshrl.u32 %v1906, 7
  %v1908 = vsub.s32 %v1905, %v1907
  %v1909 = vrot.slane %v1893, %v1908
  %v1911 = vunpack.c.l.s4 1966171168
  %v1912 = vunpack.c.0.s8 %v1911
  %v1913 = vlaneseq
  %v1914 = vshrl.u32 %v1913, 7
  %v1915 = vsub.s32 %v1912, %v1914
  %v1916 = vrot.slane %v1894, %v1915
  %v1918 = vunpack.c.l.s4 1966171168
  %v1919 = vunpack.c.0.s8 %v1918
  %v1920 = vlaneseq
  %v1921 = vshrl.u32 %v1920, 7
  %v1922 = vsub.s32 %v1919, %v1921
  %v1923 = vrot.slane %v1895, %v1922
  %v1924 = vcombine.high %v1902, %v1902
  %v1925 = vcombine.high %v1909, %v1909
  %v1926 = vcombine.high %v1916, %v1916
  %v1927 = vcombine.high %v1923, %v1923
  %v1928 = vld [vmem:[#allocation4] sm:$0xff]
  %v1929 = vlaneseq
  %v1930 = vshrl.u32 %v1929, 7
  %v1931 = vsub.s32 0, %v1930
  %v1932 = vrot.slane %v1928, %v1931
  %1934 = vbcast.lane.b32.xlu0 %v1932, 256
  %v1935 = vpop.permute.xlu0 %1934
  %s1937 = sor.u32 256, 8
  %1938 = vbcast.lane.b32.xlu0 %v1932, %s1937
  %v1939 = vpop.permute.xlu0 %1938
  %v1940 = vlaneseq
  %v1941 = vshrl.u32 %v1940, 7
  %v1942 = vsub.s32 1, %v1941
  %v1943 = vrot.slane %v1928, %v1942
  %1945 = vbcast.lane.b32.xlu0 %v1943, 256
  %v1946 = vpop.permute.xlu0 %1945
  %s1948 = sor.u32 256, 8
  %1949 = vbcast.lane.b32.xlu0 %v1943, %s1948
  %v1950 = vpop.permute.xlu0 %1949
  %v1951 = vlaneseq
  %v1952 = vshrl.u32 %v1951, 7
  %v1953 = vsub.s32 2, %v1952
  %v1954 = vrot.slane %v1928, %v1953
  %1956 = vbcast.lane.b32.xlu0 %v1954, 256
  %v1957 = vpop.permute.xlu0 %1956
  %s1959 = sor.u32 256, 8
  %1960 = vbcast.lane.b32.xlu0 %v1954, %s1959
  %v1961 = vpop.permute.xlu0 %1960
  %v1962 = vlaneseq
  %v1963 = vshrl.u32 %v1962, 7
  %v1964 = vsub.s32 3, %v1963
  %v1965 = vrot.slane %v1928, %v1964
  %1967 = vbcast.lane.b32.xlu0 %v1965, 256
  %v1968 = vpop.permute.xlu0 %1967
  %s1970 = sor.u32 256, 8
  %1971 = vbcast.lane.b32.xlu0 %v1965, %s1970
  %v1972 = vpop.permute.xlu0 %1971
  %v1973 = vlaneseq
  %v1974 = vshrl.u32 %v1973, 7
  %v1975 = vsub.s32 4, %v1974
  %v1976 = vrot.slane %v1928, %v1975
  %1978 = vbcast.lane.b32.xlu0 %v1976, 256
  %v1979 = vpop.permute.xlu0 %1978
  %s1981 = sor.u32 256, 8
  %1982 = vbcast.lane.b32.xlu0 %v1976, %s1981
  %v1983 = vpop.permute.xlu0 %1982
  %v1984 = vlaneseq
  %v1985 = vshrl.u32 %v1984, 7
  %v1986 = vsub.s32 5, %v1985
  %v1987 = vrot.slane %v1928, %v1986
  %1989 = vbcast.lane.b32.xlu0 %v1987, 256
  %v1990 = vpop.permute.xlu0 %1989
  %s1992 = sor.u32 256, 8
  %1993 = vbcast.lane.b32.xlu0 %v1987, %s1992
  %v1994 = vpop.permute.xlu0 %1993
  %v1995 = vlaneseq
  %v1996 = vshrl.u32 %v1995, 7
  %v1997 = vsub.s32 6, %v1996
  %v1998 = vrot.slane %v1928, %v1997
  %2000 = vbcast.lane.b32.xlu0 %v1998, 256
  %v2001 = vpop.permute.xlu0 %2000
  %s2003 = sor.u32 256, 8
  %2004 = vbcast.lane.b32.xlu0 %v1998, %s2003
  %v2005 = vpop.permute.xlu0 %2004
  %v2006 = vlaneseq
  %v2007 = vshrl.u32 %v2006, 7
  %v2008 = vsub.s32 7, %v2007
  %v2009 = vrot.slane %v1928, %v2008
  %2011 = vbcast.lane.b32.xlu0 %v2009, 256
  %v2012 = vpop.permute.xlu0 %2011
  %s2014 = sor.u32 256, 8
  %2015 = vbcast.lane.b32.xlu0 %v2009, %s2014
  %v2016 = vpop.permute.xlu0 %2015
  %v2017 = vlaneseq
  %v2018 = vshrl.u32 %v2017, 7
  %v2019 = vsub.s32 0, %v2018
  %v2020 = vrot.slane %v1902, %v2019
  %v2021 = vlaneseq
  %v2022 = vshrl.u32 %v2021, 7
  %v2023 = vsub.s32 0, %v2022
  %v2024 = vrot.slane %v1916, %v2023
  %v2025 = vlaneseq
  %v2026 = vshrl.u32 %v2025, 7
  %v2027 = vsub.s32 0, %v2026
  %v2028 = vrot.slane %v1924, %v2027
  %v2029 = vlaneseq
  %v2030 = vshrl.u32 %v2029, 7
  %v2031 = vsub.s32 0, %v2030
  %v2032 = vrot.slane %v1926, %v2031
  %v2033 = vlaneseq
  %v2034 = vshrl.u32 %v2033, 7
  %v2035 = vsub.s32 0, %v2034
  %v2036 = vrot.slane %v1909, %v2035
  %v2037 = vlaneseq
  %v2038 = vshrl.u32 %v2037, 7
  %v2039 = vsub.s32 0, %v2038
  %v2040 = vrot.slane %v1923, %v2039
  %v2041 = vlaneseq
  %v2042 = vshrl.u32 %v2041, 7
  %v2043 = vsub.s32 0, %v2042
  %v2044 = vrot.slane %v1925, %v2043
  %v2045 = vlaneseq
  %v2046 = vshrl.u32 %v2045, 7
  %v2047 = vsub.s32 0, %v2046
  %v2048 = vrot.slane %v1927, %v2047
  %v2057 = vmul.f32 %v2020, %v1935
  %v2058 = vmul.f32 %v2020, %v1939
  %v2059 = vmul.f32 %v2024, %v1946
  %v2060 = vmul.f32 %v2024, %v1950
  %v2061 = vmul.f32 %v2028, %v1957
  %v2062 = vmul.f32 %v2028, %v1961
  %v2063 = vmul.f32 %v2032, %v1968
  %v2064 = vmul.f32 %v2032, %v1972
  %v2065 = vmul.f32 %v2036, %v1979
  %v2066 = vmul.f32 %v2036, %v1983
  %v2067 = vmul.f32 %v2040, %v1990
  %v2068 = vmul.f32 %v2040, %v1994
  %v2069 = vmul.f32 %v2044, %v2001
  %v2070 = vmul.f32 %v2044, %v2005
  %v2071 = vmul.f32 %v2048, %v2012
  %v2072 = vmul.f32 %v2048, %v2016
  %v2073 = vld [vmem:[#allocation2] sm:$0xff]
  %v2074 = vld [vmem:[#allocation2 + $0x8] sm:$0xff]
  %v2075 = vld [vmem:[#allocation2 + $0x10] sm:$0xff]
  %v2076 = vld [vmem:[#allocation2 + $0x18] sm:$0xff]
  %v2077 = vld [vmem:[#allocation2 + $0x20] sm:$0xff]
  %v2078 = vld [vmem:[#allocation2 + $0x28] sm:$0xff]
  %v2079 = vld [vmem:[#allocation2 + $0x30] sm:$0xff]
  %v2080 = vld [vmem:[#allocation2 + $0x38] sm:$0xff]
  %v2081 = vld [vmem:[#allocation2 + $0x40] sm:$0xff]
  %v2082 = vld [vmem:[#allocation2 + $0x48] sm:$0xff]
  %v2083 = vld [vmem:[#allocation2 + $0x50] sm:$0xff]
  %v2084 = vld [vmem:[#allocation2 + $0x58] sm:$0xff]
  %v2085 = vld [vmem:[#allocation2 + $0x60] sm:$0xff]
  %v2086 = vld [vmem:[#allocation2 + $0x68] sm:$0xff]
  %v2087 = vld [vmem:[#allocation2 + $0x70] sm:$0xff]
  %v2088 = vld [vmem:[#allocation2 + $0x78] sm:$0xff]
  %v2089 = vmul.f32 %v2073, 0.0
  %v2090 = vmul.f32 %v2074, 0.0
  %v2091 = vmul.f32 %v2075, 0.0
  %v2092 = vmul.f32 %v2076, 0.0
  %v2093 = vmul.f32 %v2077, 0.0
  %v2094 = vmul.f32 %v2078, 0.0
  %v2095 = vmul.f32 %v2079, 0.0
  %v2096 = vmul.f32 %v2080, 0.0
  %v2097 = vmul.f32 %v2081, 0.0
  %v2098 = vmul.f32 %v2082, 0.0
  %v2099 = vmul.f32 %v2083, 0.0
  %v2100 = vmul.f32 %v2084, 0.0
  %v2101 = vmul.f32 %v2085, 0.0
  %v2102 = vmul.f32 %v2086, 0.0
  %v2103 = vmul.f32 %v2087, 0.0
  %v2104 = vmul.f32 %v2088, 0.0
  %v2105 = vadd.f32 %v2089, %v2057
  %v2106 = vadd.f32 %v2090, %v2058
  %v2107 = vadd.f32 %v2091, %v2059
  %v2108 = vadd.f32 %v2092, %v2060
  %v2109 = vadd.f32 %v2093, %v2061
  %v2110 = vadd.f32 %v2094, %v2062
  %v2111 = vadd.f32 %v2095, %v2063
  %v2112 = vadd.f32 %v2096, %v2064
  %v2113 = vadd.f32 %v2097, %v2065
  %v2114 = vadd.f32 %v2098, %v2066
  %v2115 = vadd.f32 %v2099, %v2067
  %v2116 = vadd.f32 %v2100, %v2068
  %v2117 = vadd.f32 %v2101, %v2069
  %v2118 = vadd.f32 %v2102, %v2070
  %v2119 = vadd.f32 %v2103, %v2071
  %v2120 = vadd.f32 %v2104, %v2072
  %v2121 = vld [vmem:[#allocation5] sm:$0xff]
  %v2122 = vlaneseq
  %v2123 = vshrl.u32 %v2122, 7
  %v2124 = vsub.s32 0, %v2123
  %v2125 = vrot.slane %v2121, %v2124
  %2127 = vbcast.lane.b32.xlu0 %v2125, 256
  %v2128 = vpop.permute.xlu0 %2127
  %s2130 = sor.u32 256, 8
  %2131 = vbcast.lane.b32.xlu0 %v2125, %s2130
  %v2132 = vpop.permute.xlu0 %2131
  %v2133 = vlaneseq
  %v2134 = vshrl.u32 %v2133, 7
  %v2135 = vsub.s32 1, %v2134
  %v2136 = vrot.slane %v2121, %v2135
  %2138 = vbcast.lane.b32.xlu0 %v2136, 256
  %v2139 = vpop.permute.xlu0 %2138
  %s2141 = sor.u32 256, 8
  %2142 = vbcast.lane.b32.xlu0 %v2136, %s2141
  %v2143 = vpop.permute.xlu0 %2142
  %v2144 = vlaneseq
  %v2145 = vshrl.u32 %v2144, 7
  %v2146 = vsub.s32 2, %v2145
  %v2147 = vrot.slane %v2121, %v2146
  %2149 = vbcast.lane.b32.xlu0 %v2147, 256
  %v2150 = vpop.permute.xlu0 %2149
  %s2152 = sor.u32 256, 8
  %2153 = vbcast.lane.b32.xlu0 %v2147, %s2152
  %v2154 = vpop.permute.xlu0 %2153
  %v2155 = vlaneseq
  %v2156 = vshrl.u32 %v2155, 7
  %v2157 = vsub.s32 3, %v2156
  %v2158 = vrot.slane %v2121, %v2157
  %2160 = vbcast.lane.b32.xlu0 %v2158, 256
  %v2161 = vpop.permute.xlu0 %2160
  %s2163 = sor.u32 256, 8
  %2164 = vbcast.lane.b32.xlu0 %v2158, %s2163
  %v2165 = vpop.permute.xlu0 %2164
  %v2166 = vlaneseq
  %v2167 = vshrl.u32 %v2166, 7
  %v2168 = vsub.s32 4, %v2167
  %v2169 = vrot.slane %v2121, %v2168
  %2171 = vbcast.lane.b32.xlu0 %v2169, 256
  %v2172 = vpop.permute.xlu0 %2171
  %s2174 = sor.u32 256, 8
  %2175 = vbcast.lane.b32.xlu0 %v2169, %s2174
  %v2176 = vpop.permute.xlu0 %2175
  %v2177 = vlaneseq
  %v2178 = vshrl.u32 %v2177, 7
  %v2179 = vsub.s32 5, %v2178
  %v2180 = vrot.slane %v2121, %v2179
  %2182 = vbcast.lane.b32.xlu0 %v2180, 256
  %v2183 = vpop.permute.xlu0 %2182
  %s2185 = sor.u32 256, 8
  %2186 = vbcast.lane.b32.xlu0 %v2180, %s2185
  %v2187 = vpop.permute.xlu0 %2186
  %v2188 = vlaneseq
  %v2189 = vshrl.u32 %v2188, 7
  %v2190 = vsub.s32 6, %v2189
  %v2191 = vrot.slane %v2121, %v2190
  %2193 = vbcast.lane.b32.xlu0 %v2191, 256
  %v2194 = vpop.permute.xlu0 %2193
  %s2196 = sor.u32 256, 8
  %2197 = vbcast.lane.b32.xlu0 %v2191, %s2196
  %v2198 = vpop.permute.xlu0 %2197
  %v2199 = vlaneseq
  %v2200 = vshrl.u32 %v2199, 7
  %v2201 = vsub.s32 7, %v2200
  %v2202 = vrot.slane %v2121, %v2201
  %2204 = vbcast.lane.b32.xlu0 %v2202, 256
  %v2205 = vpop.permute.xlu0 %2204
  %s2207 = sor.u32 256, 8
  %2208 = vbcast.lane.b32.xlu0 %v2202, %s2207
  %v2209 = vpop.permute.xlu0 %2208
  %v2210 = vmul.f32 %v2105, %v2128
  %v2211 = vmul.f32 %v2106, %v2132
  %v2212 = vmul.f32 %v2107, %v2139
  %v2213 = vmul.f32 %v2108, %v2143
  %v2214 = vmul.f32 %v2109, %v2150
  %v2215 = vmul.f32 %v2110, %v2154
  %v2216 = vmul.f32 %v2111, %v2161
  %v2217 = vmul.f32 %v2112, %v2165
  %v2218 = vmul.f32 %v2113, %v2172
  %v2219 = vmul.f32 %v2114, %v2176
  %v2220 = vmul.f32 %v2115, %v2183
  %v2221 = vmul.f32 %v2116, %v2187
  %v2222 = vmul.f32 %v2117, %v2194
  %v2223 = vmul.f32 %v2118, %v2198
  %v2224 = vmul.f32 %v2119, %v2205
  %v2225 = vmul.f32 %v2120, %v2209
  %v2226 = vsel %vm380, %v2210, 0.0
  %v2227 = vsel %vm380, %v2211, 0.0
  %v2228 = vadd.f32 %v2226, %v2227
  %v2229 = vrot.slane %v2228, 4
  %v2230 = vadd.f32 %v2228, %v2229
  %v2231 = vrot.slane %v2230, 2
  %v2232 = vadd.f32 %v2230, %v2231
  %v2233 = vrot.slane %v2232, 1
  %v2234 = vadd.f32 %v2232, %v2233
  %v2235 = vsel %vm380, %v2212, 0.0
  %v2236 = vsel %vm380, %v2213, 0.0
  %v2237 = vadd.f32 %v2235, %v2236
  %v2238 = vrot.slane %v2237, 4
  %v2239 = vadd.f32 %v2237, %v2238
  %v2240 = vrot.slane %v2239, 2
  %v2241 = vadd.f32 %v2239, %v2240
  %v2242 = vrot.slane %v2241, 1
  %v2243 = vadd.f32 %v2241, %v2242
  %v2244 = vsel %vm380, %v2214, 0.0
  %v2245 = vsel %vm380, %v2215, 0.0
  %v2246 = vadd.f32 %v2244, %v2245
  %v2247 = vrot.slane %v2246, 4
  %v2248 = vadd.f32 %v2246, %v2247
  %v2249 = vrot.slane %v2248, 2
  %v2250 = vadd.f32 %v2248, %v2249
  %v2251 = vrot.slane %v2250, 1
  %v2252 = vadd.f32 %v2250, %v2251
  %v2253 = vsel %vm380, %v2216, 0.0
  %v2254 = vsel %vm380, %v2217, 0.0
  %v2255 = vadd.f32 %v2253, %v2254
  %v2256 = vrot.slane %v2255, 4
  %v2257 = vadd.f32 %v2255, %v2256
  %v2258 = vrot.slane %v2257, 2
  %v2259 = vadd.f32 %v2257, %v2258
  %v2260 = vrot.slane %v2259, 1
  %v2261 = vadd.f32 %v2259, %v2260
  %v2262 = vsel %vm380, %v2218, 0.0
  %v2263 = vsel %vm380, %v2219, 0.0
  %v2264 = vadd.f32 %v2262, %v2263
  %v2265 = vrot.slane %v2264, 4
  %v2266 = vadd.f32 %v2264, %v2265
  %v2267 = vrot.slane %v2266, 2
  %v2268 = vadd.f32 %v2266, %v2267
  %v2269 = vrot.slane %v2268, 1
  %v2270 = vadd.f32 %v2268, %v2269
  %v2271 = vsel %vm380, %v2220, 0.0
  %v2272 = vsel %vm380, %v2221, 0.0
  %v2273 = vadd.f32 %v2271, %v2272
  %v2274 = vrot.slane %v2273, 4
  %v2275 = vadd.f32 %v2273, %v2274
  %v2276 = vrot.slane %v2275, 2
  %v2277 = vadd.f32 %v2275, %v2276
  %v2278 = vrot.slane %v2277, 1
  %v2279 = vadd.f32 %v2277, %v2278
  %v2280 = vsel %vm380, %v2222, 0.0
  %v2281 = vsel %vm380, %v2223, 0.0
  %v2282 = vadd.f32 %v2280, %v2281
  %v2283 = vrot.slane %v2282, 4
  %v2284 = vadd.f32 %v2282, %v2283
  %v2285 = vrot.slane %v2284, 2
  %v2286 = vadd.f32 %v2284, %v2285
  %v2287 = vrot.slane %v2286, 1
  %v2288 = vadd.f32 %v2286, %v2287
  %v2289 = vsel %vm380, %v2224, 0.0
  %v2290 = vsel %vm380, %v2225, 0.0
  %v2291 = vadd.f32 %v2289, %v2290
  %v2292 = vrot.slane %v2291, 4
  %v2293 = vadd.f32 %v2291, %v2292
  %v2294 = vrot.slane %v2293, 2
  %v2295 = vadd.f32 %v2293, %v2294
  %v2296 = vrot.slane %v2295, 1
  %v2297 = vadd.f32 %v2295, %v2296
  %vm2306 = vcmask 1041409
  %v2307 = vsel %vm2306, %v2243, %v2234
  %vm2308 = vcmask 1042434
  %v2309 = vsel %vm2308, %v2252, %v2307
  %vm2310 = vcmask 1043459
  %v2311 = vsel %vm2310, %v2261, %v2309
  %vm2312 = vcmask 1044484
  %v2313 = vsel %vm2312, %v2270, %v2311
  %vm2314 = vcmask 1045509
  %v2315 = vsel %vm2314, %v2279, %v2313
  %vm2316 = vcmask 1046534
  %v2317 = vsel %vm2316, %v2288, %v2315
  %vm2318 = vcmask 1047559
  %v2319 = vsel %vm2318, %v2297, %v2317
  %2321 = vst.msk [vmem:[#allocation6] sm:$0xff] %vm380, %v2319
  %s2322 = scalar_lea.vmem [#allocation3], 8
  %v2323 = vld [vmem:[%s2322] sm:$0xff]
  %v2325 = vcombine.high %v2323, %v2323
  %v2327 = vunpack.c.l.s4 1966171168
  %v2328 = vunpack.c.0.s8 %v2327
  %v2329 = vlaneseq
  %v2330 = vshrl.u32 %v2329, 7
  %v2331 = vsub.s32 %v2328, %v2330
  %v2332 = vrot.slane %v2323, %v2331
  %v2334 = vunpack.c.l.s4 1966171168
  %v2335 = vunpack.c.0.s8 %v2334
  %v2336 = vlaneseq
  %v2337 = vshrl.u32 %v2336, 7
  %v2338 = vsub.s32 %v2335, %v2337
  %v2339 = vrot.slane %v2325, %v2338
  %v2340 = vcombine.high %v2332, %v2332
  %v2341 = vcombine.high %v2339, %v2339
  %v2343 = vunpack.c.l.s4 1966171168
  %v2344 = vunpack.c.0.s8 %v2343
  %v2345 = vlaneseq
  %v2346 = vshrl.u32 %v2345, 7
  %v2347 = vsub.s32 %v2344, %v2346
  %v2348 = vrot.slane %v2332, %v2347
  %v2350 = vunpack.c.l.s4 1966171168
  %v2351 = vunpack.c.0.s8 %v2350
  %v2352 = vlaneseq
  %v2353 = vshrl.u32 %v2352, 7
  %v2354 = vsub.s32 %v2351, %v2353
  %v2355 = vrot.slane %v2339, %v2354
  %v2357 = vunpack.c.l.s4 1966171168
  %v2358 = vunpack.c.0.s8 %v2357
  %v2359 = vlaneseq
  %v2360 = vshrl.u32 %v2359, 7
  %v2361 = vsub.s32 %v2358, %v2360
  %v2362 = vrot.slane %v2340, %v2361
  %v2364 = vunpack.c.l.s4 1966171168
  %v2365 = vunpack.c.0.s8 %v2364
  %v2366 = vlaneseq
  %v2367 = vshrl.u32 %v2366, 7
  %v2368 = vsub.s32 %v2365, %v2367
  %v2369 = vrot.slane %v2341, %v2368
  %v2370 = vcombine.high %v2348, %v2348
  %v2371 = vcombine.high %v2355, %v2355
  %v2372 = vcombine.high %v2362, %v2362
  %v2373 = vcombine.high %v2369, %v2369
  %s2374 = scalar_lea.vmem [#allocation4], 8
  %v2375 = vld [vmem:[%s2374] sm:$0xff]
  %v2376 = vlaneseq
  %v2377 = vshrl.u32 %v2376, 7
  %v2378 = vsub.s32 0, %v2377
  %v2379 = vrot.slane %v2375, %v2378
  %2381 = vbcast.lane.b32.xlu0 %v2379, 256
  %v2382 = vpop.permute.xlu0 %2381
  %s2384 = sor.u32 256, 8
  %2385 = vbcast.lane.b32.xlu0 %v2379, %s2384
  %v2386 = vpop.permute.xlu0 %2385
  %v2387 = vlaneseq
  %v2388 = vshrl.u32 %v2387, 7
  %v2389 = vsub.s32 1, %v2388
  %v2390 = vrot.slane %v2375, %v2389
  %2392 = vbcast.lane.b32.xlu0 %v2390, 256
  %v2393 = vpop.permute.xlu0 %2392
  %s2395 = sor.u32 256, 8
  %2396 = vbcast.lane.b32.xlu0 %v2390, %s2395
  %v2397 = vpop.permute.xlu0 %2396
  %v2398 = vlaneseq
  %v2399 = vshrl.u32 %v2398, 7
  %v2400 = vsub.s32 2, %v2399
  %v2401 = vrot.slane %v2375, %v2400
  %2403 = vbcast.lane.b32.xlu0 %v2401, 256
  %v2404 = vpop.permute.xlu0 %2403
  %s2406 = sor.u32 256, 8
  %2407 = vbcast.lane.b32.xlu0 %v2401, %s2406
  %v2408 = vpop.permute.xlu0 %2407
  %v2409 = vlaneseq
  %v2410 = vshrl.u32 %v2409, 7
  %v2411 = vsub.s32 3, %v2410
  %v2412 = vrot.slane %v2375, %v2411
  %2414 = vbcast.lane.b32.xlu0 %v2412, 256
  %v2415 = vpop.permute.xlu0 %2414
  %s2417 = sor.u32 256, 8
  %2418 = vbcast.lane.b32.xlu0 %v2412, %s2417
  %v2419 = vpop.permute.xlu0 %2418
  %v2420 = vlaneseq
  %v2421 = vshrl.u32 %v2420, 7
  %v2422 = vsub.s32 4, %v2421
  %v2423 = vrot.slane %v2375, %v2422
  %2425 = vbcast.lane.b32.xlu0 %v2423, 256
  %v2426 = vpop.permute.xlu0 %2425
  %s2428 = sor.u32 256, 8
  %2429 = vbcast.lane.b32.xlu0 %v2423, %s2428
  %v2430 = vpop.permute.xlu0 %2429
  %v2431 = vlaneseq
  %v2432 = vshrl.u32 %v2431, 7
  %v2433 = vsub.s32 5, %v2432
  %v2434 = vrot.slane %v2375, %v2433
  %2436 = vbcast.lane.b32.xlu0 %v2434, 256
  %v2437 = vpop.permute.xlu0 %2436
  %s2439 = sor.u32 256, 8
  %2440 = vbcast.lane.b32.xlu0 %v2434, %s2439
  %v2441 = vpop.permute.xlu0 %2440
  %v2442 = vlaneseq
  %v2443 = vshrl.u32 %v2442, 7
  %v2444 = vsub.s32 6, %v2443
  %v2445 = vrot.slane %v2375, %v2444
  %2447 = vbcast.lane.b32.xlu0 %v2445, 256
  %v2448 = vpop.permute.xlu0 %2447
  %s2450 = sor.u32 256, 8
  %2451 = vbcast.lane.b32.xlu0 %v2445, %s2450
  %v2452 = vpop.permute.xlu0 %2451
  %v2453 = vlaneseq
  %v2454 = vshrl.u32 %v2453, 7
  %v2455 = vsub.s32 7, %v2454
  %v2456 = vrot.slane %v2375, %v2455
  %2458 = vbcast.lane.b32.xlu0 %v2456, 256
  %v2459 = vpop.permute.xlu0 %2458
  %s2461 = sor.u32 256, 8
  %2462 = vbcast.lane.b32.xlu0 %v2456, %s2461
  %v2463 = vpop.permute.xlu0 %2462
  %v2464 = vlaneseq
  %v2465 = vshrl.u32 %v2464, 7
  %v2466 = vsub.s32 0, %v2465
  %v2467 = vrot.slane %v2348, %v2466
  %v2468 = vlaneseq
  %v2469 = vshrl.u32 %v2468, 7
  %v2470 = vsub.s32 0, %v2469
  %v2471 = vrot.slane %v2362, %v2470
  %v2472 = vlaneseq
  %v2473 = vshrl.u32 %v2472, 7
  %v2474 = vsub.s32 0, %v2473
  %v2475 = vrot.slane %v2370, %v2474
  %v2476 = vlaneseq
  %v2477 = vshrl.u32 %v2476, 7
  %v2478 = vsub.s32 0, %v2477
  %v2479 = vrot.slane %v2372, %v2478
  %v2480 = vlaneseq
  %v2481 = vshrl.u32 %v2480, 7
  %v2482 = vsub.s32 0, %v2481
  %v2483 = vrot.slane %v2355, %v2482
  %v2484 = vlaneseq
  %v2485 = vshrl.u32 %v2484, 7
  %v2486 = vsub.s32 0, %v2485
  %v2487 = vrot.slane %v2369, %v2486
  %v2488 = vlaneseq
  %v2489 = vshrl.u32 %v2488, 7
  %v2490 = vsub.s32 0, %v2489
  %v2491 = vrot.slane %v2371, %v2490
  %v2492 = vlaneseq
  %v2493 = vshrl.u32 %v2492, 7
  %v2494 = vsub.s32 0, %v2493
  %v2495 = vrot.slane %v2373, %v2494
  %v2504 = vmul.f32 %v2467, %v2382
  %v2505 = vmul.f32 %v2467, %v2386
  %v2506 = vmul.f32 %v2471, %v2393
  %v2507 = vmul.f32 %v2471, %v2397
  %v2508 = vmul.f32 %v2475, %v2404
  %v2509 = vmul.f32 %v2475, %v2408
  %v2510 = vmul.f32 %v2479, %v2415
  %v2511 = vmul.f32 %v2479, %v2419
  %v2512 = vmul.f32 %v2483, %v2426
  %v2513 = vmul.f32 %v2483, %v2430
  %v2514 = vmul.f32 %v2487, %v2437
  %v2515 = vmul.f32 %v2487, %v2441
  %v2516 = vmul.f32 %v2491, %v2448
  %v2517 = vmul.f32 %v2491, %v2452
  %v2518 = vmul.f32 %v2495, %v2459
  %v2519 = vmul.f32 %v2495, %v2463
  %s2520 = scalar_lea.vmem [#allocation2], 128
  %v2521 = vld [vmem:[%s2520] sm:$0xff]
  %v2522 = vld [vmem:[%s2520 + $0x8] sm:$0xff]
  %v2523 = vld [vmem:[%s2520 + $0x10] sm:$0xff]
  %v2524 = vld [vmem:[%s2520 + $0x18] sm:$0xff]
  %v2525 = vld [vmem:[%s2520 + $0x20] sm:$0xff]
  %v2526 = vld [vmem:[%s2520 + $0x28] sm:$0xff]
  %v2527 = vld [vmem:[%s2520 + $0x30] sm:$0xff]
  %v2528 = vld [vmem:[%s2520 + $0x38] sm:$0xff]
  %v2529 = vld [vmem:[%s2520 + $0x40] sm:$0xff]
  %v2530 = vld [vmem:[%s2520 + $0x48] sm:$0xff]
  %v2531 = vld [vmem:[%s2520 + $0x50] sm:$0xff]
  %v2532 = vld [vmem:[%s2520 + $0x58] sm:$0xff]
  %v2533 = vld [vmem:[%s2520 + $0x60] sm:$0xff]
  %v2534 = vld [vmem:[%s2520 + $0x68] sm:$0xff]
  %v2535 = vld [vmem:[%s2520 + $0x70] sm:$0xff]
  %v2536 = vld [vmem:[%s2520 + $0x78] sm:$0xff]
  %v2537 = vmul.f32 %v2521, %v2105
  %v2538 = vmul.f32 %v2522, %v2106
  %v2539 = vmul.f32 %v2523, %v2107
  %v2540 = vmul.f32 %v2524, %v2108
  %v2541 = vmul.f32 %v2525, %v2109
  %v2542 = vmul.f32 %v2526, %v2110
  %v2543 = vmul.f32 %v2527, %v2111
  %v2544 = vmul.f32 %v2528, %v2112
  %v2545 = vmul.f32 %v2529, %v2113
  %v2546 = vmul.f32 %v2530, %v2114
  %v2547 = vmul.f32 %v2531, %v2115
  %v2548 = vmul.f32 %v2532, %v2116
  %v2549 = vmul.f32 %v2533, %v2117
  %v2550 = vmul.f32 %v2534, %v2118
  %v2551 = vmul.f32 %v2535, %v2119
  %v2552 = vmul.f32 %v2536, %v2120
  %v2553 = vadd.f32 %v2537, %v2504
  %v2554 = vadd.f32 %v2538, %v2505
  %v2555 = vadd.f32 %v2539, %v2506
  %v2556 = vadd.f32 %v2540, %v2507
  %v2557 = vadd.f32 %v2541, %v2508
  %v2558 = vadd.f32 %v2542, %v2509
  %v2559 = vadd.f32 %v2543, %v2510
  %v2560 = vadd.f32 %v2544, %v2511
  %v2561 = vadd.f32 %v2545, %v2512
  %v2562 = vadd.f32 %v2546, %v2513
  %v2563 = vadd.f32 %v2547, %v2514
  %v2564 = vadd.f32 %v2548, %v2515
  %v2565 = vadd.f32 %v2549, %v2516
  %v2566 = vadd.f32 %v2550, %v2517
  %v2567 = vadd.f32 %v2551, %v2518
  %v2568 = vadd.f32 %v2552, %v2519
  %s2569 = scalar_lea.vmem [#allocation5], 8
  %v2570 = vld [vmem:[%s2569] sm:$0xff]
  %v2571 = vlaneseq
  %v2572 = vshrl.u32 %v2571, 7
  %v2573 = vsub.s32 0, %v2572
  %v2574 = vrot.slane %v2570, %v2573
  %2576 = vbcast.lane.b32.xlu0 %v2574, 256
  %v2577 = vpop.permute.xlu0 %2576
  %s2579 = sor.u32 256, 8
  %2580 = vbcast.lane.b32.xlu0 %v2574, %s2579
  %v2581 = vpop.permute.xlu0 %2580
  %v2582 = vlaneseq
  %v2583 = vshrl.u32 %v2582, 7
  %v2584 = vsub.s32 1, %v2583
  %v2585 = vrot.slane %v2570, %v2584
  %2587 = vbcast.lane.b32.xlu0 %v2585, 256
  %v2588 = vpop.permute.xlu0 %2587
  %s2590 = sor.u32 256, 8
  %2591 = vbcast.lane.b32.xlu0 %v2585, %s2590
  %v2592 = vpop.permute.xlu0 %2591
  %v2593 = vlaneseq
  %v2594 = vshrl.u32 %v2593, 7
  %v2595 = vsub.s32 2, %v2594
  %v2596 = vrot.slane %v2570, %v2595
  %2598 = vbcast.lane.b32.xlu0 %v2596, 256
  %v2599 = vpop.permute.xlu0 %2598
  %s2601 = sor.u32 256, 8
  %2602 = vbcast.lane.b32.xlu0 %v2596, %s2601
  %v2603 = vpop.permute.xlu0 %2602
  %v2604 = vlaneseq
  %v2605 = vshrl.u32 %v2604, 7
  %v2606 = vsub.s32 3, %v2605
  %v2607 = vrot.slane %v2570, %v2606
  %2609 = vbcast.lane.b32.xlu0 %v2607, 256
  %v2610 = vpop.permute.xlu0 %2609
  %s2612 = sor.u32 256, 8
  %2613 = vbcast.lane.b32.xlu0 %v2607, %s2612
  %v2614 = vpop.permute.xlu0 %2613
  %v2615 = vlaneseq
  %v2616 = vshrl.u32 %v2615, 7
  %v2617 = vsub.s32 4, %v2616
  %v2618 = vrot.slane %v2570, %v2617
  %2620 = vbcast.lane.b32.xlu0 %v2618, 256
  %v2621 = vpop.permute.xlu0 %2620
  %s2623 = sor.u32 256, 8
  %2624 = vbcast.lane.b32.xlu0 %v2618, %s2623
  %v2625 = vpop.permute.xlu0 %2624
  %v2626 = vlaneseq
  %v2627 = vshrl.u32 %v2626, 7
  %v2628 = vsub.s32 5, %v2627
  %v2629 = vrot.slane %v2570, %v2628
  %2631 = vbcast.lane.b32.xlu0 %v2629, 256
  %v2632 = vpop.permute.xlu0 %2631
  %s2634 = sor.u32 256, 8
  %2635 = vbcast.lane.b32.xlu0 %v2629, %s2634
  %v2636 = vpop.permute.xlu0 %2635
  %v2637 = vlaneseq
  %v2638 = vshrl.u32 %v2637, 7
  %v2639 = vsub.s32 6, %v2638
  %v2640 = vrot.slane %v2570, %v2639
  %2642 = vbcast.lane.b32.xlu0 %v2640, 256
  %v2643 = vpop.permute.xlu0 %2642
  %s2645 = sor.u32 256, 8
  %2646 = vbcast.lane.b32.xlu0 %v2640, %s2645
  %v2647 = vpop.permute.xlu0 %2646
  %v2648 = vlaneseq
  %v2649 = vshrl.u32 %v2648, 7
  %v2650 = vsub.s32 7, %v2649
  %v2651 = vrot.slane %v2570, %v2650
  %2653 = vbcast.lane.b32.xlu0 %v2651, 256
  %v2654 = vpop.permute.xlu0 %2653
  %s2656 = sor.u32 256, 8
  %2657 = vbcast.lane.b32.xlu0 %v2651, %s2656
  %v2658 = vpop.permute.xlu0 %2657
  %v2659 = vmul.f32 %v2553, %v2577
  %v2660 = vmul.f32 %v2554, %v2581
  %v2661 = vmul.f32 %v2555, %v2588
  %v2662 = vmul.f32 %v2556, %v2592
  %v2663 = vmul.f32 %v2557, %v2599
  %v2664 = vmul.f32 %v2558, %v2603
  %v2665 = vmul.f32 %v2559, %v2610
  %v2666 = vmul.f32 %v2560, %v2614
  %v2667 = vmul.f32 %v2561, %v2621
  %v2668 = vmul.f32 %v2562, %v2625
  %v2669 = vmul.f32 %v2563, %v2632
  %v2670 = vmul.f32 %v2564, %v2636
  %v2671 = vmul.f32 %v2565, %v2643
  %v2672 = vmul.f32 %v2566, %v2647
  %v2673 = vmul.f32 %v2567, %v2654
  %v2674 = vmul.f32 %v2568, %v2658
  %v2675 = vsel %vm380, %v2659, 0.0
  %v2676 = vsel %vm380, %v2660, 0.0
  %v2677 = vadd.f32 %v2675, %v2676
  %v2678 = vrot.slane %v2677, 4
  %v2679 = vadd.f32 %v2677, %v2678
  %v2680 = vrot.slane %v2679, 2
  %v2681 = vadd.f32 %v2679, %v2680
  %v2682 = vrot.slane %v2681, 1
  %v2683 = vadd.f32 %v2681, %v2682
  %v2684 = vsel %vm380, %v2661, 0.0
  %v2685 = vsel %vm380, %v2662, 0.0
  %v2686 = vadd.f32 %v2684, %v2685
  %v2687 = vrot.slane %v2686, 4
  %v2688 = vadd.f32 %v2686, %v2687
  %v2689 = vrot.slane %v2688, 2
  %v2690 = vadd.f32 %v2688, %v2689
  %v2691 = vrot.slane %v2690, 1
  %v2692 = vadd.f32 %v2690, %v2691
  %v2693 = vsel %vm380, %v2663, 0.0
  %v2694 = vsel %vm380, %v2664, 0.0
  %v2695 = vadd.f32 %v2693, %v2694
  %v2696 = vrot.slane %v2695, 4
  %v2697 = vadd.f32 %v2695, %v2696
  %v2698 = vrot.slane %v2697, 2
  %v2699 = vadd.f32 %v2697, %v2698
  %v2700 = vrot.slane %v2699, 1
  %v2701 = vadd.f32 %v2699, %v2700
  %v2702 = vsel %vm380, %v2665, 0.0
  %v2703 = vsel %vm380, %v2666, 0.0
  %v2704 = vadd.f32 %v2702, %v2703
  %v2705 = vrot.slane %v2704, 4
  %v2706 = vadd.f32 %v2704, %v2705
  %v2707 = vrot.slane %v2706, 2
  %v2708 = vadd.f32 %v2706, %v2707
  %v2709 = vrot.slane %v2708, 1
  %v2710 = vadd.f32 %v2708, %v2709
  %v2711 = vsel %vm380, %v2667, 0.0
  %v2712 = vsel %vm380, %v2668, 0.0
  %v2713 = vadd.f32 %v2711, %v2712
  %v2714 = vrot.slane %v2713, 4
  %v2715 = vadd.f32 %v2713, %v2714
  %v2716 = vrot.slane %v2715, 2
  %v2717 = vadd.f32 %v2715, %v2716
  %v2718 = vrot.slane %v2717, 1
  %v2719 = vadd.f32 %v2717, %v2718
  %v2720 = vsel %vm380, %v2669, 0.0
  %v2721 = vsel %vm380, %v2670, 0.0
  %v2722 = vadd.f32 %v2720, %v2721
  %v2723 = vrot.slane %v2722, 4
  %v2724 = vadd.f32 %v2722, %v2723
  %v2725 = vrot.slane %v2724, 2
  %v2726 = vadd.f32 %v2724, %v2725
  %v2727 = vrot.slane %v2726, 1
  %v2728 = vadd.f32 %v2726, %v2727
  %v2729 = vsel %vm380, %v2671, 0.0
  %v2730 = vsel %vm380, %v2672, 0.0
  %v2731 = vadd.f32 %v2729, %v2730
  %v2732 = vrot.slane %v2731, 4
  %v2733 = vadd.f32 %v2731, %v2732
  %v2734 = vrot.slane %v2733, 2
  %v2735 = vadd.f32 %v2733, %v2734
  %v2736 = vrot.slane %v2735, 1
  %v2737 = vadd.f32 %v2735, %v2736
  %v2738 = vsel %vm380, %v2673, 0.0
  %v2739 = vsel %vm380, %v2674, 0.0
  %v2740 = vadd.f32 %v2738, %v2739
  %v2741 = vrot.slane %v2740, 4
  %v2742 = vadd.f32 %v2740, %v2741
  %v2743 = vrot.slane %v2742, 2
  %v2744 = vadd.f32 %v2742, %v2743
  %v2745 = vrot.slane %v2744, 1
  %v2746 = vadd.f32 %v2744, %v2745
  %v2755 = vsel %vm2306, %v2692, %v2683
  %v2756 = vsel %vm2308, %v2701, %v2755
  %v2757 = vsel %vm2310, %v2710, %v2756
  %v2758 = vsel %vm2312, %v2719, %v2757
  %v2759 = vsel %vm2314, %v2728, %v2758
  %v2760 = vsel %vm2316, %v2737, %v2759
  %v2761 = vsel %vm2318, %v2746, %v2760
  %s2763 = scalar_lea.vmem [#allocation6], 8
  %2764 = vst.msk [vmem:[%s2763] sm:$0xff] %vm380, %v2761
  %s2765 = scalar_lea.vmem [#allocation3], 16
  %v2766 = vld [vmem:[%s2765] sm:$0xff]
  %v2768 = vcombine.high %v2766, %v2766
  %v2770 = vunpack.c.l.s4 1966171168
  %v2771 = vunpack.c.0.s8 %v2770
  %v2772 = vlaneseq
  %v2773 = vshrl.u32 %v2772, 7
  %v2774 = vsub.s32 %v2771, %v2773
  %v2775 = vrot.slane %v2766, %v2774
  %v2777 = vunpack.c.l.s4 1966171168
  %v2778 = vunpack.c.0.s8 %v2777
  %v2779 = vlaneseq
  %v2780 = vshrl.u32 %v2779, 7
  %v2781 = vsub.s32 %v2778, %v2780
  %v2782 = vrot.slane %v2768, %v2781
  %v2783 = vcombine.high %v2775, %v2775
  %v2784 = vcombine.high %v2782, %v2782
  %v2786 = vunpack.c.l.s4 1966171168
  %v2787 = vunpack.c.0.s8 %v2786
  %v2788 = vlaneseq
  %v2789 = vshrl.u32 %v2788, 7
  %v2790 = vsub.s32 %v2787, %v2789
  %v2791 = vrot.slane %v2775, %v2790
  %v2793 = vunpack.c.l.s4 1966171168
  %v2794 = vunpack.c.0.s8 %v2793
  %v2795 = vlaneseq
  %v2796 = vshrl.u32 %v2795, 7
  %v2797 = vsub.s32 %v2794, %v2796
  %v2798 = vrot.slane %v2782, %v2797
  %v2800 = vunpack.c.l.s4 1966171168
  %v2801 = vunpack.c.0.s8 %v2800
  %v2802 = vlaneseq
  %v2803 = vshrl.u32 %v2802, 7
  %v2804 = vsub.s32 %v2801, %v2803
  %v2805 = vrot.slane %v2783, %v2804
  %v2807 = vunpack.c.l.s4 1966171168
  %v2808 = vunpack.c.0.s8 %v2807
  %v2809 = vlaneseq
  %v2810 = vshrl.u32 %v2809, 7
  %v2811 = vsub.s32 %v2808, %v2810
  %v2812 = vrot.slane %v2784, %v2811
  %v2813 = vcombine.high %v2791, %v2791
  %v2814 = vcombine.high %v2798, %v2798
  %v2815 = vcombine.high %v2805, %v2805
  %v2816 = vcombine.high %v2812, %v2812
  %s2817 = scalar_lea.vmem [#allocation4], 16
  %v2818 = vld [vmem:[%s2817] sm:$0xff]
  %v2819 = vlaneseq
  %v2820 = vshrl.u32 %v2819, 7
  %v2821 = vsub.s32 0, %v2820
  %v2822 = vrot.slane %v2818, %v2821
  %2824 = vbcast.lane.b32.xlu0 %v2822, 256
  %v2825 = vpop.permute.xlu0 %2824
  %s2827 = sor.u32 256, 8
  %2828 = vbcast.lane.b32.xlu0 %v2822, %s2827
  %v2829 = vpop.permute.xlu0 %2828
  %v2830 = vlaneseq
  %v2831 = vshrl.u32 %v2830, 7
  %v2832 = vsub.s32 1, %v2831
  %v2833 = vrot.slane %v2818, %v2832
  %2835 = vbcast.lane.b32.xlu0 %v2833, 256
  %v2836 = vpop.permute.xlu0 %2835
  %s2838 = sor.u32 256, 8
  %2839 = vbcast.lane.b32.xlu0 %v2833, %s2838
  %v2840 = vpop.permute.xlu0 %2839
  %v2841 = vlaneseq
  %v2842 = vshrl.u32 %v2841, 7
  %v2843 = vsub.s32 2, %v2842
  %v2844 = vrot.slane %v2818, %v2843
  %2846 = vbcast.lane.b32.xlu0 %v2844, 256
  %v2847 = vpop.permute.xlu0 %2846
  %s2849 = sor.u32 256, 8
  %2850 = vbcast.lane.b32.xlu0 %v2844, %s2849
  %v2851 = vpop.permute.xlu0 %2850
  %v2852 = vlaneseq
  %v2853 = vshrl.u32 %v2852, 7
  %v2854 = vsub.s32 3, %v2853
  %v2855 = vrot.slane %v2818, %v2854
  %2857 = vbcast.lane.b32.xlu0 %v2855, 256
  %v2858 = vpop.permute.xlu0 %2857
  %s2860 = sor.u32 256, 8
  %2861 = vbcast.lane.b32.xlu0 %v2855, %s2860
  %v2862 = vpop.permute.xlu0 %2861
  %v2863 = vlaneseq
  %v2864 = vshrl.u32 %v2863, 7
  %v2865 = vsub.s32 4, %v2864
  %v2866 = vrot.slane %v2818, %v2865
  %2868 = vbcast.lane.b32.xlu0 %v2866, 256
  %v2869 = vpop.permute.xlu0 %2868
  %s2871 = sor.u32 256, 8
  %2872 = vbcast.lane.b32.xlu0 %v2866, %s2871
  %v2873 = vpop.permute.xlu0 %2872
  %v2874 = vlaneseq
  %v2875 = vshrl.u32 %v2874, 7
  %v2876 = vsub.s32 5, %v2875
  %v2877 = vrot.slane %v2818, %v2876
  %2879 = vbcast.lane.b32.xlu0 %v2877, 256
  %v2880 = vpop.permute.xlu0 %2879
  %s2882 = sor.u32 256, 8
  %2883 = vbcast.lane.b32.xlu0 %v2877, %s2882
  %v2884 = vpop.permute.xlu0 %2883
  %v2885 = vlaneseq
  %v2886 = vshrl.u32 %v2885, 7
  %v2887 = vsub.s32 6, %v2886
  %v2888 = vrot.slane %v2818, %v2887
  %2890 = vbcast.lane.b32.xlu0 %v2888, 256
  %v2891 = vpop.permute.xlu0 %2890
  %s2893 = sor.u32 256, 8
  %2894 = vbcast.lane.b32.xlu0 %v2888, %s2893
  %v2895 = vpop.permute.xlu0 %2894
  %v2896 = vlaneseq
  %v2897 = vshrl.u32 %v2896, 7
  %v2898 = vsub.s32 7, %v2897
  %v2899 = vrot.slane %v2818, %v2898
  %2901 = vbcast.lane.b32.xlu0 %v2899, 256
  %v2902 = vpop.permute.xlu0 %2901
  %s2904 = sor.u32 256, 8
  %2905 = vbcast.lane.b32.xlu0 %v2899, %s2904
  %v2906 = vpop.permute.xlu0 %2905
  %v2907 = vlaneseq
  %v2908 = vshrl.u32 %v2907, 7
  %v2909 = vsub.s32 0, %v2908
  %v2910 = vrot.slane %v2791, %v2909
  %v2911 = vlaneseq
  %v2912 = vshrl.u32 %v2911, 7
  %v2913 = vsub.s32 0, %v2912
  %v2914 = vrot.slane %v2805, %v2913
  %v2915 = vlaneseq
  %v2916 = vshrl.u32 %v2915, 7
  %v2917 = vsub.s32 0, %v2916
  %v2918 = vrot.slane %v2813, %v2917
  %v2919 = vlaneseq
  %v2920 = vshrl.u32 %v2919, 7
  %v2921 = vsub.s32 0, %v2920
  %v2922 = vrot.slane %v2815, %v2921
  %v2923 = vlaneseq
  %v2924 = vshrl.u32 %v2923, 7
  %v2925 = vsub.s32 0, %v2924
  %v2926 = vrot.slane %v2798, %v2925
  %v2927 = vlaneseq
  %v2928 = vshrl.u32 %v2927, 7
  %v2929 = vsub.s32 0, %v2928
  %v2930 = vrot.slane %v2812, %v2929
  %v2931 = vlaneseq
  %v2932 = vshrl.u32 %v2931, 7
  %v2933 = vsub.s32 0, %v2932
  %v2934 = vrot.slane %v2814, %v2933
  %v2935 = vlaneseq
  %v2936 = vshrl.u32 %v2935, 7
  %v2937 = vsub.s32 0, %v2936
  %v2938 = vrot.slane %v2816, %v2937
  %v2947 = vmul.f32 %v2910, %v2825
  %v2948 = vmul.f32 %v2910, %v2829
  %v2949 = vmul.f32 %v2914, %v2836
  %v2950 = vmul.f32 %v2914, %v2840
  %v2951 = vmul.f32 %v2918, %v2847
  %v2952 = vmul.f32 %v2918, %v2851
  %v2953 = vmul.f32 %v2922, %v2858
  %v2954 = vmul.f32 %v2922, %v2862
  %v2955 = vmul.f32 %v2926, %v2869
  %v2956 = vmul.f32 %v2926, %v2873
  %v2957 = vmul.f32 %v2930, %v2880
  %v2958 = vmul.f32 %v2930, %v2884
  %v2959 = vmul.f32 %v2934, %v2891
  %v2960 = vmul.f32 %v2934, %v2895
  %v2961 = vmul.f32 %v2938, %v2902
  %v2962 = vmul.f32 %v2938, %v2906
  %s2963 = scalar_lea.vmem [#allocation2], 256
  %v2964 = vld [vmem:[%s2963] sm:$0xff]
  %v2965 = vld [vmem:[%s2963 + $0x8] sm:$0xff]
  %v2966 = vld [vmem:[%s2963 + $0x10] sm:$0xff]
  %v2967 = vld [vmem:[%s2963 + $0x18] sm:$0xff]
  %v2968 = vld [vmem:[%s2963 + $0x20] sm:$0xff]
  %v2969 = vld [vmem:[%s2963 + $0x28] sm:$0xff]
  %v2970 = vld [vmem:[%s2963 + $0x30] sm:$0xff]
  %v2971 = vld [vmem:[%s2963 + $0x38] sm:$0xff]
  %v2972 = vld [vmem:[%s2963 + $0x40] sm:$0xff]
  %v2973 = vld [vmem:[%s2963 + $0x48] sm:$0xff]
  %v2974 = vld [vmem:[%s2963 + $0x50] sm:$0xff]
  %v2975 = vld [vmem:[%s2963 + $0x58] sm:$0xff]
  %v2976 = vld [vmem:[%s2963 + $0x60] sm:$0xff]
  %v2977 = vld [vmem:[%s2963 + $0x68] sm:$0xff]
  %v2978 = vld [vmem:[%s2963 + $0x70] sm:$0xff]
  %v2979 = vld [vmem:[%s2963 + $0x78] sm:$0xff]
  %v2980 = vmul.f32 %v2964, %v2553
  %v2981 = vmul.f32 %v2965, %v2554
  %v2982 = vmul.f32 %v2966, %v2555
  %v2983 = vmul.f32 %v2967, %v2556
  %v2984 = vmul.f32 %v2968, %v2557
  %v2985 = vmul.f32 %v2969, %v2558
  %v2986 = vmul.f32 %v2970, %v2559
  %v2987 = vmul.f32 %v2971, %v2560
  %v2988 = vmul.f32 %v2972, %v2561
  %v2989 = vmul.f32 %v2973, %v2562
  %v2990 = vmul.f32 %v2974, %v2563
  %v2991 = vmul.f32 %v2975, %v2564
  %v2992 = vmul.f32 %v2976, %v2565
  %v2993 = vmul.f32 %v2977, %v2566
  %v2994 = vmul.f32 %v2978, %v2567
  %v2995 = vmul.f32 %v2979, %v2568
  %v2996 = vadd.f32 %v2980, %v2947
  %v2997 = vadd.f32 %v2981, %v2948
  %v2998 = vadd.f32 %v2982, %v2949
  %v2999 = vadd.f32 %v2983, %v2950
  %v3000 = vadd.f32 %v2984, %v2951
  %v3001 = vadd.f32 %v2985, %v2952
  %v3002 = vadd.f32 %v2986, %v2953
  %v3003 = vadd.f32 %v2987, %v2954
  %v3004 = vadd.f32 %v2988, %v2955
  %v3005 = vadd.f32 %v2989, %v2956
  %v3006 = vadd.f32 %v2990, %v2957
  %v3007 = vadd.f32 %v2991, %v2958
  %v3008 = vadd.f32 %v2992, %v2959
  %v3009 = vadd.f32 %v2993, %v2960
  %v3010 = vadd.f32 %v2994, %v2961
  %v3011 = vadd.f32 %v2995, %v2962
  %s3012 = scalar_lea.vmem [#allocation5], 16
  %v3013 = vld [vmem:[%s3012] sm:$0xff]
  %v3014 = vlaneseq
  %v3015 = vshrl.u32 %v3014, 7
  %v3016 = vsub.s32 0, %v3015
  %v3017 = vrot.slane %v3013, %v3016
  %3019 = vbcast.lane.b32.xlu0 %v3017, 256
  %v3020 = vpop.permute.xlu0 %3019
  %s3022 = sor.u32 256, 8
  %3023 = vbcast.lane.b32.xlu0 %v3017, %s3022
  %v3024 = vpop.permute.xlu0 %3023
  %v3025 = vlaneseq
  %v3026 = vshrl.u32 %v3025, 7
  %v3027 = vsub.s32 1, %v3026
  %v3028 = vrot.slane %v3013, %v3027
  %3030 = vbcast.lane.b32.xlu0 %v3028, 256
  %v3031 = vpop.permute.xlu0 %3030
  %s3033 = sor.u32 256, 8
  %3034 = vbcast.lane.b32.xlu0 %v3028, %s3033
  %v3035 = vpop.permute.xlu0 %3034
  %v3036 = vlaneseq
  %v3037 = vshrl.u32 %v3036, 7
  %v3038 = vsub.s32 2, %v3037
  %v3039 = vrot.slane %v3013, %v3038
  %3041 = vbcast.lane.b32.xlu0 %v3039, 256
  %v3042 = vpop.permute.xlu0 %3041
  %s3044 = sor.u32 256, 8
  %3045 = vbcast.lane.b32.xlu0 %v3039, %s3044
  %v3046 = vpop.permute.xlu0 %3045
  %v3047 = vlaneseq
  %v3048 = vshrl.u32 %v3047, 7
  %v3049 = vsub.s32 3, %v3048
  %v3050 = vrot.slane %v3013, %v3049
  %3052 = vbcast.lane.b32.xlu0 %v3050, 256
  %v3053 = vpop.permute.xlu0 %3052
  %s3055 = sor.u32 256, 8
  %3056 = vbcast.lane.b32.xlu0 %v3050, %s3055
  %v3057 = vpop.permute.xlu0 %3056
  %v3058 = vlaneseq
  %v3059 = vshrl.u32 %v3058, 7
  %v3060 = vsub.s32 4, %v3059
  %v3061 = vrot.slane %v3013, %v3060
  %3063 = vbcast.lane.b32.xlu0 %v3061, 256
  %v3064 = vpop.permute.xlu0 %3063
  %s3066 = sor.u32 256, 8
  %3067 = vbcast.lane.b32.xlu0 %v3061, %s3066
  %v3068 = vpop.permute.xlu0 %3067
  %v3069 = vlaneseq
  %v3070 = vshrl.u32 %v3069, 7
  %v3071 = vsub.s32 5, %v3070
  %v3072 = vrot.slane %v3013, %v3071
  %3074 = vbcast.lane.b32.xlu0 %v3072, 256
  %v3075 = vpop.permute.xlu0 %3074
  %s3077 = sor.u32 256, 8
  %3078 = vbcast.lane.b32.xlu0 %v3072, %s3077
  %v3079 = vpop.permute.xlu0 %3078
  %v3080 = vlaneseq
  %v3081 = vshrl.u32 %v3080, 7
  %v3082 = vsub.s32 6, %v3081
  %v3083 = vrot.slane %v3013, %v3082
  %3085 = vbcast.lane.b32.xlu0 %v3083, 256
  %v3086 = vpop.permute.xlu0 %3085
  %s3088 = sor.u32 256, 8
  %3089 = vbcast.lane.b32.xlu0 %v3083, %s3088
  %v3090 = vpop.permute.xlu0 %3089
  %v3091 = vlaneseq
  %v3092 = vshrl.u32 %v3091, 7
  %v3093 = vsub.s32 7, %v3092
  %v3094 = vrot.slane %v3013, %v3093
  %3096 = vbcast.lane.b32.xlu0 %v3094, 256
  %v3097 = vpop.permute.xlu0 %3096
  %s3099 = sor.u32 256, 8
  %3100 = vbcast.lane.b32.xlu0 %v3094, %s3099
  %v3101 = vpop.permute.xlu0 %3100
  %v3102 = vmul.f32 %v2996, %v3020
  %v3103 = vmul.f32 %v2997, %v3024
  %v3104 = vmul.f32 %v2998, %v3031
  %v3105 = vmul.f32 %v2999, %v3035
  %v3106 = vmul.f32 %v3000, %v3042
  %v3107 = vmul.f32 %v3001, %v3046
  %v3108 = vmul.f32 %v3002, %v3053
  %v3109 = vmul.f32 %v3003, %v3057
  %v3110 = vmul.f32 %v3004, %v3064
  %v3111 = vmul.f32 %v3005, %v3068
  %v3112 = vmul.f32 %v3006, %v3075
  %v3113 = vmul.f32 %v3007, %v3079
  %v3114 = vmul.f32 %v3008, %v3086
  %v3115 = vmul.f32 %v3009, %v3090
  %v3116 = vmul.f32 %v3010, %v3097
  %v3117 = vmul.f32 %v3011, %v3101
  %v3118 = vsel %vm380, %v3102, 0.0
  %v3119 = vsel %vm380, %v3103, 0.0
  %v3120 = vadd.f32 %v3118, %v3119
  %v3121 = vrot.slane %v3120, 4
  %v3122 = vadd.f32 %v3120, %v3121
  %v3123 = vrot.slane %v3122, 2
  %v3124 = vadd.f32 %v3122, %v3123
  %v3125 = vrot.slane %v3124, 1
  %v3126 = vadd.f32 %v3124, %v3125
  %v3127 = vsel %vm380, %v3104, 0.0
  %v3128 = vsel %vm380, %v3105, 0.0
  %v3129 = vadd.f32 %v3127, %v3128
  %v3130 = vrot.slane %v3129, 4
  %v3131 = vadd.f32 %v3129, %v3130
  %v3132 = vrot.slane %v3131, 2
  %v3133 = vadd.f32 %v3131, %v3132
  %v3134 = vrot.slane %v3133, 1
  %v3135 = vadd.f32 %v3133, %v3134
  %v3136 = vsel %vm380, %v3106, 0.0
  %v3137 = vsel %vm380, %v3107, 0.0
  %v3138 = vadd.f32 %v3136, %v3137
  %v3139 = vrot.slane %v3138, 4
  %v3140 = vadd.f32 %v3138, %v3139
  %v3141 = vrot.slane %v3140, 2
  %v3142 = vadd.f32 %v3140, %v3141
  %v3143 = vrot.slane %v3142, 1
  %v3144 = vadd.f32 %v3142, %v3143
  %v3145 = vsel %vm380, %v3108, 0.0
  %v3146 = vsel %vm380, %v3109, 0.0
  %v3147 = vadd.f32 %v3145, %v3146
  %v3148 = vrot.slane %v3147, 4
  %v3149 = vadd.f32 %v3147, %v3148
  %v3150 = vrot.slane %v3149, 2
  %v3151 = vadd.f32 %v3149, %v3150
  %v3152 = vrot.slane %v3151, 1
  %v3153 = vadd.f32 %v3151, %v3152
  %v3154 = vsel %vm380, %v3110, 0.0
  %v3155 = vsel %vm380, %v3111, 0.0
  %v3156 = vadd.f32 %v3154, %v3155
  %v3157 = vrot.slane %v3156, 4
  %v3158 = vadd.f32 %v3156, %v3157
  %v3159 = vrot.slane %v3158, 2
  %v3160 = vadd.f32 %v3158, %v3159
  %v3161 = vrot.slane %v3160, 1
  %v3162 = vadd.f32 %v3160, %v3161
  %v3163 = vsel %vm380, %v3112, 0.0
  %v3164 = vsel %vm380, %v3113, 0.0
  %v3165 = vadd.f32 %v3163, %v3164
  %v3166 = vrot.slane %v3165, 4
  %v3167 = vadd.f32 %v3165, %v3166
  %v3168 = vrot.slane %v3167, 2
  %v3169 = vadd.f32 %v3167, %v3168
  %v3170 = vrot.slane %v3169, 1
  %v3171 = vadd.f32 %v3169, %v3170
  %v3172 = vsel %vm380, %v3114, 0.0
  %v3173 = vsel %vm380, %v3115, 0.0
  %v3174 = vadd.f32 %v3172, %v3173
  %v3175 = vrot.slane %v3174, 4
  %v3176 = vadd.f32 %v3174, %v3175
  %v3177 = vrot.slane %v3176, 2
  %v3178 = vadd.f32 %v3176, %v3177
  %v3179 = vrot.slane %v3178, 1
  %v3180 = vadd.f32 %v3178, %v3179
  %v3181 = vsel %vm380, %v3116, 0.0
  %v3182 = vsel %vm380, %v3117, 0.0
  %v3183 = vadd.f32 %v3181, %v3182
  %v3184 = vrot.slane %v3183, 4
  %v3185 = vadd.f32 %v3183, %v3184
  %v3186 = vrot.slane %v3185, 2
  %v3187 = vadd.f32 %v3185, %v3186
  %v3188 = vrot.slane %v3187, 1
  %v3189 = vadd.f32 %v3187, %v3188
  %v3198 = vsel %vm2306, %v3135, %v3126
  %v3199 = vsel %vm2308, %v3144, %v3198
  %v3200 = vsel %vm2310, %v3153, %v3199
  %v3201 = vsel %vm2312, %v3162, %v3200
  %v3202 = vsel %vm2314, %v3171, %v3201
  %v3203 = vsel %vm2316, %v3180, %v3202
  %v3204 = vsel %vm2318, %v3189, %v3203
  %s3206 = scalar_lea.vmem [#allocation6], 16
  %3207 = vst.msk [vmem:[%s3206] sm:$0xff] %vm380, %v3204
  %s3208 = scalar_lea.vmem [#allocation3], 24
  %v3209 = vld [vmem:[%s3208] sm:$0xff]
  %v3211 = vcombine.high %v3209, %v3209
  %v3213 = vunpack.c.l.s4 1966171168
  %v3214 = vunpack.c.0.s8 %v3213
  %v3215 = vlaneseq
  %v3216 = vshrl.u32 %v3215, 7
  %v3217 = vsub.s32 %v3214, %v3216
  %v3218 = vrot.slane %v3209, %v3217
  %v3220 = vunpack.c.l.s4 1966171168
  %v3221 = vunpack.c.0.s8 %v3220
  %v3222 = vlaneseq
  %v3223 = vshrl.u32 %v3222, 7
  %v3224 = vsub.s32 %v3221, %v3223
  %v3225 = vrot.slane %v3211, %v3224
  %v3226 = vcombine.high %v3218, %v3218
  %v3227 = vcombine.high %v3225, %v3225
  %v3229 = vunpack.c.l.s4 1966171168
  %v3230 = vunpack.c.0.s8 %v3229
  %v3231 = vlaneseq
  %v3232 = vshrl.u32 %v3231, 7
  %v3233 = vsub.s32 %v3230, %v3232
  %v3234 = vrot.slane %v3218, %v3233
  %v3236 = vunpack.c.l.s4 1966171168
  %v3237 = vunpack.c.0.s8 %v3236
  %v3238 = vlaneseq
  %v3239 = vshrl.u32 %v3238, 7
  %v3240 = vsub.s32 %v3237, %v3239
  %v3241 = vrot.slane %v3225, %v3240
  %v3243 = vunpack.c.l.s4 1966171168
  %v3244 = vunpack.c.0.s8 %v3243
  %v3245 = vlaneseq
  %v3246 = vshrl.u32 %v3245, 7
  %v3247 = vsub.s32 %v3244, %v3246
  %v3248 = vrot.slane %v3226, %v3247
  %v3250 = vunpack.c.l.s4 1966171168
  %v3251 = vunpack.c.0.s8 %v3250
  %v3252 = vlaneseq
  %v3253 = vshrl.u32 %v3252, 7
  %v3254 = vsub.s32 %v3251, %v3253
  %v3255 = vrot.slane %v3227, %v3254
  %v3256 = vcombine.high %v3234, %v3234
  %v3257 = vcombine.high %v3241, %v3241
  %v3258 = vcombine.high %v3248, %v3248
  %v3259 = vcombine.high %v3255, %v3255
  %s3260 = scalar_lea.vmem [#allocation4], 24
  %v3261 = vld [vmem:[%s3260] sm:$0xff]
  %v3262 = vlaneseq
  %v3263 = vshrl.u32 %v3262, 7
  %v3264 = vsub.s32 0, %v3263
  %v3265 = vrot.slane %v3261, %v3264
  %3267 = vbcast.lane.b32.xlu0 %v3265, 256
  %v3268 = vpop.permute.xlu0 %3267
  %s3270 = sor.u32 256, 8
  %3271 = vbcast.lane.b32.xlu0 %v3265, %s3270
  %v3272 = vpop.permute.xlu0 %3271
  %v3273 = vlaneseq
  %v3274 = vshrl.u32 %v3273, 7
  %v3275 = vsub.s32 1, %v3274
  %v3276 = vrot.slane %v3261, %v3275
  %3278 = vbcast.lane.b32.xlu0 %v3276, 256
  %v3279 = vpop.permute.xlu0 %3278
  %s3281 = sor.u32 256, 8
  %3282 = vbcast.lane.b32.xlu0 %v3276, %s3281
  %v3283 = vpop.permute.xlu0 %3282
  %v3284 = vlaneseq
  %v3285 = vshrl.u32 %v3284, 7
  %v3286 = vsub.s32 2, %v3285
  %v3287 = vrot.slane %v3261, %v3286
  %3289 = vbcast.lane.b32.xlu0 %v3287, 256
  %v3290 = vpop.permute.xlu0 %3289
  %s3292 = sor.u32 256, 8
  %3293 = vbcast.lane.b32.xlu0 %v3287, %s3292
  %v3294 = vpop.permute.xlu0 %3293
  %v3295 = vlaneseq
  %v3296 = vshrl.u32 %v3295, 7
  %v3297 = vsub.s32 3, %v3296
  %v3298 = vrot.slane %v3261, %v3297
  %3300 = vbcast.lane.b32.xlu0 %v3298, 256
  %v3301 = vpop.permute.xlu0 %3300
  %s3303 = sor.u32 256, 8
  %3304 = vbcast.lane.b32.xlu0 %v3298, %s3303
  %v3305 = vpop.permute.xlu0 %3304
  %v3306 = vlaneseq
  %v3307 = vshrl.u32 %v3306, 7
  %v3308 = vsub.s32 4, %v3307
  %v3309 = vrot.slane %v3261, %v3308
  %3311 = vbcast.lane.b32.xlu0 %v3309, 256
  %v3312 = vpop.permute.xlu0 %3311
  %s3314 = sor.u32 256, 8
  %3315 = vbcast.lane.b32.xlu0 %v3309, %s3314
  %v3316 = vpop.permute.xlu0 %3315
  %v3317 = vlaneseq
  %v3318 = vshrl.u32 %v3317, 7
  %v3319 = vsub.s32 5, %v3318
  %v3320 = vrot.slane %v3261, %v3319
  %3322 = vbcast.lane.b32.xlu0 %v3320, 256
  %v3323 = vpop.permute.xlu0 %3322
  %s3325 = sor.u32 256, 8
  %3326 = vbcast.lane.b32.xlu0 %v3320, %s3325
  %v3327 = vpop.permute.xlu0 %3326
  %v3328 = vlaneseq
  %v3329 = vshrl.u32 %v3328, 7
  %v3330 = vsub.s32 6, %v3329
  %v3331 = vrot.slane %v3261, %v3330
  %3333 = vbcast.lane.b32.xlu0 %v3331, 256
  %v3334 = vpop.permute.xlu0 %3333
  %s3336 = sor.u32 256, 8
  %3337 = vbcast.lane.b32.xlu0 %v3331, %s3336
  %v3338 = vpop.permute.xlu0 %3337
  %v3339 = vlaneseq
  %v3340 = vshrl.u32 %v3339, 7
  %v3341 = vsub.s32 7, %v3340
  %v3342 = vrot.slane %v3261, %v3341
  %3344 = vbcast.lane.b32.xlu0 %v3342, 256
  %v3345 = vpop.permute.xlu0 %3344
  %s3347 = sor.u32 256, 8
  %3348 = vbcast.lane.b32.xlu0 %v3342, %s3347
  %v3349 = vpop.permute.xlu0 %3348
  %v3350 = vlaneseq
  %v3351 = vshrl.u32 %v3350, 7
  %v3352 = vsub.s32 0, %v3351
  %v3353 = vrot.slane %v3234, %v3352
  %v3354 = vlaneseq
  %v3355 = vshrl.u32 %v3354, 7
  %v3356 = vsub.s32 0, %v3355
  %v3357 = vrot.slane %v3248, %v3356
  %v3358 = vlaneseq
  %v3359 = vshrl.u32 %v3358, 7
  %v3360 = vsub.s32 0, %v3359
  %v3361 = vrot.slane %v3256, %v3360
  %v3362 = vlaneseq
  %v3363 = vshrl.u32 %v3362, 7
  %v3364 = vsub.s32 0, %v3363
  %v3365 = vrot.slane %v3258, %v3364
  %v3366 = vlaneseq
  %v3367 = vshrl.u32 %v3366, 7
  %v3368 = vsub.s32 0, %v3367
  %v3369 = vrot.slane %v3241, %v3368
  %v3370 = vlaneseq
  %v3371 = vshrl.u32 %v3370, 7
  %v3372 = vsub.s32 0, %v3371
  %v3373 = vrot.slane %v3255, %v3372
  %v3374 = vlaneseq
  %v3375 = vshrl.u32 %v3374, 7
  %v3376 = vsub.s32 0, %v3375
  %v3377 = vrot.slane %v3257, %v3376
  %v3378 = vlaneseq
  %v3379 = vshrl.u32 %v3378, 7
  %v3380 = vsub.s32 0, %v3379
  %v3381 = vrot.slane %v3259, %v3380
  %v3390 = vmul.f32 %v3353, %v3268
  %v3391 = vmul.f32 %v3353, %v3272
  %v3392 = vmul.f32 %v3357, %v3279
  %v3393 = vmul.f32 %v3357, %v3283
  %v3394 = vmul.f32 %v3361, %v3290
  %v3395 = vmul.f32 %v3361, %v3294
  %v3396 = vmul.f32 %v3365, %v3301
  %v3397 = vmul.f32 %v3365, %v3305
  %v3398 = vmul.f32 %v3369, %v3312
  %v3399 = vmul.f32 %v3369, %v3316
  %v3400 = vmul.f32 %v3373, %v3323
  %v3401 = vmul.f32 %v3373, %v3327
  %v3402 = vmul.f32 %v3377, %v3334
  %v3403 = vmul.f32 %v3377, %v3338
  %v3404 = vmul.f32 %v3381, %v3345
  %v3405 = vmul.f32 %v3381, %v3349
  %s3406 = scalar_lea.vmem [#allocation2], 384
  %v3407 = vld [vmem:[%s3406] sm:$0xff]
  %v3408 = vld [vmem:[%s3406 + $0x8] sm:$0xff]
  %v3409 = vld [vmem:[%s3406 + $0x10] sm:$0xff]
  %v3410 = vld [vmem:[%s3406 + $0x18] sm:$0xff]
  %v3411 = vld [vmem:[%s3406 + $0x20] sm:$0xff]
  %v3412 = vld [vmem:[%s3406 + $0x28] sm:$0xff]
  %v3413 = vld [vmem:[%s3406 + $0x30] sm:$0xff]
  %v3414 = vld [vmem:[%s3406 + $0x38] sm:$0xff]
  %v3415 = vld [vmem:[%s3406 + $0x40] sm:$0xff]
  %v3416 = vld [vmem:[%s3406 + $0x48] sm:$0xff]
  %v3417 = vld [vmem:[%s3406 + $0x50] sm:$0xff]
  %v3418 = vld [vmem:[%s3406 + $0x58] sm:$0xff]
  %v3419 = vld [vmem:[%s3406 + $0x60] sm:$0xff]
  %v3420 = vld [vmem:[%s3406 + $0x68] sm:$0xff]
  %v3421 = vld [vmem:[%s3406 + $0x70] sm:$0xff]
  %v3422 = vld [vmem:[%s3406 + $0x78] sm:$0xff]
  %v3423 = vmul.f32 %v3407, %v2996
  %v3424 = vmul.f32 %v3408, %v2997
  %v3425 = vmul.f32 %v3409, %v2998
  %v3426 = vmul.f32 %v3410, %v2999
  %v3427 = vmul.f32 %v3411, %v3000
  %v3428 = vmul.f32 %v3412, %v3001
  %v3429 = vmul.f32 %v3413, %v3002
  %v3430 = vmul.f32 %v3414, %v3003
  %v3431 = vmul.f32 %v3415, %v3004
  %v3432 = vmul.f32 %v3416, %v3005
  %v3433 = vmul.f32 %v3417, %v3006
  %v3434 = vmul.f32 %v3418, %v3007
  %v3435 = vmul.f32 %v3419, %v3008
  %v3436 = vmul.f32 %v3420, %v3009
  %v3437 = vmul.f32 %v3421, %v3010
  %v3438 = vmul.f32 %v3422, %v3011
  %v3439 = vadd.f32 %v3423, %v3390
  %v3440 = vadd.f32 %v3424, %v3391
  %v3441 = vadd.f32 %v3425, %v3392
  %v3442 = vadd.f32 %v3426, %v3393
  %v3443 = vadd.f32 %v3427, %v3394
  %v3444 = vadd.f32 %v3428, %v3395
  %v3445 = vadd.f32 %v3429, %v3396
  %v3446 = vadd.f32 %v3430, %v3397
  %v3447 = vadd.f32 %v3431, %v3398
  %v3448 = vadd.f32 %v3432, %v3399
  %v3449 = vadd.f32 %v3433, %v3400
  %v3450 = vadd.f32 %v3434, %v3401
  %v3451 = vadd.f32 %v3435, %v3402
  %v3452 = vadd.f32 %v3436, %v3403
  %v3453 = vadd.f32 %v3437, %v3404
  %v3454 = vadd.f32 %v3438, %v3405
  %s3455 = scalar_lea.vmem [#allocation5], 24
  %v3456 = vld [vmem:[%s3455] sm:$0xff]
  %v3457 = vlaneseq
  %v3458 = vshrl.u32 %v3457, 7
  %v3459 = vsub.s32 0, %v3458
  %v3460 = vrot.slane %v3456, %v3459
  %3462 = vbcast.lane.b32.xlu0 %v3460, 256
  %v3463 = vpop.permute.xlu0 %3462
  %s3465 = sor.u32 256, 8
  %3466 = vbcast.lane.b32.xlu0 %v3460, %s3465
  %v3467 = vpop.permute.xlu0 %3466
  %v3468 = vlaneseq
  %v3469 = vshrl.u32 %v3468, 7
  %v3470 = vsub.s32 1, %v3469
  %v3471 = vrot.slane %v3456, %v3470
  %3473 = vbcast.lane.b32.xlu0 %v3471, 256
  %v3474 = vpop.permute.xlu0 %3473
  %s3476 = sor.u32 256, 8
  %3477 = vbcast.lane.b32.xlu0 %v3471, %s3476
  %v3478 = vpop.permute.xlu0 %3477
  %v3479 = vlaneseq
  %v3480 = vshrl.u32 %v3479, 7
  %v3481 = vsub.s32 2, %v3480
  %v3482 = vrot.slane %v3456, %v3481
  %3484 = vbcast.lane.b32.xlu0 %v3482, 256
  %v3485 = vpop.permute.xlu0 %3484
  %s3487 = sor.u32 256, 8
  %3488 = vbcast.lane.b32.xlu0 %v3482, %s3487
  %v3489 = vpop.permute.xlu0 %3488
  %v3490 = vlaneseq
  %v3491 = vshrl.u32 %v3490, 7
  %v3492 = vsub.s32 3, %v3491
  %v3493 = vrot.slane %v3456, %v3492
  %3495 = vbcast.lane.b32.xlu0 %v3493, 256
  %v3496 = vpop.permute.xlu0 %3495
  %s3498 = sor.u32 256, 8
  %3499 = vbcast.lane.b32.xlu0 %v3493, %s3498
  %v3500 = vpop.permute.xlu0 %3499
  %v3501 = vlaneseq
  %v3502 = vshrl.u32 %v3501, 7
  %v3503 = vsub.s32 4, %v3502
  %v3504 = vrot.slane %v3456, %v3503
  %3506 = vbcast.lane.b32.xlu0 %v3504, 256
  %v3507 = vpop.permute.xlu0 %3506
  %s3509 = sor.u32 256, 8
  %3510 = vbcast.lane.b32.xlu0 %v3504, %s3509
  %v3511 = vpop.permute.xlu0 %3510
  %v3512 = vlaneseq
  %v3513 = vshrl.u32 %v3512, 7
  %v3514 = vsub.s32 5, %v3513
  %v3515 = vrot.slane %v3456, %v3514
  %3517 = vbcast.lane.b32.xlu0 %v3515, 256
  %v3518 = vpop.permute.xlu0 %3517
  %s3520 = sor.u32 256, 8
  %3521 = vbcast.lane.b32.xlu0 %v3515, %s3520
  %v3522 = vpop.permute.xlu0 %3521
  %v3523 = vlaneseq
  %v3524 = vshrl.u32 %v3523, 7
  %v3525 = vsub.s32 6, %v3524
  %v3526 = vrot.slane %v3456, %v3525
  %3528 = vbcast.lane.b32.xlu0 %v3526, 256
  %v3529 = vpop.permute.xlu0 %3528
  %s3531 = sor.u32 256, 8
  %3532 = vbcast.lane.b32.xlu0 %v3526, %s3531
  %v3533 = vpop.permute.xlu0 %3532
  %v3534 = vlaneseq
  %v3535 = vshrl.u32 %v3534, 7
  %v3536 = vsub.s32 7, %v3535
  %v3537 = vrot.slane %v3456, %v3536
  %3539 = vbcast.lane.b32.xlu0 %v3537, 256
  %v3540 = vpop.permute.xlu0 %3539
  %s3542 = sor.u32 256, 8
  %3543 = vbcast.lane.b32.xlu0 %v3537, %s3542
  %v3544 = vpop.permute.xlu0 %3543
  %v3545 = vmul.f32 %v3439, %v3463
  %v3546 = vmul.f32 %v3440, %v3467
  %v3547 = vmul.f32 %v3441, %v3474
  %v3548 = vmul.f32 %v3442, %v3478
  %v3549 = vmul.f32 %v3443, %v3485
  %v3550 = vmul.f32 %v3444, %v3489
  %v3551 = vmul.f32 %v3445, %v3496
  %v3552 = vmul.f32 %v3446, %v3500
  %v3553 = vmul.f32 %v3447, %v3507
  %v3554 = vmul.f32 %v3448, %v3511
  %v3555 = vmul.f32 %v3449, %v3518
  %v3556 = vmul.f32 %v3450, %v3522
  %v3557 = vmul.f32 %v3451, %v3529
  %v3558 = vmul.f32 %v3452, %v3533
  %v3559 = vmul.f32 %v3453, %v3540
  %v3560 = vmul.f32 %v3454, %v3544
  %v3561 = vsel %vm380, %v3545, 0.0
  %v3562 = vsel %vm380, %v3546, 0.0
  %v3563 = vadd.f32 %v3561, %v3562
  %v3564 = vrot.slane %v3563, 4
  %v3565 = vadd.f32 %v3563, %v3564
  %v3566 = vrot.slane %v3565, 2
  %v3567 = vadd.f32 %v3565, %v3566
  %v3568 = vrot.slane %v3567, 1
  %v3569 = vadd.f32 %v3567, %v3568
  %v3570 = vsel %vm380, %v3547, 0.0
  %v3571 = vsel %vm380, %v3548, 0.0
  %v3572 = vadd.f32 %v3570, %v3571
  %v3573 = vrot.slane %v3572, 4
  %v3574 = vadd.f32 %v3572, %v3573
  %v3575 = vrot.slane %v3574, 2
  %v3576 = vadd.f32 %v3574, %v3575
  %v3577 = vrot.slane %v3576, 1
  %v3578 = vadd.f32 %v3576, %v3577
  %v3579 = vsel %vm380, %v3549, 0.0
  %v3580 = vsel %vm380, %v3550, 0.0
  %v3581 = vadd.f32 %v3579, %v3580
  %v3582 = vrot.slane %v3581, 4
  %v3583 = vadd.f32 %v3581, %v3582
  %v3584 = vrot.slane %v3583, 2
  %v3585 = vadd.f32 %v3583, %v3584
  %v3586 = vrot.slane %v3585, 1
  %v3587 = vadd.f32 %v3585, %v3586
  %v3588 = vsel %vm380, %v3551, 0.0
  %v3589 = vsel %vm380, %v3552, 0.0
  %v3590 = vadd.f32 %v3588, %v3589
  %v3591 = vrot.slane %v3590, 4
  %v3592 = vadd.f32 %v3590, %v3591
  %v3593 = vrot.slane %v3592, 2
  %v3594 = vadd.f32 %v3592, %v3593
  %v3595 = vrot.slane %v3594, 1
  %v3596 = vadd.f32 %v3594, %v3595
  %v3597 = vsel %vm380, %v3553, 0.0
  %v3598 = vsel %vm380, %v3554, 0.0
  %v3599 = vadd.f32 %v3597, %v3598
  %v3600 = vrot.slane %v3599, 4
  %v3601 = vadd.f32 %v3599, %v3600
  %v3602 = vrot.slane %v3601, 2
  %v3603 = vadd.f32 %v3601, %v3602
  %v3604 = vrot.slane %v3603, 1
  %v3605 = vadd.f32 %v3603, %v3604
  %v3606 = vsel %vm380, %v3555, 0.0
  %v3607 = vsel %vm380, %v3556, 0.0
  %v3608 = vadd.f32 %v3606, %v3607
  %v3609 = vrot.slane %v3608, 4
  %v3610 = vadd.f32 %v3608, %v3609
  %v3611 = vrot.slane %v3610, 2
  %v3612 = vadd.f32 %v3610, %v3611
  %v3613 = vrot.slane %v3612, 1
  %v3614 = vadd.f32 %v3612, %v3613
  %v3615 = vsel %vm380, %v3557, 0.0
  %v3616 = vsel %vm380, %v3558, 0.0
  %v3617 = vadd.f32 %v3615, %v3616
  %v3618 = vrot.slane %v3617, 4
  %v3619 = vadd.f32 %v3617, %v3618
  %v3620 = vrot.slane %v3619, 2
  %v3621 = vadd.f32 %v3619, %v3620
  %v3622 = vrot.slane %v3621, 1
  %v3623 = vadd.f32 %v3621, %v3622
  %v3624 = vsel %vm380, %v3559, 0.0
  %v3625 = vsel %vm380, %v3560, 0.0
  %v3626 = vadd.f32 %v3624, %v3625
  %v3627 = vrot.slane %v3626, 4
  %v3628 = vadd.f32 %v3626, %v3627
  %v3629 = vrot.slane %v3628, 2
  %v3630 = vadd.f32 %v3628, %v3629
  %v3631 = vrot.slane %v3630, 1
  %v3632 = vadd.f32 %v3630, %v3631
  %v3641 = vsel %vm2306, %v3578, %v3569
  %v3642 = vsel %vm2308, %v3587, %v3641
  %v3643 = vsel %vm2310, %v3596, %v3642
  %v3644 = vsel %vm2312, %v3605, %v3643
  %v3645 = vsel %vm2314, %v3614, %v3644
  %v3646 = vsel %vm2316, %v3623, %v3645
  %v3647 = vsel %vm2318, %v3632, %v3646
  %s3649 = scalar_lea.vmem [#allocation6], 24
  %3650 = vst.msk [vmem:[%s3649] sm:$0xff] %vm380, %v3647
  %s3651 = scalar_lea.vmem [#allocation3], 32
  %v3652 = vld [vmem:[%s3651] sm:$0xff]
  %v3654 = vcombine.high %v3652, %v3652
  %v3656 = vunpack.c.l.s4 1966171168
  %v3657 = vunpack.c.0.s8 %v3656
  %v3658 = vlaneseq
  %v3659 = vshrl.u32 %v3658, 7
  %v3660 = vsub.s32 %v3657, %v3659
  %v3661 = vrot.slane %v3652, %v3660
  %v3663 = vunpack.c.l.s4 1966171168
  %v3664 = vunpack.c.0.s8 %v3663
  %v3665 = vlaneseq
  %v3666 = vshrl.u32 %v3665, 7
  %v3667 = vsub.s32 %v3664, %v3666
  %v3668 = vrot.slane %v3654, %v3667
  %v3669 = vcombine.high %v3661, %v3661
  %v3670 = vcombine.high %v3668, %v3668
  %v3672 = vunpack.c.l.s4 1966171168
  %v3673 = vunpack.c.0.s8 %v3672
  %v3674 = vlaneseq
  %v3675 = vshrl.u32 %v3674, 7
  %v3676 = vsub.s32 %v3673, %v3675
  %v3677 = vrot.slane %v3661, %v3676
  %v3679 = vunpack.c.l.s4 1966171168
  %v3680 = vunpack.c.0.s8 %v3679
  %v3681 = vlaneseq
  %v3682 = vshrl.u32 %v3681, 7
  %v3683 = vsub.s32 %v3680, %v3682
  %v3684 = vrot.slane %v3668, %v3683
  %v3686 = vunpack.c.l.s4 1966171168
  %v3687 = vunpack.c.0.s8 %v3686
  %v3688 = vlaneseq
  %v3689 = vshrl.u32 %v3688, 7
  %v3690 = vsub.s32 %v3687, %v3689
  %v3691 = vrot.slane %v3669, %v3690
  %v3693 = vunpack.c.l.s4 1966171168
  %v3694 = vunpack.c.0.s8 %v3693
  %v3695 = vlaneseq
  %v3696 = vshrl.u32 %v3695, 7
  %v3697 = vsub.s32 %v3694, %v3696
  %v3698 = vrot.slane %v3670, %v3697
  %v3699 = vcombine.high %v3677, %v3677
  %v3700 = vcombine.high %v3684, %v3684
  %v3701 = vcombine.high %v3691, %v3691
  %v3702 = vcombine.high %v3698, %v3698
  %s3703 = scalar_lea.vmem [#allocation4], 32
  %v3704 = vld [vmem:[%s3703] sm:$0xff]
  %v3705 = vlaneseq
  %v3706 = vshrl.u32 %v3705, 7
  %v3707 = vsub.s32 0, %v3706
  %v3708 = vrot.slane %v3704, %v3707
  %3710 = vbcast.lane.b32.xlu0 %v3708, 256
  %v3711 = vpop.permute.xlu0 %3710
  %s3713 = sor.u32 256, 8
  %3714 = vbcast.lane.b32.xlu0 %v3708, %s3713
  %v3715 = vpop.permute.xlu0 %3714
  %v3716 = vlaneseq
  %v3717 = vshrl.u32 %v3716, 7
  %v3718 = vsub.s32 1, %v3717
  %v3719 = vrot.slane %v3704, %v3718
  %3721 = vbcast.lane.b32.xlu0 %v3719, 256
  %v3722 = vpop.permute.xlu0 %3721
  %s3724 = sor.u32 256, 8
  %3725 = vbcast.lane.b32.xlu0 %v3719, %s3724
  %v3726 = vpop.permute.xlu0 %3725
  %v3727 = vlaneseq
  %v3728 = vshrl.u32 %v3727, 7
  %v3729 = vsub.s32 2, %v3728
  %v3730 = vrot.slane %v3704, %v3729
  %3732 = vbcast.lane.b32.xlu0 %v3730, 256
  %v3733 = vpop.permute.xlu0 %3732
  %s3735 = sor.u32 256, 8
  %3736 = vbcast.lane.b32.xlu0 %v3730, %s3735
  %v3737 = vpop.permute.xlu0 %3736
  %v3738 = vlaneseq
  %v3739 = vshrl.u32 %v3738, 7
  %v3740 = vsub.s32 3, %v3739
  %v3741 = vrot.slane %v3704, %v3740
  %3743 = vbcast.lane.b32.xlu0 %v3741, 256
  %v3744 = vpop.permute.xlu0 %3743
  %s3746 = sor.u32 256, 8
  %3747 = vbcast.lane.b32.xlu0 %v3741, %s3746
  %v3748 = vpop.permute.xlu0 %3747
  %v3749 = vlaneseq
  %v3750 = vshrl.u32 %v3749, 7
  %v3751 = vsub.s32 4, %v3750
  %v3752 = vrot.slane %v3704, %v3751
  %3754 = vbcast.lane.b32.xlu0 %v3752, 256
  %v3755 = vpop.permute.xlu0 %3754
  %s3757 = sor.u32 256, 8
  %3758 = vbcast.lane.b32.xlu0 %v3752, %s3757
  %v3759 = vpop.permute.xlu0 %3758
  %v3760 = vlaneseq
  %v3761 = vshrl.u32 %v3760, 7
  %v3762 = vsub.s32 5, %v3761
  %v3763 = vrot.slane %v3704, %v3762
  %3765 = vbcast.lane.b32.xlu0 %v3763, 256
  %v3766 = vpop.permute.xlu0 %3765
  %s3768 = sor.u32 256, 8
  %3769 = vbcast.lane.b32.xlu0 %v3763, %s3768
  %v3770 = vpop.permute.xlu0 %3769
  %v3771 = vlaneseq
  %v3772 = vshrl.u32 %v3771, 7
  %v3773 = vsub.s32 6, %v3772
  %v3774 = vrot.slane %v3704, %v3773
  %3776 = vbcast.lane.b32.xlu0 %v3774, 256
  %v3777 = vpop.permute.xlu0 %3776
  %s3779 = sor.u32 256, 8
  %3780 = vbcast.lane.b32.xlu0 %v3774, %s3779
  %v3781 = vpop.permute.xlu0 %3780
  %v3782 = vlaneseq
  %v3783 = vshrl.u32 %v3782, 7
  %v3784 = vsub.s32 7, %v3783
  %v3785 = vrot.slane %v3704, %v3784
  %3787 = vbcast.lane.b32.xlu0 %v3785, 256
  %v3788 = vpop.permute.xlu0 %3787
  %s3790 = sor.u32 256, 8
  %3791 = vbcast.lane.b32.xlu0 %v3785, %s3790
  %v3792 = vpop.permute.xlu0 %3791
  %v3793 = vlaneseq
  %v3794 = vshrl.u32 %v3793, 7
  %v3795 = vsub.s32 0, %v3794
  %v3796 = vrot.slane %v3677, %v3795
  %v3797 = vlaneseq
  %v3798 = vshrl.u32 %v3797, 7
  %v3799 = vsub.s32 0, %v3798
  %v3800 = vrot.slane %v3691, %v3799
  %v3801 = vlaneseq
  %v3802 = vshrl.u32 %v3801, 7
  %v3803 = vsub.s32 0, %v3802
  %v3804 = vrot.slane %v3699, %v3803
  %v3805 = vlaneseq
  %v3806 = vshrl.u32 %v3805, 7
  %v3807 = vsub.s32 0, %v3806
  %v3808 = vrot.slane %v3701, %v3807
  %v3809 = vlaneseq
  %v3810 = vshrl.u32 %v3809, 7
  %v3811 = vsub.s32 0, %v3810
  %v3812 = vrot.slane %v3684, %v3811
  %v3813 = vlaneseq
  %v3814 = vshrl.u32 %v3813, 7
  %v3815 = vsub.s32 0, %v3814
  %v3816 = vrot.slane %v3698, %v3815
  %v3817 = vlaneseq
  %v3818 = vshrl.u32 %v3817, 7
  %v3819 = vsub.s32 0, %v3818
  %v3820 = vrot.slane %v3700, %v3819
  %v3821 = vlaneseq
  %v3822 = vshrl.u32 %v3821, 7
  %v3823 = vsub.s32 0, %v3822
  %v3824 = vrot.slane %v3702, %v3823
  %v3833 = vmul.f32 %v3796, %v3711
  %v3834 = vmul.f32 %v3796, %v3715
  %v3835 = vmul.f32 %v3800, %v3722
  %v3836 = vmul.f32 %v3800, %v3726
  %v3837 = vmul.f32 %v3804, %v3733
  %v3838 = vmul.f32 %v3804, %v3737
  %v3839 = vmul.f32 %v3808, %v3744
  %v3840 = vmul.f32 %v3808, %v3748
  %v3841 = vmul.f32 %v3812, %v3755
  %v3842 = vmul.f32 %v3812, %v3759
  %v3843 = vmul.f32 %v3816, %v3766
  %v3844 = vmul.f32 %v3816, %v3770
  %v3845 = vmul.f32 %v3820, %v3777
  %v3846 = vmul.f32 %v3820, %v3781
  %v3847 = vmul.f32 %v3824, %v3788
  %v3848 = vmul.f32 %v3824, %v3792
  %s3849 = scalar_lea.vmem [#allocation2], 512
  %v3850 = vld [vmem:[%s3849] sm:$0xff]
  %v3851 = vld [vmem:[%s3849 + $0x8] sm:$0xff]
  %v3852 = vld [vmem:[%s3849 + $0x10] sm:$0xff]
  %v3853 = vld [vmem:[%s3849 + $0x18] sm:$0xff]
  %v3854 = vld [vmem:[%s3849 + $0x20] sm:$0xff]
  %v3855 = vld [vmem:[%s3849 + $0x28] sm:$0xff]
  %v3856 = vld [vmem:[%s3849 + $0x30] sm:$0xff]
  %v3857 = vld [vmem:[%s3849 + $0x38] sm:$0xff]
  %v3858 = vld [vmem:[%s3849 + $0x40] sm:$0xff]
  %v3859 = vld [vmem:[%s3849 + $0x48] sm:$0xff]
  %v3860 = vld [vmem:[%s3849 + $0x50] sm:$0xff]
  %v3861 = vld [vmem:[%s3849 + $0x58] sm:$0xff]
  %v3862 = vld [vmem:[%s3849 + $0x60] sm:$0xff]
  %v3863 = vld [vmem:[%s3849 + $0x68] sm:$0xff]
  %v3864 = vld [vmem:[%s3849 + $0x70] sm:$0xff]
  %v3865 = vld [vmem:[%s3849 + $0x78] sm:$0xff]
  %v3866 = vmul.f32 %v3850, %v3439
  %v3867 = vmul.f32 %v3851, %v3440
  %v3868 = vmul.f32 %v3852, %v3441
  %v3869 = vmul.f32 %v3853, %v3442
  %v3870 = vmul.f32 %v3854, %v3443
  %v3871 = vmul.f32 %v3855, %v3444
  %v3872 = vmul.f32 %v3856, %v3445
  %v3873 = vmul.f32 %v3857, %v3446
  %v3874 = vmul.f32 %v3858, %v3447
  %v3875 = vmul.f32 %v3859, %v3448
  %v3876 = vmul.f32 %v3860, %v3449
  %v3877 = vmul.f32 %v3861, %v3450
  %v3878 = vmul.f32 %v3862, %v3451
  %v3879 = vmul.f32 %v3863, %v3452
  %v3880 = vmul.f32 %v3864, %v3453
  %v3881 = vmul.f32 %v3865, %v3454
  %v3882 = vadd.f32 %v3866, %v3833
  %v3883 = vadd.f32 %v3867, %v3834
  %v3884 = vadd.f32 %v3868, %v3835
  %v3885 = vadd.f32 %v3869, %v3836
  %v3886 = vadd.f32 %v3870, %v3837
  %v3887 = vadd.f32 %v3871, %v3838
  %v3888 = vadd.f32 %v3872, %v3839
  %v3889 = vadd.f32 %v3873, %v3840
  %v3890 = vadd.f32 %v3874, %v3841
  %v3891 = vadd.f32 %v3875, %v3842
  %v3892 = vadd.f32 %v3876, %v3843
  %v3893 = vadd.f32 %v3877, %v3844
  %v3894 = vadd.f32 %v3878, %v3845
  %v3895 = vadd.f32 %v3879, %v3846
  %v3896 = vadd.f32 %v3880, %v3847
  %v3897 = vadd.f32 %v3881, %v3848
  %s3898 = scalar_lea.vmem [#allocation5], 32
  %v3899 = vld [vmem:[%s3898] sm:$0xff]
  %v3900 = vlaneseq
  %v3901 = vshrl.u32 %v3900, 7
  %v3902 = vsub.s32 0, %v3901
  %v3903 = vrot.slane %v3899, %v3902
  %3905 = vbcast.lane.b32.xlu0 %v3903, 256
  %v3906 = vpop.permute.xlu0 %3905
  %s3908 = sor.u32 256, 8
  %3909 = vbcast.lane.b32.xlu0 %v3903, %s3908
  %v3910 = vpop.permute.xlu0 %3909
  %v3911 = vlaneseq
  %v3912 = vshrl.u32 %v3911, 7
  %v3913 = vsub.s32 1, %v3912
  %v3914 = vrot.slane %v3899, %v3913
  %3916 = vbcast.lane.b32.xlu0 %v3914, 256
  %v3917 = vpop.permute.xlu0 %3916
  %s3919 = sor.u32 256, 8
  %3920 = vbcast.lane.b32.xlu0 %v3914, %s3919
  %v3921 = vpop.permute.xlu0 %3920
  %v3922 = vlaneseq
  %v3923 = vshrl.u32 %v3922, 7
  %v3924 = vsub.s32 2, %v3923
  %v3925 = vrot.slane %v3899, %v3924
  %3927 = vbcast.lane.b32.xlu0 %v3925, 256
  %v3928 = vpop.permute.xlu0 %3927
  %s3930 = sor.u32 256, 8
  %3931 = vbcast.lane.b32.xlu0 %v3925, %s3930
  %v3932 = vpop.permute.xlu0 %3931
  %v3933 = vlaneseq
  %v3934 = vshrl.u32 %v3933, 7
  %v3935 = vsub.s32 3, %v3934
  %v3936 = vrot.slane %v3899, %v3935
  %3938 = vbcast.lane.b32.xlu0 %v3936, 256
  %v3939 = vpop.permute.xlu0 %3938
  %s3941 = sor.u32 256, 8
  %3942 = vbcast.lane.b32.xlu0 %v3936, %s3941
  %v3943 = vpop.permute.xlu0 %3942
  %v3944 = vlaneseq
  %v3945 = vshrl.u32 %v3944, 7
  %v3946 = vsub.s32 4, %v3945
  %v3947 = vrot.slane %v3899, %v3946
  %3949 = vbcast.lane.b32.xlu0 %v3947, 256
  %v3950 = vpop.permute.xlu0 %3949
  %s3952 = sor.u32 256, 8
  %3953 = vbcast.lane.b32.xlu0 %v3947, %s3952
  %v3954 = vpop.permute.xlu0 %3953
  %v3955 = vlaneseq
  %v3956 = vshrl.u32 %v3955, 7
  %v3957 = vsub.s32 5, %v3956
  %v3958 = vrot.slane %v3899, %v3957
  %3960 = vbcast.lane.b32.xlu0 %v3958, 256
  %v3961 = vpop.permute.xlu0 %3960
  %s3963 = sor.u32 256, 8
  %3964 = vbcast.lane.b32.xlu0 %v3958, %s3963
  %v3965 = vpop.permute.xlu0 %3964
  %v3966 = vlaneseq
  %v3967 = vshrl.u32 %v3966, 7
  %v3968 = vsub.s32 6, %v3967
  %v3969 = vrot.slane %v3899, %v3968
  %3971 = vbcast.lane.b32.xlu0 %v3969, 256
  %v3972 = vpop.permute.xlu0 %3971
  %s3974 = sor.u32 256, 8
  %3975 = vbcast.lane.b32.xlu0 %v3969, %s3974
  %v3976 = vpop.permute.xlu0 %3975
  %v3977 = vlaneseq
  %v3978 = vshrl.u32 %v3977, 7
  %v3979 = vsub.s32 7, %v3978
  %v3980 = vrot.slane %v3899, %v3979
  %3982 = vbcast.lane.b32.xlu0 %v3980, 256
  %v3983 = vpop.permute.xlu0 %3982
  %s3985 = sor.u32 256, 8
  %3986 = vbcast.lane.b32.xlu0 %v3980, %s3985
  %v3987 = vpop.permute.xlu0 %3986
  %v3988 = vmul.f32 %v3882, %v3906
  %v3989 = vmul.f32 %v3883, %v3910
  %v3990 = vmul.f32 %v3884, %v3917
  %v3991 = vmul.f32 %v3885, %v3921
  %v3992 = vmul.f32 %v3886, %v3928
  %v3993 = vmul.f32 %v3887, %v3932
  %v3994 = vmul.f32 %v3888, %v3939
  %v3995 = vmul.f32 %v3889, %v3943
  %v3996 = vmul.f32 %v3890, %v3950
  %v3997 = vmul.f32 %v3891, %v3954
  %v3998 = vmul.f32 %v3892, %v3961
  %v3999 = vmul.f32 %v3893, %v3965
  %v4000 = vmul.f32 %v3894, %v3972
  %v4001 = vmul.f32 %v3895, %v3976
  %v4002 = vmul.f32 %v3896, %v3983
  %v4003 = vmul.f32 %v3897, %v3987
  %v4004 = vsel %vm380, %v3988, 0.0
  %v4005 = vsel %vm380, %v3989, 0.0
  %v4006 = vadd.f32 %v4004, %v4005
  %v4007 = vrot.slane %v4006, 4
  %v4008 = vadd.f32 %v4006, %v4007
  %v4009 = vrot.slane %v4008, 2
  %v4010 = vadd.f32 %v4008, %v4009
  %v4011 = vrot.slane %v4010, 1
  %v4012 = vadd.f32 %v4010, %v4011
  %v4013 = vsel %vm380, %v3990, 0.0
  %v4014 = vsel %vm380, %v3991, 0.0
  %v4015 = vadd.f32 %v4013, %v4014
  %v4016 = vrot.slane %v4015, 4
  %v4017 = vadd.f32 %v4015, %v4016
  %v4018 = vrot.slane %v4017, 2
  %v4019 = vadd.f32 %v4017, %v4018
  %v4020 = vrot.slane %v4019, 1
  %v4021 = vadd.f32 %v4019, %v4020
  %v4022 = vsel %vm380, %v3992, 0.0
  %v4023 = vsel %vm380, %v3993, 0.0
  %v4024 = vadd.f32 %v4022, %v4023
  %v4025 = vrot.slane %v4024, 4
  %v4026 = vadd.f32 %v4024, %v4025
  %v4027 = vrot.slane %v4026, 2
  %v4028 = vadd.f32 %v4026, %v4027
  %v4029 = vrot.slane %v4028, 1
  %v4030 = vadd.f32 %v4028, %v4029
  %v4031 = vsel %vm380, %v3994, 0.0
  %v4032 = vsel %vm380, %v3995, 0.0
  %v4033 = vadd.f32 %v4031, %v4032
  %v4034 = vrot.slane %v4033, 4
  %v4035 = vadd.f32 %v4033, %v4034
  %v4036 = vrot.slane %v4035, 2
  %v4037 = vadd.f32 %v4035, %v4036
  %v4038 = vrot.slane %v4037, 1
  %v4039 = vadd.f32 %v4037, %v4038
  %v4040 = vsel %vm380, %v3996, 0.0
  %v4041 = vsel %vm380, %v3997, 0.0
  %v4042 = vadd.f32 %v4040, %v4041
  %v4043 = vrot.slane %v4042, 4
  %v4044 = vadd.f32 %v4042, %v4043
  %v4045 = vrot.slane %v4044, 2
  %v4046 = vadd.f32 %v4044, %v4045
  %v4047 = vrot.slane %v4046, 1
  %v4048 = vadd.f32 %v4046, %v4047
  %v4049 = vsel %vm380, %v3998, 0.0
  %v4050 = vsel %vm380, %v3999, 0.0
  %v4051 = vadd.f32 %v4049, %v4050
  %v4052 = vrot.slane %v4051, 4
  %v4053 = vadd.f32 %v4051, %v4052
  %v4054 = vrot.slane %v4053, 2
  %v4055 = vadd.f32 %v4053, %v4054
  %v4056 = vrot.slane %v4055, 1
  %v4057 = vadd.f32 %v4055, %v4056
  %v4058 = vsel %vm380, %v4000, 0.0
  %v4059 = vsel %vm380, %v4001, 0.0
  %v4060 = vadd.f32 %v4058, %v4059
  %v4061 = vrot.slane %v4060, 4
  %v4062 = vadd.f32 %v4060, %v4061
  %v4063 = vrot.slane %v4062, 2
  %v4064 = vadd.f32 %v4062, %v4063
  %v4065 = vrot.slane %v4064, 1
  %v4066 = vadd.f32 %v4064, %v4065
  %v4067 = vsel %vm380, %v4002, 0.0
  %v4068 = vsel %vm380, %v4003, 0.0
  %v4069 = vadd.f32 %v4067, %v4068
  %v4070 = vrot.slane %v4069, 4
  %v4071 = vadd.f32 %v4069, %v4070
  %v4072 = vrot.slane %v4071, 2
  %v4073 = vadd.f32 %v4071, %v4072
  %v4074 = vrot.slane %v4073, 1
  %v4075 = vadd.f32 %v4073, %v4074
  %v4084 = vsel %vm2306, %v4021, %v4012
  %v4085 = vsel %vm2308, %v4030, %v4084
  %v4086 = vsel %vm2310, %v4039, %v4085
  %v4087 = vsel %vm2312, %v4048, %v4086
  %v4088 = vsel %vm2314, %v4057, %v4087
  %v4089 = vsel %vm2316, %v4066, %v4088
  %v4090 = vsel %vm2318, %v4075, %v4089
  %s4092 = scalar_lea.vmem [#allocation6], 32
  %4093 = vst.msk [vmem:[%s4092] sm:$0xff] %vm380, %v4090
  %s4094 = scalar_lea.vmem [#allocation3], 40
  %v4095 = vld [vmem:[%s4094] sm:$0xff]
  %v4097 = vcombine.high %v4095, %v4095
  %v4099 = vunpack.c.l.s4 1966171168
  %v4100 = vunpack.c.0.s8 %v4099
  %v4101 = vlaneseq
  %v4102 = vshrl.u32 %v4101, 7
  %v4103 = vsub.s32 %v4100, %v4102
  %v4104 = vrot.slane %v4095, %v4103
  %v4106 = vunpack.c.l.s4 1966171168
  %v4107 = vunpack.c.0.s8 %v4106
  %v4108 = vlaneseq
  %v4109 = vshrl.u32 %v4108, 7
  %v4110 = vsub.s32 %v4107, %v4109
  %v4111 = vrot.slane %v4097, %v4110
  %v4112 = vcombine.high %v4104, %v4104
  %v4113 = vcombine.high %v4111, %v4111
  %v4115 = vunpack.c.l.s4 1966171168
  %v4116 = vunpack.c.0.s8 %v4115
  %v4117 = vlaneseq
  %v4118 = vshrl.u32 %v4117, 7
  %v4119 = vsub.s32 %v4116, %v4118
  %v4120 = vrot.slane %v4104, %v4119
  %v4122 = vunpack.c.l.s4 1966171168
  %v4123 = vunpack.c.0.s8 %v4122
  %v4124 = vlaneseq
  %v4125 = vshrl.u32 %v4124, 7
  %v4126 = vsub.s32 %v4123, %v4125
  %v4127 = vrot.slane %v4111, %v4126
  %v4129 = vunpack.c.l.s4 1966171168
  %v4130 = vunpack.c.0.s8 %v4129
  %v4131 = vlaneseq
  %v4132 = vshrl.u32 %v4131, 7
  %v4133 = vsub.s32 %v4130, %v4132
  %v4134 = vrot.slane %v4112, %v4133
  %v4136 = vunpack.c.l.s4 1966171168
  %v4137 = vunpack.c.0.s8 %v4136
  %v4138 = vlaneseq
  %v4139 = vshrl.u32 %v4138, 7
  %v4140 = vsub.s32 %v4137, %v4139
  %v4141 = vrot.slane %v4113, %v4140
  %v4142 = vcombine.high %v4120, %v4120
  %v4143 = vcombine.high %v4127, %v4127
  %v4144 = vcombine.high %v4134, %v4134
  %v4145 = vcombine.high %v4141, %v4141
  %s4146 = scalar_lea.vmem [#allocation4], 40
  %v4147 = vld [vmem:[%s4146] sm:$0xff]
  %v4148 = vlaneseq
  %v4149 = vshrl.u32 %v4148, 7
  %v4150 = vsub.s32 0, %v4149
  %v4151 = vrot.slane %v4147, %v4150
  %4153 = vbcast.lane.b32.xlu0 %v4151, 256
  %v4154 = vpop.permute.xlu0 %4153
  %s4156 = sor.u32 256, 8
  %4157 = vbcast.lane.b32.xlu0 %v4151, %s4156
  %v4158 = vpop.permute.xlu0 %4157
  %v4159 = vlaneseq
  %v4160 = vshrl.u32 %v4159, 7
  %v4161 = vsub.s32 1, %v4160
  %v4162 = vrot.slane %v4147, %v4161
  %4164 = vbcast.lane.b32.xlu0 %v4162, 256
  %v4165 = vpop.permute.xlu0 %4164
  %s4167 = sor.u32 256, 8
  %4168 = vbcast.lane.b32.xlu0 %v4162, %s4167
  %v4169 = vpop.permute.xlu0 %4168
  %v4170 = vlaneseq
  %v4171 = vshrl.u32 %v4170, 7
  %v4172 = vsub.s32 2, %v4171
  %v4173 = vrot.slane %v4147, %v4172
  %4175 = vbcast.lane.b32.xlu0 %v4173, 256
  %v4176 = vpop.permute.xlu0 %4175
  %s4178 = sor.u32 256, 8
  %4179 = vbcast.lane.b32.xlu0 %v4173, %s4178
  %v4180 = vpop.permute.xlu0 %4179
  %v4181 = vlaneseq
  %v4182 = vshrl.u32 %v4181, 7
  %v4183 = vsub.s32 3, %v4182
  %v4184 = vrot.slane %v4147, %v4183
  %4186 = vbcast.lane.b32.xlu0 %v4184, 256
  %v4187 = vpop.permute.xlu0 %4186
  %s4189 = sor.u32 256, 8
  %4190 = vbcast.lane.b32.xlu0 %v4184, %s4189
  %v4191 = vpop.permute.xlu0 %4190
  %v4192 = vlaneseq
  %v4193 = vshrl.u32 %v4192, 7
  %v4194 = vsub.s32 4, %v4193
  %v4195 = vrot.slane %v4147, %v4194
  %4197 = vbcast.lane.b32.xlu0 %v4195, 256
  %v4198 = vpop.permute.xlu0 %4197
  %s4200 = sor.u32 256, 8
  %4201 = vbcast.lane.b32.xlu0 %v4195, %s4200
  %v4202 = vpop.permute.xlu0 %4201
  %v4203 = vlaneseq
  %v4204 = vshrl.u32 %v4203, 7
  %v4205 = vsub.s32 5, %v4204
  %v4206 = vrot.slane %v4147, %v4205
  %4208 = vbcast.lane.b32.xlu0 %v4206, 256
  %v4209 = vpop.permute.xlu0 %4208
  %s4211 = sor.u32 256, 8
  %4212 = vbcast.lane.b32.xlu0 %v4206, %s4211
  %v4213 = vpop.permute.xlu0 %4212
  %v4214 = vlaneseq
  %v4215 = vshrl.u32 %v4214, 7
  %v4216 = vsub.s32 6, %v4215
  %v4217 = vrot.slane %v4147, %v4216
  %4219 = vbcast.lane.b32.xlu0 %v4217, 256
  %v4220 = vpop.permute.xlu0 %4219
  %s4222 = sor.u32 256, 8
  %4223 = vbcast.lane.b32.xlu0 %v4217, %s4222
  %v4224 = vpop.permute.xlu0 %4223
  %v4225 = vlaneseq
  %v4226 = vshrl.u32 %v4225, 7
  %v4227 = vsub.s32 7, %v4226
  %v4228 = vrot.slane %v4147, %v4227
  %4230 = vbcast.lane.b32.xlu0 %v4228, 256
  %v4231 = vpop.permute.xlu0 %4230
  %s4233 = sor.u32 256, 8
  %4234 = vbcast.lane.b32.xlu0 %v4228, %s4233
  %v4235 = vpop.permute.xlu0 %4234
  %v4236 = vlaneseq
  %v4237 = vshrl.u32 %v4236, 7
  %v4238 = vsub.s32 0, %v4237
  %v4239 = vrot.slane %v4120, %v4238
  %v4240 = vlaneseq
  %v4241 = vshrl.u32 %v4240, 7
  %v4242 = vsub.s32 0, %v4241
  %v4243 = vrot.slane %v4134, %v4242
  %v4244 = vlaneseq
  %v4245 = vshrl.u32 %v4244, 7
  %v4246 = vsub.s32 0, %v4245
  %v4247 = vrot.slane %v4142, %v4246
  %v4248 = vlaneseq
  %v4249 = vshrl.u32 %v4248, 7
  %v4250 = vsub.s32 0, %v4249
  %v4251 = vrot.slane %v4144, %v4250
  %v4252 = vlaneseq
  %v4253 = vshrl.u32 %v4252, 7
  %v4254 = vsub.s32 0, %v4253
  %v4255 = vrot.slane %v4127, %v4254
  %v4256 = vlaneseq
  %v4257 = vshrl.u32 %v4256, 7
  %v4258 = vsub.s32 0, %v4257
  %v4259 = vrot.slane %v4141, %v4258
  %v4260 = vlaneseq
  %v4261 = vshrl.u32 %v4260, 7
  %v4262 = vsub.s32 0, %v4261
  %v4263 = vrot.slane %v4143, %v4262
  %v4264 = vlaneseq
  %v4265 = vshrl.u32 %v4264, 7
  %v4266 = vsub.s32 0, %v4265
  %v4267 = vrot.slane %v4145, %v4266
  %v4276 = vmul.f32 %v4239, %v4154
  %v4277 = vmul.f32 %v4239, %v4158
  %v4278 = vmul.f32 %v4243, %v4165
  %v4279 = vmul.f32 %v4243, %v4169
  %v4280 = vmul.f32 %v4247, %v4176
  %v4281 = vmul.f32 %v4247, %v4180
  %v4282 = vmul.f32 %v4251, %v4187
  %v4283 = vmul.f32 %v4251, %v4191
  %v4284 = vmul.f32 %v4255, %v4198
  %v4285 = vmul.f32 %v4255, %v4202
  %v4286 = vmul.f32 %v4259, %v4209
  %v4287 = vmul.f32 %v4259, %v4213
  %v4288 = vmul.f32 %v4263, %v4220
  %v4289 = vmul.f32 %v4263, %v4224
  %v4290 = vmul.f32 %v4267, %v4231
  %v4291 = vmul.f32 %v4267, %v4235
  %s4292 = scalar_lea.vmem [#allocation2], 640
  %v4293 = vld [vmem:[%s4292] sm:$0xff]
  %v4294 = vld [vmem:[%s4292 + $0x8] sm:$0xff]
  %v4295 = vld [vmem:[%s4292 + $0x10] sm:$0xff]
  %v4296 = vld [vmem:[%s4292 + $0x18] sm:$0xff]
  %v4297 = vld [vmem:[%s4292 + $0x20] sm:$0xff]
  %v4298 = vld [vmem:[%s4292 + $0x28] sm:$0xff]
  %v4299 = vld [vmem:[%s4292 + $0x30] sm:$0xff]
  %v4300 = vld [vmem:[%s4292 + $0x38] sm:$0xff]
  %v4301 = vld [vmem:[%s4292 + $0x40] sm:$0xff]
  %v4302 = vld [vmem:[%s4292 + $0x48] sm:$0xff]
  %v4303 = vld [vmem:[%s4292 + $0x50] sm:$0xff]
  %v4304 = vld [vmem:[%s4292 + $0x58] sm:$0xff]
  %v4305 = vld [vmem:[%s4292 + $0x60] sm:$0xff]
  %v4306 = vld [vmem:[%s4292 + $0x68] sm:$0xff]
  %v4307 = vld [vmem:[%s4292 + $0x70] sm:$0xff]
  %v4308 = vld [vmem:[%s4292 + $0x78] sm:$0xff]
  %v4309 = vmul.f32 %v4293, %v3882
  %v4310 = vmul.f32 %v4294, %v3883
  %v4311 = vmul.f32 %v4295, %v3884
  %v4312 = vmul.f32 %v4296, %v3885
  %v4313 = vmul.f32 %v4297, %v3886
  %v4314 = vmul.f32 %v4298, %v3887
  %v4315 = vmul.f32 %v4299, %v3888
  %v4316 = vmul.f32 %v4300, %v3889
  %v4317 = vmul.f32 %v4301, %v3890
  %v4318 = vmul.f32 %v4302, %v3891
  %v4319 = vmul.f32 %v4303, %v3892
  %v4320 = vmul.f32 %v4304, %v3893
  %v4321 = vmul.f32 %v4305, %v3894
  %v4322 = vmul.f32 %v4306, %v3895
  %v4323 = vmul.f32 %v4307, %v3896
  %v4324 = vmul.f32 %v4308, %v3897
  %v4325 = vadd.f32 %v4309, %v4276
  %v4326 = vadd.f32 %v4310, %v4277
  %v4327 = vadd.f32 %v4311, %v4278
  %v4328 = vadd.f32 %v4312, %v4279
  %v4329 = vadd.f32 %v4313, %v4280
  %v4330 = vadd.f32 %v4314, %v4281
  %v4331 = vadd.f32 %v4315, %v4282
  %v4332 = vadd.f32 %v4316, %v4283
  %v4333 = vadd.f32 %v4317, %v4284
  %v4334 = vadd.f32 %v4318, %v4285
  %v4335 = vadd.f32 %v4319, %v4286
  %v4336 = vadd.f32 %v4320, %v4287
  %v4337 = vadd.f32 %v4321, %v4288
  %v4338 = vadd.f32 %v4322, %v4289
  %v4339 = vadd.f32 %v4323, %v4290
  %v4340 = vadd.f32 %v4324, %v4291
  %s4341 = scalar_lea.vmem [#allocation5], 40
  %v4342 = vld [vmem:[%s4341] sm:$0xff]
  %v4343 = vlaneseq
  %v4344 = vshrl.u32 %v4343, 7
  %v4345 = vsub.s32 0, %v4344
  %v4346 = vrot.slane %v4342, %v4345
  %4348 = vbcast.lane.b32.xlu0 %v4346, 256
  %v4349 = vpop.permute.xlu0 %4348
  %s4351 = sor.u32 256, 8
  %4352 = vbcast.lane.b32.xlu0 %v4346, %s4351
  %v4353 = vpop.permute.xlu0 %4352
  %v4354 = vlaneseq
  %v4355 = vshrl.u32 %v4354, 7
  %v4356 = vsub.s32 1, %v4355
  %v4357 = vrot.slane %v4342, %v4356
  %4359 = vbcast.lane.b32.xlu0 %v4357, 256
  %v4360 = vpop.permute.xlu0 %4359
  %s4362 = sor.u32 256, 8
  %4363 = vbcast.lane.b32.xlu0 %v4357, %s4362
  %v4364 = vpop.permute.xlu0 %4363
  %v4365 = vlaneseq
  %v4366 = vshrl.u32 %v4365, 7
  %v4367 = vsub.s32 2, %v4366
  %v4368 = vrot.slane %v4342, %v4367
  %4370 = vbcast.lane.b32.xlu0 %v4368, 256
  %v4371 = vpop.permute.xlu0 %4370
  %s4373 = sor.u32 256, 8
  %4374 = vbcast.lane.b32.xlu0 %v4368, %s4373
  %v4375 = vpop.permute.xlu0 %4374
  %v4376 = vlaneseq
  %v4377 = vshrl.u32 %v4376, 7
  %v4378 = vsub.s32 3, %v4377
  %v4379 = vrot.slane %v4342, %v4378
  %4381 = vbcast.lane.b32.xlu0 %v4379, 256
  %v4382 = vpop.permute.xlu0 %4381
  %s4384 = sor.u32 256, 8
  %4385 = vbcast.lane.b32.xlu0 %v4379, %s4384
  %v4386 = vpop.permute.xlu0 %4385
  %v4387 = vlaneseq
  %v4388 = vshrl.u32 %v4387, 7
  %v4389 = vsub.s32 4, %v4388
  %v4390 = vrot.slane %v4342, %v4389
  %4392 = vbcast.lane.b32.xlu0 %v4390, 256
  %v4393 = vpop.permute.xlu0 %4392
  %s4395 = sor.u32 256, 8
  %4396 = vbcast.lane.b32.xlu0 %v4390, %s4395
  %v4397 = vpop.permute.xlu0 %4396
  %v4398 = vlaneseq
  %v4399 = vshrl.u32 %v4398, 7
  %v4400 = vsub.s32 5, %v4399
  %v4401 = vrot.slane %v4342, %v4400
  %4403 = vbcast.lane.b32.xlu0 %v4401, 256
  %v4404 = vpop.permute.xlu0 %4403
  %s4406 = sor.u32 256, 8
  %4407 = vbcast.lane.b32.xlu0 %v4401, %s4406
  %v4408 = vpop.permute.xlu0 %4407
  %v4409 = vlaneseq
  %v4410 = vshrl.u32 %v4409, 7
  %v4411 = vsub.s32 6, %v4410
  %v4412 = vrot.slane %v4342, %v4411
  %4414 = vbcast.lane.b32.xlu0 %v4412, 256
  %v4415 = vpop.permute.xlu0 %4414
  %s4417 = sor.u32 256, 8
  %4418 = vbcast.lane.b32.xlu0 %v4412, %s4417
  %v4419 = vpop.permute.xlu0 %4418
  %v4420 = vlaneseq
  %v4421 = vshrl.u32 %v4420, 7
  %v4422 = vsub.s32 7, %v4421
  %v4423 = vrot.slane %v4342, %v4422
  %4425 = vbcast.lane.b32.xlu0 %v4423, 256
  %v4426 = vpop.permute.xlu0 %4425
  %s4428 = sor.u32 256, 8
  %4429 = vbcast.lane.b32.xlu0 %v4423, %s4428
  %v4430 = vpop.permute.xlu0 %4429
  %v4431 = vmul.f32 %v4325, %v4349
  %v4432 = vmul.f32 %v4326, %v4353
  %v4433 = vmul.f32 %v4327, %v4360
  %v4434 = vmul.f32 %v4328, %v4364
  %v4435 = vmul.f32 %v4329, %v4371
  %v4436 = vmul.f32 %v4330, %v4375
  %v4437 = vmul.f32 %v4331, %v4382
  %v4438 = vmul.f32 %v4332, %v4386
  %v4439 = vmul.f32 %v4333, %v4393
  %v4440 = vmul.f32 %v4334, %v4397
  %v4441 = vmul.f32 %v4335, %v4404
  %v4442 = vmul.f32 %v4336, %v4408
  %v4443 = vmul.f32 %v4337, %v4415
  %v4444 = vmul.f32 %v4338, %v4419
  %v4445 = vmul.f32 %v4339, %v4426
  %v4446 = vmul.f32 %v4340, %v4430
  %v4447 = vsel %vm380, %v4431, 0.0
  %v4448 = vsel %vm380, %v4432, 0.0
  %v4449 = vadd.f32 %v4447, %v4448
  %v4450 = vrot.slane %v4449, 4
  %v4451 = vadd.f32 %v4449, %v4450
  %v4452 = vrot.slane %v4451, 2
  %v4453 = vadd.f32 %v4451, %v4452
  %v4454 = vrot.slane %v4453, 1
  %v4455 = vadd.f32 %v4453, %v4454
  %v4456 = vsel %vm380, %v4433, 0.0
  %v4457 = vsel %vm380, %v4434, 0.0
  %v4458 = vadd.f32 %v4456, %v4457
  %v4459 = vrot.slane %v4458, 4
  %v4460 = vadd.f32 %v4458, %v4459
  %v4461 = vrot.slane %v4460, 2
  %v4462 = vadd.f32 %v4460, %v4461
  %v4463 = vrot.slane %v4462, 1
  %v4464 = vadd.f32 %v4462, %v4463
  %v4465 = vsel %vm380, %v4435, 0.0
  %v4466 = vsel %vm380, %v4436, 0.0
  %v4467 = vadd.f32 %v4465, %v4466
  %v4468 = vrot.slane %v4467, 4
  %v4469 = vadd.f32 %v4467, %v4468
  %v4470 = vrot.slane %v4469, 2
  %v4471 = vadd.f32 %v4469, %v4470
  %v4472 = vrot.slane %v4471, 1
  %v4473 = vadd.f32 %v4471, %v4472
  %v4474 = vsel %vm380, %v4437, 0.0
  %v4475 = vsel %vm380, %v4438, 0.0
  %v4476 = vadd.f32 %v4474, %v4475
  %v4477 = vrot.slane %v4476, 4
  %v4478 = vadd.f32 %v4476, %v4477
  %v4479 = vrot.slane %v4478, 2
  %v4480 = vadd.f32 %v4478, %v4479
  %v4481 = vrot.slane %v4480, 1
  %v4482 = vadd.f32 %v4480, %v4481
  %v4483 = vsel %vm380, %v4439, 0.0
  %v4484 = vsel %vm380, %v4440, 0.0
  %v4485 = vadd.f32 %v4483, %v4484
  %v4486 = vrot.slane %v4485, 4
  %v4487 = vadd.f32 %v4485, %v4486
  %v4488 = vrot.slane %v4487, 2
  %v4489 = vadd.f32 %v4487, %v4488
  %v4490 = vrot.slane %v4489, 1
  %v4491 = vadd.f32 %v4489, %v4490
  %v4492 = vsel %vm380, %v4441, 0.0
  %v4493 = vsel %vm380, %v4442, 0.0
  %v4494 = vadd.f32 %v4492, %v4493
  %v4495 = vrot.slane %v4494, 4
  %v4496 = vadd.f32 %v4494, %v4495
  %v4497 = vrot.slane %v4496, 2
  %v4498 = vadd.f32 %v4496, %v4497
  %v4499 = vrot.slane %v4498, 1
  %v4500 = vadd.f32 %v4498, %v4499
  %v4501 = vsel %vm380, %v4443, 0.0
  %v4502 = vsel %vm380, %v4444, 0.0
  %v4503 = vadd.f32 %v4501, %v4502
  %v4504 = vrot.slane %v4503, 4
  %v4505 = vadd.f32 %v4503, %v4504
  %v4506 = vrot.slane %v4505, 2
  %v4507 = vadd.f32 %v4505, %v4506
  %v4508 = vrot.slane %v4507, 1
  %v4509 = vadd.f32 %v4507, %v4508
  %v4510 = vsel %vm380, %v4445, 0.0
  %v4511 = vsel %vm380, %v4446, 0.0
  %v4512 = vadd.f32 %v4510, %v4511
  %v4513 = vrot.slane %v4512, 4
  %v4514 = vadd.f32 %v4512, %v4513
  %v4515 = vrot.slane %v4514, 2
  %v4516 = vadd.f32 %v4514, %v4515
  %v4517 = vrot.slane %v4516, 1
  %v4518 = vadd.f32 %v4516, %v4517
  %v4527 = vsel %vm2306, %v4464, %v4455
  %v4528 = vsel %vm2308, %v4473, %v4527
  %v4529 = vsel %vm2310, %v4482, %v4528
  %v4530 = vsel %vm2312, %v4491, %v4529
  %v4531 = vsel %vm2314, %v4500, %v4530
  %v4532 = vsel %vm2316, %v4509, %v4531
  %v4533 = vsel %vm2318, %v4518, %v4532
  %s4535 = scalar_lea.vmem [#allocation6], 40
  %4536 = vst.msk [vmem:[%s4535] sm:$0xff] %vm380, %v4533
  %s4537 = scalar_lea.vmem [#allocation3], 48
  %v4538 = vld [vmem:[%s4537] sm:$0xff]
  %v4540 = vcombine.high %v4538, %v4538
  %v4542 = vunpack.c.l.s4 1966171168
  %v4543 = vunpack.c.0.s8 %v4542
  %v4544 = vlaneseq
  %v4545 = vshrl.u32 %v4544, 7
  %v4546 = vsub.s32 %v4543, %v4545
  %v4547 = vrot.slane %v4538, %v4546
  %v4549 = vunpack.c.l.s4 1966171168
  %v4550 = vunpack.c.0.s8 %v4549
  %v4551 = vlaneseq
  %v4552 = vshrl.u32 %v4551, 7
  %v4553 = vsub.s32 %v4550, %v4552
  %v4554 = vrot.slane %v4540, %v4553
  %v4555 = vcombine.high %v4547, %v4547
  %v4556 = vcombine.high %v4554, %v4554
  %v4558 = vunpack.c.l.s4 1966171168
  %v4559 = vunpack.c.0.s8 %v4558
  %v4560 = vlaneseq
  %v4561 = vshrl.u32 %v4560, 7
  %v4562 = vsub.s32 %v4559, %v4561
  %v4563 = vrot.slane %v4547, %v4562
  %v4565 = vunpack.c.l.s4 1966171168
  %v4566 = vunpack.c.0.s8 %v4565
  %v4567 = vlaneseq
  %v4568 = vshrl.u32 %v4567, 7
  %v4569 = vsub.s32 %v4566, %v4568
  %v4570 = vrot.slane %v4554, %v4569
  %v4572 = vunpack.c.l.s4 1966171168
  %v4573 = vunpack.c.0.s8 %v4572
  %v4574 = vlaneseq
  %v4575 = vshrl.u32 %v4574, 7
  %v4576 = vsub.s32 %v4573, %v4575
  %v4577 = vrot.slane %v4555, %v4576
  %v4579 = vunpack.c.l.s4 1966171168
  %v4580 = vunpack.c.0.s8 %v4579
  %v4581 = vlaneseq
  %v4582 = vshrl.u32 %v4581, 7
  %v4583 = vsub.s32 %v4580, %v4582
  %v4584 = vrot.slane %v4556, %v4583
  %v4585 = vcombine.high %v4563, %v4563
  %v4586 = vcombine.high %v4570, %v4570
  %v4587 = vcombine.high %v4577, %v4577
  %v4588 = vcombine.high %v4584, %v4584
  %s4589 = scalar_lea.vmem [#allocation4], 48
  %v4590 = vld [vmem:[%s4589] sm:$0xff]
  %v4591 = vlaneseq
  %v4592 = vshrl.u32 %v4591, 7
  %v4593 = vsub.s32 0, %v4592
  %v4594 = vrot.slane %v4590, %v4593
  %4596 = vbcast.lane.b32.xlu0 %v4594, 256
  %v4597 = vpop.permute.xlu0 %4596
  %s4599 = sor.u32 256, 8
  %4600 = vbcast.lane.b32.xlu0 %v4594, %s4599
  %v4601 = vpop.permute.xlu0 %4600
  %v4602 = vlaneseq
  %v4603 = vshrl.u32 %v4602, 7
  %v4604 = vsub.s32 1, %v4603
  %v4605 = vrot.slane %v4590, %v4604
  %4607 = vbcast.lane.b32.xlu0 %v4605, 256
  %v4608 = vpop.permute.xlu0 %4607
  %s4610 = sor.u32 256, 8
  %4611 = vbcast.lane.b32.xlu0 %v4605, %s4610
  %v4612 = vpop.permute.xlu0 %4611
  %v4613 = vlaneseq
  %v4614 = vshrl.u32 %v4613, 7
  %v4615 = vsub.s32 2, %v4614
  %v4616 = vrot.slane %v4590, %v4615
  %4618 = vbcast.lane.b32.xlu0 %v4616, 256
  %v4619 = vpop.permute.xlu0 %4618
  %s4621 = sor.u32 256, 8
  %4622 = vbcast.lane.b32.xlu0 %v4616, %s4621
  %v4623 = vpop.permute.xlu0 %4622
  %v4624 = vlaneseq
  %v4625 = vshrl.u32 %v4624, 7
  %v4626 = vsub.s32 3, %v4625
  %v4627 = vrot.slane %v4590, %v4626
  %4629 = vbcast.lane.b32.xlu0 %v4627, 256
  %v4630 = vpop.permute.xlu0 %4629
  %s4632 = sor.u32 256, 8
  %4633 = vbcast.lane.b32.xlu0 %v4627, %s4632
  %v4634 = vpop.permute.xlu0 %4633
  %v4635 = vlaneseq
  %v4636 = vshrl.u32 %v4635, 7
  %v4637 = vsub.s32 4, %v4636
  %v4638 = vrot.slane %v4590, %v4637
  %4640 = vbcast.lane.b32.xlu0 %v4638, 256
  %v4641 = vpop.permute.xlu0 %4640
  %s4643 = sor.u32 256, 8
  %4644 = vbcast.lane.b32.xlu0 %v4638, %s4643
  %v4645 = vpop.permute.xlu0 %4644
  %v4646 = vlaneseq
  %v4647 = vshrl.u32 %v4646, 7
  %v4648 = vsub.s32 5, %v4647
  %v4649 = vrot.slane %v4590, %v4648
  %4651 = vbcast.lane.b32.xlu0 %v4649, 256
  %v4652 = vpop.permute.xlu0 %4651
  %s4654 = sor.u32 256, 8
  %4655 = vbcast.lane.b32.xlu0 %v4649, %s4654
  %v4656 = vpop.permute.xlu0 %4655
  %v4657 = vlaneseq
  %v4658 = vshrl.u32 %v4657, 7
  %v4659 = vsub.s32 6, %v4658
  %v4660 = vrot.slane %v4590, %v4659
  %4662 = vbcast.lane.b32.xlu0 %v4660, 256
  %v4663 = vpop.permute.xlu0 %4662
  %s4665 = sor.u32 256, 8
  %4666 = vbcast.lane.b32.xlu0 %v4660, %s4665
  %v4667 = vpop.permute.xlu0 %4666
  %v4668 = vlaneseq
  %v4669 = vshrl.u32 %v4668, 7
  %v4670 = vsub.s32 7, %v4669
  %v4671 = vrot.slane %v4590, %v4670
  %4673 = vbcast.lane.b32.xlu0 %v4671, 256
  %v4674 = vpop.permute.xlu0 %4673
  %s4676 = sor.u32 256, 8
  %4677 = vbcast.lane.b32.xlu0 %v4671, %s4676
  %v4678 = vpop.permute.xlu0 %4677
  %v4679 = vlaneseq
  %v4680 = vshrl.u32 %v4679, 7
  %v4681 = vsub.s32 0, %v4680
  %v4682 = vrot.slane %v4563, %v4681
  %v4683 = vlaneseq
  %v4684 = vshrl.u32 %v4683, 7
  %v4685 = vsub.s32 0, %v4684
  %v4686 = vrot.slane %v4577, %v4685
  %v4687 = vlaneseq
  %v4688 = vshrl.u32 %v4687, 7
  %v4689 = vsub.s32 0, %v4688
  %v4690 = vrot.slane %v4585, %v4689
  %v4691 = vlaneseq
  %v4692 = vshrl.u32 %v4691, 7
  %v4693 = vsub.s32 0, %v4692
  %v4694 = vrot.slane %v4587, %v4693
  %v4695 = vlaneseq
  %v4696 = vshrl.u32 %v4695, 7
  %v4697 = vsub.s32 0, %v4696
  %v4698 = vrot.slane %v4570, %v4697
  %v4699 = vlaneseq
  %v4700 = vshrl.u32 %v4699, 7
  %v4701 = vsub.s32 0, %v4700
  %v4702 = vrot.slane %v4584, %v4701
  %v4703 = vlaneseq
  %v4704 = vshrl.u32 %v4703, 7
  %v4705 = vsub.s32 0, %v4704
  %v4706 = vrot.slane %v4586, %v4705
  %v4707 = vlaneseq
  %v4708 = vshrl.u32 %v4707, 7
  %v4709 = vsub.s32 0, %v4708
  %v4710 = vrot.slane %v4588, %v4709
  %v4719 = vmul.f32 %v4682, %v4597
  %v4720 = vmul.f32 %v4682, %v4601
  %v4721 = vmul.f32 %v4686, %v4608
  %v4722 = vmul.f32 %v4686, %v4612
  %v4723 = vmul.f32 %v4690, %v4619
  %v4724 = vmul.f32 %v4690, %v4623
  %v4725 = vmul.f32 %v4694, %v4630
  %v4726 = vmul.f32 %v4694, %v4634
  %v4727 = vmul.f32 %v4698, %v4641
  %v4728 = vmul.f32 %v4698, %v4645
  %v4729 = vmul.f32 %v4702, %v4652
  %v4730 = vmul.f32 %v4702, %v4656
  %v4731 = vmul.f32 %v4706, %v4663
  %v4732 = vmul.f32 %v4706, %v4667
  %v4733 = vmul.f32 %v4710, %v4674
  %v4734 = vmul.f32 %v4710, %v4678
  %s4735 = scalar_lea.vmem [#allocation2], 768
  %v4736 = vld [vmem:[%s4735] sm:$0xff]
  %v4737 = vld [vmem:[%s4735 + $0x8] sm:$0xff]
  %v4738 = vld [vmem:[%s4735 + $0x10] sm:$0xff]
  %v4739 = vld [vmem:[%s4735 + $0x18] sm:$0xff]
  %v4740 = vld [vmem:[%s4735 + $0x20] sm:$0xff]
  %v4741 = vld [vmem:[%s4735 + $0x28] sm:$0xff]
  %v4742 = vld [vmem:[%s4735 + $0x30] sm:$0xff]
  %v4743 = vld [vmem:[%s4735 + $0x38] sm:$0xff]
  %v4744 = vld [vmem:[%s4735 + $0x40] sm:$0xff]
  %v4745 = vld [vmem:[%s4735 + $0x48] sm:$0xff]
  %v4746 = vld [vmem:[%s4735 + $0x50] sm:$0xff]
  %v4747 = vld [vmem:[%s4735 + $0x58] sm:$0xff]
  %v4748 = vld [vmem:[%s4735 + $0x60] sm:$0xff]
  %v4749 = vld [vmem:[%s4735 + $0x68] sm:$0xff]
  %v4750 = vld [vmem:[%s4735 + $0x70] sm:$0xff]
  %v4751 = vld [vmem:[%s4735 + $0x78] sm:$0xff]
  %v4752 = vmul.f32 %v4736, %v4325
  %v4753 = vmul.f32 %v4737, %v4326
  %v4754 = vmul.f32 %v4738, %v4327
  %v4755 = vmul.f32 %v4739, %v4328
  %v4756 = vmul.f32 %v4740, %v4329
  %v4757 = vmul.f32 %v4741, %v4330
  %v4758 = vmul.f32 %v4742, %v4331
  %v4759 = vmul.f32 %v4743, %v4332
  %v4760 = vmul.f32 %v4744, %v4333
  %v4761 = vmul.f32 %v4745, %v4334
  %v4762 = vmul.f32 %v4746, %v4335
  %v4763 = vmul.f32 %v4747, %v4336
  %v4764 = vmul.f32 %v4748, %v4337
  %v4765 = vmul.f32 %v4749, %v4338
  %v4766 = vmul.f32 %v4750, %v4339
  %v4767 = vmul.f32 %v4751, %v4340
  %v4768 = vadd.f32 %v4752, %v4719
  %v4769 = vadd.f32 %v4753, %v4720
  %v4770 = vadd.f32 %v4754, %v4721
  %v4771 = vadd.f32 %v4755, %v4722
  %v4772 = vadd.f32 %v4756, %v4723
  %v4773 = vadd.f32 %v4757, %v4724
  %v4774 = vadd.f32 %v4758, %v4725
  %v4775 = vadd.f32 %v4759, %v4726
  %v4776 = vadd.f32 %v4760, %v4727
  %v4777 = vadd.f32 %v4761, %v4728
  %v4778 = vadd.f32 %v4762, %v4729
  %v4779 = vadd.f32 %v4763, %v4730
  %v4780 = vadd.f32 %v4764, %v4731
  %v4781 = vadd.f32 %v4765, %v4732
  %v4782 = vadd.f32 %v4766, %v4733
  %v4783 = vadd.f32 %v4767, %v4734
  %s4784 = scalar_lea.vmem [#allocation5], 48
  %v4785 = vld [vmem:[%s4784] sm:$0xff]
  %v4786 = vlaneseq
  %v4787 = vshrl.u32 %v4786, 7
  %v4788 = vsub.s32 0, %v4787
  %v4789 = vrot.slane %v4785, %v4788
  %4791 = vbcast.lane.b32.xlu0 %v4789, 256
  %v4792 = vpop.permute.xlu0 %4791
  %s4794 = sor.u32 256, 8
  %4795 = vbcast.lane.b32.xlu0 %v4789, %s4794
  %v4796 = vpop.permute.xlu0 %4795
  %v4797 = vlaneseq
  %v4798 = vshrl.u32 %v4797, 7
  %v4799 = vsub.s32 1, %v4798
  %v4800 = vrot.slane %v4785, %v4799
  %4802 = vbcast.lane.b32.xlu0 %v4800, 256
  %v4803 = vpop.permute.xlu0 %4802
  %s4805 = sor.u32 256, 8
  %4806 = vbcast.lane.b32.xlu0 %v4800, %s4805
  %v4807 = vpop.permute.xlu0 %4806
  %v4808 = vlaneseq
  %v4809 = vshrl.u32 %v4808, 7
  %v4810 = vsub.s32 2, %v4809
  %v4811 = vrot.slane %v4785, %v4810
  %4813 = vbcast.lane.b32.xlu0 %v4811, 256
  %v4814 = vpop.permute.xlu0 %4813
  %s4816 = sor.u32 256, 8
  %4817 = vbcast.lane.b32.xlu0 %v4811, %s4816
  %v4818 = vpop.permute.xlu0 %4817
  %v4819 = vlaneseq
  %v4820 = vshrl.u32 %v4819, 7
  %v4821 = vsub.s32 3, %v4820
  %v4822 = vrot.slane %v4785, %v4821
  %4824 = vbcast.lane.b32.xlu0 %v4822, 256
  %v4825 = vpop.permute.xlu0 %4824
  %s4827 = sor.u32 256, 8
  %4828 = vbcast.lane.b32.xlu0 %v4822, %s4827
  %v4829 = vpop.permute.xlu0 %4828
  %v4830 = vlaneseq
  %v4831 = vshrl.u32 %v4830, 7
  %v4832 = vsub.s32 4, %v4831
  %v4833 = vrot.slane %v4785, %v4832
  %4835 = vbcast.lane.b32.xlu0 %v4833, 256
  %v4836 = vpop.permute.xlu0 %4835
  %s4838 = sor.u32 256, 8
  %4839 = vbcast.lane.b32.xlu0 %v4833, %s4838
  %v4840 = vpop.permute.xlu0 %4839
  %v4841 = vlaneseq
  %v4842 = vshrl.u32 %v4841, 7
  %v4843 = vsub.s32 5, %v4842
  %v4844 = vrot.slane %v4785, %v4843
  %4846 = vbcast.lane.b32.xlu0 %v4844, 256
  %v4847 = vpop.permute.xlu0 %4846
  %s4849 = sor.u32 256, 8
  %4850 = vbcast.lane.b32.xlu0 %v4844, %s4849
  %v4851 = vpop.permute.xlu0 %4850
  %v4852 = vlaneseq
  %v4853 = vshrl.u32 %v4852, 7
  %v4854 = vsub.s32 6, %v4853
  %v4855 = vrot.slane %v4785, %v4854
  %4857 = vbcast.lane.b32.xlu0 %v4855, 256
  %v4858 = vpop.permute.xlu0 %4857
  %s4860 = sor.u32 256, 8
  %4861 = vbcast.lane.b32.xlu0 %v4855, %s4860
  %v4862 = vpop.permute.xlu0 %4861
  %v4863 = vlaneseq
  %v4864 = vshrl.u32 %v4863, 7
  %v4865 = vsub.s32 7, %v4864
  %v4866 = vrot.slane %v4785, %v4865
  %4868 = vbcast.lane.b32.xlu0 %v4866, 256
  %v4869 = vpop.permute.xlu0 %4868
  %s4871 = sor.u32 256, 8
  %4872 = vbcast.lane.b32.xlu0 %v4866, %s4871
  %v4873 = vpop.permute.xlu0 %4872
  %v4874 = vmul.f32 %v4768, %v4792
  %v4875 = vmul.f32 %v4769, %v4796
  %v4876 = vmul.f32 %v4770, %v4803
  %v4877 = vmul.f32 %v4771, %v4807
  %v4878 = vmul.f32 %v4772, %v4814
  %v4879 = vmul.f32 %v4773, %v4818
  %v4880 = vmul.f32 %v4774, %v4825
  %v4881 = vmul.f32 %v4775, %v4829
  %v4882 = vmul.f32 %v4776, %v4836
  %v4883 = vmul.f32 %v4777, %v4840
  %v4884 = vmul.f32 %v4778, %v4847
  %v4885 = vmul.f32 %v4779, %v4851
  %v4886 = vmul.f32 %v4780, %v4858
  %v4887 = vmul.f32 %v4781, %v4862
  %v4888 = vmul.f32 %v4782, %v4869
  %v4889 = vmul.f32 %v4783, %v4873
  %v4890 = vsel %vm380, %v4874, 0.0
  %v4891 = vsel %vm380, %v4875, 0.0
  %v4892 = vadd.f32 %v4890, %v4891
  %v4893 = vrot.slane %v4892, 4
  %v4894 = vadd.f32 %v4892, %v4893
  %v4895 = vrot.slane %v4894, 2
  %v4896 = vadd.f32 %v4894, %v4895
  %v4897 = vrot.slane %v4896, 1
  %v4898 = vadd.f32 %v4896, %v4897
  %v4899 = vsel %vm380, %v4876, 0.0
  %v4900 = vsel %vm380, %v4877, 0.0
  %v4901 = vadd.f32 %v4899, %v4900
  %v4902 = vrot.slane %v4901, 4
  %v4903 = vadd.f32 %v4901, %v4902
  %v4904 = vrot.slane %v4903, 2
  %v4905 = vadd.f32 %v4903, %v4904
  %v4906 = vrot.slane %v4905, 1
  %v4907 = vadd.f32 %v4905, %v4906
  %v4908 = vsel %vm380, %v4878, 0.0
  %v4909 = vsel %vm380, %v4879, 0.0
  %v4910 = vadd.f32 %v4908, %v4909
  %v4911 = vrot.slane %v4910, 4
  %v4912 = vadd.f32 %v4910, %v4911
  %v4913 = vrot.slane %v4912, 2
  %v4914 = vadd.f32 %v4912, %v4913
  %v4915 = vrot.slane %v4914, 1
  %v4916 = vadd.f32 %v4914, %v4915
  %v4917 = vsel %vm380, %v4880, 0.0
  %v4918 = vsel %vm380, %v4881, 0.0
  %v4919 = vadd.f32 %v4917, %v4918
  %v4920 = vrot.slane %v4919, 4
  %v4921 = vadd.f32 %v4919, %v4920
  %v4922 = vrot.slane %v4921, 2
  %v4923 = vadd.f32 %v4921, %v4922
  %v4924 = vrot.slane %v4923, 1
  %v4925 = vadd.f32 %v4923, %v4924
  %v4926 = vsel %vm380, %v4882, 0.0
  %v4927 = vsel %vm380, %v4883, 0.0
  %v4928 = vadd.f32 %v4926, %v4927
  %v4929 = vrot.slane %v4928, 4
  %v4930 = vadd.f32 %v4928, %v4929
  %v4931 = vrot.slane %v4930, 2
  %v4932 = vadd.f32 %v4930, %v4931
  %v4933 = vrot.slane %v4932, 1
  %v4934 = vadd.f32 %v4932, %v4933
  %v4935 = vsel %vm380, %v4884, 0.0
  %v4936 = vsel %vm380, %v4885, 0.0
  %v4937 = vadd.f32 %v4935, %v4936
  %v4938 = vrot.slane %v4937, 4
  %v4939 = vadd.f32 %v4937, %v4938
  %v4940 = vrot.slane %v4939, 2
  %v4941 = vadd.f32 %v4939, %v4940
  %v4942 = vrot.slane %v4941, 1
  %v4943 = vadd.f32 %v4941, %v4942
  %v4944 = vsel %vm380, %v4886, 0.0
  %v4945 = vsel %vm380, %v4887, 0.0
  %v4946 = vadd.f32 %v4944, %v4945
  %v4947 = vrot.slane %v4946, 4
  %v4948 = vadd.f32 %v4946, %v4947
  %v4949 = vrot.slane %v4948, 2
  %v4950 = vadd.f32 %v4948, %v4949
  %v4951 = vrot.slane %v4950, 1
  %v4952 = vadd.f32 %v4950, %v4951
  %v4953 = vsel %vm380, %v4888, 0.0
  %v4954 = vsel %vm380, %v4889, 0.0
  %v4955 = vadd.f32 %v4953, %v4954
  %v4956 = vrot.slane %v4955, 4
  %v4957 = vadd.f32 %v4955, %v4956
  %v4958 = vrot.slane %v4957, 2
  %v4959 = vadd.f32 %v4957, %v4958
  %v4960 = vrot.slane %v4959, 1
  %v4961 = vadd.f32 %v4959, %v4960
  %v4970 = vsel %vm2306, %v4907, %v4898
  %v4971 = vsel %vm2308, %v4916, %v4970
  %v4972 = vsel %vm2310, %v4925, %v4971
  %v4973 = vsel %vm2312, %v4934, %v4972
  %v4974 = vsel %vm2314, %v4943, %v4973
  %v4975 = vsel %vm2316, %v4952, %v4974
  %v4976 = vsel %vm2318, %v4961, %v4975
  %s4978 = scalar_lea.vmem [#allocation6], 48
  %4979 = vst.msk [vmem:[%s4978] sm:$0xff] %vm380, %v4976
  %s4980 = scalar_lea.vmem [#allocation3], 56
  %v4981 = vld [vmem:[%s4980] sm:$0xff]
  %v4983 = vcombine.high %v4981, %v4981
  %v4985 = vunpack.c.l.s4 1966171168
  %v4986 = vunpack.c.0.s8 %v4985
  %v4987 = vlaneseq
  %v4988 = vshrl.u32 %v4987, 7
  %v4989 = vsub.s32 %v4986, %v4988
  %v4990 = vrot.slane %v4981, %v4989
  %v4992 = vunpack.c.l.s4 1966171168
  %v4993 = vunpack.c.0.s8 %v4992
  %v4994 = vlaneseq
  %v4995 = vshrl.u32 %v4994, 7
  %v4996 = vsub.s32 %v4993, %v4995
  %v4997 = vrot.slane %v4983, %v4996
  %v4998 = vcombine.high %v4990, %v4990
  %v4999 = vcombine.high %v4997, %v4997
  %v5001 = vunpack.c.l.s4 1966171168
  %v5002 = vunpack.c.0.s8 %v5001
  %v5003 = vlaneseq
  %v5004 = vshrl.u32 %v5003, 7
  %v5005 = vsub.s32 %v5002, %v5004
  %v5006 = vrot.slane %v4990, %v5005
  %v5008 = vunpack.c.l.s4 1966171168
  %v5009 = vunpack.c.0.s8 %v5008
  %v5010 = vlaneseq
  %v5011 = vshrl.u32 %v5010, 7
  %v5012 = vsub.s32 %v5009, %v5011
  %v5013 = vrot.slane %v4997, %v5012
  %v5015 = vunpack.c.l.s4 1966171168
  %v5016 = vunpack.c.0.s8 %v5015
  %v5017 = vlaneseq
  %v5018 = vshrl.u32 %v5017, 7
  %v5019 = vsub.s32 %v5016, %v5018
  %v5020 = vrot.slane %v4998, %v5019
  %v5022 = vunpack.c.l.s4 1966171168
  %v5023 = vunpack.c.0.s8 %v5022
  %v5024 = vlaneseq
  %v5025 = vshrl.u32 %v5024, 7
  %v5026 = vsub.s32 %v5023, %v5025
  %v5027 = vrot.slane %v4999, %v5026
  %v5028 = vcombine.high %v5006, %v5006
  %v5029 = vcombine.high %v5013, %v5013
  %v5030 = vcombine.high %v5020, %v5020
  %v5031 = vcombine.high %v5027, %v5027
  %s5032 = scalar_lea.vmem [#allocation4], 56
  %v5033 = vld [vmem:[%s5032] sm:$0xff]
  %v5034 = vlaneseq
  %v5035 = vshrl.u32 %v5034, 7
  %v5036 = vsub.s32 0, %v5035
  %v5037 = vrot.slane %v5033, %v5036
  %5039 = vbcast.lane.b32.xlu0 %v5037, 256
  %v5040 = vpop.permute.xlu0 %5039
  %s5042 = sor.u32 256, 8
  %5043 = vbcast.lane.b32.xlu0 %v5037, %s5042
  %v5044 = vpop.permute.xlu0 %5043
  %v5045 = vlaneseq
  %v5046 = vshrl.u32 %v5045, 7
  %v5047 = vsub.s32 1, %v5046
  %v5048 = vrot.slane %v5033, %v5047
  %5050 = vbcast.lane.b32.xlu0 %v5048, 256
  %v5051 = vpop.permute.xlu0 %5050
  %s5053 = sor.u32 256, 8
  %5054 = vbcast.lane.b32.xlu0 %v5048, %s5053
  %v5055 = vpop.permute.xlu0 %5054
  %v5056 = vlaneseq
  %v5057 = vshrl.u32 %v5056, 7
  %v5058 = vsub.s32 2, %v5057
  %v5059 = vrot.slane %v5033, %v5058
  %5061 = vbcast.lane.b32.xlu0 %v5059, 256
  %v5062 = vpop.permute.xlu0 %5061
  %s5064 = sor.u32 256, 8
  %5065 = vbcast.lane.b32.xlu0 %v5059, %s5064
  %v5066 = vpop.permute.xlu0 %5065
  %v5067 = vlaneseq
  %v5068 = vshrl.u32 %v5067, 7
  %v5069 = vsub.s32 3, %v5068
  %v5070 = vrot.slane %v5033, %v5069
  %5072 = vbcast.lane.b32.xlu0 %v5070, 256
  %v5073 = vpop.permute.xlu0 %5072
  %s5075 = sor.u32 256, 8
  %5076 = vbcast.lane.b32.xlu0 %v5070, %s5075
  %v5077 = vpop.permute.xlu0 %5076
  %v5078 = vlaneseq
  %v5079 = vshrl.u32 %v5078, 7
  %v5080 = vsub.s32 4, %v5079
  %v5081 = vrot.slane %v5033, %v5080
  %5083 = vbcast.lane.b32.xlu0 %v5081, 256
  %v5084 = vpop.permute.xlu0 %5083
  %s5086 = sor.u32 256, 8
  %5087 = vbcast.lane.b32.xlu0 %v5081, %s5086
  %v5088 = vpop.permute.xlu0 %5087
  %v5089 = vlaneseq
  %v5090 = vshrl.u32 %v5089, 7
  %v5091 = vsub.s32 5, %v5090
  %v5092 = vrot.slane %v5033, %v5091
  %5094 = vbcast.lane.b32.xlu0 %v5092, 256
  %v5095 = vpop.permute.xlu0 %5094
  %s5097 = sor.u32 256, 8
  %5098 = vbcast.lane.b32.xlu0 %v5092, %s5097
  %v5099 = vpop.permute.xlu0 %5098
  %v5100 = vlaneseq
  %v5101 = vshrl.u32 %v5100, 7
  %v5102 = vsub.s32 6, %v5101
  %v5103 = vrot.slane %v5033, %v5102
  %5105 = vbcast.lane.b32.xlu0 %v5103, 256
  %v5106 = vpop.permute.xlu0 %5105
  %s5108 = sor.u32 256, 8
  %5109 = vbcast.lane.b32.xlu0 %v5103, %s5108
  %v5110 = vpop.permute.xlu0 %5109
  %v5111 = vlaneseq
  %v5112 = vshrl.u32 %v5111, 7
  %v5113 = vsub.s32 7, %v5112
  %v5114 = vrot.slane %v5033, %v5113
  %5116 = vbcast.lane.b32.xlu0 %v5114, 256
  %v5117 = vpop.permute.xlu0 %5116
  %s5119 = sor.u32 256, 8
  %5120 = vbcast.lane.b32.xlu0 %v5114, %s5119
  %v5121 = vpop.permute.xlu0 %5120
  %v5122 = vlaneseq
  %v5123 = vshrl.u32 %v5122, 7
  %v5124 = vsub.s32 0, %v5123
  %v5125 = vrot.slane %v5006, %v5124
  %v5126 = vlaneseq
  %v5127 = vshrl.u32 %v5126, 7
  %v5128 = vsub.s32 0, %v5127
  %v5129 = vrot.slane %v5020, %v5128
  %v5130 = vlaneseq
  %v5131 = vshrl.u32 %v5130, 7
  %v5132 = vsub.s32 0, %v5131
  %v5133 = vrot.slane %v5028, %v5132
  %v5134 = vlaneseq
  %v5135 = vshrl.u32 %v5134, 7
  %v5136 = vsub.s32 0, %v5135
  %v5137 = vrot.slane %v5030, %v5136
  %v5138 = vlaneseq
  %v5139 = vshrl.u32 %v5138, 7
  %v5140 = vsub.s32 0, %v5139
  %v5141 = vrot.slane %v5013, %v5140
  %v5142 = vlaneseq
  %v5143 = vshrl.u32 %v5142, 7
  %v5144 = vsub.s32 0, %v5143
  %v5145 = vrot.slane %v5027, %v5144
  %v5146 = vlaneseq
  %v5147 = vshrl.u32 %v5146, 7
  %v5148 = vsub.s32 0, %v5147
  %v5149 = vrot.slane %v5029, %v5148
  %v5150 = vlaneseq
  %v5151 = vshrl.u32 %v5150, 7
  %v5152 = vsub.s32 0, %v5151
  %v5153 = vrot.slane %v5031, %v5152
  %v5162 = vmul.f32 %v5125, %v5040
  %v5163 = vmul.f32 %v5125, %v5044
  %v5164 = vmul.f32 %v5129, %v5051
  %v5165 = vmul.f32 %v5129, %v5055
  %v5166 = vmul.f32 %v5133, %v5062
  %v5167 = vmul.f32 %v5133, %v5066
  %v5168 = vmul.f32 %v5137, %v5073
  %v5169 = vmul.f32 %v5137, %v5077
  %v5170 = vmul.f32 %v5141, %v5084
  %v5171 = vmul.f32 %v5141, %v5088
  %v5172 = vmul.f32 %v5145, %v5095
  %v5173 = vmul.f32 %v5145, %v5099
  %v5174 = vmul.f32 %v5149, %v5106
  %v5175 = vmul.f32 %v5149, %v5110
  %v5176 = vmul.f32 %v5153, %v5117
  %v5177 = vmul.f32 %v5153, %v5121
  %s5178 = scalar_lea.vmem [#allocation2], 896
  %v5179 = vld [vmem:[%s5178] sm:$0xff]
  %v5180 = vld [vmem:[%s5178 + $0x8] sm:$0xff]
  %v5181 = vld [vmem:[%s5178 + $0x10] sm:$0xff]
  %v5182 = vld [vmem:[%s5178 + $0x18] sm:$0xff]
  %v5183 = vld [vmem:[%s5178 + $0x20] sm:$0xff]
  %v5184 = vld [vmem:[%s5178 + $0x28] sm:$0xff]
  %v5185 = vld [vmem:[%s5178 + $0x30] sm:$0xff]
  %v5186 = vld [vmem:[%s5178 + $0x38] sm:$0xff]
  %v5187 = vld [vmem:[%s5178 + $0x40] sm:$0xff]
  %v5188 = vld [vmem:[%s5178 + $0x48] sm:$0xff]
  %v5189 = vld [vmem:[%s5178 + $0x50] sm:$0xff]
  %v5190 = vld [vmem:[%s5178 + $0x58] sm:$0xff]
  %v5191 = vld [vmem:[%s5178 + $0x60] sm:$0xff]
  %v5192 = vld [vmem:[%s5178 + $0x68] sm:$0xff]
  %v5193 = vld [vmem:[%s5178 + $0x70] sm:$0xff]
  %v5194 = vld [vmem:[%s5178 + $0x78] sm:$0xff]
  %v5195 = vmul.f32 %v5179, %v4768
  %v5196 = vmul.f32 %v5180, %v4769
  %v5197 = vmul.f32 %v5181, %v4770
  %v5198 = vmul.f32 %v5182, %v4771
  %v5199 = vmul.f32 %v5183, %v4772
  %v5200 = vmul.f32 %v5184, %v4773
  %v5201 = vmul.f32 %v5185, %v4774
  %v5202 = vmul.f32 %v5186, %v4775
  %v5203 = vmul.f32 %v5187, %v4776
  %v5204 = vmul.f32 %v5188, %v4777
  %v5205 = vmul.f32 %v5189, %v4778
  %v5206 = vmul.f32 %v5190, %v4779
  %v5207 = vmul.f32 %v5191, %v4780
  %v5208 = vmul.f32 %v5192, %v4781
  %v5209 = vmul.f32 %v5193, %v4782
  %v5210 = vmul.f32 %v5194, %v4783
  %v5211 = vadd.f32 %v5195, %v5162
  %v5212 = vadd.f32 %v5196, %v5163
  %v5213 = vadd.f32 %v5197, %v5164
  %v5214 = vadd.f32 %v5198, %v5165
  %v5215 = vadd.f32 %v5199, %v5166
  %v5216 = vadd.f32 %v5200, %v5167
  %v5217 = vadd.f32 %v5201, %v5168
  %v5218 = vadd.f32 %v5202, %v5169
  %v5219 = vadd.f32 %v5203, %v5170
  %v5220 = vadd.f32 %v5204, %v5171
  %v5221 = vadd.f32 %v5205, %v5172
  %v5222 = vadd.f32 %v5206, %v5173
  %v5223 = vadd.f32 %v5207, %v5174
  %v5224 = vadd.f32 %v5208, %v5175
  %v5225 = vadd.f32 %v5209, %v5176
  %v5226 = vadd.f32 %v5210, %v5177
  %s5227 = scalar_lea.vmem [#allocation5], 56
  %v5228 = vld [vmem:[%s5227] sm:$0xff]
  %v5229 = vlaneseq
  %v5230 = vshrl.u32 %v5229, 7
  %v5231 = vsub.s32 0, %v5230
  %v5232 = vrot.slane %v5228, %v5231
  %5234 = vbcast.lane.b32.xlu0 %v5232, 256
  %v5235 = vpop.permute.xlu0 %5234
  %s5237 = sor.u32 256, 8
  %5238 = vbcast.lane.b32.xlu0 %v5232, %s5237
  %v5239 = vpop.permute.xlu0 %5238
  %v5240 = vlaneseq
  %v5241 = vshrl.u32 %v5240, 7
  %v5242 = vsub.s32 1, %v5241
  %v5243 = vrot.slane %v5228, %v5242
  %5245 = vbcast.lane.b32.xlu0 %v5243, 256
  %v5246 = vpop.permute.xlu0 %5245
  %s5248 = sor.u32 256, 8
  %5249 = vbcast.lane.b32.xlu0 %v5243, %s5248
  %v5250 = vpop.permute.xlu0 %5249
  %v5251 = vlaneseq
  %v5252 = vshrl.u32 %v5251, 7
  %v5253 = vsub.s32 2, %v5252
  %v5254 = vrot.slane %v5228, %v5253
  %5256 = vbcast.lane.b32.xlu0 %v5254, 256
  %v5257 = vpop.permute.xlu0 %5256
  %s5259 = sor.u32 256, 8
  %5260 = vbcast.lane.b32.xlu0 %v5254, %s5259
  %v5261 = vpop.permute.xlu0 %5260
  %v5262 = vlaneseq
  %v5263 = vshrl.u32 %v5262, 7
  %v5264 = vsub.s32 3, %v5263
  %v5265 = vrot.slane %v5228, %v5264
  %5267 = vbcast.lane.b32.xlu0 %v5265, 256
  %v5268 = vpop.permute.xlu0 %5267
  %s5270 = sor.u32 256, 8
  %5271 = vbcast.lane.b32.xlu0 %v5265, %s5270
  %v5272 = vpop.permute.xlu0 %5271
  %v5273 = vlaneseq
  %v5274 = vshrl.u32 %v5273, 7
  %v5275 = vsub.s32 4, %v5274
  %v5276 = vrot.slane %v5228, %v5275
  %5278 = vbcast.lane.b32.xlu0 %v5276, 256
  %v5279 = vpop.permute.xlu0 %5278
  %s5281 = sor.u32 256, 8
  %5282 = vbcast.lane.b32.xlu0 %v5276, %s5281
  %v5283 = vpop.permute.xlu0 %5282
  %v5284 = vlaneseq
  %v5285 = vshrl.u32 %v5284, 7
  %v5286 = vsub.s32 5, %v5285
  %v5287 = vrot.slane %v5228, %v5286
  %5289 = vbcast.lane.b32.xlu0 %v5287, 256
  %v5290 = vpop.permute.xlu0 %5289
  %s5292 = sor.u32 256, 8
  %5293 = vbcast.lane.b32.xlu0 %v5287, %s5292
  %v5294 = vpop.permute.xlu0 %5293
  %v5295 = vlaneseq
  %v5296 = vshrl.u32 %v5295, 7
  %v5297 = vsub.s32 6, %v5296
  %v5298 = vrot.slane %v5228, %v5297
  %5300 = vbcast.lane.b32.xlu0 %v5298, 256
  %v5301 = vpop.permute.xlu0 %5300
  %s5303 = sor.u32 256, 8
  %5304 = vbcast.lane.b32.xlu0 %v5298, %s5303
  %v5305 = vpop.permute.xlu0 %5304
  %v5306 = vlaneseq
  %v5307 = vshrl.u32 %v5306, 7
  %v5308 = vsub.s32 7, %v5307
  %v5309 = vrot.slane %v5228, %v5308
  %5311 = vbcast.lane.b32.xlu0 %v5309, 256
  %v5312 = vpop.permute.xlu0 %5311
  %s5314 = sor.u32 256, 8
  %5315 = vbcast.lane.b32.xlu0 %v5309, %s5314
  %v5316 = vpop.permute.xlu0 %5315
  %v5317 = vmul.f32 %v5211, %v5235
  %v5318 = vmul.f32 %v5212, %v5239
  %v5319 = vmul.f32 %v5213, %v5246
  %v5320 = vmul.f32 %v5214, %v5250
  %v5321 = vmul.f32 %v5215, %v5257
  %v5322 = vmul.f32 %v5216, %v5261
  %v5323 = vmul.f32 %v5217, %v5268
  %v5324 = vmul.f32 %v5218, %v5272
  %v5325 = vmul.f32 %v5219, %v5279
  %v5326 = vmul.f32 %v5220, %v5283
  %v5327 = vmul.f32 %v5221, %v5290
  %v5328 = vmul.f32 %v5222, %v5294
  %v5329 = vmul.f32 %v5223, %v5301
  %v5330 = vmul.f32 %v5224, %v5305
  %v5331 = vmul.f32 %v5225, %v5312
  %v5332 = vmul.f32 %v5226, %v5316
  %v5333 = vsel %vm380, %v5317, 0.0
  %v5334 = vsel %vm380, %v5318, 0.0
  %v5335 = vadd.f32 %v5333, %v5334
  %v5336 = vrot.slane %v5335, 4
  %v5337 = vadd.f32 %v5335, %v5336
  %v5338 = vrot.slane %v5337, 2
  %v5339 = vadd.f32 %v5337, %v5338
  %v5340 = vrot.slane %v5339, 1
  %v5341 = vadd.f32 %v5339, %v5340
  %v5342 = vsel %vm380, %v5319, 0.0
  %v5343 = vsel %vm380, %v5320, 0.0
  %v5344 = vadd.f32 %v5342, %v5343
  %v5345 = vrot.slane %v5344, 4
  %v5346 = vadd.f32 %v5344, %v5345
  %v5347 = vrot.slane %v5346, 2
  %v5348 = vadd.f32 %v5346, %v5347
  %v5349 = vrot.slane %v5348, 1
  %v5350 = vadd.f32 %v5348, %v5349
  %v5351 = vsel %vm380, %v5321, 0.0
  %v5352 = vsel %vm380, %v5322, 0.0
  %v5353 = vadd.f32 %v5351, %v5352
  %v5354 = vrot.slane %v5353, 4
  %v5355 = vadd.f32 %v5353, %v5354
  %v5356 = vrot.slane %v5355, 2
  %v5357 = vadd.f32 %v5355, %v5356
  %v5358 = vrot.slane %v5357, 1
  %v5359 = vadd.f32 %v5357, %v5358
  %v5360 = vsel %vm380, %v5323, 0.0
  %v5361 = vsel %vm380, %v5324, 0.0
  %v5362 = vadd.f32 %v5360, %v5361
  %v5363 = vrot.slane %v5362, 4
  %v5364 = vadd.f32 %v5362, %v5363
  %v5365 = vrot.slane %v5364, 2
  %v5366 = vadd.f32 %v5364, %v5365
  %v5367 = vrot.slane %v5366, 1
  %v5368 = vadd.f32 %v5366, %v5367
  %v5369 = vsel %vm380, %v5325, 0.0
  %v5370 = vsel %vm380, %v5326, 0.0
  %v5371 = vadd.f32 %v5369, %v5370
  %v5372 = vrot.slane %v5371, 4
  %v5373 = vadd.f32 %v5371, %v5372
  %v5374 = vrot.slane %v5373, 2
  %v5375 = vadd.f32 %v5373, %v5374
  %v5376 = vrot.slane %v5375, 1
  %v5377 = vadd.f32 %v5375, %v5376
  %v5378 = vsel %vm380, %v5327, 0.0
  %v5379 = vsel %vm380, %v5328, 0.0
  %v5380 = vadd.f32 %v5378, %v5379
  %v5381 = vrot.slane %v5380, 4
  %v5382 = vadd.f32 %v5380, %v5381
  %v5383 = vrot.slane %v5382, 2
  %v5384 = vadd.f32 %v5382, %v5383
  %v5385 = vrot.slane %v5384, 1
  %v5386 = vadd.f32 %v5384, %v5385
  %v5387 = vsel %vm380, %v5329, 0.0
  %v5388 = vsel %vm380, %v5330, 0.0
  %v5389 = vadd.f32 %v5387, %v5388
  %v5390 = vrot.slane %v5389, 4
  %v5391 = vadd.f32 %v5389, %v5390
  %v5392 = vrot.slane %v5391, 2
  %v5393 = vadd.f32 %v5391, %v5392
  %v5394 = vrot.slane %v5393, 1
  %v5395 = vadd.f32 %v5393, %v5394
  %v5396 = vsel %vm380, %v5331, 0.0
  %v5397 = vsel %vm380, %v5332, 0.0
  %v5398 = vadd.f32 %v5396, %v5397
  %v5399 = vrot.slane %v5398, 4
  %v5400 = vadd.f32 %v5398, %v5399
  %v5401 = vrot.slane %v5400, 2
  %v5402 = vadd.f32 %v5400, %v5401
  %v5403 = vrot.slane %v5402, 1
  %v5404 = vadd.f32 %v5402, %v5403
  %v5413 = vsel %vm2306, %v5350, %v5341
  %v5414 = vsel %vm2308, %v5359, %v5413
  %v5415 = vsel %vm2310, %v5368, %v5414
  %v5416 = vsel %vm2312, %v5377, %v5415
  %v5417 = vsel %vm2314, %v5386, %v5416
  %v5418 = vsel %vm2316, %v5395, %v5417
  %v5419 = vsel %vm2318, %v5404, %v5418
  %s5421 = scalar_lea.vmem [#allocation6], 56
  %5422 = vst.msk [vmem:[%s5421] sm:$0xff] %vm380, %v5419
  %v5423 = vld [vmem:[#allocation6] sm:$0xff]
  %v5424 = vld [vmem:[#allocation6 + $0x8] sm:$0xff]
  %v5425 = vld [vmem:[#allocation6 + $0x10] sm:$0xff]
  %v5426 = vld [vmem:[#allocation6 + $0x18] sm:$0xff]
  %v5427 = vld [vmem:[#allocation6 + $0x20] sm:$0xff]
  %v5428 = vld [vmem:[#allocation6 + $0x28] sm:$0xff]
  %v5429 = vld [vmem:[#allocation6 + $0x30] sm:$0xff]
  %v5430 = vld [vmem:[#allocation6 + $0x38] sm:$0xff]
  %v5431 = vld [vmem:[%s6] sm:$0x1]
  %v5433 = vlaneseq
  %v5434 = vshrl.u32 %v5433, 7
  %v5435 = vsub.s32 0, %v5434
  %v5436 = vrot.slane %v5431, %v5435
  %v5438 = vmul.f32 %v281, %v5436
  %v5439 = vmul.f32 %v283, %v5436
  %v5440 = vmul.f32 %v285, %v5436
  %v5441 = vmul.f32 %v287, %v5436
  %v5442 = vmul.f32 %v289, %v5436
  %v5443 = vmul.f32 %v291, %v5436
  %v5444 = vmul.f32 %v293, %v5436
  %v5445 = vmul.f32 %v295, %v5436
  %v5446 = vadd.f32 %v5423, %v5438
  %v5447 = vadd.f32 %v5424, %v5439
  %v5448 = vadd.f32 %v5425, %v5440
  %v5449 = vadd.f32 %v5426, %v5441
  %v5450 = vadd.f32 %v5427, %v5442
  %v5451 = vadd.f32 %v5428, %v5443
  %v5452 = vadd.f32 %v5429, %v5444
  %v5453 = vadd.f32 %v5430, %v5445
  %v5454 = vsub.f32 0.0, %v142
  %v5455 = vsub.f32 0.0, %v146
  %v5456 = vsub.f32 0.0, %v152
  %v5457 = vsub.f32 0.0, %v156
  %v5458 = vsub.f32 0.0, %v162
  %v5459 = vsub.f32 0.0, %v166
  %v5460 = vsub.f32 0.0, %v172
  %v5461 = vsub.f32 0.0, %v176
  %v5462 = vmul.f32 %v5454, 1.442695
  %v5463 = vpow.pop %v5462
  %v5464 = vmul.f32 %v5455, 1.442695
  %v5465 = vpow.pop %v5464
  %v5466 = vmul.f32 %v5456, 1.442695
  %v5467 = vpow.pop %v5466
  %v5468 = vmul.f32 %v5457, 1.442695
  %v5469 = vpow.pop %v5468
  %v5470 = vmul.f32 %v5458, 1.442695
  %v5471 = vpow.pop %v5470
  %v5472 = vmul.f32 %v5459, 1.442695
  %v5473 = vpow.pop %v5472
  %v5474 = vmul.f32 %v5460, 1.442695
  %v5475 = vpow.pop %v5474
  %v5476 = vmul.f32 %v5461, 1.442695
  %v5477 = vpow.pop %v5476
  %v5478 = vadd.f32 %v5463, 1.0
  %v5479 = vadd.f32 %v5465, 1.0
  %v5480 = vadd.f32 %v5467, 1.0
  %v5481 = vadd.f32 %v5469, 1.0
  %v5482 = vadd.f32 %v5471, 1.0
  %v5483 = vadd.f32 %v5473, 1.0
  %v5484 = vadd.f32 %v5475, 1.0
  %v5485 = vadd.f32 %v5477, 1.0
  %v5486 = vrcp.pop %v5478
  %v5487 = vmul.f32 %v142, %v5486
  %v5488 = vrcp.pop %v5479
  %v5489 = vmul.f32 %v146, %v5488
  %v5490 = vrcp.pop %v5480
  %v5491 = vmul.f32 %v152, %v5490
  %v5492 = vrcp.pop %v5481
  %v5493 = vmul.f32 %v156, %v5492
  %v5494 = vrcp.pop %v5482
  %v5495 = vmul.f32 %v162, %v5494
  %v5496 = vrcp.pop %v5483
  %v5497 = vmul.f32 %v166, %v5496
  %v5498 = vrcp.pop %v5484
  %v5499 = vmul.f32 %v172, %v5498
  %v5500 = vrcp.pop %v5485
  %v5501 = vmul.f32 %v176, %v5500
  %v5502 = vmul.f32 %v5446, %v5487
  %v5503 = vmul.f32 %v5447, %v5489
  %v5504 = vmul.f32 %v5448, %v5491
  %v5505 = vmul.f32 %v5449, %v5493
  %v5506 = vmul.f32 %v5450, %v5495
  %v5507 = vmul.f32 %v5451, %v5497
  %v5508 = vmul.f32 %v5452, %v5499
  %v5509 = vmul.f32 %v5453, %v5501
  %v5510 = vpack.c.bf16 %v5503, %v5502
  %v5511 = vpack.c.bf16 %v5505, %v5504
  %v5512 = vpack.c.bf16 %v5507, %v5506
  %v5513 = vpack.c.bf16 %v5509, %v5508
  %v5514 = vld [vmem:[%s7] sm:$0xf]
  %v5515 = vld [vmem:[%s7 + $0x4] sm:$0xf]
  %v5516 = vld [vmem:[%s7 + $0x8] sm:$0xf]
  %v5517 = vld [vmem:[%s7 + $0xc] sm:$0xf]
  %v5518 = vld [vmem:[%s7 + $0x10] sm:$0xf]
  %v5519 = vld [vmem:[%s7 + $0x14] sm:$0xf]
  %v5520 = vld [vmem:[%s7 + $0x18] sm:$0xf]
  %v5521 = vld [vmem:[%s7 + $0x1c] sm:$0xf]
  %v5530 = vunpack.c.l.b16 %v5514
  %v5531 = vunpack.c.l.b16 %v5515
  %v5532 = vunpack.c.l.b16 %v5516
  %v5533 = vunpack.c.l.b16 %v5517
  %v5534 = vunpack.c.l.b16 %v5518
  %v5535 = vunpack.c.l.b16 %v5519
  %v5536 = vunpack.c.l.b16 %v5520
  %v5537 = vunpack.c.l.b16 %v5521
  %v5538 = vpack.c.b16 %v5531, %v5530
  %v5539 = vpack.c.b16 %v5533, %v5532
  %v5540 = vpack.c.b16 %v5535, %v5534
  %v5541 = vpack.c.b16 %v5537, %v5536
  %v5547 = vsel %vm380, %v5510, 0
  %v5550 = vsel %vm380, %v5511, 0
  %v5553 = vsel %vm380, %v5512, 0
  %v5556 = vsel %vm380, %v5513, 0
  %5558 = vmatprep.subr.bf16.mxu0 0
  %5559 = vmatpush1.bf16.msra.mxu0 %v5538
  %5560 = vmatprep.subr.bf16.mxu0 0
  %5561 = vmatpush1.bf16.msra.mxu0 %v5539
  %5562 = vmatprep.subr.bf16.mxu0 0
  %5563 = vmatpush1.bf16.msra.mxu0 %v5540
  %5564 = vmatprep.subr.bf16.mxu0 0
  %5565 = vmatpush1.bf16.msra.mxu0 %v5541
  %5566 = vmatprep.subr.bf16.mxu0 0
  %5567 = vmatpush1.bf16.msra.mxu0 0
  %5568 = vmatprep.subr.bf16.mxu0 0
  %5569 = vmatpush1.bf16.msra.mxu0 0
  %5570 = vmatprep.subr.bf16.mxu0 0
  %5571 = vmatpush1.bf16.msra.mxu0 0
  %5572 = vmatprep.subr.bf16.mxu0 0
  %5573 = vmatpush1.bf16.msra.mxu0 0
  %5574 = vmatprep.subr.bf16.mxu0 0
  %5575 = vmatpush1.bf16.msra.mxu0 0
  %5576 = vmatprep.subr.bf16.mxu0 0
  %5577 = vmatpush1.bf16.msra.mxu0 0
  %5578 = vmatprep.subr.bf16.mxu0 0
  %5579 = vmatpush1.bf16.msra.mxu0 0
  %5580 = vmatprep.subr.bf16.mxu0 0
  %5581 = vmatpush1.bf16.msra.mxu0 0
  %5582 = vmatprep.subr.bf16.mxu0 0
  %5583 = vmatpush1.bf16.msra.mxu0 0
  %5584 = vmatprep.subr.bf16.mxu0 0
  %5585 = vmatpush1.bf16.msra.mxu0 0
  %5586 = vmatprep.subr.bf16.mxu0 0
  %5587 = vmatpush1.bf16.msra.mxu0 0
  %5588 = vmatprep.subr.bf16.mxu0 0
  %5589 = vmatpush1.bf16.msra.mxu0 0
  %5590 = vmatprep.mubr.bf16.mxu0 0
  %5591 = vmatmul.mubr.bf16.gmra.mrb[0].mxu0 %v5547
  %v5592 = vpop.f32.mrb[0].mxu0
  %v5593 = vadd.f32 %v56, %v5592
  %v5594 = vpop.f32.mrb[0].mxu0
  %v5595 = vpop.f32.mrb[0].mxu0
  %v5596 = vadd.f32 %v57, %v5595
  %v5597 = vpop.f32.mrb[0].mxu0
  %5598 = vmatprep.mubr.bf16.mxu0 0
  %5599 = vmatmul.mubr.bf16.gmra.mrb[0].mxu0 %v5550
  %v5600 = vpop.f32.mrb[0].mxu0
  %v5601 = vadd.f32 %v58, %v5600
  %v5602 = vpop.f32.mrb[0].mxu0
  %v5603 = vpop.f32.mrb[0].mxu0
  %v5604 = vadd.f32 %v59, %v5603
  %v5605 = vpop.f32.mrb[0].mxu0
  %5606 = vmatprep.mubr.bf16.mxu0 0
  %5607 = vmatmul.mubr.bf16.gmra.mrb[0].mxu0 %v5553
  %v5608 = vpop.f32.mrb[0].mxu0
  %v5609 = vadd.f32 %v60, %v5608
  %v5610 = vpop.f32.mrb[0].mxu0
  %v5611 = vpop.f32.mrb[0].mxu0
  %v5612 = vadd.f32 %v61, %v5611
  %v5613 = vpop.f32.mrb[0].mxu0
  %5614 = vmatprep.mubr.bf16.mxu0 0
  %5615 = vmatmul.mubr.bf16.gmra.mrb[0].mxu0 %v5556
  %v5616 = vpop.f32.mrb[0].mxu0
  %v5617 = vadd.f32 %v62, %v5616
  %v5618 = vpop.f32.mrb[0].mxu0
  %v5619 = vpop.f32.mrb[0].mxu0
  %v5620 = vadd.f32 %v63, %v5619
  %v5621 = vpop.f32.mrb[0].mxu0
  %5622 = vdwg.mxu0
  %v5623 = vsel %vm92, %v5593, 0.0
  %5624 = vadd.xlane.f32.xlu0 %v5623
  %v5625 = vpop.xlane.xlu0 %5624
  %v5626 = vsel %vm92, %v5596, 0.0
  %5627 = vadd.xlane.f32.xlu0 %v5626
  %v5628 = vpop.xlane.xlu0 %5627
  %v5629 = vsel %vm92, %v5601, 0.0
  %5630 = vadd.xlane.f32.xlu0 %v5629
  %v5631 = vpop.xlane.xlu0 %5630
  %v5632 = vsel %vm92, %v5604, 0.0
  %5633 = vadd.xlane.f32.xlu0 %v5632
  %v5634 = vpop.xlane.xlu0 %5633
  %v5635 = vsel %vm92, %v5609, 0.0
  %5636 = vadd.xlane.f32.xlu0 %v5635
  %v5637 = vpop.xlane.xlu0 %5636
  %v5638 = vsel %vm92, %v5612, 0.0
  %5639 = vadd.xlane.f32.xlu0 %v5638
  %v5640 = vpop.xlane.xlu0 %5639
  %v5641 = vsel %vm92, %v5617, 0.0
  %5642 = vadd.xlane.f32.xlu0 %v5641
  %v5643 = vpop.xlane.xlu0 %5642
  %v5644 = vsel %vm92, %v5620, 0.0
  %5645 = vadd.xlane.f32.xlu0 %v5644
  %v5646 = vpop.xlane.xlu0 %5645
  %v5647 = vrcp.pop 32.0
  %v5648 = vmul.f32 %v5625, %v5647
  %v5649 = vmul.f32 %v5628, %v5647
  %v5650 = vmul.f32 %v5631, %v5647
  %v5651 = vmul.f32 %v5634, %v5647
  %v5652 = vmul.f32 %v5637, %v5647
  %v5653 = vmul.f32 %v5640, %v5647
  %v5654 = vmul.f32 %v5643, %v5647
  %v5655 = vmul.f32 %v5646, %v5647
  %v5656 = vsub.f32 %v5593, %v5648
  %v5657 = vsub.f32 %v5596, %v5649
  %v5658 = vsub.f32 %v5601, %v5650
  %v5659 = vsub.f32 %v5604, %v5651
  %v5660 = vsub.f32 %v5609, %v5652
  %v5661 = vsub.f32 %v5612, %v5653
  %v5662 = vsub.f32 %v5617, %v5654
  %v5663 = vsub.f32 %v5620, %v5655
  %v5664 = vmul.f32 %v5656, %v5656
  %v5665 = vmul.f32 %v5657, %v5657
  %v5666 = vmul.f32 %v5658, %v5658
  %v5667 = vmul.f32 %v5659, %v5659
  %v5668 = vmul.f32 %v5660, %v5660
  %v5669 = vmul.f32 %v5661, %v5661
  %v5670 = vmul.f32 %v5662, %v5662
  %v5671 = vmul.f32 %v5663, %v5663
  %v5672 = vsel %vm92, %v5664, 0.0
  %5673 = vadd.xlane.f32.xlu0 %v5672
  %v5674 = vpop.xlane.xlu0 %5673
  %v5675 = vsel %vm92, %v5665, 0.0
  %5676 = vadd.xlane.f32.xlu0 %v5675
  %v5677 = vpop.xlane.xlu0 %5676
  %v5678 = vsel %vm92, %v5666, 0.0
  %5679 = vadd.xlane.f32.xlu0 %v5678
  %v5680 = vpop.xlane.xlu0 %5679
  %v5681 = vsel %vm92, %v5667, 0.0
  %5682 = vadd.xlane.f32.xlu0 %v5681
  %v5683 = vpop.xlane.xlu0 %5682
  %v5684 = vsel %vm92, %v5668, 0.0
  %5685 = vadd.xlane.f32.xlu0 %v5684
  %v5686 = vpop.xlane.xlu0 %5685
  %v5687 = vsel %vm92, %v5669, 0.0
  %5688 = vadd.xlane.f32.xlu0 %v5687
  %v5689 = vpop.xlane.xlu0 %5688
  %v5690 = vsel %vm92, %v5670, 0.0
  %5691 = vadd.xlane.f32.xlu0 %v5690
  %v5692 = vpop.xlane.xlu0 %5691
  %v5693 = vsel %vm92, %v5671, 0.0
  %5694 = vadd.xlane.f32.xlu0 %v5693
  %v5695 = vpop.xlane.xlu0 %5694
  %v5696 = vmul.f32 %v5674, %v5647
  %v5697 = vmul.f32 %v5677, %v5647
  %v5698 = vmul.f32 %v5680, %v5647
  %v5699 = vmul.f32 %v5683, %v5647
  %v5700 = vmul.f32 %v5686, %v5647
  %v5701 = vmul.f32 %v5689, %v5647
  %v5702 = vmul.f32 %v5692, %v5647
  %v5703 = vmul.f32 %v5695, %v5647
  %v5704 = vadd.f32 %v5696, 1e-12
  %v5705 = vadd.f32 %v5697, 1e-12
  %v5706 = vadd.f32 %v5698, 1e-12
  %v5707 = vadd.f32 %v5699, 1e-12
  %v5708 = vadd.f32 %v5700, 1e-12
  %v5709 = vadd.f32 %v5701, 1e-12
  %v5710 = vadd.f32 %v5702, 1e-12
  %v5711 = vadd.f32 %v5703, 1e-12
  %v5712 = vrsqrt.pop %v5704
  %v5713 = vrsqrt.pop %v5705
  %v5714 = vrsqrt.pop %v5706
  %v5715 = vrsqrt.pop %v5707
  %v5716 = vrsqrt.pop %v5708
  %v5717 = vrsqrt.pop %v5709
  %v5718 = vrsqrt.pop %v5710
  %v5719 = vrsqrt.pop %v5711
  %v5720 = vmul.f32 %v5656, %v5712
  %v5721 = vmul.f32 %v5657, %v5713
  %v5722 = vmul.f32 %v5658, %v5714
  %v5723 = vmul.f32 %v5659, %v5715
  %v5724 = vmul.f32 %v5660, %v5716
  %v5725 = vmul.f32 %v5661, %v5717
  %v5726 = vmul.f32 %v5662, %v5718
  %v5727 = vmul.f32 %v5663, %v5719
  %v5728 = vld [vmem:[%s8] sm:$0x1]
  %v5730 = vlaneseq
  %v5731 = vshrl.u32 %v5730, 7
  %v5732 = vsub.s32 0, %v5731
  %v5733 = vrot.slane %v5728, %v5732
  %v5735 = vmul.f32 %v5720, %v5733
  %v5736 = vmul.f32 %v5721, %v5733
  %v5737 = vmul.f32 %v5722, %v5733
  %v5738 = vmul.f32 %v5723, %v5733
  %v5739 = vmul.f32 %v5724, %v5733
  %v5740 = vmul.f32 %v5725, %v5733
  %v5741 = vmul.f32 %v5726, %v5733
  %v5742 = vmul.f32 %v5727, %v5733
  %v5743 = vld [vmem:[%s9] sm:$0x1]
  %v5745 = vlaneseq
  %v5746 = vshrl.u32 %v5745, 7
  %v5747 = vsub.s32 0, %v5746
  %v5748 = vrot.slane %v5743, %v5747
  %v5750 = vadd.f32 %v5735, %v5748
  %v5751 = vadd.f32 %v5736, %v5748
  %v5752 = vadd.f32 %v5737, %v5748
  %v5753 = vadd.f32 %v5738, %v5748
  %v5754 = vadd.f32 %v5739, %v5748
  %v5755 = vadd.f32 %v5740, %v5748
  %v5756 = vadd.f32 %v5741, %v5748
  %v5757 = vadd.f32 %v5742, %v5748
  %v5758 = vpack.c.bf16 %v5751, %v5750
  %v5759 = vpack.c.bf16 %v5753, %v5752
  %v5760 = vpack.c.bf16 %v5755, %v5754
  %v5761 = vpack.c.bf16 %v5757, %v5756
  %v5762 = vld [vmem:[%s10] sm:$0xf]
  %v5763 = vld [vmem:[%s10 + $0x4] sm:$0xf]
  %v5764 = vld [vmem:[%s10 + $0x8] sm:$0xf]
  %v5765 = vld [vmem:[%s10 + $0xc] sm:$0xf]
  %v5766 = vld [vmem:[%s11] sm:$0x1]
  %v5768 = vlaneseq
  %v5769 = vshrl.u32 %v5768, 7
  %v5770 = vsub.s32 0, %v5769
  %v5771 = vrot.slane %v5766, %v5770
  %v5777 = vunpack.c.l.b16 %v5762
  %v5778 = vunpack.c.l.b16 %v5763
  %v5779 = vunpack.c.l.b16 %v5764
  %v5780 = vunpack.c.l.b16 %v5765
  %v5781 = vpack.c.b16 %v5778, %v5777
  %v5782 = vpack.c.b16 %v5780, %v5779
  %v5786 = vsel %vm92, %v5758, 0
  %v5789 = vsel %vm92, %v5759, 0
  %v5792 = vsel %vm92, %v5760, 0
  %v5795 = vsel %vm92, %v5761, 0
  %5797 = vmatprep.subr.bf16.mxu0 0
  %5798 = vmatpush1.bf16.msra.mxu0 %v5781
  %5799 = vmatprep.subr.bf16.mxu0 0
  %5800 = vmatpush1.bf16.msra.mxu0 %v5782
  %5801 = vmatprep.subr.bf16.mxu0 0
  %5802 = vmatpush1.bf16.msra.mxu0 0
  %5803 = vmatprep.subr.bf16.mxu0 0
  %5804 = vmatpush1.bf16.msra.mxu0 0
  %5805 = vmatprep.subr.bf16.mxu0 0
  %5806 = vmatpush1.bf16.msra.mxu0 0
  %5807 = vmatprep.subr.bf16.mxu0 0
  %5808 = vmatpush1.bf16.msra.mxu0 0
  %5809 = vmatprep.subr.bf16.mxu0 0
  %5810 = vmatpush1.bf16.msra.mxu0 0
  %5811 = vmatprep.subr.bf16.mxu0 0
  %5812 = vmatpush1.bf16.msra.mxu0 0
  %5813 = vmatprep.subr.bf16.mxu0 0
  %5814 = vmatpush1.bf16.msra.mxu0 0
  %5815 = vmatprep.subr.bf16.mxu0 0
  %5816 = vmatpush1.bf16.msra.mxu0 0
  %5817 = vmatprep.subr.bf16.mxu0 0
  %5818 = vmatpush1.bf16.msra.mxu0 0
  %5819 = vmatprep.subr.bf16.mxu0 0
  %5820 = vmatpush1.bf16.msra.mxu0 0
  %5821 = vmatprep.subr.bf16.mxu0 0
  %5822 = vmatpush1.bf16.msra.mxu0 0
  %5823 = vmatprep.subr.bf16.mxu0 0
  %5824 = vmatpush1.bf16.msra.mxu0 0
  %5825 = vmatprep.subr.bf16.mxu0 0
  %5826 = vmatpush1.bf16.msra.mxu0 0
  %5827 = vmatprep.subr.bf16.mxu0 0
  %5828 = vmatpush1.bf16.msra.mxu0 0
  %5829 = vmatprep.mubr.bf16.mxu0 0
  %5830 = vmatmul.mubr.bf16.gmra.mrb[0].mxu0 %v5786
  %v5831 = vpop.f32.mrb[0].mxu0
  %v5832 = vadd.f32 %v5771, %v5831
  %v5833 = vpop.f32.mrb[0].mxu0
  %v5834 = vpop.f32.mrb[0].mxu0
  %v5835 = vadd.f32 %v5771, %v5834
  %v5836 = vpop.f32.mrb[0].mxu0
  %5837 = vmatprep.mubr.bf16.mxu0 0
  %5838 = vmatmul.mubr.bf16.gmra.mrb[0].mxu0 %v5789
  %v5839 = vpop.f32.mrb[0].mxu0
  %v5840 = vadd.f32 %v5771, %v5839
  %v5841 = vpop.f32.mrb[0].mxu0
  %v5842 = vpop.f32.mrb[0].mxu0
  %v5843 = vadd.f32 %v5771, %v5842
  %v5844 = vpop.f32.mrb[0].mxu0
  %5845 = vmatprep.mubr.bf16.mxu0 0
  %5846 = vmatmul.mubr.bf16.gmra.mrb[0].mxu0 %v5792
  %v5847 = vpop.f32.mrb[0].mxu0
  %v5848 = vadd.f32 %v5771, %v5847
  %v5849 = vpop.f32.mrb[0].mxu0
  %v5850 = vpop.f32.mrb[0].mxu0
  %v5851 = vadd.f32 %v5771, %v5850
  %v5852 = vpop.f32.mrb[0].mxu0
  %5853 = vmatprep.mubr.bf16.mxu0 0
  %5854 = vmatmul.mubr.bf16.gmra.mrb[0].mxu0 %v5795
  %v5855 = vpop.f32.mrb[0].mxu0
  %v5856 = vadd.f32 %v5771, %v5855
  %v5857 = vpop.f32.mrb[0].mxu0
  %v5858 = vpop.f32.mrb[0].mxu0
  %v5859 = vadd.f32 %v5771, %v5858
  %v5860 = vpop.f32.mrb[0].mxu0
  %5861 = vdwg.mxu0
  %v5862 = vmul.f32 %v5832, 0.5
  %v5863 = vmul.f32 %v5835, 0.5
  %v5864 = vmul.f32 %v5840, 0.5
  %v5865 = vmul.f32 %v5843, 0.5
  %v5866 = vmul.f32 %v5848, 0.5
  %v5867 = vmul.f32 %v5851, 0.5
  %v5868 = vmul.f32 %v5856, 0.5
  %v5869 = vmul.f32 %v5859, 0.5
  %v5870 = vmul.f32 %v5832, 0.70710677
  %v5871 = vmul.f32 %v5835, 0.70710677
  %v5872 = vmul.f32 %v5840, 0.70710677
  %v5873 = vmul.f32 %v5843, 0.70710677
  %v5874 = vmul.f32 %v5848, 0.70710677
  %v5875 = vmul.f32 %v5851, 0.70710677
  %v5876 = vmul.f32 %v5856, 0.70710677
  %v5877 = vmul.f32 %v5859, 0.70710677
  %v5878 = vmin.f32 %v5870, 4.0
  %v5879 = vmin.f32 %v5871, 4.0
  %v5880 = vmin.f32 %v5872, 4.0
  %v5881 = vmin.f32 %v5873, 4.0
  %v5882 = vmin.f32 %v5874, 4.0
  %v5883 = vmin.f32 %v5875, 4.0
  %v5884 = vmin.f32 %v5876, 4.0
  %v5885 = vmin.f32 %v5877, 4.0
  %v5886 = vmax.f32 %v5878, -4.0
  %v5887 = vmax.f32 %v5879, -4.0
  %v5888 = vmax.f32 %v5880, -4.0
  %v5889 = vmax.f32 %v5881, -4.0
  %v5890 = vmax.f32 %v5882, -4.0
  %v5891 = vmax.f32 %v5883, -4.0
  %v5892 = vmax.f32 %v5884, -4.0
  %v5893 = vmax.f32 %v5885, -4.0
  %v5894 = vmul.f32 %v5886, %v5886
  %v5895 = vmul.f32 %v5887, %v5887
  %v5896 = vmul.f32 %v5888, %v5888
  %v5897 = vmul.f32 %v5889, %v5889
  %v5898 = vmul.f32 %v5890, %v5890
  %v5899 = vmul.f32 %v5891, %v5891
  %v5900 = vmul.f32 %v5892, %v5892
  %v5901 = vmul.f32 %v5893, %v5893
  %v5902 = vmul.f32 %v5894, 0.00022905065
  %v5903 = vmul.f32 %v5895, 0.00022905065
  %v5904 = vmul.f32 %v5896, 0.00022905065
  %v5905 = vmul.f32 %v5897, 0.00022905065
  %v5906 = vmul.f32 %v5898, 0.00022905065
  %v5907 = vmul.f32 %v5899, 0.00022905065
  %v5908 = vmul.f32 %v5900, 0.00022905065
  %v5909 = vmul.f32 %v5901, 0.00022905065
  %v5910 = vadd.f32 %v5902, 0.003408291
  %v5911 = vadd.f32 %v5903, 0.003408291
  %v5912 = vadd.f32 %v5904, 0.003408291
  %v5913 = vadd.f32 %v5905, 0.003408291
  %v5914 = vadd.f32 %v5906, 0.003408291
  %v5915 = vadd.f32 %v5907, 0.003408291
  %v5916 = vadd.f32 %v5908, 0.003408291
  %v5917 = vadd.f32 %v5909, 0.003408291
  %v5918 = vmul.f32 %v5910, %v5894
  %v5919 = vmul.f32 %v5911, %v5895
  %v5920 = vmul.f32 %v5912, %v5896
  %v5921 = vmul.f32 %v5913, %v5897
  %v5922 = vmul.f32 %v5914, %v5898
  %v5923 = vmul.f32 %v5915, %v5899
  %v5924 = vmul.f32 %v5916, %v5900
  %v5925 = vmul.f32 %v5917, %v5901
  %v5926 = vadd.f32 %v5918, 0.050955694
  %v5927 = vadd.f32 %v5919, 0.050955694
  %v5928 = vadd.f32 %v5920, 0.050955694
  %v5929 = vadd.f32 %v5921, 0.050955694
  %v5930 = vadd.f32 %v5922, 0.050955694
  %v5931 = vadd.f32 %v5923, 0.050955694
  %v5932 = vadd.f32 %v5924, 0.050955694
  %v5933 = vadd.f32 %v5925, 0.050955694
  %v5934 = vmul.f32 %v5926, %v5894
  %v5935 = vmul.f32 %v5927, %v5895
  %v5936 = vmul.f32 %v5928, %v5896
  %v5937 = vmul.f32 %v5929, %v5897
  %v5938 = vmul.f32 %v5930, %v5898
  %v5939 = vmul.f32 %v5931, %v5899
  %v5940 = vmul.f32 %v5932, %v5900
  %v5941 = vmul.f32 %v5933, %v5901
  %v5942 = vadd.f32 %v5934, 0.18520832
  %v5943 = vadd.f32 %v5935, 0.18520832
  %v5944 = vadd.f32 %v5936, 0.18520832
  %v5945 = vadd.f32 %v5937, 0.18520832
  %v5946 = vadd.f32 %v5938, 0.18520832
  %v5947 = vadd.f32 %v5939, 0.18520832
  %v5948 = vadd.f32 %v5940, 0.18520832
  %v5949 = vadd.f32 %v5941, 0.18520832
  %v5950 = vmul.f32 %v5942, %v5894
  %v5951 = vmul.f32 %v5943, %v5895
  %v5952 = vmul.f32 %v5944, %v5896
  %v5953 = vmul.f32 %v5945, %v5897
  %v5954 = vmul.f32 %v5946, %v5898
  %v5955 = vmul.f32 %v5947, %v5899
  %v5956 = vmul.f32 %v5948, %v5900
  %v5957 = vmul.f32 %v5949, %v5901
  %v5958 = vadd.f32 %v5950, 1.1283791
  %v5959 = vadd.f32 %v5951, 1.1283791
  %v5960 = vadd.f32 %v5952, 1.1283791
  %v5961 = vadd.f32 %v5953, 1.1283791
  %v5962 = vadd.f32 %v5954, 1.1283791
  %v5963 = vadd.f32 %v5955, 1.1283791
  %v5964 = vadd.f32 %v5956, 1.1283791
  %v5965 = vadd.f32 %v5957, 1.1283791
  %v5966 = vmul.f32 %v5894, -1.1791603e-07
  %v5967 = vmul.f32 %v5895, -1.1791603e-07
  %v5968 = vmul.f32 %v5896, -1.1791603e-07
  %v5969 = vmul.f32 %v5897, -1.1791603e-07
  %v5970 = vmul.f32 %v5898, -1.1791603e-07
  %v5971 = vmul.f32 %v5899, -1.1791603e-07
  %v5972 = vmul.f32 %v5900, -1.1791603e-07
  %v5973 = vmul.f32 %v5901, -1.1791603e-07
  %v5974 = vadd.f32 %v5966, 2.3547966e-05
  %v5975 = vadd.f32 %v5967, 2.3547966e-05
  %v5976 = vadd.f32 %v5968, 2.3547966e-05
  %v5977 = vadd.f32 %v5969, 2.3547966e-05
  %v5978 = vadd.f32 %v5970, 2.3547966e-05
  %v5979 = vadd.f32 %v5971, 2.3547966e-05
  %v5980 = vadd.f32 %v5972, 2.3547966e-05
  %v5981 = vadd.f32 %v5973, 2.3547966e-05
  %v5982 = vmul.f32 %v5974, %v5894
  %v5983 = vmul.f32 %v5975, %v5895
  %v5984 = vmul.f32 %v5976, %v5896
  %v5985 = vmul.f32 %v5977, %v5897
  %v5986 = vmul.f32 %v5978, %v5898
  %v5987 = vmul.f32 %v5979, %v5899
  %v5988 = vmul.f32 %v5980, %v5900
  %v5989 = vmul.f32 %v5981, %v5901
  %v5990 = vadd.f32 %v5982, 0.0010179626
  %v5991 = vadd.f32 %v5983, 0.0010179626
  %v5992 = vadd.f32 %v5984, 0.0010179626
  %v5993 = vadd.f32 %v5985, 0.0010179626
  %v5994 = vadd.f32 %v5986, 0.0010179626
  %v5995 = vadd.f32 %v5987, 0.0010179626
  %v5996 = vadd.f32 %v5988, 0.0010179626
  %v5997 = vadd.f32 %v5989, 0.0010179626
  %v5998 = vmul.f32 %v5990, %v5894
  %v5999 = vmul.f32 %v5991, %v5895
  %v6000 = vmul.f32 %v5992, %v5896
  %v6001 = vmul.f32 %v5993, %v5897
  %v6002 = vmul.f32 %v5994, %v5898
  %v6003 = vmul.f32 %v5995, %v5899
  %v6004 = vmul.f32 %v5996, %v5900
  %v6005 = vmul.f32 %v5997, %v5901
  %v6006 = vadd.f32 %v5998, 0.01407047
  %v6007 = vadd.f32 %v5999, 0.01407047
  %v6008 = vadd.f32 %v6000, 0.01407047
  %v6009 = vadd.f32 %v6001, 0.01407047
  %v6010 = vadd.f32 %v6002, 0.01407047
  %v6011 = vadd.f32 %v6003, 0.01407047
  %v6012 = vadd.f32 %v6004, 0.01407047
  %v6013 = vadd.f32 %v6005, 0.01407047
  %v6014 = vmul.f32 %v6006, %v5894
  %v6015 = vmul.f32 %v6007, %v5895
  %v6016 = vmul.f32 %v6008, %v5896
  %v6017 = vmul.f32 %v6009, %v5897
  %v6018 = vmul.f32 %v6010, %v5898
  %v6019 = vmul.f32 %v6011, %v5899
  %v6020 = vmul.f32 %v6012, %v5900
  %v6021 = vmul.f32 %v6013, %v5901
  %v6022 = vadd.f32 %v6014, 0.11098505
  %v6023 = vadd.f32 %v6015, 0.11098505
  %v6024 = vadd.f32 %v6016, 0.11098505
  %v6025 = vadd.f32 %v6017, 0.11098505
  %v6026 = vadd.f32 %v6018, 0.11098505
  %v6027 = vadd.f32 %v6019, 0.11098505
  %v6028 = vadd.f32 %v6020, 0.11098505
  %v6029 = vadd.f32 %v6021, 0.11098505
  %v6030 = vmul.f32 %v6022, %v5894
  %v6031 = vmul.f32 %v6023, %v5895
  %v6032 = vmul.f32 %v6024, %v5896
  %v6033 = vmul.f32 %v6025, %v5897
  %v6034 = vmul.f32 %v6026, %v5898
  %v6035 = vmul.f32 %v6027, %v5899
  %v6036 = vmul.f32 %v6028, %v5900
  %v6037 = vmul.f32 %v6029, %v5901
  %v6038 = vadd.f32 %v6030, 0.49746925
  %v6039 = vadd.f32 %v6031, 0.49746925
  %v6040 = vadd.f32 %v6032, 0.49746925
  %v6041 = vadd.f32 %v6033, 0.49746925
  %v6042 = vadd.f32 %v6034, 0.49746925
  %v6043 = vadd.f32 %v6035, 0.49746925
  %v6044 = vadd.f32 %v6036, 0.49746925
  %v6045 = vadd.f32 %v6037, 0.49746925
  %v6046 = vmul.f32 %v6038, %v5894
  %v6047 = vmul.f32 %v6039, %v5895
  %v6048 = vmul.f32 %v6040, %v5896
  %v6049 = vmul.f32 %v6041, %v5897
  %v6050 = vmul.f32 %v6042, %v5898
  %v6051 = vmul.f32 %v6043, %v5899
  %v6052 = vmul.f32 %v6044, %v5900
  %v6053 = vmul.f32 %v6045, %v5901
  %v6054 = vadd.f32 %v6046, 1.0
  %v6055 = vadd.f32 %v6047, 1.0
  %v6056 = vadd.f32 %v6048, 1.0
  %v6057 = vadd.f32 %v6049, 1.0
  %v6058 = vadd.f32 %v6050, 1.0
  %v6059 = vadd.f32 %v6051, 1.0
  %v6060 = vadd.f32 %v6052, 1.0
  %v6061 = vadd.f32 %v6053, 1.0
  %v6062 = vmul.f32 %v5886, %v5958
  %v6063 = vmul.f32 %v5887, %v5959
  %v6064 = vmul.f32 %v5888, %v5960
  %v6065 = vmul.f32 %v5889, %v5961
  %v6066 = vmul.f32 %v5890, %v5962
  %v6067 = vmul.f32 %v5891, %v5963
  %v6068 = vmul.f32 %v5892, %v5964
  %v6069 = vmul.f32 %v5893, %v5965
  %v6070 = vrcp.pop %v6054
  %v6071 = vmul.f32 %v6062, %v6070
  %v6072 = vrcp.pop %v6055
  %v6073 = vmul.f32 %v6063, %v6072
  %v6074 = vrcp.pop %v6056
  %v6075 = vmul.f32 %v6064, %v6074
  %v6076 = vrcp.pop %v6057
  %v6077 = vmul.f32 %v6065, %v6076
  %v6078 = vrcp.pop %v6058
  %v6079 = vmul.f32 %v6066, %v6078
  %v6080 = vrcp.pop %v6059
  %v6081 = vmul.f32 %v6067, %v6080
  %v6082 = vrcp.pop %v6060
  %v6083 = vmul.f32 %v6068, %v6082
  %v6084 = vrcp.pop %v6061
  %v6085 = vmul.f32 %v6069, %v6084
  %v6086 = vadd.f32 %v6071, 1.0
  %v6087 = vadd.f32 %v6073, 1.0
  %v6088 = vadd.f32 %v6075, 1.0
  %v6089 = vadd.f32 %v6077, 1.0
  %v6090 = vadd.f32 %v6079, 1.0
  %v6091 = vadd.f32 %v6081, 1.0
  %v6092 = vadd.f32 %v6083, 1.0
  %v6093 = vadd.f32 %v6085, 1.0
  %v6094 = vmul.f32 %v5862, %v6086
  %v6095 = vmul.f32 %v5863, %v6087
  %v6096 = vmul.f32 %v5864, %v6088
  %v6097 = vmul.f32 %v5865, %v6089
  %v6098 = vmul.f32 %v5866, %v6090
  %v6099 = vmul.f32 %v5867, %v6091
  %v6100 = vmul.f32 %v5868, %v6092
  %v6101 = vmul.f32 %v5869, %v6093
  %v6102 = vpack.c.bf16 %v6095, %v6094
  %v6103 = vpack.c.bf16 %v6097, %v6096
  %v6104 = vpack.c.bf16 %v6099, %v6098
  %v6105 = vpack.c.bf16 %v6101, %v6100
  %v6106 = vld [vmem:[%s12] sm:$0xf]
  %v6107 = vld [vmem:[%s12 + $0x4] sm:$0xf]
  %v6108 = vld [vmem:[%s13] sm:$0x1]
  %v6110 = vlaneseq
  %v6111 = vshrl.u32 %v6110, 7
  %v6112 = vsub.s32 0, %v6111
  %v6113 = vrot.slane %v6108, %v6112
  %v6117 = vunpack.c.l.b16 %v6106
  %v6118 = vunpack.c.l.b16 %v6107
  %v6119 = vpack.c.b16 %v6118, %v6117
  %v6122 = vsel %vm1860, %v6102, 0
  %v6125 = vsel %vm1860, %v6103, 0
  %v6128 = vsel %vm1860, %v6104, 0
  %v6131 = vsel %vm1860, %v6105, 0
  %6133 = vmatprep.subr.bf16.mxu0 0
  %6134 = vmatpush1.bf16.msra.mxu0 %v6119
  %6135 = vmatprep.subr.bf16.mxu0 0
  %6136 = vmatpush1.bf16.msra.mxu0 0
  %6137 = vmatprep.subr.bf16.mxu0 0
  %6138 = vmatpush1.bf16.msra.mxu0 0
  %6139 = vmatprep.subr.bf16.mxu0 0
  %6140 = vmatpush1.bf16.msra.mxu0 0
  %6141 = vmatprep.subr.bf16.mxu0 0
  %6142 = vmatpush1.bf16.msra.mxu0 0
  %6143 = vmatprep.subr.bf16.mxu0 0
  %6144 = vmatpush1.bf16.msra.mxu0 0
  %6145 = vmatprep.subr.bf16.mxu0 0
  %6146 = vmatpush1.bf16.msra.mxu0 0
  %6147 = vmatprep.subr.bf16.mxu0 0
  %6148 = vmatpush1.bf16.msra.mxu0 0
  %6149 = vmatprep.subr.bf16.mxu0 0
  %6150 = vmatpush1.bf16.msra.mxu0 0
  %6151 = vmatprep.subr.bf16.mxu0 0
  %6152 = vmatpush1.bf16.msra.mxu0 0
  %6153 = vmatprep.subr.bf16.mxu0 0
  %6154 = vmatpush1.bf16.msra.mxu0 0
  %6155 = vmatprep.subr.bf16.mxu0 0
  %6156 = vmatpush1.bf16.msra.mxu0 0
  %6157 = vmatprep.subr.bf16.mxu0 0
  %6158 = vmatpush1.bf16.msra.mxu0 0
  %6159 = vmatprep.subr.bf16.mxu0 0
  %6160 = vmatpush1.bf16.msra.mxu0 0
  %6161 = vmatprep.subr.bf16.mxu0 0
  %6162 = vmatpush1.bf16.msra.mxu0 0
  %6163 = vmatprep.subr.bf16.mxu0 0
  %6164 = vmatpush1.bf16.msra.mxu0 0
  %6165 = vmatprep.mubr.bf16.mxu0 0
  %6166 = vmatmul.mubr.bf16.gmra.mrb[0].mxu0 %v6122
  %v6167 = vpop.f32.mrb[0].mxu0
  %v6168 = vadd.f32 %v6113, %v6167
  %v6169 = vpop.f32.mrb[0].mxu0
  %v6170 = vpop.f32.mrb[0].mxu0
  %v6171 = vadd.f32 %v6113, %v6170
  %v6172 = vpop.f32.mrb[0].mxu0
  %6173 = vmatprep.mubr.bf16.mxu0 0
  %6174 = vmatmul.mubr.bf16.gmra.mrb[0].mxu0 %v6125
  %v6175 = vpop.f32.mrb[0].mxu0
  %v6176 = vadd.f32 %v6113, %v6175
  %v6177 = vpop.f32.mrb[0].mxu0
  %v6178 = vpop.f32.mrb[0].mxu0
  %v6179 = vadd.f32 %v6113, %v6178
  %v6180 = vpop.f32.mrb[0].mxu0
  %6181 = vmatprep.mubr.bf16.mxu0 0
  %6182 = vmatmul.mubr.bf16.gmra.mrb[0].mxu0 %v6128
  %v6183 = vpop.f32.mrb[0].mxu0
  %v6184 = vadd.f32 %v6113, %v6183
  %v6185 = vpop.f32.mrb[0].mxu0
  %v6186 = vpop.f32.mrb[0].mxu0
  %v6187 = vadd.f32 %v6113, %v6186
  %v6188 = vpop.f32.mrb[0].mxu0
  %6189 = vmatprep.mubr.bf16.mxu0 0
  %6190 = vmatmul.mubr.bf16.gmra.mrb[0].mxu0 %v6131
  %v6191 = vpop.f32.mrb[0].mxu0
  %v6192 = vadd.f32 %v6113, %v6191
  %v6193 = vpop.f32.mrb[0].mxu0
  %v6194 = vpop.f32.mrb[0].mxu0
  %v6195 = vadd.f32 %v6113, %v6194
  %v6196 = vpop.f32.mrb[0].mxu0
  %6197 = vdwg.mxu0
  %v6198 = vadd.f32 %v6168, %v5750
  %v6199 = vadd.f32 %v6171, %v5751
  %v6200 = vadd.f32 %v6176, %v5752
  %v6201 = vadd.f32 %v6179, %v5753
  %v6202 = vadd.f32 %v6184, %v5754
  %v6203 = vadd.f32 %v6187, %v5755
  %v6204 = vadd.f32 %v6192, %v5756
  %v6205 = vadd.f32 %v6195, %v5757
  %v6206 = vpack.c.bf16 %v6198, %v6198
  %v6207 = vpack.c.bf16 %v6199, %v6199
  %v6208 = vpack.c.bf16 %v6200, %v6200
  %v6209 = vpack.c.bf16 %v6201, %v6201
  %v6210 = vpack.c.bf16 %v6202, %v6202
  %v6211 = vpack.c.bf16 %v6203, %v6203
  %v6212 = vpack.c.bf16 %v6204, %v6204
  %v6213 = vpack.c.bf16 %v6205, %v6205
  %vm6214 = vcmask 257024
  %6215 = vst.msk [vmem:[%s14] sm:$0xf] %vm6214, %v6206
  %6216 = vst.msk [vmem:[%s14 + $0x4] sm:$0xf] %vm6214, %v6207
  %6217 = vst.msk [vmem:[%s14 + $0x8] sm:$0xf] %vm6214, %v6208
  %6218 = vst.msk [vmem:[%s14 + $0xc] sm:$0xf] %vm6214, %v6209
  %6219 = vst.msk [vmem:[%s14 + $0x10] sm:$0xf] %vm6214, %v6210
  %6220 = vst.msk [vmem:[%s14 + $0x14] sm:$0xf] %vm6214, %v6211
  %6221 = vst.msk [vmem:[%s14 + $0x18] sm:$0xf] %vm6214, %v6212
  %6222 = vst.msk [vmem:[%s14 + $0x1c] sm:$0xf] %vm6214, %v6213
  // Predicated region
  $region58: #{mamba4rec_forward.4} parent=0 // pred_check
    _
  $region59: #{mamba4rec_forward.4} parent=0 // pred_check_branch
    %6224 = sbr.rel (0) target = $region61
  $region60: #{mamba4rec_forward.4} parent=0 // pred_region
    _
  $region61: #{mamba4rec_forward.4} parent=0 // pred_fallthru
    _
  // Predicated region
  $region62: #{mamba4rec_forward.4} parent=0 // pred_check
    _
  $region63: #{mamba4rec_forward.4} parent=0 // pred_check_branch
    %6226 = sbr.rel (0) target = $region65
  $region64: #{mamba4rec_forward.4} parent=0 // pred_region
    _
  $region65: #{mamba4rec_forward.4} parent=0 // pred_fallthru
    _

</llo_original>
